<compile_context>
chip_gen: v6e
topology: v6e:2x2x1
jax: 0.10.0
libtpu: 0.0.40
codegen_flags: <defaults>
</compile_context>

<pallas_src>
import jax
import jax.numpy as jnp
from jax.experimental import pallas as pl
from jax.experimental.pallas import tpu as pltpu


def tsmixer_kernel(x_ref,
                   ln1w_ref, ln1b_ref, w1_ref, b1_ref, w2_ref, b2_ref,
                   ln2w_ref, ln2b_ref, w3_ref, b3_ref, w4_ref, b4_ref,
                   o_ref):
    x = x_ref[...].astype(jnp.float32)

    def mix(inp, lnw_ref, lnb_ref, wa_ref, ba_ref, wb_ref, bb_ref):
        lnw = lnw_ref[...].astype(jnp.float32)
        lnb = lnb_ref[...].astype(jnp.float32)
        ba = ba_ref[...].astype(jnp.float32)
        bb = bb_ref[...].astype(jnp.float32)
        wa = wa_ref[...]          # native dtype (f32 or bf16) -> MXU directly
        wb = wb_ref[...]

        # LayerNorm over last dim (eps=1e-5, elementwise affine).
        # One-pass statistics: var = E[x^2] - mean^2 (one VPU pass, one
        # XLU-reduction pair instead of two full passes).
        inv_d = 1.0 / inp.shape[-1]
        s1 = jnp.sum(inp, axis=-1, keepdims=True)
        s2 = jnp.sum(inp * inp, axis=-1, keepdims=True)
        mean = s1 * inv_d
        var = jnp.maximum(s2 * inv_d - mean * mean, 0.0)
        xn = (inp - mean) * jax.lax.rsqrt(var + 1e-5)
        xn = xn * lnw + lnb

        # Linear(D -> F) + ReLU.  LHS cast to the weights' dtype (bf16 weights
        # -> bf16 LHS, MXU-native rate); accumulation stays f32.
        h = jnp.dot(xn.astype(wa.dtype), wa,
                    preferred_element_type=jnp.float32) + ba
        h = jnp.maximum(h, 0.0)
        # Dropout: identity (inference).
        # Linear(F -> D).
        y = jnp.dot(h.astype(wb.dtype), wb,
                    preferred_element_type=jnp.float32) + bb
        # Dropout: identity (inference).  Residual add.
        return inp + y

    x1 = mix(x, ln1w_ref, ln1b_ref, w1_ref, b1_ref, w2_ref, b2_ref)
    x2 = mix(x1, ln2w_ref, ln2b_ref, w3_ref, b3_ref, w4_ref, b4_ref)
    o_ref[...] = x2.astype(o_ref.dtype)


def _vmem_config():
    """One generation-aware VMEM number for both the tile chooser and the
    compiler limit.  v5e/v6e: 128 MiB physical VMEM, v7x: 64 MiB per TC."""
    cap = None
    try:
        info = pltpu.get_tpu_info()
        cap = getattr(info, "vmem_capacity_bytes", None)
    except Exception:
        cap = None
    if not cap:
        cap = 64 * 2**20                                   # conservative (v7x)
    headroom = max(8 * 2**20, cap // 8)
    limit = min(cap - headroom, 100 * 2**20)               # compiler scoped limit
    budget = max(16 * 2**20, limit - 8 * 2**20)            # chooser budget
    # Small-VMEM parts (v7x) have 2 TensorCores: keep >=4 grid steps so the
    # "parallel" row axis feeds both cores; single-TC chips only need >=2.
    min_steps = 4 if cap <= 96 * 2**20 else 2
    return budget, limit, min_steps


def _choose_row_tile(rows, D, F, x_itemsize, w_itemsize, target, budget_bytes,
                     min_steps):
    """Largest sublane-aligned row tile that fits the VMEM budget, keeps at
    least `min_steps` grid steps, and (preferably) divides `rows` exactly so
    the wrapper needs no pad / slice HBM passes."""
    pack = max(8, 32 // x_itemsize)            # f32 -> 8, bf16 -> 16, int8 -> 32
    min_steps = min(min_steps, max(1, rows // pack))

    def vmem_estimate(rt):
        io = 2 * 2 * rt * D * x_itemsize                     # x + out, double-buffered
        w = 2 * (2 * D * F + 2 * D + 2 * F) * w_itemsize     # weights, single-buffered
        ln = 2 * 4 * D * 4                                   # f32 LN params + biases
        mid = 4 * rt * (F + 4 * D)                           # f32 intermediates (rough)
        return io + w + ln + mid

    target = max(pack, min(target, rows))
    rt0 = max(pack, (target // pack) * pack)

    # Preferred: exact divisor of rows -> no jnp.pad / out[:rows] slice.
    if rows % pack == 0:
        rt = rt0
        while rt >= pack:
            if (rows % rt == 0 and rows // rt >= min_steps
                    and vmem_estimate(rt) <= budget_bytes):
                return rt, False
            rt -= pack

    # Fallback: ragged tail, pad rows up to a multiple of rt.
    rt = rt0
    while rt > pack and (vmem_estimate(rt) > budget_bytes
                         or pl.cdiv(rows, rt) < min_steps):
        rt = max(pack, ((rt // 2) // pack) * pack)
    return rt, True


def tsmixer_block(x, params, *, row_tile=2048):
    """x: (batch, seq, input_dim), f32 or bf16 (bf16 halves streamed HBM bytes;
    output dtype follows x).  params: dict of weights (see init_params).
    Inference semantics (dropout == identity)."""
    B, S, D = x.shape
    F = params["w1"].shape[1]
    rows = B * S

    budget, vmem_limit, min_steps = _vmem_config()
    rt, _ = _choose_row_tile(rows, D, F,
                             x.dtype.itemsize, params["w1"].dtype.itemsize,
                             row_tile, budget, min_steps)

    x2d = x.reshape(rows, D)
    rows_pad = pl.cdiv(rows, rt) * rt
    if rows_pad != rows:
        # TODO(synk): ragged tail costs an extra pad + slice HBM pass; only hit
        # when no sublane-aligned divisor of rows fits the VMEM budget.
        x2d = jnp.pad(x2d, ((0, rows_pad - rows), (0, 0)))

    row_spec = pl.BlockSpec((rt, D), lambda i: (i, 0))
    args = (x2d,
            params["ln1_w"], params["ln1_b"], params["w1"], params["b1"],
            params["w2"], params["b2"],
            params["ln2_w"], params["ln2_b"], params["w3"], params["b3"],
            params["w4"], params["b4"])

    def run(single_buffer_weights):
        if single_buffer_weights:
            def full(shape):
                # Grid-invariant (index_map constant): fetched once, so a
                # single VMEM buffer suffices -> halves resident-weight VMEM.
                return pl.BlockSpec(shape, lambda i: (0, 0),
                                    pipeline_mode=pl.Buffered(1))
        else:
            def full(shape):
                return pl.BlockSpec(shape, lambda i: (0, 0))

        in_specs = [
            row_spec,
            full((1, D)), full((1, D)),   # ln1 weight, bias
            full((D, F)), full((1, F)),   # linear1
            full((F, D)), full((1, D)),   # linear2
            full((1, D)), full((1, D)),   # ln2 weight, bias
            full((D, F)), full((1, F)),   # linear3
            full((F, D)), full((1, D)),   # linear4
        ]
        return pl.pallas_call(
            tsmixer_kernel,
            out_shape=jax.ShapeDtypeStruct((rows_pad, D), x.dtype),
            grid_spec=pltpu.PrefetchScalarGridSpec(
                num_scalar_prefetch=0,
                grid=(rows_pad // rt,),
                in_specs=in_specs,
                out_specs=row_spec,
            ),
            compiler_params=pltpu.CompilerParams(
                dimension_semantics=("parallel",),
                vmem_limit_bytes=int(vmem_limit),
            ),
        )(*args)

    try:
        out = run(True)
    except Exception:
        # This JAX build rejected single-buffered (Buffered(1)) weight specs;
        # fall back to default double-buffered specs.
        out = run(False)

    if rows_pad != rows:
        out = out[:rows]
    return out.reshape(B, S, D)


def init_params(key, input_dim, ff_dim, dtype=jnp.float32):
    """PyTorch-default-style init.  LayerNorm: weight=1, bias=0.
       Linear: U(-1/sqrt(fan_in), 1/sqrt(fan_in)), stored as (in, out)."""
    ks = jax.random.split(key, 8)
    d_bound = 1.0 / jnp.sqrt(input_dim)
    f_bound = 1.0 / jnp.sqrt(ff_dim)
    u = lambda k, shape, b: jax.random.uniform(k, shape, dtype, -b, b)
    return {
        "ln1_w": jnp.ones((1, input_dim), jnp.float32),
        "ln1_b": jnp.zeros((1, input_dim), jnp.float32),
        "w1": u(ks[0], (input_dim, ff_dim), d_bound),
        "b1": u(ks[1], (1, ff_dim), d_bound).astype(jnp.float32),
        "w2": u(ks[2], (ff_dim, input_dim), f_bound),
        "b2": u(ks[3], (1, input_dim), f_bound).astype(jnp.float32),
        "ln2_w": jnp.ones((1, input_dim), jnp.float32),
        "ln2_b": jnp.zeros((1, input_dim), jnp.float32),
        "w3": u(ks[4], (input_dim, ff_dim), d_bound),
        "b3": u(ks[5], (1, ff_dim), d_bound).astype(jnp.float32),
        "w4": u(ks[6], (ff_dim, input_dim), f_bound),
        "b4": u(ks[7], (1, input_dim), f_bound).astype(jnp.float32),
    }


def tsmixer_ref(x, p):
    """Pure-JAX reference (eval-mode dropout == identity), f32 math."""
    def mix(inp, lnw, lnb, wa, ba, wb, bb):
        mean = jnp.mean(inp, axis=-1, keepdims=True)
        var = jnp.mean((inp - mean) ** 2, axis=-1, keepdims=True)
        xn = (inp - mean) / jnp.sqrt(var + 1e-5) * lnw[0] + lnb[0]
        h = jnp.maximum(xn @ wa.astype(jnp.float32) + ba[0], 0.0)
        return inp + (h @ wb.astype(jnp.float32) + bb[0])

    x = mix(x, p["ln1_w"], p["ln1_b"], p["w1"], p["b1"], p["w2"], p["b2"])
    x = mix(x, p["ln2_w"], p["ln2_b"], p["w3"], p["b3"], p["w4"], p["b4"])
    return x


if __name__ == "__main__":
    # Lane-dense small demo: D multiple of 128, enough rows for >=2 grid steps.
    B, S, D, F = 4, 256, 128, 256
    key = jax.random.PRNGKey(0)
    kx, kp = jax.random.split(key)
    x = jax.random.normal(kx, (B, S, D), jnp.float32)
    params = init_params(kp, D, F)

    out = jax.block_until_ready(tsmixer_block(x, params))
    ref = tsmixer_ref(x, params)
    assert out.shape == (B, S, D)
    assert jnp.allclose(out, ref, atol=1e-3, rtol=1e-3), "f32 mismatch vs reference"

    # bf16 activation I/O + bf16 matmul weights: halves streamed HBM bytes
    # (this kernel is HBM-bound at these dims) and hits the MXU bf16 rate.
    # LayerNorm / bias math and matmul accumulation remain f32 in-kernel.
    params_bf16 = dict(params)
    for k in ("w1", "w2", "w3", "w4"):
        params_bf16[k] = params[k].astype(jnp.bfloat16)
    x_bf16 = x.astype(jnp.bfloat16)
    out_bf16 = jax.block_until_ready(tsmixer_block(x_bf16, params_bf16))
    assert out_bf16.dtype == jnp.bfloat16
    ref_bf16 = tsmixer_ref(x_bf16.astype(jnp.float32), params_bf16)
    assert jnp.allclose(out_bf16.astype(jnp.float32), ref_bf16,
                        atol=1e-1, rtol=1e-1), "bf16 mismatch vs reference"

    print("KERNEL_OK")
</pallas_src>

<mosaic_0001>
module attributes {stable_mosaic.version = 11 : i64} {
  func.func @tsmixer_kernel(%arg0: i32, %arg1: memref<256x128xf32, #tpu.memory_space<vmem>>, %arg2: memref<1x128xf32, #tpu.memory_space<vmem>>, %arg3: memref<1x128xf32, #tpu.memory_space<vmem>>, %arg4: memref<128x256xf32, #tpu.memory_space<vmem>>, %arg5: memref<1x256xf32, #tpu.memory_space<vmem>>, %arg6: memref<256x128xf32, #tpu.memory_space<vmem>>, %arg7: memref<1x128xf32, #tpu.memory_space<vmem>>, %arg8: memref<1x128xf32, #tpu.memory_space<vmem>>, %arg9: memref<1x128xf32, #tpu.memory_space<vmem>>, %arg10: memref<128x256xf32, #tpu.memory_space<vmem>>, %arg11: memref<1x256xf32, #tpu.memory_space<vmem>>, %arg12: memref<256x128xf32, #tpu.memory_space<vmem>>, %arg13: memref<1x128xf32, #tpu.memory_space<vmem>>, %arg14: memref<256x128xf32, #tpu.memory_space<vmem>>) attributes {dimension_semantics = [#tpu.dimension_semantics<parallel>], iteration_bounds = array<i64: 4>, scalar_prefetch = 0 : i64, scratch_operands = 0 : i64, tpu.core_type = #tpu.core_type<tc>, window_params = [{transform_indices = @transform_0, window_bounds = array<i64: 256, 128>}, {pipeline_mode = #tpu.pipeline_mode<synchronous>, transform_indices = @transform_1, window_bounds = array<i64: 1, 128>}, {pipeline_mode = #tpu.pipeline_mode<synchronous>, transform_indices = @transform_2, window_bounds = array<i64: 1, 128>}, {pipeline_mode = #tpu.pipeline_mode<synchronous>, transform_indices = @transform_3, window_bounds = array<i64: 128, 256>}, {pipeline_mode = #tpu.pipeline_mode<synchronous>, transform_indices = @transform_4, window_bounds = array<i64: 1, 256>}, {pipeline_mode = #tpu.pipeline_mode<synchronous>, transform_indices = @transform_5, window_bounds = array<i64: 256, 128>}, {pipeline_mode = #tpu.pipeline_mode<synchronous>, transform_indices = @transform_6, window_bounds = array<i64: 1, 128>}, {pipeline_mode = #tpu.pipeline_mode<synchronous>, transform_indices = @transform_7, window_bounds = array<i64: 1, 128>}, {pipeline_mode = #tpu.pipeline_mode<synchronous>, transform_indices = @transform_8, window_bounds = array<i64: 1, 128>}, {pipeline_mode = #tpu.pipeline_mode<synchronous>, transform_indices = @transform_9, window_bounds = array<i64: 128, 256>}, {pipeline_mode = #tpu.pipeline_mode<synchronous>, transform_indices = @transform_10, window_bounds = array<i64: 1, 256>}, {pipeline_mode = #tpu.pipeline_mode<synchronous>, transform_indices = @transform_11, window_bounds = array<i64: 256, 128>}, {pipeline_mode = #tpu.pipeline_mode<synchronous>, transform_indices = @transform_12, window_bounds = array<i64: 1, 128>}, {transform_indices = @transform_13, window_bounds = array<i64: 256, 128>}]} {
    %c0 = arith.constant 0 : index
    %c0_0 = arith.constant 0 : index
    %0 = vector.load %arg1[%c0, %c0_0] : memref<256x128xf32, #tpu.memory_space<vmem>>, vector<256x128xf32>
    %c0_1 = arith.constant 0 : index
    %c0_2 = arith.constant 0 : index
    %1 = vector.load %arg2[%c0_1, %c0_2] : memref<1x128xf32, #tpu.memory_space<vmem>>, vector<1x128xf32>
    %c0_3 = arith.constant 0 : index
    %c0_4 = arith.constant 0 : index
    %2 = vector.load %arg3[%c0_3, %c0_4] : memref<1x128xf32, #tpu.memory_space<vmem>>, vector<1x128xf32>
    %c0_5 = arith.constant 0 : index
    %c0_6 = arith.constant 0 : index
    %3 = vector.load %arg5[%c0_5, %c0_6] : memref<1x256xf32, #tpu.memory_space<vmem>>, vector<1x256xf32>
    %c0_7 = arith.constant 0 : index
    %c0_8 = arith.constant 0 : index
    %4 = vector.load %arg7[%c0_7, %c0_8] : memref<1x128xf32, #tpu.memory_space<vmem>>, vector<1x128xf32>
    %c0_9 = arith.constant 0 : index
    %c0_10 = arith.constant 0 : index
    %5 = vector.load %arg4[%c0_9, %c0_10] : memref<128x256xf32, #tpu.memory_space<vmem>>, vector<128x256xf32>
    %c0_11 = arith.constant 0 : index
    %c0_12 = arith.constant 0 : index
    %6 = vector.load %arg6[%c0_11, %c0_12] : memref<256x128xf32, #tpu.memory_space<vmem>>, vector<256x128xf32>
    %cst = arith.constant dense<0.000000e+00> : vector<256xf32>
    %7 = vector.multi_reduction <add>, %0, %cst [1] : vector<256x128xf32> to vector<256xf32>
    %8 = vector.shape_cast %7 : vector<256xf32> to vector<256x1xf32>
    %9 = arith.mulf %0, %0 : vector<256x128xf32>
    %cst_13 = arith.constant dense<0.000000e+00> : vector<256xf32>
    %10 = vector.multi_reduction <add>, %9, %cst_13 [1] : vector<256x128xf32> to vector<256xf32>
    %11 = vector.shape_cast %10 : vector<256xf32> to vector<256x1xf32>
    %cst_14 = arith.constant 7.812500e-03 : f32
    %12 = vector.broadcast %cst_14 : f32 to vector<256x1xf32>
    %13 = arith.mulf %8, %12 : vector<256x1xf32>
    %cst_15 = arith.constant 7.812500e-03 : f32
    %14 = vector.broadcast %cst_15 : f32 to vector<256x1xf32>
    %15 = arith.mulf %11, %14 : vector<256x1xf32>
    %16 = arith.mulf %13, %13 : vector<256x1xf32>
    %17 = arith.subf %15, %16 : vector<256x1xf32>
    %cst_16 = arith.constant 0.000000e+00 : f32
    %18 = vector.broadcast %cst_16 : f32 to vector<256x1xf32>
    %19 = arith.maximumf %17, %18 : vector<256x1xf32>
    %20 = vector.broadcast %13 : vector<256x1xf32> to vector<256x128xf32>
    %21 = arith.subf %0, %20 : vector<256x128xf32>
    %cst_17 = arith.constant 9.99999974E-6 : f32
    %22 = vector.broadcast %cst_17 : f32 to vector<256x1xf32>
    %23 = arith.addf %19, %22 : vector<256x1xf32>
    %24 = math.rsqrt %23 : vector<256x1xf32>
    %25 = vector.broadcast %24 : vector<256x1xf32> to vector<256x128xf32>
    %26 = arith.mulf %21, %25 : vector<256x128xf32>
    %27 = vector.broadcast %1 : vector<1x128xf32> to vector<256x128xf32>
    %28 = arith.mulf %26, %27 : vector<256x128xf32>
    %29 = vector.broadcast %2 : vector<1x128xf32> to vector<256x128xf32>
    %30 = arith.addf %28, %29 : vector<256x128xf32>
    %cst_18 = arith.constant dense<0.000000e+00> : vector<256x256xf32>
    %31 = tpu.matmul %30, %5, %cst_18 {dimension_numbers = #tpu.dot_dimension_numbers<[1], [0], [0], [1], [0, 0, 1, 1], [], []>} : vector<256x128xf32>, vector<128x256xf32>, vector<256x256xf32> -> vector<256x256xf32>
    %32 = vector.broadcast %3 : vector<1x256xf32> to vector<256x256xf32>
    %33 = arith.addf %31, %32 : vector<256x256xf32>
    %cst_19 = arith.constant 0.000000e+00 : f32
    %34 = vector.broadcast %cst_19 : f32 to vector<256x256xf32>
    %35 = arith.maximumf %33, %34 : vector<256x256xf32>
    %cst_20 = arith.constant dense<0.000000e+00> : vector<256x128xf32>
    %36 = tpu.matmul %35, %6, %cst_20 {dimension_numbers = #tpu.dot_dimension_numbers<[1], [0], [0], [1], [0, 0, 1, 1], [], []>} : vector<256x256xf32>, vector<256x128xf32>, vector<256x128xf32> -> vector<256x128xf32>
    %37 = vector.broadcast %4 : vector<1x128xf32> to vector<256x128xf32>
    %38 = arith.addf %36, %37 : vector<256x128xf32>
    %39 = arith.addf %0, %38 : vector<256x128xf32>
    %c0_21 = arith.constant 0 : index
    %c0_22 = arith.constant 0 : index
    %40 = vector.load %arg8[%c0_21, %c0_22] : memref<1x128xf32, #tpu.memory_space<vmem>>, vector<1x128xf32>
    %c0_23 = arith.constant 0 : index
    %c0_24 = arith.constant 0 : index
    %41 = vector.load %arg9[%c0_23, %c0_24] : memref<1x128xf32, #tpu.memory_space<vmem>>, vector<1x128xf32>
    %c0_25 = arith.constant 0 : index
    %c0_26 = arith.constant 0 : index
    %42 = vector.load %arg11[%c0_25, %c0_26] : memref<1x256xf32, #tpu.memory_space<vmem>>, vector<1x256xf32>
    %c0_27 = arith.constant 0 : index
    %c0_28 = arith.constant 0 : index
    %43 = vector.load %arg13[%c0_27, %c0_28] : memref<1x128xf32, #tpu.memory_space<vmem>>, vector<1x128xf32>
    %c0_29 = arith.constant 0 : index
    %c0_30 = arith.constant 0 : index
    %44 = vector.load %arg10[%c0_29, %c0_30] : memref<128x256xf32, #tpu.memory_space<vmem>>, vector<128x256xf32>
    %c0_31 = arith.constant 0 : index
    %c0_32 = arith.constant 0 : index
    %45 = vector.load %arg12[%c0_31, %c0_32] : memref<256x128xf32, #tpu.memory_space<vmem>>, vector<256x128xf32>
    %cst_33 = arith.constant dense<0.000000e+00> : vector<256xf32>
    %46 = vector.multi_reduction <add>, %39, %cst_33 [1] : vector<256x128xf32> to vector<256xf32>
    %47 = vector.shape_cast %46 : vector<256xf32> to vector<256x1xf32>
    %48 = arith.mulf %39, %39 : vector<256x128xf32>
    %cst_34 = arith.constant dense<0.000000e+00> : vector<256xf32>
    %49 = vector.multi_reduction <add>, %48, %cst_34 [1] : vector<256x128xf32> to vector<256xf32>
    %50 = vector.shape_cast %49 : vector<256xf32> to vector<256x1xf32>
    %cst_35 = arith.constant 7.812500e-03 : f32
    %51 = vector.broadcast %cst_35 : f32 to vector<256x1xf32>
    %52 = arith.mulf %47, %51 : vector<256x1xf32>
    %cst_36 = arith.constant 7.812500e-03 : f32
    %53 = vector.broadcast %cst_36 : f32 to vector<256x1xf32>
    %54 = arith.mulf %50, %53 : vector<256x1xf32>
    %55 = arith.mulf %52, %52 : vector<256x1xf32>
    %56 = arith.subf %54, %55 : vector<256x1xf32>
    %cst_37 = arith.constant 0.000000e+00 : f32
    %57 = vector.broadcast %cst_37 : f32 to vector<256x1xf32>
    %58 = arith.maximumf %56, %57 : vector<256x1xf32>
    %59 = vector.broadcast %52 : vector<256x1xf32> to vector<256x128xf32>
    %60 = arith.subf %39, %59 : vector<256x128xf32>
    %cst_38 = arith.constant 9.99999974E-6 : f32
    %61 = vector.broadcast %cst_38 : f32 to vector<256x1xf32>
    %62 = arith.addf %58, %61 : vector<256x1xf32>
    %63 = math.rsqrt %62 : vector<256x1xf32>
    %64 = vector.broadcast %63 : vector<256x1xf32> to vector<256x128xf32>
    %65 = arith.mulf %60, %64 : vector<256x128xf32>
    %66 = vector.broadcast %40 : vector<1x128xf32> to vector<256x128xf32>
    %67 = arith.mulf %65, %66 : vector<256x128xf32>
    %68 = vector.broadcast %41 : vector<1x128xf32> to vector<256x128xf32>
    %69 = arith.addf %67, %68 : vector<256x128xf32>
    %cst_39 = arith.constant dense<0.000000e+00> : vector<256x256xf32>
    %70 = tpu.matmul %69, %44, %cst_39 {dimension_numbers = #tpu.dot_dimension_numbers<[1], [0], [0], [1], [0, 0, 1, 1], [], []>} : vector<256x128xf32>, vector<128x256xf32>, vector<256x256xf32> -> vector<256x256xf32>
    %71 = vector.broadcast %42 : vector<1x256xf32> to vector<256x256xf32>
    %72 = arith.addf %70, %71 : vector<256x256xf32>
    %cst_40 = arith.constant 0.000000e+00 : f32
    %73 = vector.broadcast %cst_40 : f32 to vector<256x256xf32>
    %74 = arith.maximumf %72, %73 : vector<256x256xf32>
    %cst_41 = arith.constant dense<0.000000e+00> : vector<256x128xf32>
    %75 = tpu.matmul %74, %45, %cst_41 {dimension_numbers = #tpu.dot_dimension_numbers<[1], [0], [0], [1], [0, 0, 1, 1], [], []>} : vector<256x256xf32>, vector<256x128xf32>, vector<256x128xf32> -> vector<256x128xf32>
    %76 = vector.broadcast %43 : vector<1x128xf32> to vector<256x128xf32>
    %77 = arith.addf %75, %76 : vector<256x128xf32>
    %78 = arith.addf %39, %77 : vector<256x128xf32>
    %c0_42 = arith.constant 0 : index
    %c0_43 = arith.constant 0 : index
    %79 = vector.load %arg14[%c0_42, %c0_43] : memref<256x128xf32, #tpu.memory_space<vmem>>, vector<256x128xf32>
    tpu.vector_store %arg14[%c0_42, %c0_43], %78 {strides = array<i32>} : memref<256x128xf32, #tpu.memory_space<vmem>>, vector<256x128xf32>,
    return
  }
  func.func @transform_0(%arg0: i32) -> (i32, i32) {
    %c0_i32 = arith.constant 0 : i32
    %c0_i32_0 = arith.constant 0 : i32
    return %arg0, %c0_i32 : i32, i32
  }
  func.func @transform_1(%arg0: i32) -> (i32, i32) {
    %c0_i32 = arith.constant 0 : i32
    %c0_i32_0 = arith.constant 0 : i32
    %c0_i32_1 = arith.constant 0 : i32
    return %c0_i32, %c0_i32_0 : i32, i32
  }
  func.func @transform_2(%arg0: i32) -> (i32, i32) {
    %c0_i32 = arith.constant 0 : i32
    %c0_i32_0 = arith.constant 0 : i32
    %c0_i32_1 = arith.constant 0 : i32
    return %c0_i32, %c0_i32_0 : i32, i32
  }
  func.func @transform_3(%arg0: i32) -> (i32, i32) {
    %c0_i32 = arith.constant 0 : i32
    %c0_i32_0 = arith.constant 0 : i32
    %c0_i32_1 = arith.constant 0 : i32
    return %c0_i32, %c0_i32_0 : i32, i32
  }
  func.func @transform_4(%arg0: i32) -> (i32, i32) {
    %c0_i32 = arith.constant 0 : i32
    %c0_i32_0 = arith.constant 0 : i32
    %c0_i32_1 = arith.constant 0 : i32
    return %c0_i32, %c0_i32_0 : i32, i32
  }
  func.func @transform_5(%arg0: i32) -> (i32, i32) {
    %c0_i32 = arith.constant 0 : i32
    %c0_i32_0 = arith.constant 0 : i32
    %c0_i32_1 = arith.constant 0 : i32
    return %c0_i32, %c0_i32_0 : i32, i32
  }
  func.func @transform_6(%arg0: i32) -> (i32, i32) {
    %c0_i32 = arith.constant 0 : i32
    %c0_i32_0 = arith.constant 0 : i32
    %c0_i32_1 = arith.constant 0 : i32
    return %c0_i32, %c0_i32_0 : i32, i32
  }
  func.func @transform_7(%arg0: i32) -> (i32, i32) {
    %c0_i32 = arith.constant 0 : i32
    %c0_i32_0 = arith.constant 0 : i32
    %c0_i32_1 = arith.constant 0 : i32
    return %c0_i32, %c0_i32_0 : i32, i32
  }
  func.func @transform_8(%arg0: i32) -> (i32, i32) {
    %c0_i32 = arith.constant 0 : i32
    %c0_i32_0 = arith.constant 0 : i32
    %c0_i32_1 = arith.constant 0 : i32
    return %c0_i32, %c0_i32_0 : i32, i32
  }
  func.func @transform_9(%arg0: i32) -> (i32, i32) {
    %c0_i32 = arith.constant 0 : i32
    %c0_i32_0 = arith.constant 0 : i32
    %c0_i32_1 = arith.constant 0 : i32
    return %c0_i32, %c0_i32_0 : i32, i32
  }
  func.func @transform_10(%arg0: i32) -> (i32, i32) {
    %c0_i32 = arith.constant 0 : i32
    %c0_i32_0 = arith.constant 0 : i32
    %c0_i32_1 = arith.constant 0 : i32
    return %c0_i32, %c0_i32_0 : i32, i32
  }
  func.func @transform_11(%arg0: i32) -> (i32, i32) {
    %c0_i32 = arith.constant 0 : i32
    %c0_i32_0 = arith.constant 0 : i32
    %c0_i32_1 = arith.constant 0 : i32
    return %c0_i32, %c0_i32_0 : i32, i32
  }
  func.func @transform_12(%arg0: i32) -> (i32, i32) {
    %c0_i32 = arith.constant 0 : i32
    %c0_i32_0 = arith.constant 0 : i32
    %c0_i32_1 = arith.constant 0 : i32
    return %c0_i32, %c0_i32_0 : i32, i32
  }
  func.func @transform_13(%arg0: i32) -> (i32, i32) {
    %c0_i32 = arith.constant 0 : i32
    %c0_i32_0 = arith.constant 0 : i32
    return %arg0, %c0_i32 : i32, i32
  }
}

module attributes {stable_mosaic.version = 11 : i64} {
  func.func @tsmixer_kernel(%arg0: i32, %arg1: memref<256x128xf32, #tpu.memory_space<vmem>>, %arg2: memref<1x128xf32, #tpu.memory_space<vmem>>, %arg3: memref<1x128xf32, #tpu.memory_space<vmem>>, %arg4: memref<128x256xf32, #tpu.memory_space<vmem>>, %arg5: memref<1x256xf32, #tpu.memory_space<vmem>>, %arg6: memref<256x128xf32, #tpu.memory_space<vmem>>, %arg7: memref<1x128xf32, #tpu.memory_space<vmem>>, %arg8: memref<1x128xf32, #tpu.memory_space<vmem>>, %arg9: memref<1x128xf32, #tpu.memory_space<vmem>>, %arg10: memref<128x256xf32, #tpu.memory_space<vmem>>, %arg11: memref<1x256xf32, #tpu.memory_space<vmem>>, %arg12: memref<256x128xf32, #tpu.memory_space<vmem>>, %arg13: memref<1x128xf32, #tpu.memory_space<vmem>>, %arg14: memref<256x128xf32, #tpu.memory_space<vmem>>) attributes {dimension_semantics = [#tpu.dimension_semantics<parallel>], iteration_bounds = array<i64: 4>, scalar_prefetch = 0 : i64, scratch_operands = 0 : i64, tpu.core_type = #tpu.core_type<tc>, window_params = [{transform_indices = @transform_0, window_bounds = array<i64: 256, 128>}, {pipeline_mode = #tpu.pipeline_mode<synchronous>, transform_indices = @transform_1, window_bounds = array<i64: 1, 128>}, {pipeline_mode = #tpu.pipeline_mode<synchronous>, transform_indices = @transform_2, window_bounds = array<i64: 1, 128>}, {pipeline_mode = #tpu.pipeline_mode<synchronous>, transform_indices = @transform_3, window_bounds = array<i64: 128, 256>}, {pipeline_mode = #tpu.pipeline_mode<synchronous>, transform_indices = @transform_4, window_bounds = array<i64: 1, 256>}, {pipeline_mode = #tpu.pipeline_mode<synchronous>, transform_indices = @transform_5, window_bounds = array<i64: 256, 128>}, {pipeline_mode = #tpu.pipeline_mode<synchronous>, transform_indices = @transform_6, window_bounds = array<i64: 1, 128>}, {pipeline_mode = #tpu.pipeline_mode<synchronous>, transform_indices = @transform_7, window_bounds = array<i64: 1, 128>}, {pipeline_mode = #tpu.pipeline_mode<synchronous>, transform_indices = @transform_8, window_bounds = array<i64: 1, 128>}, {pipeline_mode = #tpu.pipeline_mode<synchronous>, transform_indices = @transform_9, window_bounds = array<i64: 128, 256>}, {pipeline_mode = #tpu.pipeline_mode<synchronous>, transform_indices = @transform_10, window_bounds = array<i64: 1, 256>}, {pipeline_mode = #tpu.pipeline_mode<synchronous>, transform_indices = @transform_11, window_bounds = array<i64: 256, 128>}, {pipeline_mode = #tpu.pipeline_mode<synchronous>, transform_indices = @transform_12, window_bounds = array<i64: 1, 128>}, {transform_indices = @transform_13, window_bounds = array<i64: 256, 128>}]} {
    %c0 = arith.constant 0 : index
    %c0_0 = arith.constant 0 : index
    %0 = vector.load %arg1[%c0, %c0_0] : memref<256x128xf32, #tpu.memory_space<vmem>>, vector<256x128xf32>
    %c0_1 = arith.constant 0 : index
    %c0_2 = arith.constant 0 : index
    %1 = vector.load %arg2[%c0_1, %c0_2] : memref<1x128xf32, #tpu.memory_space<vmem>>, vector<1x128xf32>
    %c0_3 = arith.constant 0 : index
    %c0_4 = arith.constant 0 : index
    %2 = vector.load %arg3[%c0_3, %c0_4] : memref<1x128xf32, #tpu.memory_space<vmem>>, vector<1x128xf32>
    %c0_5 = arith.constant 0 : index
    %c0_6 = arith.constant 0 : index
    %3 = vector.load %arg5[%c0_5, %c0_6] : memref<1x256xf32, #tpu.memory_space<vmem>>, vector<1x256xf32>
    %c0_7 = arith.constant 0 : index
    %c0_8 = arith.constant 0 : index
    %4 = vector.load %arg7[%c0_7, %c0_8] : memref<1x128xf32, #tpu.memory_space<vmem>>, vector<1x128xf32>
    %c0_9 = arith.constant 0 : index
    %c0_10 = arith.constant 0 : index
    %5 = vector.load %arg4[%c0_9, %c0_10] : memref<128x256xf32, #tpu.memory_space<vmem>>, vector<128x256xf32>
    %c0_11 = arith.constant 0 : index
    %c0_12 = arith.constant 0 : index
    %6 = vector.load %arg6[%c0_11, %c0_12] : memref<256x128xf32, #tpu.memory_space<vmem>>, vector<256x128xf32>
    %cst = arith.constant dense<0.000000e+00> : vector<256xf32>
    %7 = vector.multi_reduction <add>, %0, %cst [1] : vector<256x128xf32> to vector<256xf32>
    %8 = vector.shape_cast %7 : vector<256xf32> to vector<256x1xf32>
    %9 = arith.mulf %0, %0 : vector<256x128xf32>
    %cst_13 = arith.constant dense<0.000000e+00> : vector<256xf32>
    %10 = vector.multi_reduction <add>, %9, %cst_13 [1] : vector<256x128xf32> to vector<256xf32>
    %11 = vector.shape_cast %10 : vector<256xf32> to vector<256x1xf32>
    %cst_14 = arith.constant 7.812500e-03 : f32
    %12 = vector.broadcast %cst_14 : f32 to vector<256x1xf32>
    %13 = arith.mulf %8, %12 : vector<256x1xf32>
    %cst_15 = arith.constant 7.812500e-03 : f32
    %14 = vector.broadcast %cst_15 : f32 to vector<256x1xf32>
    %15 = arith.mulf %11, %14 : vector<256x1xf32>
    %16 = arith.mulf %13, %13 : vector<256x1xf32>
    %17 = arith.subf %15, %16 : vector<256x1xf32>
    %cst_16 = arith.constant 0.000000e+00 : f32
    %18 = vector.broadcast %cst_16 : f32 to vector<256x1xf32>
    %19 = arith.maximumf %17, %18 : vector<256x1xf32>
    %20 = vector.broadcast %13 : vector<256x1xf32> to vector<256x128xf32>
    %21 = arith.subf %0, %20 : vector<256x128xf32>
    %cst_17 = arith.constant 9.99999974E-6 : f32
    %22 = vector.broadcast %cst_17 : f32 to vector<256x1xf32>
    %23 = arith.addf %19, %22 : vector<256x1xf32>
    %24 = math.rsqrt %23 : vector<256x1xf32>
    %25 = vector.broadcast %24 : vector<256x1xf32> to vector<256x128xf32>
    %26 = arith.mulf %21, %25 : vector<256x128xf32>
    %27 = vector.broadcast %1 : vector<1x128xf32> to vector<256x128xf32>
    %28 = arith.mulf %26, %27 : vector<256x128xf32>
    %29 = vector.broadcast %2 : vector<1x128xf32> to vector<256x128xf32>
    %30 = arith.addf %28, %29 : vector<256x128xf32>
    %cst_18 = arith.constant dense<0.000000e+00> : vector<256x256xf32>
    %31 = tpu.matmul %30, %5, %cst_18 {dimension_numbers = #tpu.dot_dimension_numbers<[1], [0], [0], [1], [0, 0, 1, 1], [], []>} : vector<256x128xf32>, vector<128x256xf32>, vector<256x256xf32> -> vector<256x256xf32>
    %32 = vector.broadcast %3 : vector<1x256xf32> to vector<256x256xf32>
    %33 = arith.addf %31, %32 : vector<256x256xf32>
    %cst_19 = arith.constant 0.000000e+00 : f32
    %34 = vector.broadcast %cst_19 : f32 to vector<256x256xf32>
    %35 = arith.maximumf %33, %34 : vector<256x256xf32>
    %cst_20 = arith.constant dense<0.000000e+00> : vector<256x128xf32>
    %36 = tpu.matmul %35, %6, %cst_20 {dimension_numbers = #tpu.dot_dimension_numbers<[1], [0], [0], [1], [0, 0, 1, 1], [], []>} : vector<256x256xf32>, vector<256x128xf32>, vector<256x128xf32> -> vector<256x128xf32>
    %37 = vector.broadcast %4 : vector<1x128xf32> to vector<256x128xf32>
    %38 = arith.addf %36, %37 : vector<256x128xf32>
    %39 = arith.addf %0, %38 : vector<256x128xf32>
    %c0_21 = arith.constant 0 : index
    %c0_22 = arith.constant 0 : index
    %40 = vector.load %arg8[%c0_21, %c0_22] : memref<1x128xf32, #tpu.memory_space<vmem>>, vector<1x128xf32>
    %c0_23 = arith.constant 0 : index
    %c0_24 = arith.constant 0 : index
    %41 = vector.load %arg9[%c0_23, %c0_24] : memref<1x128xf32, #tpu.memory_space<vmem>>, vector<1x128xf32>
    %c0_25 = arith.constant 0 : index
    %c0_26 = arith.constant 0 : index
    %42 = vector.load %arg11[%c0_25, %c0_26] : memref<1x256xf32, #tpu.memory_space<vmem>>, vector<1x256xf32>
    %c0_27 = arith.constant 0 : index
    %c0_28 = arith.constant 0 : index
    %43 = vector.load %arg13[%c0_27, %c0_28] : memref<1x128xf32, #tpu.memory_space<vmem>>, vector<1x128xf32>
    %c0_29 = arith.constant 0 : index
    %c0_30 = arith.constant 0 : index
    %44 = vector.load %arg10[%c0_29, %c0_30] : memref<128x256xf32, #tpu.memory_space<vmem>>, vector<128x256xf32>
    %c0_31 = arith.constant 0 : index
    %c0_32 = arith.constant 0 : index
    %45 = vector.load %arg12[%c0_31, %c0_32] : memref<256x128xf32, #tpu.memory_space<vmem>>, vector<256x128xf32>
    %cst_33 = arith.constant dense<0.000000e+00> : vector<256xf32>
    %46 = vector.multi_reduction <add>, %39, %cst_33 [1] : vector<256x128xf32> to vector<256xf32>
    %47 = vector.shape_cast %46 : vector<256xf32> to vector<256x1xf32>
    %48 = arith.mulf %39, %39 : vector<256x128xf32>
    %cst_34 = arith.constant dense<0.000000e+00> : vector<256xf32>
    %49 = vector.multi_reduction <add>, %48, %cst_34 [1] : vector<256x128xf32> to vector<256xf32>
    %50 = vector.shape_cast %49 : vector<256xf32> to vector<256x1xf32>
    %cst_35 = arith.constant 7.812500e-03 : f32
    %51 = vector.broadcast %cst_35 : f32 to vector<256x1xf32>
    %52 = arith.mulf %47, %51 : vector<256x1xf32>
    %cst_36 = arith.constant 7.812500e-03 : f32
    %53 = vector.broadcast %cst_36 : f32 to vector<256x1xf32>
    %54 = arith.mulf %50, %53 : vector<256x1xf32>
    %55 = arith.mulf %52, %52 : vector<256x1xf32>
    %56 = arith.subf %54, %55 : vector<256x1xf32>
    %cst_37 = arith.constant 0.000000e+00 : f32
    %57 = vector.broadcast %cst_37 : f32 to vector<256x1xf32>
    %58 = arith.maximumf %56, %57 : vector<256x1xf32>
    %59 = vector.broadcast %52 : vector<256x1xf32> to vector<256x128xf32>
    %60 = arith.subf %39, %59 : vector<256x128xf32>
    %cst_38 = arith.constant 9.99999974E-6 : f32
    %61 = vector.broadcast %cst_38 : f32 to vector<256x1xf32>
    %62 = arith.addf %58, %61 : vector<256x1xf32>
    %63 = math.rsqrt %62 : vector<256x1xf32>
    %64 = vector.broadcast %63 : vector<256x1xf32> to vector<256x128xf32>
    %65 = arith.mulf %60, %64 : vector<256x128xf32>
    %66 = vector.broadcast %40 : vector<1x128xf32> to vector<256x128xf32>
    %67 = arith.mulf %65, %66 : vector<256x128xf32>
    %68 = vector.broadcast %41 : vector<1x128xf32> to vector<256x128xf32>
    %69 = arith.addf %67, %68 : vector<256x128xf32>
    %cst_39 = arith.constant dense<0.000000e+00> : vector<256x256xf32>
    %70 = tpu.matmul %69, %44, %cst_39 {dimension_numbers = #tpu.dot_dimension_numbers<[1], [0], [0], [1], [0, 0, 1, 1], [], []>} : vector<256x128xf32>, vector<128x256xf32>, vector<256x256xf32> -> vector<256x256xf32>
    %71 = vector.broadcast %42 : vector<1x256xf32> to vector<256x256xf32>
    %72 = arith.addf %70, %71 : vector<256x256xf32>
    %cst_40 = arith.constant 0.000000e+00 : f32
    %73 = vector.broadcast %cst_40 : f32 to vector<256x256xf32>
    %74 = arith.maximumf %72, %73 : vector<256x256xf32>
    %cst_41 = arith.constant dense<0.000000e+00> : vector<256x128xf32>
    %75 = tpu.matmul %74, %45, %cst_41 {dimension_numbers = #tpu.dot_dimension_numbers<[1], [0], [0], [1], [0, 0, 1, 1], [], []>} : vector<256x256xf32>, vector<256x128xf32>, vector<256x128xf32> -> vector<256x128xf32>
    %76 = vector.broadcast %43 : vector<1x128xf32> to vector<256x128xf32>
    %77 = arith.addf %75, %76 : vector<256x128xf32>
    %78 = arith.addf %39, %77 : vector<256x128xf32>
    %c0_42 = arith.constant 0 : index
    %c0_43 = arith.constant 0 : index
    %79 = vector.load %arg14[%c0_42, %c0_43] : memref<256x128xf32, #tpu.memory_space<vmem>>, vector<256x128xf32>
    tpu.vector_store %arg14[%c0_42, %c0_43], %78 {strides = array<i32>} : memref<256x128xf32, #tpu.memory_space<vmem>>, vector<256x128xf32>,
    return
  }
  func.func @transform_0(%arg0: i32) -> (i32, i32) {
    %c0_i32 = arith.constant 0 : i32
    %c0_i32_0 = arith.constant 0 : i32
    return %arg0, %c0_i32 : i32, i32
  }
  func.func @transform_1(%arg0: i32) -> (i32, i32) {
    %c0_i32 = arith.constant 0 : i32
    %c0_i32_0 = arith.constant 0 : i32
    %c0_i32_1 = arith.constant 0 : i32
    return %c0_i32, %c0_i32_0 : i32, i32
  }
  func.func @transform_2(%arg0: i32) -> (i32, i32) {
    %c0_i32 = arith.constant 0 : i32
    %c0_i32_0 = arith.constant 0 : i32
    %c0_i32_1 = arith.constant 0 : i32
    return %c0_i32, %c0_i32_0 : i32, i32
  }
  func.func @transform_3(%arg0: i32) -> (i32, i32) {
    %c0_i32 = arith.constant 0 : i32
    %c0_i32_0 = arith.constant 0 : i32
    %c0_i32_1 = arith.constant 0 : i32
    return %c0_i32, %c0_i32_0 : i32, i32
  }
  func.func @transform_4(%arg0: i32) -> (i32, i32) {
    %c0_i32 = arith.constant 0 : i32
    %c0_i32_0 = arith.constant 0 : i32
    %c0_i32_1 = arith.constant 0 : i32
    return %c0_i32, %c0_i32_0 : i32, i32
  }
  func.func @transform_5(%arg0: i32) -> (i32, i32) {
    %c0_i32 = arith.constant 0 : i32
    %c0_i32_0 = arith.constant 0 : i32
    %c0_i32_1 = arith.constant 0 : i32
    return %c0_i32, %c0_i32_0 : i32, i32
  }
  func.func @transform_6(%arg0: i32) -> (i32, i32) {
    %c0_i32 = arith.constant 0 : i32
    %c0_i32_0 = arith.constant 0 : i32
    %c0_i32_1 = arith.constant 0 : i32
    return %c0_i32, %c0_i32_0 : i32, i32
  }
  func.func @transform_7(%arg0: i32) -> (i32, i32) {
    %c0_i32 = arith.constant 0 : i32
    %c0_i32_0 = arith.constant 0 : i32
    %c0_i32_1 = arith.constant 0 : i32
    return %c0_i32, %c0_i32_0 : i32, i32
  }
  func.func @transform_8(%arg0: i32) -> (i32, i32) {
    %c0_i32 = arith.constant 0 : i32
    %c0_i32_0 = arith.constant 0 : i32
    %c0_i32_1 = arith.constant 0 : i32
    return %c0_i32, %c0_i32_0 : i32, i32
  }
  func.func @transform_9(%arg0: i32) -> (i32, i32) {
    %c0_i32 = arith.constant 0 : i32
    %c0_i32_0 = arith.constant 0 : i32
    %c0_i32_1 = arith.constant 0 : i32
    return %c0_i32, %c0_i32_0 : i32, i32
  }
  func.func @transform_10(%arg0: i32) -> (i32, i32) {
    %c0_i32 = arith.constant 0 : i32
    %c0_i32_0 = arith.constant 0 : i32
    %c0_i32_1 = arith.constant 0 : i32
    return %c0_i32, %c0_i32_0 : i32, i32
  }
  func.func @transform_11(%arg0: i32) -> (i32, i32) {
    %c0_i32 = arith.constant 0 : i32
    %c0_i32_0 = arith.constant 0 : i32
    %c0_i32_1 = arith.constant 0 : i32
    return %c0_i32, %c0_i32_0 : i32, i32
  }
  func.func @transform_12(%arg0: i32) -> (i32, i32) {
    %c0_i32 = arith.constant 0 : i32
    %c0_i32_0 = arith.constant 0 : i32
    %c0_i32_1 = arith.constant 0 : i32
    return %c0_i32, %c0_i32_0 : i32, i32
  }
  func.func @transform_13(%arg0: i32) -> (i32, i32) {
    %c0_i32 = arith.constant 0 : i32
    %c0_i32_0 = arith.constant 0 : i32
    return %arg0, %c0_i32 : i32, i32
  }
}

</mosaic_0001>

<llo_original>
// kernel: tpu_custom_call.1
$region0: #{tpu_custom_call.1}
  #allocation0 [shape = 'u32[]', space=smem, size = 0x4, offset = 0x4, fixed_abs, tag = 'smem constant byte address 0x4 - core index']
  #allocation1 [shape = 'u32[144,128]{1,0:T(1,128)}', space=vmem, size = 0x12000, scoped, tag = 'internal scratch']
  %s0 = inlined_call_operand.hbm [shape: f32[1024,128], index: 0, kind: input, shape index: {}]
  %s1 = inlined_call_operand.vmem [shape: f32[1,128], index: 1, kind: input, shape index: {}]
  %s2 = inlined_call_operand.hbm [shape: f32[1,128], index: 2, kind: input, shape index: {}]
  %s3 = inlined_call_operand.hbm [shape: f32[128,256], index: 3, kind: input, shape index: {}]
  %s4 = inlined_call_operand.vmem [shape: f32[1,256], index: 4, kind: input, shape index: {}]
  %s5 = inlined_call_operand.hbm [shape: f32[256,128], index: 5, kind: input, shape index: {}]
  %s6 = inlined_call_operand.vmem [shape: f32[1,128], index: 6, kind: input, shape index: {}]
  %s7 = inlined_call_operand.vmem [shape: f32[1,128], index: 7, kind: input, shape index: {}]
  %s8 = inlined_call_operand.vmem [shape: f32[1,128], index: 8, kind: input, shape index: {}]
  %s9 = inlined_call_operand.hbm [shape: f32[128,256], index: 9, kind: input, shape index: {}]
  %s10 = inlined_call_operand.vmem [shape: f32[1,256], index: 10, kind: input, shape index: {}]
  %s11 = inlined_call_operand.hbm [shape: f32[256,128], index: 11, kind: input, shape index: {}]
  %s12 = inlined_call_operand.vmem [shape: f32[1,128], index: 12, kind: input, shape index: {}]
  %s13 = inlined_call_operand.hbm [shape: f32[1024,128], index: 13, kind: output, shape index: {}]
  %s14 = sld [smem:[#allocation0]]
  $region109: #{tpu_custom_call.1} parent=0
    _
  %s16 = ssub.s32 1, %s14
  %s17 = scalar_select 0, %s16, %s14
  $region1: #{tpu_custom_call.1} parent=0
    #allocation2 [shape = 'u8[262144]{0}', space=vmem, size = 0x40000, scoped, tag = 'input window, operand 0']
    #allocation3 [shape = 's32[2]{0}', space=sflag, size = 0x8, scoped, tag = 'scoped memory for tpu_custom_call.1']
    #allocation4 [shape = 's32[2]{0}', space=sflag, size = 0x8, scoped, tag = 'scoped memory for tpu_custom_call.1']
    #allocation5 [shape = 'u8[512]{0}', space=vmem, size = 0x400, scoped, tag = 'input window, operand 2, single buffered']
    #allocation6 [shape = 's32[1]{0}', space=sflag, size = 0x4, scoped, tag = 'scoped memory for tpu_custom_call.1']
    #allocation7 [shape = 'u8[131072]{0}', space=vmem, size = 0x20000, scoped, tag = 'input window, operand 3, single buffered']
    #allocation8 [shape = 'u8[131072]{0}', space=vmem, size = 0x20000, scoped, tag = 'input window, operand 5, single buffered']
    #allocation9 [shape = 's32[1]{0}', space=sflag, size = 0x4, scoped, tag = 'scoped memory for tpu_custom_call.1']
    #allocation10 [shape = 'u8[131072]{0}', space=vmem, size = 0x20000, scoped, tag = 'input window, operand 9, single buffered']
    #allocation11 [shape = 'u8[131072]{0}', space=vmem, size = 0x20000, scoped, tag = 'input window, operand 11, single buffered']
    #allocation12 [shape = 's32[1]{0}', space=sflag, size = 0x4, scoped, tag = 'scoped memory for tpu_custom_call.1']
    #allocation13 [shape = 'u8[262144]{0}', space=vmem, size = 0x40000, scoped, tag = 'output window, operand 0']
    %18 = vsyncpa [#allocation3], 0
    %s19 = scalar_lea.sflag [#allocation3], 1
    %20 = vsyncpa %s19, 0
    %21 = vsyncpa [#allocation6], 0
    %22 = vsyncpa [#allocation9], 0
    %23 = vsyncpa [#allocation12], 0
    %24 = vsyncpa [#allocation4], 0
    %s25 = scalar_lea.sflag [#allocation4], 1
    %26 = vsyncpa %s25, 0
    loop: start=0, step=1, limit=6
    $region2: #{tpu_custom_call.1} parent=1 // loop_pre_header
      _
    $region3: #{tpu_custom_call.1} parent=1 // loop_header
      %s28 = sphi 0, %s32
      %p29 = scmp.ge.s32.totalorder %s28, 6
      %s38 = sphi 0, %s40
      %s41 = sphi 0, %s38
      %s42 = sphi 0, %s41
      %s58 = sphi 0, %s42
      %s62 = sphi 0, %s62
      %s64 = sphi 0, %s62
      %s65 = sphi 0, %s64
      %s79 = sphi 0, %s65
      %s83 = sphi 0, %s83
      %s85 = sphi 0, %s83
      %s86 = sphi 0, %s85
      %s100 = sphi 0, %s86
      %s104 = sphi 0, %s104
      %s106 = sphi 0, %s104
      %s107 = sphi 0, %s106
      %s121 = sphi 0, %s107
      %s125 = sphi 0, %s125
      %s127 = sphi 0, %s125
      %s128 = sphi 0, %s127
      %s142 = sphi 0, %s128
      %s146 = sphi 0, %s146
      %s148 = sphi 0, %s146
      %s149 = sphi 0, %s148
      %s163 = sphi 0, %s149
      %s167 = sphi 0, %s167
      %s169 = sphi 0, %s167
      %s170 = sphi 0, %s169
      %s184 = sphi 0, %s170
      %s188 = sphi 0, %s188
      %s190 = sphi 0, %s188
      %s191 = sphi 0, %s190
      %s205 = sphi 0, %s191
      %s209 = sphi 0, %s209
      %s211 = sphi 0, %s209
      %s212 = sphi 0, %s211
      %s226 = sphi 0, %s212
      %s230 = sphi 0, %s230
      %s232 = sphi 0, %s230
      %s233 = sphi 0, %s232
      %s247 = sphi 0, %s233
      %s251 = sphi 0, %s251
      %s253 = sphi 0, %s251
      %s254 = sphi 0, %s253
      %s268 = sphi 0, %s254
      %s272 = sphi 0, %s272
      %s274 = sphi 0, %s272
      %s275 = sphi 0, %s274
      %s289 = sphi 0, %s275
      %s293 = sphi 0, %s293
      %s295 = sphi 0, %s293
      %s296 = sphi 0, %s295
      %s310 = sphi 0, %s296
      %s316 = sphi 0, %s318
      %s319 = sphi 0, %s316
      %s320 = sphi 0, %s319
      %s336 = sphi 0, %s320
    $region4: #{tpu_custom_call.1} parent=1 // loop_header_branch
      %31 = sbr.rel (%p29) target = $region8
    $region5: #{tpu_custom_call.1} parent=1 // loop_body
      %s33 = ssub.s32 %s28, 1
      %s34 = ssub.s32 %s28, 2
      %s35 = sadd.s32 %s28, 1
      %s36 = ssub.s32 %s28, %s35
      %p37 = scmp.eq.s32.totalorder %s36, 0
      %s39 = sadd.s32 %s38, 1
      %s40 = scalar_select %p37, %s38, %s39
      %p43 = pneg %p37
      %p44 = scmp.eq.s32.totalorder %s28, 3
      %p45 = por %p43, %p44
      %p46 = scmp.ne.s32.totalorder %s38, %s41
      %p47 = scmp.eq.s32.totalorder %s28, 0
      %p48 = por %p46, %p47
      %p49 = scmp.ne.s32.totalorder %s38, %s41
      %p50 = scmp.eq.s32.totalorder %s33, 3
      %p51 = por %p49, %p50
      %p52 = scmp.ne.s32.totalorder %s41, %s42
      %p53 = scmp.eq.s32.totalorder %s33, 0
      %p54 = por %p52, %p53
      %p55 = scmp.ne.s32.totalorder %s41, %s42
      %p56 = scmp.eq.s32.totalorder %s34, 3
      %p57 = por %p55, %p56
      %p59 = scmp.ne.s32.totalorder %s42, %s58
      %p60 = scmp.eq.s32.totalorder %s34, 0
      %p61 = por %p59, %p60
      %s63 = sadd.s32 %s62, 1
      %p66 = scmp.eq.s32.totalorder %s28, 3
      %p67 = scmp.ne.s32.totalorder %s62, %s64
      %p68 = scmp.eq.s32.totalorder %s28, 0
      %p69 = por %p67, %p68
      %p70 = scmp.ne.s32.totalorder %s62, %s64
      %p71 = scmp.eq.s32.totalorder %s33, 3
      %p72 = por %p70, %p71
      %p73 = scmp.ne.s32.totalorder %s64, %s65
      %p74 = scmp.eq.s32.totalorder %s33, 0
      %p75 = por %p73, %p74
      %p76 = scmp.ne.s32.totalorder %s64, %s65
      %p77 = scmp.eq.s32.totalorder %s34, 3
      %p78 = por %p76, %p77
      %p80 = scmp.ne.s32.totalorder %s65, %s79
      %p81 = scmp.eq.s32.totalorder %s34, 0
      %p82 = por %p80, %p81
      %s84 = sadd.s32 %s83, 1
      %p87 = scmp.eq.s32.totalorder %s28, 3
      %p88 = scmp.ne.s32.totalorder %s83, %s85
      %p89 = scmp.eq.s32.totalorder %s28, 0
      %p90 = por %p88, %p89
      %p91 = scmp.ne.s32.totalorder %s83, %s85
      %p92 = scmp.eq.s32.totalorder %s33, 3
      %p93 = por %p91, %p92
      %p94 = scmp.ne.s32.totalorder %s85, %s86
      %p95 = scmp.eq.s32.totalorder %s33, 0
      %p96 = por %p94, %p95
      %p97 = scmp.ne.s32.totalorder %s85, %s86
      %p98 = scmp.eq.s32.totalorder %s34, 3
      %p99 = por %p97, %p98
      %p101 = scmp.ne.s32.totalorder %s86, %s100
      %p102 = scmp.eq.s32.totalorder %s34, 0
      %p103 = por %p101, %p102
      %s105 = sadd.s32 %s104, 1
      %p108 = scmp.eq.s32.totalorder %s28, 3
      %p109 = scmp.ne.s32.totalorder %s104, %s106
      %p110 = scmp.eq.s32.totalorder %s28, 0
      %p111 = por %p109, %p110
      %p112 = scmp.ne.s32.totalorder %s104, %s106
      %p113 = scmp.eq.s32.totalorder %s33, 3
      %p114 = por %p112, %p113
      %p115 = scmp.ne.s32.totalorder %s106, %s107
      %p116 = scmp.eq.s32.totalorder %s33, 0
      %p117 = por %p115, %p116
      %p118 = scmp.ne.s32.totalorder %s106, %s107
      %p119 = scmp.eq.s32.totalorder %s34, 3
      %p120 = por %p118, %p119
      %p122 = scmp.ne.s32.totalorder %s107, %s121
      %p123 = scmp.eq.s32.totalorder %s34, 0
      %p124 = por %p122, %p123
      %s126 = sadd.s32 %s125, 1
      %p129 = scmp.eq.s32.totalorder %s28, 3
      %p130 = scmp.ne.s32.totalorder %s125, %s127
      %p131 = scmp.eq.s32.totalorder %s28, 0
      %p132 = por %p130, %p131
      %p133 = scmp.ne.s32.totalorder %s125, %s127
      %p134 = scmp.eq.s32.totalorder %s33, 3
      %p135 = por %p133, %p134
      %p136 = scmp.ne.s32.totalorder %s127, %s128
      %p137 = scmp.eq.s32.totalorder %s33, 0
      %p138 = por %p136, %p137
      %p139 = scmp.ne.s32.totalorder %s127, %s128
      %p140 = scmp.eq.s32.totalorder %s34, 3
      %p141 = por %p139, %p140
      %p143 = scmp.ne.s32.totalorder %s128, %s142
      %p144 = scmp.eq.s32.totalorder %s34, 0
      %p145 = por %p143, %p144
      %s147 = sadd.s32 %s146, 1
      %p150 = scmp.eq.s32.totalorder %s28, 3
      %p151 = scmp.ne.s32.totalorder %s146, %s148
      %p152 = scmp.eq.s32.totalorder %s28, 0
      %p153 = por %p151, %p152
      %p154 = scmp.ne.s32.totalorder %s146, %s148
      %p155 = scmp.eq.s32.totalorder %s33, 3
      %p156 = por %p154, %p155
      %p157 = scmp.ne.s32.totalorder %s148, %s149
      %p158 = scmp.eq.s32.totalorder %s33, 0
      %p159 = por %p157, %p158
      %p160 = scmp.ne.s32.totalorder %s148, %s149
      %p161 = scmp.eq.s32.totalorder %s34, 3
      %p162 = por %p160, %p161
      %p164 = scmp.ne.s32.totalorder %s149, %s163
      %p165 = scmp.eq.s32.totalorder %s34, 0
      %p166 = por %p164, %p165
      %s168 = sadd.s32 %s167, 1
      %p171 = scmp.eq.s32.totalorder %s28, 3
      %p172 = scmp.ne.s32.totalorder %s167, %s169
      %p173 = scmp.eq.s32.totalorder %s28, 0
      %p174 = por %p172, %p173
      %p175 = scmp.ne.s32.totalorder %s167, %s169
      %p176 = scmp.eq.s32.totalorder %s33, 3
      %p177 = por %p175, %p176
      %p178 = scmp.ne.s32.totalorder %s169, %s170
      %p179 = scmp.eq.s32.totalorder %s33, 0
      %p180 = por %p178, %p179
      %p181 = scmp.ne.s32.totalorder %s169, %s170
      %p182 = scmp.eq.s32.totalorder %s34, 3
      %p183 = por %p181, %p182
      %p185 = scmp.ne.s32.totalorder %s170, %s184
      %p186 = scmp.eq.s32.totalorder %s34, 0
      %p187 = por %p185, %p186
      %s189 = sadd.s32 %s188, 1
      %p192 = scmp.eq.s32.totalorder %s28, 3
      %p193 = scmp.ne.s32.totalorder %s188, %s190
      %p194 = scmp.eq.s32.totalorder %s28, 0
      %p195 = por %p193, %p194
      %p196 = scmp.ne.s32.totalorder %s188, %s190
      %p197 = scmp.eq.s32.totalorder %s33, 3
      %p198 = por %p196, %p197
      %p199 = scmp.ne.s32.totalorder %s190, %s191
      %p200 = scmp.eq.s32.totalorder %s33, 0
      %p201 = por %p199, %p200
      %p202 = scmp.ne.s32.totalorder %s190, %s191
      %p203 = scmp.eq.s32.totalorder %s34, 3
      %p204 = por %p202, %p203
      %p206 = scmp.ne.s32.totalorder %s191, %s205
      %p207 = scmp.eq.s32.totalorder %s34, 0
      %p208 = por %p206, %p207
      %s210 = sadd.s32 %s209, 1
      %p213 = scmp.eq.s32.totalorder %s28, 3
      %p214 = scmp.ne.s32.totalorder %s209, %s211
      %p215 = scmp.eq.s32.totalorder %s28, 0
      %p216 = por %p214, %p215
      %p217 = scmp.ne.s32.totalorder %s209, %s211
      %p218 = scmp.eq.s32.totalorder %s33, 3
      %p219 = por %p217, %p218
      %p220 = scmp.ne.s32.totalorder %s211, %s212
      %p221 = scmp.eq.s32.totalorder %s33, 0
      %p222 = por %p220, %p221
      %p223 = scmp.ne.s32.totalorder %s211, %s212
      %p224 = scmp.eq.s32.totalorder %s34, 3
      %p225 = por %p223, %p224
      %p227 = scmp.ne.s32.totalorder %s212, %s226
      %p228 = scmp.eq.s32.totalorder %s34, 0
      %p229 = por %p227, %p228
      %s231 = sadd.s32 %s230, 1
      %p234 = scmp.eq.s32.totalorder %s28, 3
      %p235 = scmp.ne.s32.totalorder %s230, %s232
      %p236 = scmp.eq.s32.totalorder %s28, 0
      %p237 = por %p235, %p236
      %p238 = scmp.ne.s32.totalorder %s230, %s232
      %p239 = scmp.eq.s32.totalorder %s33, 3
      %p240 = por %p238, %p239
      %p241 = scmp.ne.s32.totalorder %s232, %s233
      %p242 = scmp.eq.s32.totalorder %s33, 0
      %p243 = por %p241, %p242
      %p244 = scmp.ne.s32.totalorder %s232, %s233
      %p245 = scmp.eq.s32.totalorder %s34, 3
      %p246 = por %p244, %p245
      %p248 = scmp.ne.s32.totalorder %s233, %s247
      %p249 = scmp.eq.s32.totalorder %s34, 0
      %p250 = por %p248, %p249
      %s252 = sadd.s32 %s251, 1
      %p255 = scmp.eq.s32.totalorder %s28, 3
      %p256 = scmp.ne.s32.totalorder %s251, %s253
      %p257 = scmp.eq.s32.totalorder %s28, 0
      %p258 = por %p256, %p257
      %p259 = scmp.ne.s32.totalorder %s251, %s253
      %p260 = scmp.eq.s32.totalorder %s33, 3
      %p261 = por %p259, %p260
      %p262 = scmp.ne.s32.totalorder %s253, %s254
      %p263 = scmp.eq.s32.totalorder %s33, 0
      %p264 = por %p262, %p263
      %p265 = scmp.ne.s32.totalorder %s253, %s254
      %p266 = scmp.eq.s32.totalorder %s34, 3
      %p267 = por %p265, %p266
      %p269 = scmp.ne.s32.totalorder %s254, %s268
      %p270 = scmp.eq.s32.totalorder %s34, 0
      %p271 = por %p269, %p270
      %s273 = sadd.s32 %s272, 1
      %p276 = scmp.eq.s32.totalorder %s28, 3
      %p277 = scmp.ne.s32.totalorder %s272, %s274
      %p278 = scmp.eq.s32.totalorder %s28, 0
      %p279 = por %p277, %p278
      %p280 = scmp.ne.s32.totalorder %s272, %s274
      %p281 = scmp.eq.s32.totalorder %s33, 3
      %p282 = por %p280, %p281
      %p283 = scmp.ne.s32.totalorder %s274, %s275
      %p284 = scmp.eq.s32.totalorder %s33, 0
      %p285 = por %p283, %p284
      %p286 = scmp.ne.s32.totalorder %s274, %s275
      %p287 = scmp.eq.s32.totalorder %s34, 3
      %p288 = por %p286, %p287
      %p290 = scmp.ne.s32.totalorder %s275, %s289
      %p291 = scmp.eq.s32.totalorder %s34, 0
      %p292 = por %p290, %p291
      %s294 = sadd.s32 %s293, 1
      %p297 = scmp.eq.s32.totalorder %s28, 3
      %p298 = scmp.ne.s32.totalorder %s293, %s295
      %p299 = scmp.eq.s32.totalorder %s28, 0
      %p300 = por %p298, %p299
      %p301 = scmp.ne.s32.totalorder %s293, %s295
      %p302 = scmp.eq.s32.totalorder %s33, 3
      %p303 = por %p301, %p302
      %p304 = scmp.ne.s32.totalorder %s295, %s296
      %p305 = scmp.eq.s32.totalorder %s33, 0
      %p306 = por %p304, %p305
      %p307 = scmp.ne.s32.totalorder %s295, %s296
      %p308 = scmp.eq.s32.totalorder %s34, 3
      %p309 = por %p307, %p308
      %p311 = scmp.ne.s32.totalorder %s296, %s310
      %p312 = scmp.eq.s32.totalorder %s34, 0
      %p313 = por %p311, %p312
      %s314 = ssub.s32 %s28, %s35
      %p315 = scmp.eq.s32.totalorder %s314, 0
      %s317 = sadd.s32 %s316, 1
      %s318 = scalar_select %p315, %s316, %s317
      %p321 = pneg %p315
      %p322 = scmp.eq.s32.totalorder %s28, 3
      %p323 = por %p321, %p322
      %p324 = scmp.ne.s32.totalorder %s316, %s319
      %p325 = scmp.eq.s32.totalorder %s28, 0
      %p326 = por %p324, %p325
      %p327 = scmp.ne.s32.totalorder %s316, %s319
      %p328 = scmp.eq.s32.totalorder %s33, 3
      %p329 = por %p327, %p328
      %p330 = scmp.ne.s32.totalorder %s319, %s320
      %p331 = scmp.eq.s32.totalorder %s33, 0
      %p332 = por %p330, %p331
      %p333 = scmp.ne.s32.totalorder %s319, %s320
      %p334 = scmp.eq.s32.totalorder %s34, 3
      %p335 = por %p333, %p334
      %p337 = scmp.ne.s32.totalorder %s320, %s336
      %p338 = scmp.eq.s32.totalorder %s34, 0
      %p339 = por %p337, %p338
      %p340 = scmp.le.s32.totalorder 1, %s28
      %p341 = scmp.lt.s32.totalorder %s28, 5
      %p342 = pnand %p340, %p341
      %p343 = pneg %p342
      // Predicated region
      $region9: #{tpu_custom_call.1} parent=5 // pred_check
        _
      $region10: #{tpu_custom_call.1} parent=5 // pred_check_branch
        %345 = sbr.rel (%p342) target = $region12
      $region11: #{tpu_custom_call.1} parent=5 // pred_region
        %s346 = ssub.s32 %s28, 1
        // Predicated region
        $region13: #{tpu_custom_call.1} parent=11 // pred_check
          %p347 = pneg %p75
        $region14: #{tpu_custom_call.1} parent=11 // pred_check_branch
          %349 = sbr.rel (%p347) target = $region16
        $region15: #{tpu_custom_call.1} parent=11 // pred_region
          _
        $region16: #{tpu_custom_call.1} parent=11 // pred_fallthru
          _
        // Predicated region
        $region17: #{tpu_custom_call.1} parent=11 // pred_check
          %p350 = pneg %p96
        $region18: #{tpu_custom_call.1} parent=11 // pred_check_branch
          %352 = sbr.rel (%p350) target = $region20
        $region19: #{tpu_custom_call.1} parent=11 // pred_region
          %s354 = ssub.s32 16, 16
          %355 = vsyncadd [#allocation6], %s354
          %s357 = sshll.u32 [#allocation5], 4
          %s358 = int_to_ptr.vmem [resolvable:$true] %s357
          %360 = dma.hbm_to_vmem [thread:$0]  %s2, 16, %s358, [#allocation6]
        $region20: #{tpu_custom_call.1} parent=11 // pred_fallthru
          _
        // Predicated region
        $region21: #{tpu_custom_call.1} parent=11 // pred_check
          %p361 = pneg %p117
        $region22: #{tpu_custom_call.1} parent=11 // pred_check_branch
          %363 = sbr.rel (%p361) target = $region24
        $region23: #{tpu_custom_call.1} parent=11 // pred_region
          %s365 = ssub.s32 4096, 4096
          %366 = vsyncadd [#allocation6], %s365
          %s367 = sshll.u32 [#allocation7], 4
          %s368 = int_to_ptr.vmem [resolvable:$true] %s367
          %373 = dma.hbm_to_vmem [thread:$0]  %s3, 4096, %s368, [#allocation6], 256, 256, 16
        $region24: #{tpu_custom_call.1} parent=11 // pred_fallthru
          _
        // Predicated region
        $region25: #{tpu_custom_call.1} parent=11 // pred_check
          %p374 = pneg %p138
        $region26: #{tpu_custom_call.1} parent=11 // pred_check_branch
          %376 = sbr.rel (%p374) target = $region28
        $region27: #{tpu_custom_call.1} parent=11 // pred_region
          _
        $region28: #{tpu_custom_call.1} parent=11 // pred_fallthru
          _
        // Predicated region
        $region29: #{tpu_custom_call.1} parent=11 // pred_check
          %p377 = pneg %p159
        $region30: #{tpu_custom_call.1} parent=11 // pred_check_branch
          %379 = sbr.rel (%p377) target = $region32
        $region31: #{tpu_custom_call.1} parent=11 // pred_region
          %s381 = ssub.s32 4096, 4096
          %382 = vsyncadd [#allocation9], %s381
          %s383 = sshll.u32 [#allocation8], 4
          %s384 = int_to_ptr.vmem [resolvable:$true] %s383
          %389 = dma.hbm_to_vmem [thread:$0]  %s5, 4096, %s384, [#allocation9], 128, 128, 8
        $region32: #{tpu_custom_call.1} parent=11 // pred_fallthru
          _
        // Predicated region
        $region33: #{tpu_custom_call.1} parent=11 // pred_check
          %p390 = pneg %p180
        $region34: #{tpu_custom_call.1} parent=11 // pred_check_branch
          %392 = sbr.rel (%p390) target = $region36
        $region35: #{tpu_custom_call.1} parent=11 // pred_region
          _
        $region36: #{tpu_custom_call.1} parent=11 // pred_fallthru
          _
        // Predicated region
        $region37: #{tpu_custom_call.1} parent=11 // pred_check
          %p393 = pneg %p201
        $region38: #{tpu_custom_call.1} parent=11 // pred_check_branch
          %395 = sbr.rel (%p393) target = $region40
        $region39: #{tpu_custom_call.1} parent=11 // pred_region
          _
        $region40: #{tpu_custom_call.1} parent=11 // pred_fallthru
          _
        // Predicated region
        $region41: #{tpu_custom_call.1} parent=11 // pred_check
          %p396 = pneg %p222
        $region42: #{tpu_custom_call.1} parent=11 // pred_check_branch
          %398 = sbr.rel (%p396) target = $region44
        $region43: #{tpu_custom_call.1} parent=11 // pred_region
          _
        $region44: #{tpu_custom_call.1} parent=11 // pred_fallthru
          _
        // Predicated region
        $region45: #{tpu_custom_call.1} parent=11 // pred_check
          %p399 = pneg %p243
        $region46: #{tpu_custom_call.1} parent=11 // pred_check_branch
          %401 = sbr.rel (%p399) target = $region48
        $region47: #{tpu_custom_call.1} parent=11 // pred_region
          %s403 = ssub.s32 4096, 4096
          %404 = vsyncadd [#allocation9], %s403
          %s405 = sshll.u32 [#allocation10], 4
          %s406 = int_to_ptr.vmem [resolvable:$true] %s405
          %411 = dma.hbm_to_vmem [thread:$0]  %s9, 4096, %s406, [#allocation9], 256, 256, 16
        $region48: #{tpu_custom_call.1} parent=11 // pred_fallthru
          _
        // Predicated region
        $region49: #{tpu_custom_call.1} parent=11 // pred_check
          %p412 = pneg %p264
        $region50: #{tpu_custom_call.1} parent=11 // pred_check_branch
          %414 = sbr.rel (%p412) target = $region52
        $region51: #{tpu_custom_call.1} parent=11 // pred_region
          _
        $region52: #{tpu_custom_call.1} parent=11 // pred_fallthru
          _
        // Predicated region
        $region53: #{tpu_custom_call.1} parent=11 // pred_check
          %p415 = pneg %p285
        $region54: #{tpu_custom_call.1} parent=11 // pred_check_branch
          %417 = sbr.rel (%p415) target = $region56
        $region55: #{tpu_custom_call.1} parent=11 // pred_region
          %s419 = ssub.s32 4096, 4096
          %420 = vsyncadd [#allocation12], %s419
          %s421 = sshll.u32 [#allocation11], 4
          %s422 = int_to_ptr.vmem [resolvable:$true] %s421
          %427 = dma.hbm_to_vmem [thread:$0]  %s11, 4096, %s422, [#allocation12], 128, 128, 8
        $region56: #{tpu_custom_call.1} parent=11 // pred_fallthru
          _
        // Predicated region
        $region57: #{tpu_custom_call.1} parent=11 // pred_check
          %p428 = pneg %p306
        $region58: #{tpu_custom_call.1} parent=11 // pred_check_branch
          %430 = sbr.rel (%p428) target = $region60
        $region59: #{tpu_custom_call.1} parent=11 // pred_region
          _
        $region60: #{tpu_custom_call.1} parent=11 // pred_fallthru
          _
      $region12: #{tpu_custom_call.1} parent=5 // pred_fallthru
        _
      %p431 = scmp.lt.s32.totalorder %s28, 4
      // Predicated region
      $region61: #{tpu_custom_call.1} parent=5 // pred_check
        %p432 = pneg %p431
      $region62: #{tpu_custom_call.1} parent=5 // pred_check_branch
        %434 = sbr.rel (%p432) target = $region64
      $region63: #{tpu_custom_call.1} parent=5 // pred_region
        // Predicated region
        $region65: #{tpu_custom_call.1} parent=63 // pred_check
          %p435 = pneg %p48
        $region66: #{tpu_custom_call.1} parent=63 // pred_check_branch
          %437 = sbr.rel (%p435) target = $region68
        $region67: #{tpu_custom_call.1} parent=63 // pred_region
          %s438 = sand.u32 %s38, 1
          %s439 = scalar_lea.sflag [#allocation3], %s438
          %s440 = sand.u32 %s38, 1
          %s441 = smul.addr %s440, 256
          %s442 = scalar_lea.vmem [#allocation2], %s441
          %s443 = smul.u32 32, %s28
          %s445 = ssub.s32 4096, 4096
          %446 = vsyncadd %s439, %s445
          %s447 = smul.addr %s443, 128
          %s448 = scalar_lea.hbm %s0, %s447
          %s449 = sshll.u32 %s442, 4
          %s450 = int_to_ptr.vmem [resolvable:$true] %s449
          %455 = dma.hbm_to_vmem [thread:$0]  %s448, 4096, %s450, %s439, 128, 128, 8
        $region68: #{tpu_custom_call.1} parent=63 // pred_fallthru
          _
      $region64: #{tpu_custom_call.1} parent=5 // pred_fallthru
        _
      %p456 = scmp.le.s32.totalorder 1, %s28
      %p457 = scmp.lt.s32.totalorder %s28, 5
      %p458 = pnand %p456, %p457
      %p459 = pneg %p458
      // Predicated region
      $region69: #{tpu_custom_call.1} parent=5 // pred_check
        _
      $region70: #{tpu_custom_call.1} parent=5 // pred_check_branch
        %461 = sbr.rel (%p458) target = $region72
      $region71: #{tpu_custom_call.1} parent=5 // pred_region
        %s462 = ssub.s32 %s28, 1
        %s463 = sand.u32 %s41, 1
        %s464 = scalar_lea.sflag [#allocation3], %s463
        %s465 = sand.u32 %s41, 1
        %s466 = smul.addr %s465, 256
        %s467 = scalar_lea.vmem [#allocation2], %s466
        // Predicated region
        $region73: #{tpu_custom_call.1} parent=71 // pred_check
          %p468 = pneg %p54
        $region74: #{tpu_custom_call.1} parent=71 // pred_check_branch
          %470 = sbr.rel (%p468) target = $region76
        $region75: #{tpu_custom_call.1} parent=71 // pred_region
          %471 = dma.done %s464, 4096
        $region76: #{tpu_custom_call.1} parent=71 // pred_fallthru
          _
        // Predicated region
        $region77: #{tpu_custom_call.1} parent=71 // pred_check
          %p472 = pneg %p96
        $region78: #{tpu_custom_call.1} parent=71 // pred_check_branch
          %474 = sbr.rel (%p472) target = $region80
        $region79: #{tpu_custom_call.1} parent=71 // pred_region
          %475 = dma.done [#allocation6], 16
        $region80: #{tpu_custom_call.1} parent=71 // pred_fallthru
          _
        // Predicated region
        $region81: #{tpu_custom_call.1} parent=71 // pred_check
          %p476 = pneg %p117
        $region82: #{tpu_custom_call.1} parent=71 // pred_check_branch
          %478 = sbr.rel (%p476) target = $region84
        $region83: #{tpu_custom_call.1} parent=71 // pred_region
          %479 = dma.done [#allocation6], 4096
        $region84: #{tpu_custom_call.1} parent=71 // pred_fallthru
          _
        // Predicated region
        $region85: #{tpu_custom_call.1} parent=71 // pred_check
          %p480 = pneg %p159
        $region86: #{tpu_custom_call.1} parent=71 // pred_check_branch
          %482 = sbr.rel (%p480) target = $region88
        $region87: #{tpu_custom_call.1} parent=71 // pred_region
          %483 = dma.done [#allocation9], 4096
        $region88: #{tpu_custom_call.1} parent=71 // pred_fallthru
          _
        // Predicated region
        $region89: #{tpu_custom_call.1} parent=71 // pred_check
          %p484 = pneg %p243
        $region90: #{tpu_custom_call.1} parent=71 // pred_check_branch
          %486 = sbr.rel (%p484) target = $region92
        $region91: #{tpu_custom_call.1} parent=71 // pred_region
          %487 = dma.done [#allocation9], 4096
        $region92: #{tpu_custom_call.1} parent=71 // pred_fallthru
          _
        // Predicated region
        $region93: #{tpu_custom_call.1} parent=71 // pred_check
          %p488 = pneg %p285
        $region94: #{tpu_custom_call.1} parent=71 // pred_check_branch
          %490 = sbr.rel (%p488) target = $region96
        $region95: #{tpu_custom_call.1} parent=71 // pred_region
          %491 = dma.done [#allocation12], 4096
        $region96: #{tpu_custom_call.1} parent=71 // pred_fallthru
          _
        %s492 = sand.u32 %s41, 1
        %s493 = scalar_lea.sflag [#allocation3], %s492
        %s494 = sand.u32 %s41, 1
        %s495 = smul.addr %s494, 256
        %s496 = scalar_lea.vmem [#allocation2], %s495
        %p497 = pneg %p54
        %p498 = pneg %p51
        %p499 = pneg %p75
        %p500 = pneg %p72
        %p501 = pneg %p96
        %p502 = pneg %p93
        %p503 = pneg %p117
        %p504 = pneg %p114
        %p505 = pneg %p138
        %p506 = pneg %p135
        %p507 = pneg %p159
        %p508 = pneg %p156
        %p509 = pneg %p180
        %p510 = pneg %p177
        %p511 = pneg %p201
        %p512 = pneg %p198
        %p513 = pneg %p222
        %p514 = pneg %p219
        %p515 = pneg %p243
        %p516 = pneg %p240
        %p517 = pneg %p264
        %p518 = pneg %p261
        %p519 = pneg %p285
        %p520 = pneg %p282
        %p521 = pneg %p306
        %p522 = pneg %p303
        %p523 = pneg %p332
        %p524 = pneg %p329
        %s525 = sand.u32 %s319, 1
        %s526 = scalar_lea.sflag [#allocation4], %s525
        %s527 = sand.u32 %s319, 1
        %s528 = smul.addr %s527, 256
        %s529 = scalar_lea.vmem [#allocation13], %s528
        %s530 = smul.u32 32, %s33
        %s531 = smul.u32 32, %s33
        %v532 = vld [vmem:[%s467] sm:$0xff]
        %v533 = vld [vmem:[%s467 + $0x8] sm:$0xff]
        %v534 = vld [vmem:[%s467 + $0x10] sm:$0xff]
        %v535 = vld [vmem:[%s467 + $0x18] sm:$0xff]
        %v536 = vld [vmem:[%s467 + $0x20] sm:$0xff]
        %v537 = vld [vmem:[%s467 + $0x28] sm:$0xff]
        %v538 = vld [vmem:[%s467 + $0x30] sm:$0xff]
        %v539 = vld [vmem:[%s467 + $0x38] sm:$0xff]
        %v540 = vld [vmem:[%s467 + $0x40] sm:$0xff]
        %v541 = vld [vmem:[%s467 + $0x48] sm:$0xff]
        %v542 = vld [vmem:[%s467 + $0x50] sm:$0xff]
        %v543 = vld [vmem:[%s467 + $0x58] sm:$0xff]
        %v544 = vld [vmem:[%s467 + $0x60] sm:$0xff]
        %v545 = vld [vmem:[%s467 + $0x68] sm:$0xff]
        %v546 = vld [vmem:[%s467 + $0x70] sm:$0xff]
        %v547 = vld [vmem:[%s467 + $0x78] sm:$0xff]
        %v548 = vld [vmem:[%s467 + $0x80] sm:$0xff]
        %v549 = vld [vmem:[%s467 + $0x88] sm:$0xff]
        %v550 = vld [vmem:[%s467 + $0x90] sm:$0xff]
        %v551 = vld [vmem:[%s467 + $0x98] sm:$0xff]
        %v552 = vld [vmem:[%s467 + $0xa0] sm:$0xff]
        %v553 = vld [vmem:[%s467 + $0xa8] sm:$0xff]
        %v554 = vld [vmem:[%s467 + $0xb0] sm:$0xff]
        %v555 = vld [vmem:[%s467 + $0xb8] sm:$0xff]
        %v556 = vld [vmem:[%s467 + $0xc0] sm:$0xff]
        %v557 = vld [vmem:[%s467 + $0xc8] sm:$0xff]
        %v558 = vld [vmem:[%s467 + $0xd0] sm:$0xff]
        %v559 = vld [vmem:[%s467 + $0xd8] sm:$0xff]
        %v560 = vld [vmem:[%s467 + $0xe0] sm:$0xff]
        %v561 = vld [vmem:[%s467 + $0xe8] sm:$0xff]
        %v562 = vld [vmem:[%s467 + $0xf0] sm:$0xff]
        %v563 = vld [vmem:[%s467 + $0xf8] sm:$0xff]
        %v564 = vld [vmem:[%s1] sm:$0x1]
        %v565 = vld [vmem:[#allocation5] sm:$0x1]
        %v566 = vld [vmem:[%s4] sm:$0x3]
        %v567 = vld [vmem:[%s6] sm:$0x1]
        %v568 = vld [vmem:[#allocation7] sm:$0xff]
        %v569 = vld [vmem:[#allocation7 + $0x8] sm:$0xff]
        %v570 = vld [vmem:[#allocation7 + $0x10] sm:$0xff]
        %v571 = vld [vmem:[#allocation7 + $0x18] sm:$0xff]
        %v572 = vld [vmem:[#allocation7 + $0x20] sm:$0xff]
        %v573 = vld [vmem:[#allocation7 + $0x28] sm:$0xff]
        %v574 = vld [vmem:[#allocation7 + $0x30] sm:$0xff]
        %v575 = vld [vmem:[#allocation7 + $0x38] sm:$0xff]
        %v576 = vld [vmem:[#allocation7 + $0x40] sm:$0xff]
        %v577 = vld [vmem:[#allocation7 + $0x48] sm:$0xff]
        %v578 = vld [vmem:[#allocation7 + $0x50] sm:$0xff]
        %v579 = vld [vmem:[#allocation7 + $0x58] sm:$0xff]
        %v580 = vld [vmem:[#allocation7 + $0x60] sm:$0xff]
        %v581 = vld [vmem:[#allocation7 + $0x68] sm:$0xff]
        %v582 = vld [vmem:[#allocation7 + $0x70] sm:$0xff]
        %v583 = vld [vmem:[#allocation7 + $0x78] sm:$0xff]
        %v584 = vld [vmem:[#allocation7 + $0x80] sm:$0xff]
        %v585 = vld [vmem:[#allocation7 + $0x88] sm:$0xff]
        %v586 = vld [vmem:[#allocation7 + $0x90] sm:$0xff]
        %v587 = vld [vmem:[#allocation7 + $0x98] sm:$0xff]
        %v588 = vld [vmem:[#allocation7 + $0xa0] sm:$0xff]
        %v589 = vld [vmem:[#allocation7 + $0xa8] sm:$0xff]
        %v590 = vld [vmem:[#allocation7 + $0xb0] sm:$0xff]
        %v591 = vld [vmem:[#allocation7 + $0xb8] sm:$0xff]
        %v592 = vld [vmem:[#allocation7 + $0xc0] sm:$0xff]
        %v593 = vld [vmem:[#allocation7 + $0xc8] sm:$0xff]
        %v594 = vld [vmem:[#allocation7 + $0xd0] sm:$0xff]
        %v595 = vld [vmem:[#allocation7 + $0xd8] sm:$0xff]
        %v596 = vld [vmem:[#allocation7 + $0xe0] sm:$0xff]
        %v597 = vld [vmem:[#allocation7 + $0xe8] sm:$0xff]
        %v598 = vld [vmem:[#allocation7 + $0xf0] sm:$0xff]
        %v599 = vld [vmem:[#allocation7 + $0xf8] sm:$0xff]
        %v600 = vld [vmem:[#allocation8] sm:$0xff]
        %v601 = vld [vmem:[#allocation8 + $0x8] sm:$0xff]
        %v602 = vld [vmem:[#allocation8 + $0x10] sm:$0xff]
        %v603 = vld [vmem:[#allocation8 + $0x18] sm:$0xff]
        %v604 = vld [vmem:[#allocation8 + $0x20] sm:$0xff]
        %v605 = vld [vmem:[#allocation8 + $0x28] sm:$0xff]
        %v606 = vld [vmem:[#allocation8 + $0x30] sm:$0xff]
        %v607 = vld [vmem:[#allocation8 + $0x38] sm:$0xff]
        %v608 = vld [vmem:[#allocation8 + $0x40] sm:$0xff]
        %v609 = vld [vmem:[#allocation8 + $0x48] sm:$0xff]
        %v610 = vld [vmem:[#allocation8 + $0x50] sm:$0xff]
        %v611 = vld [vmem:[#allocation8 + $0x58] sm:$0xff]
        %v612 = vld [vmem:[#allocation8 + $0x60] sm:$0xff]
        %v613 = vld [vmem:[#allocation8 + $0x68] sm:$0xff]
        %v614 = vld [vmem:[#allocation8 + $0x70] sm:$0xff]
        %v615 = vld [vmem:[#allocation8 + $0x78] sm:$0xff]
        %v616 = vld [vmem:[#allocation8 + $0x80] sm:$0xff]
        %v617 = vld [vmem:[#allocation8 + $0x88] sm:$0xff]
        %v618 = vld [vmem:[#allocation8 + $0x90] sm:$0xff]
        %v619 = vld [vmem:[#allocation8 + $0x98] sm:$0xff]
        %v620 = vld [vmem:[#allocation8 + $0xa0] sm:$0xff]
        %v621 = vld [vmem:[#allocation8 + $0xa8] sm:$0xff]
        %v622 = vld [vmem:[#allocation8 + $0xb0] sm:$0xff]
        %v623 = vld [vmem:[#allocation8 + $0xb8] sm:$0xff]
        %v624 = vld [vmem:[#allocation8 + $0xc0] sm:$0xff]
        %v625 = vld [vmem:[#allocation8 + $0xc8] sm:$0xff]
        %v626 = vld [vmem:[#allocation8 + $0xd0] sm:$0xff]
        %v627 = vld [vmem:[#allocation8 + $0xd8] sm:$0xff]
        %v628 = vld [vmem:[#allocation8 + $0xe0] sm:$0xff]
        %v629 = vld [vmem:[#allocation8 + $0xe8] sm:$0xff]
        %v630 = vld [vmem:[#allocation8 + $0xf0] sm:$0xff]
        %v631 = vld [vmem:[#allocation8 + $0xf8] sm:$0xff]
        %632 = vadd.xlane.f32.xlu0 %v532
        %v633 = vpop.xlane.xlu0 %632
        %634 = vadd.xlane.f32.xlu0 %v533
        %v635 = vpop.xlane.xlu0 %634
        %636 = vadd.xlane.f32.xlu0 %v534
        %v637 = vpop.xlane.xlu0 %636
        %638 = vadd.xlane.f32.xlu0 %v535
        %v639 = vpop.xlane.xlu0 %638
        %640 = vadd.xlane.f32.xlu0 %v536
        %v641 = vpop.xlane.xlu0 %640
        %642 = vadd.xlane.f32.xlu0 %v537
        %v643 = vpop.xlane.xlu0 %642
        %644 = vadd.xlane.f32.xlu0 %v538
        %v645 = vpop.xlane.xlu0 %644
        %646 = vadd.xlane.f32.xlu0 %v539
        %v647 = vpop.xlane.xlu0 %646
        %648 = vadd.xlane.f32.xlu0 %v540
        %v649 = vpop.xlane.xlu0 %648
        %650 = vadd.xlane.f32.xlu0 %v541
        %v651 = vpop.xlane.xlu0 %650
        %652 = vadd.xlane.f32.xlu0 %v542
        %v653 = vpop.xlane.xlu0 %652
        %654 = vadd.xlane.f32.xlu0 %v543
        %v655 = vpop.xlane.xlu0 %654
        %656 = vadd.xlane.f32.xlu0 %v544
        %v657 = vpop.xlane.xlu0 %656
        %658 = vadd.xlane.f32.xlu0 %v545
        %v659 = vpop.xlane.xlu0 %658
        %660 = vadd.xlane.f32.xlu0 %v546
        %v661 = vpop.xlane.xlu0 %660
        %662 = vadd.xlane.f32.xlu0 %v547
        %v663 = vpop.xlane.xlu0 %662
        %664 = vadd.xlane.f32.xlu0 %v548
        %v665 = vpop.xlane.xlu0 %664
        %666 = vadd.xlane.f32.xlu0 %v549
        %v667 = vpop.xlane.xlu0 %666
        %668 = vadd.xlane.f32.xlu0 %v550
        %v669 = vpop.xlane.xlu0 %668
        %670 = vadd.xlane.f32.xlu0 %v551
        %v671 = vpop.xlane.xlu0 %670
        %672 = vadd.xlane.f32.xlu0 %v552
        %v673 = vpop.xlane.xlu0 %672
        %674 = vadd.xlane.f32.xlu0 %v553
        %v675 = vpop.xlane.xlu0 %674
        %676 = vadd.xlane.f32.xlu0 %v554
        %v677 = vpop.xlane.xlu0 %676
        %678 = vadd.xlane.f32.xlu0 %v555
        %v679 = vpop.xlane.xlu0 %678
        %680 = vadd.xlane.f32.xlu0 %v556
        %v681 = vpop.xlane.xlu0 %680
        %682 = vadd.xlane.f32.xlu0 %v557
        %v683 = vpop.xlane.xlu0 %682
        %684 = vadd.xlane.f32.xlu0 %v558
        %v685 = vpop.xlane.xlu0 %684
        %686 = vadd.xlane.f32.xlu0 %v559
        %v687 = vpop.xlane.xlu0 %686
        %688 = vadd.xlane.f32.xlu0 %v560
        %v689 = vpop.xlane.xlu0 %688
        %690 = vadd.xlane.f32.xlu0 %v561
        %v691 = vpop.xlane.xlu0 %690
        %692 = vadd.xlane.f32.xlu0 %v562
        %v693 = vpop.xlane.xlu0 %692
        %694 = vadd.xlane.f32.xlu0 %v563
        %v695 = vpop.xlane.xlu0 %694
        %v696 = vmul.f32 %v532, %v532
        %v697 = vmul.f32 %v533, %v533
        %v698 = vmul.f32 %v534, %v534
        %v699 = vmul.f32 %v535, %v535
        %v700 = vmul.f32 %v536, %v536
        %v701 = vmul.f32 %v537, %v537
        %v702 = vmul.f32 %v538, %v538
        %v703 = vmul.f32 %v539, %v539
        %v704 = vmul.f32 %v540, %v540
        %v705 = vmul.f32 %v541, %v541
        %v706 = vmul.f32 %v542, %v542
        %v707 = vmul.f32 %v543, %v543
        %v708 = vmul.f32 %v544, %v544
        %v709 = vmul.f32 %v545, %v545
        %v710 = vmul.f32 %v546, %v546
        %v711 = vmul.f32 %v547, %v547
        %v712 = vmul.f32 %v548, %v548
        %v713 = vmul.f32 %v549, %v549
        %v714 = vmul.f32 %v550, %v550
        %v715 = vmul.f32 %v551, %v551
        %v716 = vmul.f32 %v552, %v552
        %v717 = vmul.f32 %v553, %v553
        %v718 = vmul.f32 %v554, %v554
        %v719 = vmul.f32 %v555, %v555
        %v720 = vmul.f32 %v556, %v556
        %v721 = vmul.f32 %v557, %v557
        %v722 = vmul.f32 %v558, %v558
        %v723 = vmul.f32 %v559, %v559
        %v724 = vmul.f32 %v560, %v560
        %v725 = vmul.f32 %v561, %v561
        %v726 = vmul.f32 %v562, %v562
        %v727 = vmul.f32 %v563, %v563
        %728 = vadd.xlane.f32.xlu0 %v696
        %v729 = vpop.xlane.xlu0 %728
        %730 = vadd.xlane.f32.xlu0 %v697
        %v731 = vpop.xlane.xlu0 %730
        %732 = vadd.xlane.f32.xlu0 %v698
        %v733 = vpop.xlane.xlu0 %732
        %734 = vadd.xlane.f32.xlu0 %v699
        %v735 = vpop.xlane.xlu0 %734
        %736 = vadd.xlane.f32.xlu0 %v700
        %v737 = vpop.xlane.xlu0 %736
        %738 = vadd.xlane.f32.xlu0 %v701
        %v739 = vpop.xlane.xlu0 %738
        %740 = vadd.xlane.f32.xlu0 %v702
        %v741 = vpop.xlane.xlu0 %740
        %742 = vadd.xlane.f32.xlu0 %v703
        %v743 = vpop.xlane.xlu0 %742
        %744 = vadd.xlane.f32.xlu0 %v704
        %v745 = vpop.xlane.xlu0 %744
        %746 = vadd.xlane.f32.xlu0 %v705
        %v747 = vpop.xlane.xlu0 %746
        %748 = vadd.xlane.f32.xlu0 %v706
        %v749 = vpop.xlane.xlu0 %748
        %750 = vadd.xlane.f32.xlu0 %v707
        %v751 = vpop.xlane.xlu0 %750
        %752 = vadd.xlane.f32.xlu0 %v708
        %v753 = vpop.xlane.xlu0 %752
        %754 = vadd.xlane.f32.xlu0 %v709
        %v755 = vpop.xlane.xlu0 %754
        %756 = vadd.xlane.f32.xlu0 %v710
        %v757 = vpop.xlane.xlu0 %756
        %758 = vadd.xlane.f32.xlu0 %v711
        %v759 = vpop.xlane.xlu0 %758
        %760 = vadd.xlane.f32.xlu0 %v712
        %v761 = vpop.xlane.xlu0 %760
        %762 = vadd.xlane.f32.xlu0 %v713
        %v763 = vpop.xlane.xlu0 %762
        %764 = vadd.xlane.f32.xlu0 %v714
        %v765 = vpop.xlane.xlu0 %764
        %766 = vadd.xlane.f32.xlu0 %v715
        %v767 = vpop.xlane.xlu0 %766
        %768 = vadd.xlane.f32.xlu0 %v716
        %v769 = vpop.xlane.xlu0 %768
        %770 = vadd.xlane.f32.xlu0 %v717
        %v771 = vpop.xlane.xlu0 %770
        %772 = vadd.xlane.f32.xlu0 %v718
        %v773 = vpop.xlane.xlu0 %772
        %774 = vadd.xlane.f32.xlu0 %v719
        %v775 = vpop.xlane.xlu0 %774
        %776 = vadd.xlane.f32.xlu0 %v720
        %v777 = vpop.xlane.xlu0 %776
        %778 = vadd.xlane.f32.xlu0 %v721
        %v779 = vpop.xlane.xlu0 %778
        %780 = vadd.xlane.f32.xlu0 %v722
        %v781 = vpop.xlane.xlu0 %780
        %782 = vadd.xlane.f32.xlu0 %v723
        %v783 = vpop.xlane.xlu0 %782
        %784 = vadd.xlane.f32.xlu0 %v724
        %v785 = vpop.xlane.xlu0 %784
        %786 = vadd.xlane.f32.xlu0 %v725
        %v787 = vpop.xlane.xlu0 %786
        %788 = vadd.xlane.f32.xlu0 %v726
        %v789 = vpop.xlane.xlu0 %788
        %790 = vadd.xlane.f32.xlu0 %v727
        %v791 = vpop.xlane.xlu0 %790
        %v792 = vmul.f32 %v633, 0.0078125
        %v793 = vmul.f32 %v635, 0.0078125
        %v794 = vmul.f32 %v637, 0.0078125
        %v795 = vmul.f32 %v639, 0.0078125
        %v796 = vmul.f32 %v641, 0.0078125
        %v797 = vmul.f32 %v643, 0.0078125
        %v798 = vmul.f32 %v645, 0.0078125
        %v799 = vmul.f32 %v647, 0.0078125
        %v800 = vmul.f32 %v649, 0.0078125
        %v801 = vmul.f32 %v651, 0.0078125
        %v802 = vmul.f32 %v653, 0.0078125
        %v803 = vmul.f32 %v655, 0.0078125
        %v804 = vmul.f32 %v657, 0.0078125
        %v805 = vmul.f32 %v659, 0.0078125
        %v806 = vmul.f32 %v661, 0.0078125
        %v807 = vmul.f32 %v663, 0.0078125
        %v808 = vmul.f32 %v665, 0.0078125
        %v809 = vmul.f32 %v667, 0.0078125
        %v810 = vmul.f32 %v669, 0.0078125
        %v811 = vmul.f32 %v671, 0.0078125
        %v812 = vmul.f32 %v673, 0.0078125
        %v813 = vmul.f32 %v675, 0.0078125
        %v814 = vmul.f32 %v677, 0.0078125
        %v815 = vmul.f32 %v679, 0.0078125
        %v816 = vmul.f32 %v681, 0.0078125
        %v817 = vmul.f32 %v683, 0.0078125
        %v818 = vmul.f32 %v685, 0.0078125
        %v819 = vmul.f32 %v687, 0.0078125
        %v820 = vmul.f32 %v689, 0.0078125
        %v821 = vmul.f32 %v691, 0.0078125
        %v822 = vmul.f32 %v693, 0.0078125
        %v823 = vmul.f32 %v695, 0.0078125
        %v824 = vmul.f32 %v729, 0.0078125
        %v825 = vmul.f32 %v731, 0.0078125
        %v826 = vmul.f32 %v733, 0.0078125
        %v827 = vmul.f32 %v735, 0.0078125
        %v828 = vmul.f32 %v737, 0.0078125
        %v829 = vmul.f32 %v739, 0.0078125
        %v830 = vmul.f32 %v741, 0.0078125
        %v831 = vmul.f32 %v743, 0.0078125
        %v832 = vmul.f32 %v745, 0.0078125
        %v833 = vmul.f32 %v747, 0.0078125
        %v834 = vmul.f32 %v749, 0.0078125
        %v835 = vmul.f32 %v751, 0.0078125
        %v836 = vmul.f32 %v753, 0.0078125
        %v837 = vmul.f32 %v755, 0.0078125
        %v838 = vmul.f32 %v757, 0.0078125
        %v839 = vmul.f32 %v759, 0.0078125
        %v840 = vmul.f32 %v761, 0.0078125
        %v841 = vmul.f32 %v763, 0.0078125
        %v842 = vmul.f32 %v765, 0.0078125
        %v843 = vmul.f32 %v767, 0.0078125
        %v844 = vmul.f32 %v769, 0.0078125
        %v845 = vmul.f32 %v771, 0.0078125
        %v846 = vmul.f32 %v773, 0.0078125
        %v847 = vmul.f32 %v775, 0.0078125
        %v848 = vmul.f32 %v777, 0.0078125
        %v849 = vmul.f32 %v779, 0.0078125
        %v850 = vmul.f32 %v781, 0.0078125
        %v851 = vmul.f32 %v783, 0.0078125
        %v852 = vmul.f32 %v785, 0.0078125
        %v853 = vmul.f32 %v787, 0.0078125
        %v854 = vmul.f32 %v789, 0.0078125
        %v855 = vmul.f32 %v791, 0.0078125
        %v856 = vmul.f32 %v792, %v792
        %v857 = vmul.f32 %v793, %v793
        %v858 = vmul.f32 %v794, %v794
        %v859 = vmul.f32 %v795, %v795
        %v860 = vmul.f32 %v796, %v796
        %v861 = vmul.f32 %v797, %v797
        %v862 = vmul.f32 %v798, %v798
        %v863 = vmul.f32 %v799, %v799
        %v864 = vmul.f32 %v800, %v800
        %v865 = vmul.f32 %v801, %v801
        %v866 = vmul.f32 %v802, %v802
        %v867 = vmul.f32 %v803, %v803
        %v868 = vmul.f32 %v804, %v804
        %v869 = vmul.f32 %v805, %v805
        %v870 = vmul.f32 %v806, %v806
        %v871 = vmul.f32 %v807, %v807
        %v872 = vmul.f32 %v808, %v808
        %v873 = vmul.f32 %v809, %v809
        %v874 = vmul.f32 %v810, %v810
        %v875 = vmul.f32 %v811, %v811
        %v876 = vmul.f32 %v812, %v812
        %v877 = vmul.f32 %v813, %v813
        %v878 = vmul.f32 %v814, %v814
        %v879 = vmul.f32 %v815, %v815
        %v880 = vmul.f32 %v816, %v816
        %v881 = vmul.f32 %v817, %v817
        %v882 = vmul.f32 %v818, %v818
        %v883 = vmul.f32 %v819, %v819
        %v884 = vmul.f32 %v820, %v820
        %v885 = vmul.f32 %v821, %v821
        %v886 = vmul.f32 %v822, %v822
        %v887 = vmul.f32 %v823, %v823
        %v888 = vsub.f32 %v824, %v856
        %v889 = vsub.f32 %v825, %v857
        %v890 = vsub.f32 %v826, %v858
        %v891 = vsub.f32 %v827, %v859
        %v892 = vsub.f32 %v828, %v860
        %v893 = vsub.f32 %v829, %v861
        %v894 = vsub.f32 %v830, %v862
        %v895 = vsub.f32 %v831, %v863
        %v896 = vsub.f32 %v832, %v864
        %v897 = vsub.f32 %v833, %v865
        %v898 = vsub.f32 %v834, %v866
        %v899 = vsub.f32 %v835, %v867
        %v900 = vsub.f32 %v836, %v868
        %v901 = vsub.f32 %v837, %v869
        %v902 = vsub.f32 %v838, %v870
        %v903 = vsub.f32 %v839, %v871
        %v904 = vsub.f32 %v840, %v872
        %v905 = vsub.f32 %v841, %v873
        %v906 = vsub.f32 %v842, %v874
        %v907 = vsub.f32 %v843, %v875
        %v908 = vsub.f32 %v844, %v876
        %v909 = vsub.f32 %v845, %v877
        %v910 = vsub.f32 %v846, %v878
        %v911 = vsub.f32 %v847, %v879
        %v912 = vsub.f32 %v848, %v880
        %v913 = vsub.f32 %v849, %v881
        %v914 = vsub.f32 %v850, %v882
        %v915 = vsub.f32 %v851, %v883
        %v916 = vsub.f32 %v852, %v884
        %v917 = vsub.f32 %v853, %v885
        %v918 = vsub.f32 %v854, %v886
        %v919 = vsub.f32 %v855, %v887
        %v920 = vmax.f32 %v888, 0.0
        %v921 = vmax.f32 %v889, 0.0
        %v922 = vmax.f32 %v890, 0.0
        %v923 = vmax.f32 %v891, 0.0
        %v924 = vmax.f32 %v892, 0.0
        %v925 = vmax.f32 %v893, 0.0
        %v926 = vmax.f32 %v894, 0.0
        %v927 = vmax.f32 %v895, 0.0
        %v928 = vmax.f32 %v896, 0.0
        %v929 = vmax.f32 %v897, 0.0
        %v930 = vmax.f32 %v898, 0.0
        %v931 = vmax.f32 %v899, 0.0
        %v932 = vmax.f32 %v900, 0.0
        %v933 = vmax.f32 %v901, 0.0
        %v934 = vmax.f32 %v902, 0.0
        %v935 = vmax.f32 %v903, 0.0
        %v936 = vmax.f32 %v904, 0.0
        %v937 = vmax.f32 %v905, 0.0
        %v938 = vmax.f32 %v906, 0.0
        %v939 = vmax.f32 %v907, 0.0
        %v940 = vmax.f32 %v908, 0.0
        %v941 = vmax.f32 %v909, 0.0
        %v942 = vmax.f32 %v910, 0.0
        %v943 = vmax.f32 %v911, 0.0
        %v944 = vmax.f32 %v912, 0.0
        %v945 = vmax.f32 %v913, 0.0
        %v946 = vmax.f32 %v914, 0.0
        %v947 = vmax.f32 %v915, 0.0
        %v948 = vmax.f32 %v916, 0.0
        %v949 = vmax.f32 %v917, 0.0
        %v950 = vmax.f32 %v918, 0.0
        %v951 = vmax.f32 %v919, 0.0
        %v952 = vsub.f32 %v532, %v792
        %v953 = vsub.f32 %v533, %v793
        %v954 = vsub.f32 %v534, %v794
        %v955 = vsub.f32 %v535, %v795
        %v956 = vsub.f32 %v536, %v796
        %v957 = vsub.f32 %v537, %v797
        %v958 = vsub.f32 %v538, %v798
        %v959 = vsub.f32 %v539, %v799
        %v960 = vsub.f32 %v540, %v800
        %v961 = vsub.f32 %v541, %v801
        %v962 = vsub.f32 %v542, %v802
        %v963 = vsub.f32 %v543, %v803
        %v964 = vsub.f32 %v544, %v804
        %v965 = vsub.f32 %v545, %v805
        %v966 = vsub.f32 %v546, %v806
        %v967 = vsub.f32 %v547, %v807
        %v968 = vsub.f32 %v548, %v808
        %v969 = vsub.f32 %v549, %v809
        %v970 = vsub.f32 %v550, %v810
        %v971 = vsub.f32 %v551, %v811
        %v972 = vsub.f32 %v552, %v812
        %v973 = vsub.f32 %v553, %v813
        %v974 = vsub.f32 %v554, %v814
        %v975 = vsub.f32 %v555, %v815
        %v976 = vsub.f32 %v556, %v816
        %v977 = vsub.f32 %v557, %v817
        %v978 = vsub.f32 %v558, %v818
        %v979 = vsub.f32 %v559, %v819
        %v980 = vsub.f32 %v560, %v820
        %v981 = vsub.f32 %v561, %v821
        %v982 = vsub.f32 %v562, %v822
        %v983 = vsub.f32 %v563, %v823
        %v984 = vadd.f32 %v920, 1e-05
        %v985 = vadd.f32 %v921, 1e-05
        %v986 = vadd.f32 %v922, 1e-05
        %v987 = vadd.f32 %v923, 1e-05
        %v988 = vadd.f32 %v924, 1e-05
        %v989 = vadd.f32 %v925, 1e-05
        %v990 = vadd.f32 %v926, 1e-05
        %v991 = vadd.f32 %v927, 1e-05
        %v992 = vadd.f32 %v928, 1e-05
        %v993 = vadd.f32 %v929, 1e-05
        %v994 = vadd.f32 %v930, 1e-05
        %v995 = vadd.f32 %v931, 1e-05
        %v996 = vadd.f32 %v932, 1e-05
        %v997 = vadd.f32 %v933, 1e-05
        %v998 = vadd.f32 %v934, 1e-05
        %v999 = vadd.f32 %v935, 1e-05
        %v1000 = vadd.f32 %v936, 1e-05
        %v1001 = vadd.f32 %v937, 1e-05
        %v1002 = vadd.f32 %v938, 1e-05
        %v1003 = vadd.f32 %v939, 1e-05
        %v1004 = vadd.f32 %v940, 1e-05
        %v1005 = vadd.f32 %v941, 1e-05
        %v1006 = vadd.f32 %v942, 1e-05
        %v1007 = vadd.f32 %v943, 1e-05
        %v1008 = vadd.f32 %v944, 1e-05
        %v1009 = vadd.f32 %v945, 1e-05
        %v1010 = vadd.f32 %v946, 1e-05
        %v1011 = vadd.f32 %v947, 1e-05
        %v1012 = vadd.f32 %v948, 1e-05
        %v1013 = vadd.f32 %v949, 1e-05
        %v1014 = vadd.f32 %v950, 1e-05
        %v1015 = vadd.f32 %v951, 1e-05
        %v1016 = vrsqrt.pop %v984
        %v1017 = vrsqrt.pop %v985
        %v1018 = vrsqrt.pop %v986
        %v1019 = vrsqrt.pop %v987
        %v1020 = vrsqrt.pop %v988
        %v1021 = vrsqrt.pop %v989
        %v1022 = vrsqrt.pop %v990
        %v1023 = vrsqrt.pop %v991
        %v1024 = vrsqrt.pop %v992
        %v1025 = vrsqrt.pop %v993
        %v1026 = vrsqrt.pop %v994
        %v1027 = vrsqrt.pop %v995
        %v1028 = vrsqrt.pop %v996
        %v1029 = vrsqrt.pop %v997
        %v1030 = vrsqrt.pop %v998
        %v1031 = vrsqrt.pop %v999
        %v1032 = vrsqrt.pop %v1000
        %v1033 = vrsqrt.pop %v1001
        %v1034 = vrsqrt.pop %v1002
        %v1035 = vrsqrt.pop %v1003
        %v1036 = vrsqrt.pop %v1004
        %v1037 = vrsqrt.pop %v1005
        %v1038 = vrsqrt.pop %v1006
        %v1039 = vrsqrt.pop %v1007
        %v1040 = vrsqrt.pop %v1008
        %v1041 = vrsqrt.pop %v1009
        %v1042 = vrsqrt.pop %v1010
        %v1043 = vrsqrt.pop %v1011
        %v1044 = vrsqrt.pop %v1012
        %v1045 = vrsqrt.pop %v1013
        %v1046 = vrsqrt.pop %v1014
        %v1047 = vrsqrt.pop %v1015
        %v1048 = vmul.f32 %v952, %v1016
        %v1049 = vmul.f32 %v953, %v1017
        %v1050 = vmul.f32 %v954, %v1018
        %v1051 = vmul.f32 %v955, %v1019
        %v1052 = vmul.f32 %v956, %v1020
        %v1053 = vmul.f32 %v957, %v1021
        %v1054 = vmul.f32 %v958, %v1022
        %v1055 = vmul.f32 %v959, %v1023
        %v1056 = vmul.f32 %v960, %v1024
        %v1057 = vmul.f32 %v961, %v1025
        %v1058 = vmul.f32 %v962, %v1026
        %v1059 = vmul.f32 %v963, %v1027
        %v1060 = vmul.f32 %v964, %v1028
        %v1061 = vmul.f32 %v965, %v1029
        %v1062 = vmul.f32 %v966, %v1030
        %v1063 = vmul.f32 %v967, %v1031
        %v1064 = vmul.f32 %v968, %v1032
        %v1065 = vmul.f32 %v969, %v1033
        %v1066 = vmul.f32 %v970, %v1034
        %v1067 = vmul.f32 %v971, %v1035
        %v1068 = vmul.f32 %v972, %v1036
        %v1069 = vmul.f32 %v973, %v1037
        %v1070 = vmul.f32 %v974, %v1038
        %v1071 = vmul.f32 %v975, %v1039
        %v1072 = vmul.f32 %v976, %v1040
        %v1073 = vmul.f32 %v977, %v1041
        %v1074 = vmul.f32 %v978, %v1042
        %v1075 = vmul.f32 %v979, %v1043
        %v1076 = vmul.f32 %v980, %v1044
        %v1077 = vmul.f32 %v981, %v1045
        %v1078 = vmul.f32 %v982, %v1046
        %v1079 = vmul.f32 %v983, %v1047
        %v1081 = vlaneseq
        %v1082 = vshrl.u32 %v1081, 7
        %v1083 = vsub.s32 0, %v1082
        %v1084 = vrot.slane %v564, %v1083
        %v1086 = vmul.f32 %v1048, %v1084
        %v1087 = vmul.f32 %v1049, %v1084
        %v1088 = vmul.f32 %v1050, %v1084
        %v1089 = vmul.f32 %v1051, %v1084
        %v1090 = vmul.f32 %v1052, %v1084
        %v1091 = vmul.f32 %v1053, %v1084
        %v1092 = vmul.f32 %v1054, %v1084
        %v1093 = vmul.f32 %v1055, %v1084
        %v1094 = vmul.f32 %v1056, %v1084
        %v1095 = vmul.f32 %v1057, %v1084
        %v1096 = vmul.f32 %v1058, %v1084
        %v1097 = vmul.f32 %v1059, %v1084
        %v1098 = vmul.f32 %v1060, %v1084
        %v1099 = vmul.f32 %v1061, %v1084
        %v1100 = vmul.f32 %v1062, %v1084
        %v1101 = vmul.f32 %v1063, %v1084
        %v1102 = vmul.f32 %v1064, %v1084
        %v1103 = vmul.f32 %v1065, %v1084
        %v1104 = vmul.f32 %v1066, %v1084
        %v1105 = vmul.f32 %v1067, %v1084
        %v1106 = vmul.f32 %v1068, %v1084
        %v1107 = vmul.f32 %v1069, %v1084
        %v1108 = vmul.f32 %v1070, %v1084
        %v1109 = vmul.f32 %v1071, %v1084
        %v1110 = vmul.f32 %v1072, %v1084
        %v1111 = vmul.f32 %v1073, %v1084
        %v1112 = vmul.f32 %v1074, %v1084
        %v1113 = vmul.f32 %v1075, %v1084
        %v1114 = vmul.f32 %v1076, %v1084
        %v1115 = vmul.f32 %v1077, %v1084
        %v1116 = vmul.f32 %v1078, %v1084
        %v1117 = vmul.f32 %v1079, %v1084
        %v1119 = vlaneseq
        %v1120 = vshrl.u32 %v1119, 7
        %v1121 = vsub.s32 0, %v1120
        %v1122 = vrot.slane %v565, %v1121
        %v1124 = vadd.f32 %v1086, %v1122
        %v1125 = vadd.f32 %v1087, %v1122
        %v1126 = vadd.f32 %v1088, %v1122
        %v1127 = vadd.f32 %v1089, %v1122
        %v1128 = vadd.f32 %v1090, %v1122
        %v1129 = vadd.f32 %v1091, %v1122
        %v1130 = vadd.f32 %v1092, %v1122
        %v1131 = vadd.f32 %v1093, %v1122
        %v1132 = vadd.f32 %v1094, %v1122
        %v1133 = vadd.f32 %v1095, %v1122
        %v1134 = vadd.f32 %v1096, %v1122
        %v1135 = vadd.f32 %v1097, %v1122
        %v1136 = vadd.f32 %v1098, %v1122
        %v1137 = vadd.f32 %v1099, %v1122
        %v1138 = vadd.f32 %v1100, %v1122
        %v1139 = vadd.f32 %v1101, %v1122
        %v1140 = vadd.f32 %v1102, %v1122
        %v1141 = vadd.f32 %v1103, %v1122
        %v1142 = vadd.f32 %v1104, %v1122
        %v1143 = vadd.f32 %v1105, %v1122
        %v1144 = vadd.f32 %v1106, %v1122
        %v1145 = vadd.f32 %v1107, %v1122
        %v1146 = vadd.f32 %v1108, %v1122
        %v1147 = vadd.f32 %v1109, %v1122
        %v1148 = vadd.f32 %v1110, %v1122
        %v1149 = vadd.f32 %v1111, %v1122
        %v1150 = vadd.f32 %v1112, %v1122
        %v1151 = vadd.f32 %v1113, %v1122
        %v1152 = vadd.f32 %v1114, %v1122
        %v1153 = vadd.f32 %v1115, %v1122
        %v1154 = vadd.f32 %v1116, %v1122
        %v1155 = vadd.f32 %v1117, %v1122
        %v1157 = vlaneseq
        %v1158 = vshrl.u32 %v1157, 7
        %v1159 = vsub.s32 0, %v1158
        %v1160 = vrot.slane %v566, %v1159
        %v1161 = vlaneseq
        %v1162 = vshrl.u32 %v1161, 7
        %v1163 = vsub.s32 1, %v1162
        %v1164 = vrot.slane %v566, %v1163
        %1167 = vmatprep.subr.mxu0 %v599
        %1168 = vmatpush1.msra.mxu0 %v598
        %1169 = vmatprep.subr.mxu0 %v597
        %1170 = vmatpush1.msra.mxu0 %v596
        %1171 = vmatprep.subr.mxu0 %v595
        %1172 = vmatpush1.msra.mxu0 %v594
        %1173 = vmatprep.subr.mxu0 %v593
        %1174 = vmatpush1.msra.mxu0 %v592
        %1175 = vmatprep.subr.mxu0 %v591
        %1176 = vmatpush1.msra.mxu0 %v590
        %1177 = vmatprep.subr.mxu0 %v589
        %1178 = vmatpush1.msra.mxu0 %v588
        %1179 = vmatprep.subr.mxu0 %v587
        %1180 = vmatpush1.msra.mxu0 %v586
        %1181 = vmatprep.subr.mxu0 %v585
        %1182 = vmatpush1.msra.mxu0 %v584
        %1183 = vmatprep.subr.mxu0 %v583
        %1184 = vmatpush1.msra.mxu0 %v582
        %1185 = vmatprep.subr.mxu0 %v581
        %1186 = vmatpush1.msra.mxu0 %v580
        %1187 = vmatprep.subr.mxu0 %v579
        %1188 = vmatpush1.msra.mxu0 %v578
        %1189 = vmatprep.subr.mxu0 %v577
        %1190 = vmatpush1.msra.mxu0 %v576
        %1191 = vmatprep.subr.mxu0 %v575
        %1192 = vmatpush1.msra.mxu0 %v574
        %1193 = vmatprep.subr.mxu0 %v573
        %1194 = vmatpush1.msra.mxu0 %v572
        %1195 = vmatprep.subr.mxu0 %v571
        %1196 = vmatpush1.msra.mxu0 %v570
        %1197 = vmatprep.subr.mxu0 %v569
        %1198 = vmatpush1.msra.mxu0 %v568
        %1199 = vmatprep.subr.mxu0 0.0
        %1200 = vmatpush2.msra.mxu0 0.0
        %1201 = vmatprep.subr.mxu0 0.0
        %1202 = vmatpush2.msra.mxu0 0.0
        %1203 = vmatprep.subr.mxu0 0.0
        %1204 = vmatpush2.msra.mxu0 0.0
        %1205 = vmatprep.subr.mxu0 0.0
        %1206 = vmatpush2.msra.mxu0 0.0
        %1207 = vmatprep.subr.mxu0 0.0
        %1208 = vmatpush2.msra.mxu0 0.0
        %1209 = vmatprep.subr.mxu0 0.0
        %1210 = vmatpush2.msra.mxu0 0.0
        %1211 = vmatprep.subr.mxu0 0.0
        %1212 = vmatpush2.msra.mxu0 0.0
        %1213 = vmatprep.subr.mxu0 0.0
        %1214 = vmatpush2.msra.mxu0 0.0
        %1215 = vmatprep.subr.mxu0 0.0
        %1216 = vmatpush2.msra.mxu0 0.0
        %1217 = vmatprep.subr.mxu0 0.0
        %1218 = vmatpush2.msra.mxu0 0.0
        %1219 = vmatprep.subr.mxu0 0.0
        %1220 = vmatpush2.msra.mxu0 0.0
        %1221 = vmatprep.subr.mxu0 0.0
        %1222 = vmatpush2.msra.mxu0 0.0
        %1223 = vmatprep.subr.mxu0 0.0
        %1224 = vmatpush2.msra.mxu0 0.0
        %1225 = vmatprep.subr.mxu0 0.0
        %1226 = vmatpush2.msra.mxu0 0.0
        %1227 = vmatprep.subr.mxu0 0.0
        %1228 = vmatpush2.msra.mxu0 0.0
        %1229 = vmatprep.subr.mxu0 0.0
        %1230 = vmatpush2.msra.mxu0 0.0
        %1231 = vmatprep.mubr.f32.mxu0 0.0
        %1232 = vmatmul.mubr.f32.gmra.mxu0 %v1124
        %v1233 = vpop.f32.mrf.mxu0
        %v1234 = vadd.f32 %v1160, %v1233
        %v1235 = vpop.f32.mrf.mxu0
        %v1236 = vadd.f32 %v1164, %v1235
        %1237 = vmatprep.mubr.f32.mxu0 0.0
        %1238 = vmatmul.mubr.f32.gmra.mxu0 %v1125
        %v1239 = vpop.f32.mrf.mxu0
        %v1240 = vadd.f32 %v1160, %v1239
        %v1241 = vpop.f32.mrf.mxu0
        %v1242 = vadd.f32 %v1164, %v1241
        %1243 = vmatprep.mubr.f32.mxu0 0.0
        %1244 = vmatmul.mubr.f32.gmra.mxu0 %v1126
        %v1245 = vpop.f32.mrf.mxu0
        %v1246 = vadd.f32 %v1160, %v1245
        %v1247 = vpop.f32.mrf.mxu0
        %v1248 = vadd.f32 %v1164, %v1247
        %1249 = vmatprep.mubr.f32.mxu0 0.0
        %1250 = vmatmul.mubr.f32.gmra.mxu0 %v1127
        %v1251 = vpop.f32.mrf.mxu0
        %v1252 = vadd.f32 %v1160, %v1251
        %v1253 = vpop.f32.mrf.mxu0
        %v1254 = vadd.f32 %v1164, %v1253
        %1255 = vmatprep.mubr.f32.mxu0 0.0
        %1256 = vmatmul.mubr.f32.gmra.mxu0 %v1128
        %v1257 = vpop.f32.mrf.mxu0
        %v1258 = vadd.f32 %v1160, %v1257
        %v1259 = vpop.f32.mrf.mxu0
        %v1260 = vadd.f32 %v1164, %v1259
        %1261 = vmatprep.mubr.f32.mxu0 0.0
        %1262 = vmatmul.mubr.f32.gmra.mxu0 %v1129
        %v1263 = vpop.f32.mrf.mxu0
        %v1264 = vadd.f32 %v1160, %v1263
        %v1265 = vpop.f32.mrf.mxu0
        %v1266 = vadd.f32 %v1164, %v1265
        %1267 = vmatprep.mubr.f32.mxu0 0.0
        %1268 = vmatmul.mubr.f32.gmra.mxu0 %v1130
        %v1269 = vpop.f32.mrf.mxu0
        %v1270 = vadd.f32 %v1160, %v1269
        %v1271 = vpop.f32.mrf.mxu0
        %v1272 = vadd.f32 %v1164, %v1271
        %1273 = vmatprep.mubr.f32.mxu0 0.0
        %1274 = vmatmul.mubr.f32.gmra.mxu0 %v1131
        %v1275 = vpop.f32.mrf.mxu0
        %v1276 = vadd.f32 %v1160, %v1275
        %v1277 = vpop.f32.mrf.mxu0
        %v1278 = vadd.f32 %v1164, %v1277
        %1279 = vmatprep.mubr.f32.mxu0 0.0
        %1280 = vmatmul.mubr.f32.gmra.mxu0 %v1132
        %v1281 = vpop.f32.mrf.mxu0
        %v1282 = vadd.f32 %v1160, %v1281
        %v1283 = vpop.f32.mrf.mxu0
        %v1284 = vadd.f32 %v1164, %v1283
        %1285 = vmatprep.mubr.f32.mxu0 0.0
        %1286 = vmatmul.mubr.f32.gmra.mxu0 %v1133
        %v1287 = vpop.f32.mrf.mxu0
        %v1288 = vadd.f32 %v1160, %v1287
        %v1289 = vpop.f32.mrf.mxu0
        %v1290 = vadd.f32 %v1164, %v1289
        %1291 = vmatprep.mubr.f32.mxu0 0.0
        %1292 = vmatmul.mubr.f32.gmra.mxu0 %v1134
        %v1293 = vpop.f32.mrf.mxu0
        %v1294 = vadd.f32 %v1160, %v1293
        %v1295 = vpop.f32.mrf.mxu0
        %v1296 = vadd.f32 %v1164, %v1295
        %1297 = vmatprep.mubr.f32.mxu0 0.0
        %1298 = vmatmul.mubr.f32.gmra.mxu0 %v1135
        %v1299 = vpop.f32.mrf.mxu0
        %v1300 = vadd.f32 %v1160, %v1299
        %v1301 = vpop.f32.mrf.mxu0
        %v1302 = vadd.f32 %v1164, %v1301
        %1303 = vmatprep.mubr.f32.mxu0 0.0
        %1304 = vmatmul.mubr.f32.gmra.mxu0 %v1136
        %v1305 = vpop.f32.mrf.mxu0
        %v1306 = vadd.f32 %v1160, %v1305
        %v1307 = vpop.f32.mrf.mxu0
        %v1308 = vadd.f32 %v1164, %v1307
        %1309 = vmatprep.mubr.f32.mxu0 0.0
        %1310 = vmatmul.mubr.f32.gmra.mxu0 %v1137
        %v1311 = vpop.f32.mrf.mxu0
        %v1312 = vadd.f32 %v1160, %v1311
        %v1313 = vpop.f32.mrf.mxu0
        %v1314 = vadd.f32 %v1164, %v1313
        %1315 = vmatprep.mubr.f32.mxu0 0.0
        %1316 = vmatmul.mubr.f32.gmra.mxu0 %v1138
        %v1317 = vpop.f32.mrf.mxu0
        %v1318 = vadd.f32 %v1160, %v1317
        %v1319 = vpop.f32.mrf.mxu0
        %v1320 = vadd.f32 %v1164, %v1319
        %1321 = vmatprep.mubr.f32.mxu0 0.0
        %1322 = vmatmul.mubr.f32.gmra.mxu0 %v1139
        %v1323 = vpop.f32.mrf.mxu0
        %v1324 = vadd.f32 %v1160, %v1323
        %v1325 = vpop.f32.mrf.mxu0
        %v1326 = vadd.f32 %v1164, %v1325
        %1327 = vmatprep.mubr.f32.mxu0 0.0
        %1328 = vmatmul.mubr.f32.gmra.mxu0 %v1140
        %v1329 = vpop.f32.mrf.mxu0
        %v1330 = vadd.f32 %v1160, %v1329
        %v1331 = vpop.f32.mrf.mxu0
        %v1332 = vadd.f32 %v1164, %v1331
        %1333 = vmatprep.mubr.f32.mxu0 0.0
        %1334 = vmatmul.mubr.f32.gmra.mxu0 %v1141
        %v1335 = vpop.f32.mrf.mxu0
        %v1336 = vadd.f32 %v1160, %v1335
        %v1337 = vpop.f32.mrf.mxu0
        %v1338 = vadd.f32 %v1164, %v1337
        %1339 = vmatprep.mubr.f32.mxu0 0.0
        %1340 = vmatmul.mubr.f32.gmra.mxu0 %v1142
        %v1341 = vpop.f32.mrf.mxu0
        %v1342 = vadd.f32 %v1160, %v1341
        %v1343 = vpop.f32.mrf.mxu0
        %v1344 = vadd.f32 %v1164, %v1343
        %1345 = vmatprep.mubr.f32.mxu0 0.0
        %1346 = vmatmul.mubr.f32.gmra.mxu0 %v1143
        %v1347 = vpop.f32.mrf.mxu0
        %v1348 = vadd.f32 %v1160, %v1347
        %v1349 = vpop.f32.mrf.mxu0
        %v1350 = vadd.f32 %v1164, %v1349
        %1351 = vmatprep.mubr.f32.mxu0 0.0
        %1352 = vmatmul.mubr.f32.gmra.mxu0 %v1144
        %v1353 = vpop.f32.mrf.mxu0
        %v1354 = vadd.f32 %v1160, %v1353
        %v1355 = vpop.f32.mrf.mxu0
        %v1356 = vadd.f32 %v1164, %v1355
        %1357 = vmatprep.mubr.f32.mxu0 0.0
        %1358 = vmatmul.mubr.f32.gmra.mxu0 %v1145
        %v1359 = vpop.f32.mrf.mxu0
        %v1360 = vadd.f32 %v1160, %v1359
        %v1361 = vpop.f32.mrf.mxu0
        %v1362 = vadd.f32 %v1164, %v1361
        %1363 = vmatprep.mubr.f32.mxu0 0.0
        %1364 = vmatmul.mubr.f32.gmra.mxu0 %v1146
        %v1365 = vpop.f32.mrf.mxu0
        %v1366 = vadd.f32 %v1160, %v1365
        %v1367 = vpop.f32.mrf.mxu0
        %v1368 = vadd.f32 %v1164, %v1367
        %1369 = vmatprep.mubr.f32.mxu0 0.0
        %1370 = vmatmul.mubr.f32.gmra.mxu0 %v1147
        %v1371 = vpop.f32.mrf.mxu0
        %v1372 = vadd.f32 %v1160, %v1371
        %v1373 = vpop.f32.mrf.mxu0
        %v1374 = vadd.f32 %v1164, %v1373
        %1375 = vmatprep.mubr.f32.mxu0 0.0
        %1376 = vmatmul.mubr.f32.gmra.mxu0 %v1148
        %v1377 = vpop.f32.mrf.mxu0
        %v1378 = vadd.f32 %v1160, %v1377
        %v1379 = vpop.f32.mrf.mxu0
        %v1380 = vadd.f32 %v1164, %v1379
        %1381 = vmatprep.mubr.f32.mxu0 0.0
        %1382 = vmatmul.mubr.f32.gmra.mxu0 %v1149
        %v1383 = vpop.f32.mrf.mxu0
        %v1384 = vadd.f32 %v1160, %v1383
        %v1385 = vpop.f32.mrf.mxu0
        %v1386 = vadd.f32 %v1164, %v1385
        %1387 = vmatprep.mubr.f32.mxu0 0.0
        %1388 = vmatmul.mubr.f32.gmra.mxu0 %v1150
        %v1389 = vpop.f32.mrf.mxu0
        %v1390 = vadd.f32 %v1160, %v1389
        %v1391 = vpop.f32.mrf.mxu0
        %v1392 = vadd.f32 %v1164, %v1391
        %1393 = vmatprep.mubr.f32.mxu0 0.0
        %1394 = vmatmul.mubr.f32.gmra.mxu0 %v1151
        %v1395 = vpop.f32.mrf.mxu0
        %v1396 = vadd.f32 %v1160, %v1395
        %v1397 = vpop.f32.mrf.mxu0
        %v1398 = vadd.f32 %v1164, %v1397
        %1399 = vmatprep.mubr.f32.mxu0 0.0
        %1400 = vmatmul.mubr.f32.gmra.mxu0 %v1152
        %v1401 = vpop.f32.mrf.mxu0
        %v1402 = vadd.f32 %v1160, %v1401
        %v1403 = vpop.f32.mrf.mxu0
        %v1404 = vadd.f32 %v1164, %v1403
        %1405 = vmatprep.mubr.f32.mxu0 0.0
        %1406 = vmatmul.mubr.f32.gmra.mxu0 %v1153
        %v1407 = vpop.f32.mrf.mxu0
        %v1408 = vadd.f32 %v1160, %v1407
        %v1409 = vpop.f32.mrf.mxu0
        %v1410 = vadd.f32 %v1164, %v1409
        %1411 = vmatprep.mubr.f32.mxu0 0.0
        %1412 = vmatmul.mubr.f32.gmra.mxu0 %v1154
        %v1413 = vpop.f32.mrf.mxu0
        %v1414 = vadd.f32 %v1160, %v1413
        %v1415 = vpop.f32.mrf.mxu0
        %v1416 = vadd.f32 %v1164, %v1415
        %1417 = vmatprep.mubr.f32.mxu0 0.0
        %1418 = vmatmul.mubr.f32.gmra.mxu0 %v1155
        %v1419 = vpop.f32.mrf.mxu0
        %v1420 = vadd.f32 %v1160, %v1419
        %v1421 = vpop.f32.mrf.mxu0
        %v1422 = vadd.f32 %v1164, %v1421
        %1423 = vdwg.mxu0
        %v1424 = vmax.f32 %v1234, 0.0
        %v1425 = vmax.f32 %v1236, 0.0
        %v1426 = vmax.f32 %v1240, 0.0
        %v1427 = vmax.f32 %v1242, 0.0
        %v1428 = vmax.f32 %v1246, 0.0
        %v1429 = vmax.f32 %v1248, 0.0
        %v1430 = vmax.f32 %v1252, 0.0
        %v1431 = vmax.f32 %v1254, 0.0
        %v1432 = vmax.f32 %v1258, 0.0
        %v1433 = vmax.f32 %v1260, 0.0
        %v1434 = vmax.f32 %v1264, 0.0
        %v1435 = vmax.f32 %v1266, 0.0
        %v1436 = vmax.f32 %v1270, 0.0
        %v1437 = vmax.f32 %v1272, 0.0
        %v1438 = vmax.f32 %v1276, 0.0
        %v1439 = vmax.f32 %v1278, 0.0
        %v1440 = vmax.f32 %v1282, 0.0
        %v1441 = vmax.f32 %v1284, 0.0
        %v1442 = vmax.f32 %v1288, 0.0
        %v1443 = vmax.f32 %v1290, 0.0
        %v1444 = vmax.f32 %v1294, 0.0
        %v1445 = vmax.f32 %v1296, 0.0
        %v1446 = vmax.f32 %v1300, 0.0
        %v1447 = vmax.f32 %v1302, 0.0
        %v1448 = vmax.f32 %v1306, 0.0
        %v1449 = vmax.f32 %v1308, 0.0
        %v1450 = vmax.f32 %v1312, 0.0
        %v1451 = vmax.f32 %v1314, 0.0
        %v1452 = vmax.f32 %v1318, 0.0
        %v1453 = vmax.f32 %v1320, 0.0
        %v1454 = vmax.f32 %v1324, 0.0
        %v1455 = vmax.f32 %v1326, 0.0
        %v1456 = vmax.f32 %v1330, 0.0
        %v1457 = vmax.f32 %v1332, 0.0
        %v1458 = vmax.f32 %v1336, 0.0
        %v1459 = vmax.f32 %v1338, 0.0
        %v1460 = vmax.f32 %v1342, 0.0
        %v1461 = vmax.f32 %v1344, 0.0
        %v1462 = vmax.f32 %v1348, 0.0
        %v1463 = vmax.f32 %v1350, 0.0
        %v1464 = vmax.f32 %v1354, 0.0
        %v1465 = vmax.f32 %v1356, 0.0
        %v1466 = vmax.f32 %v1360, 0.0
        %v1467 = vmax.f32 %v1362, 0.0
        %v1468 = vmax.f32 %v1366, 0.0
        %v1469 = vmax.f32 %v1368, 0.0
        %v1470 = vmax.f32 %v1372, 0.0
        %v1471 = vmax.f32 %v1374, 0.0
        %v1472 = vmax.f32 %v1378, 0.0
        %v1473 = vmax.f32 %v1380, 0.0
        %v1474 = vmax.f32 %v1384, 0.0
        %v1475 = vmax.f32 %v1386, 0.0
        %v1476 = vmax.f32 %v1390, 0.0
        %v1477 = vmax.f32 %v1392, 0.0
        %v1478 = vmax.f32 %v1396, 0.0
        %v1479 = vmax.f32 %v1398, 0.0
        %v1480 = vmax.f32 %v1402, 0.0
        %v1481 = vmax.f32 %v1404, 0.0
        %v1482 = vmax.f32 %v1408, 0.0
        %v1483 = vmax.f32 %v1410, 0.0
        %v1484 = vmax.f32 %v1414, 0.0
        %v1485 = vmax.f32 %v1416, 0.0
        %v1486 = vmax.f32 %v1420, 0.0
        %v1487 = vmax.f32 %v1422, 0.0
        %v1489 = vlaneseq
        %v1490 = vshrl.u32 %v1489, 7
        %v1491 = vsub.s32 0, %v1490
        %v1492 = vrot.slane %v567, %v1491
        %1494 = vmatprep.subr.mxu0 0.0
        %1495 = vmatpush1.msra.mxu0 %v615
        %1496 = vmatprep.subr.mxu0 0.0
        %1497 = vmatpush1.msra.mxu0 %v614
        %1498 = vmatprep.subr.mxu0 0.0
        %1499 = vmatpush1.msra.mxu0 %v613
        %1500 = vmatprep.subr.mxu0 0.0
        %1501 = vmatpush1.msra.mxu0 %v612
        %1502 = vmatprep.subr.mxu0 0.0
        %1503 = vmatpush1.msra.mxu0 %v611
        %1504 = vmatprep.subr.mxu0 0.0
        %1505 = vmatpush1.msra.mxu0 %v610
        %1506 = vmatprep.subr.mxu0 0.0
        %1507 = vmatpush1.msra.mxu0 %v609
        %1508 = vmatprep.subr.mxu0 0.0
        %1509 = vmatpush1.msra.mxu0 %v608
        %1510 = vmatprep.subr.mxu0 0.0
        %1511 = vmatpush1.msra.mxu0 %v607
        %1512 = vmatprep.subr.mxu0 0.0
        %1513 = vmatpush1.msra.mxu0 %v606
        %1514 = vmatprep.subr.mxu0 0.0
        %1515 = vmatpush1.msra.mxu0 %v605
        %1516 = vmatprep.subr.mxu0 0.0
        %1517 = vmatpush1.msra.mxu0 %v604
        %1518 = vmatprep.subr.mxu0 0.0
        %1519 = vmatpush1.msra.mxu0 %v603
        %1520 = vmatprep.subr.mxu0 0.0
        %1521 = vmatpush1.msra.mxu0 %v602
        %1522 = vmatprep.subr.mxu0 0.0
        %1523 = vmatpush1.msra.mxu0 %v601
        %1524 = vmatprep.subr.mxu0 0.0
        %1525 = vmatpush1.msra.mxu0 %v600
        %1526 = vmatprep.subr.mxu0 0.0
        %1527 = vmatpush2.msra.mxu0 %v631
        %1528 = vmatprep.subr.mxu0 0.0
        %1529 = vmatpush2.msra.mxu0 %v630
        %1530 = vmatprep.subr.mxu0 0.0
        %1531 = vmatpush2.msra.mxu0 %v629
        %1532 = vmatprep.subr.mxu0 0.0
        %1533 = vmatpush2.msra.mxu0 %v628
        %1534 = vmatprep.subr.mxu0 0.0
        %1535 = vmatpush2.msra.mxu0 %v627
        %1536 = vmatprep.subr.mxu0 0.0
        %1537 = vmatpush2.msra.mxu0 %v626
        %1538 = vmatprep.subr.mxu0 0.0
        %1539 = vmatpush2.msra.mxu0 %v625
        %1540 = vmatprep.subr.mxu0 0.0
        %1541 = vmatpush2.msra.mxu0 %v624
        %1542 = vmatprep.subr.mxu0 0.0
        %1543 = vmatpush2.msra.mxu0 %v623
        %1544 = vmatprep.subr.mxu0 0.0
        %1545 = vmatpush2.msra.mxu0 %v622
        %1546 = vmatprep.subr.mxu0 0.0
        %1547 = vmatpush2.msra.mxu0 %v621
        %1548 = vmatprep.subr.mxu0 0.0
        %1549 = vmatpush2.msra.mxu0 %v620
        %1550 = vmatprep.subr.mxu0 0.0
        %1551 = vmatpush2.msra.mxu0 %v619
        %1552 = vmatprep.subr.mxu0 0.0
        %1553 = vmatpush2.msra.mxu0 %v618
        %1554 = vmatprep.subr.mxu0 0.0
        %1555 = vmatpush2.msra.mxu0 %v617
        %1556 = vmatprep.subr.mxu0 0.0
        %1557 = vmatpush2.msra.mxu0 %v616
        %1558 = vmatprep.mubr.f32.mxu0 %v1425
        %1559 = vmatmul.mubr.f32.gmra.mxu0 %v1424
        %v1560 = vpop.f32.mrf.mxu0
        %v1561 = vadd.f32 %v1492, %v1560
        %v1562 = vpop.f32.mrf.mxu0
        %1563 = vmatprep.mubr.f32.mxu0 %v1427
        %1564 = vmatmul.mubr.f32.gmra.mxu0 %v1426
        %v1565 = vpop.f32.mrf.mxu0
        %v1566 = vadd.f32 %v1492, %v1565
        %v1567 = vpop.f32.mrf.mxu0
        %1568 = vmatprep.mubr.f32.mxu0 %v1429
        %1569 = vmatmul.mubr.f32.gmra.mxu0 %v1428
        %v1570 = vpop.f32.mrf.mxu0
        %v1571 = vadd.f32 %v1492, %v1570
        %v1572 = vpop.f32.mrf.mxu0
        %1573 = vmatprep.mubr.f32.mxu0 %v1431
        %1574 = vmatmul.mubr.f32.gmra.mxu0 %v1430
        %v1575 = vpop.f32.mrf.mxu0
        %v1576 = vadd.f32 %v1492, %v1575
        %v1577 = vpop.f32.mrf.mxu0
        %1578 = vmatprep.mubr.f32.mxu0 %v1433
        %1579 = vmatmul.mubr.f32.gmra.mxu0 %v1432
        %v1580 = vpop.f32.mrf.mxu0
        %v1581 = vadd.f32 %v1492, %v1580
        %v1582 = vpop.f32.mrf.mxu0
        %1583 = vmatprep.mubr.f32.mxu0 %v1435
        %1584 = vmatmul.mubr.f32.gmra.mxu0 %v1434
        %v1585 = vpop.f32.mrf.mxu0
        %v1586 = vadd.f32 %v1492, %v1585
        %v1587 = vpop.f32.mrf.mxu0
        %1588 = vmatprep.mubr.f32.mxu0 %v1437
        %1589 = vmatmul.mubr.f32.gmra.mxu0 %v1436
        %v1590 = vpop.f32.mrf.mxu0
        %v1591 = vadd.f32 %v1492, %v1590
        %v1592 = vpop.f32.mrf.mxu0
        %1593 = vmatprep.mubr.f32.mxu0 %v1439
        %1594 = vmatmul.mubr.f32.gmra.mxu0 %v1438
        %v1595 = vpop.f32.mrf.mxu0
        %v1596 = vadd.f32 %v1492, %v1595
        %v1597 = vpop.f32.mrf.mxu0
        %1598 = vmatprep.mubr.f32.mxu0 %v1441
        %1599 = vmatmul.mubr.f32.gmra.mxu0 %v1440
        %v1600 = vpop.f32.mrf.mxu0
        %v1601 = vadd.f32 %v1492, %v1600
        %v1602 = vpop.f32.mrf.mxu0
        %1603 = vmatprep.mubr.f32.mxu0 %v1443
        %1604 = vmatmul.mubr.f32.gmra.mxu0 %v1442
        %v1605 = vpop.f32.mrf.mxu0
        %v1606 = vadd.f32 %v1492, %v1605
        %v1607 = vpop.f32.mrf.mxu0
        %1608 = vmatprep.mubr.f32.mxu0 %v1445
        %1609 = vmatmul.mubr.f32.gmra.mxu0 %v1444
        %v1610 = vpop.f32.mrf.mxu0
        %v1611 = vadd.f32 %v1492, %v1610
        %v1612 = vpop.f32.mrf.mxu0
        %1613 = vmatprep.mubr.f32.mxu0 %v1447
        %1614 = vmatmul.mubr.f32.gmra.mxu0 %v1446
        %v1615 = vpop.f32.mrf.mxu0
        %v1616 = vadd.f32 %v1492, %v1615
        %v1617 = vpop.f32.mrf.mxu0
        %1618 = vmatprep.mubr.f32.mxu0 %v1449
        %1619 = vmatmul.mubr.f32.gmra.mxu0 %v1448
        %v1620 = vpop.f32.mrf.mxu0
        %v1621 = vadd.f32 %v1492, %v1620
        %v1622 = vpop.f32.mrf.mxu0
        %1623 = vmatprep.mubr.f32.mxu0 %v1451
        %1624 = vmatmul.mubr.f32.gmra.mxu0 %v1450
        %v1625 = vpop.f32.mrf.mxu0
        %v1626 = vadd.f32 %v1492, %v1625
        %v1627 = vpop.f32.mrf.mxu0
        %1628 = vmatprep.mubr.f32.mxu0 %v1453
        %1629 = vmatmul.mubr.f32.gmra.mxu0 %v1452
        %v1630 = vpop.f32.mrf.mxu0
        %v1631 = vadd.f32 %v1492, %v1630
        %v1632 = vpop.f32.mrf.mxu0
        %1633 = vmatprep.mubr.f32.mxu0 %v1455
        %1634 = vmatmul.mubr.f32.gmra.mxu0 %v1454
        %v1635 = vpop.f32.mrf.mxu0
        %v1636 = vadd.f32 %v1492, %v1635
        %v1637 = vpop.f32.mrf.mxu0
        %1638 = vmatprep.mubr.f32.mxu0 %v1457
        %1639 = vmatmul.mubr.f32.gmra.mxu0 %v1456
        %v1640 = vpop.f32.mrf.mxu0
        %v1641 = vadd.f32 %v1492, %v1640
        %v1642 = vpop.f32.mrf.mxu0
        %1643 = vmatprep.mubr.f32.mxu0 %v1459
        %1644 = vmatmul.mubr.f32.gmra.mxu0 %v1458
        %v1645 = vpop.f32.mrf.mxu0
        %v1646 = vadd.f32 %v1492, %v1645
        %v1647 = vpop.f32.mrf.mxu0
        %1648 = vmatprep.mubr.f32.mxu0 %v1461
        %1649 = vmatmul.mubr.f32.gmra.mxu0 %v1460
        %v1650 = vpop.f32.mrf.mxu0
        %v1651 = vadd.f32 %v1492, %v1650
        %v1652 = vpop.f32.mrf.mxu0
        %1653 = vmatprep.mubr.f32.mxu0 %v1463
        %1654 = vmatmul.mubr.f32.gmra.mxu0 %v1462
        %v1655 = vpop.f32.mrf.mxu0
        %v1656 = vadd.f32 %v1492, %v1655
        %v1657 = vpop.f32.mrf.mxu0
        %1658 = vmatprep.mubr.f32.mxu0 %v1465
        %1659 = vmatmul.mubr.f32.gmra.mxu0 %v1464
        %v1660 = vpop.f32.mrf.mxu0
        %v1661 = vadd.f32 %v1492, %v1660
        %v1662 = vpop.f32.mrf.mxu0
        %1663 = vmatprep.mubr.f32.mxu0 %v1467
        %1664 = vmatmul.mubr.f32.gmra.mxu0 %v1466
        %v1665 = vpop.f32.mrf.mxu0
        %v1666 = vadd.f32 %v1492, %v1665
        %v1667 = vpop.f32.mrf.mxu0
        %1668 = vmatprep.mubr.f32.mxu0 %v1469
        %1669 = vmatmul.mubr.f32.gmra.mxu0 %v1468
        %v1670 = vpop.f32.mrf.mxu0
        %v1671 = vadd.f32 %v1492, %v1670
        %v1672 = vpop.f32.mrf.mxu0
        %1673 = vmatprep.mubr.f32.mxu0 %v1471
        %1674 = vmatmul.mubr.f32.gmra.mxu0 %v1470
        %v1675 = vpop.f32.mrf.mxu0
        %v1676 = vadd.f32 %v1492, %v1675
        %v1677 = vpop.f32.mrf.mxu0
        %1678 = vmatprep.mubr.f32.mxu0 %v1473
        %1679 = vmatmul.mubr.f32.gmra.mxu0 %v1472
        %v1680 = vpop.f32.mrf.mxu0
        %v1681 = vadd.f32 %v1492, %v1680
        %v1682 = vpop.f32.mrf.mxu0
        %1683 = vmatprep.mubr.f32.mxu0 %v1475
        %1684 = vmatmul.mubr.f32.gmra.mxu0 %v1474
        %v1685 = vpop.f32.mrf.mxu0
        %v1686 = vadd.f32 %v1492, %v1685
        %v1687 = vpop.f32.mrf.mxu0
        %1688 = vmatprep.mubr.f32.mxu0 %v1477
        %1689 = vmatmul.mubr.f32.gmra.mxu0 %v1476
        %v1690 = vpop.f32.mrf.mxu0
        %v1691 = vadd.f32 %v1492, %v1690
        %v1692 = vpop.f32.mrf.mxu0
        %1693 = vmatprep.mubr.f32.mxu0 %v1479
        %1694 = vmatmul.mubr.f32.gmra.mxu0 %v1478
        %v1695 = vpop.f32.mrf.mxu0
        %v1696 = vadd.f32 %v1492, %v1695
        %v1697 = vpop.f32.mrf.mxu0
        %1698 = vmatprep.mubr.f32.mxu0 %v1481
        %1699 = vmatmul.mubr.f32.gmra.mxu0 %v1480
        %v1700 = vpop.f32.mrf.mxu0
        %v1701 = vadd.f32 %v1492, %v1700
        %v1702 = vpop.f32.mrf.mxu0
        %1703 = vmatprep.mubr.f32.mxu0 %v1483
        %1704 = vmatmul.mubr.f32.gmra.mxu0 %v1482
        %v1705 = vpop.f32.mrf.mxu0
        %v1706 = vadd.f32 %v1492, %v1705
        %v1707 = vpop.f32.mrf.mxu0
        %1708 = vmatprep.mubr.f32.mxu0 %v1485
        %1709 = vmatmul.mubr.f32.gmra.mxu0 %v1484
        %v1710 = vpop.f32.mrf.mxu0
        %v1711 = vadd.f32 %v1492, %v1710
        %v1712 = vpop.f32.mrf.mxu0
        %1713 = vmatprep.mubr.f32.mxu0 %v1487
        %1714 = vmatmul.mubr.f32.gmra.mxu0 %v1486
        %v1715 = vpop.f32.mrf.mxu0
        %v1716 = vadd.f32 %v1492, %v1715
        %v1717 = vpop.f32.mrf.mxu0
        %1718 = vdwg.mxu0
        %v1719 = vadd.f32 %v532, %v1561
        %v1720 = vadd.f32 %v533, %v1566
        %v1721 = vadd.f32 %v534, %v1571
        %v1722 = vadd.f32 %v535, %v1576
        %v1723 = vadd.f32 %v536, %v1581
        %v1724 = vadd.f32 %v537, %v1586
        %v1725 = vadd.f32 %v538, %v1591
        %v1726 = vadd.f32 %v539, %v1596
        %v1727 = vadd.f32 %v540, %v1601
        %v1728 = vadd.f32 %v541, %v1606
        %v1729 = vadd.f32 %v542, %v1611
        %v1730 = vadd.f32 %v543, %v1616
        %v1731 = vadd.f32 %v544, %v1621
        %v1732 = vadd.f32 %v545, %v1626
        %v1733 = vadd.f32 %v546, %v1631
        %v1734 = vadd.f32 %v547, %v1636
        %v1735 = vadd.f32 %v548, %v1641
        %v1736 = vadd.f32 %v549, %v1646
        %v1737 = vadd.f32 %v550, %v1651
        %v1738 = vadd.f32 %v551, %v1656
        %v1739 = vadd.f32 %v552, %v1661
        %v1740 = vadd.f32 %v553, %v1666
        %v1741 = vadd.f32 %v554, %v1671
        %v1742 = vadd.f32 %v555, %v1676
        %v1743 = vadd.f32 %v556, %v1681
        %v1744 = vadd.f32 %v557, %v1686
        %v1745 = vadd.f32 %v558, %v1691
        %v1746 = vadd.f32 %v559, %v1696
        %v1747 = vadd.f32 %v560, %v1701
        %v1748 = vadd.f32 %v561, %v1706
        %v1749 = vadd.f32 %v562, %v1711
        %v1750 = vadd.f32 %v563, %v1716
        %v1751 = vld [vmem:[%s7] sm:$0x1]
        %v1752 = vld [vmem:[%s8] sm:$0x1]
        %v1753 = vld [vmem:[%s10] sm:$0x3]
        %v1754 = vld [vmem:[%s12] sm:$0x1]
        %v1755 = vld [vmem:[#allocation10] sm:$0xff]
        %v1756 = vld [vmem:[#allocation10 + $0x8] sm:$0xff]
        %v1757 = vld [vmem:[#allocation10 + $0x10] sm:$0xff]
        %v1758 = vld [vmem:[#allocation10 + $0x18] sm:$0xff]
        %v1759 = vld [vmem:[#allocation10 + $0x20] sm:$0xff]
        %v1760 = vld [vmem:[#allocation10 + $0x28] sm:$0xff]
        %v1761 = vld [vmem:[#allocation10 + $0x30] sm:$0xff]
        %v1762 = vld [vmem:[#allocation10 + $0x38] sm:$0xff]
        %v1763 = vld [vmem:[#allocation10 + $0x40] sm:$0xff]
        %v1764 = vld [vmem:[#allocation10 + $0x48] sm:$0xff]
        %v1765 = vld [vmem:[#allocation10 + $0x50] sm:$0xff]
        %v1766 = vld [vmem:[#allocation10 + $0x58] sm:$0xff]
        %v1767 = vld [vmem:[#allocation10 + $0x60] sm:$0xff]
        %v1768 = vld [vmem:[#allocation10 + $0x68] sm:$0xff]
        %v1769 = vld [vmem:[#allocation10 + $0x70] sm:$0xff]
        %v1770 = vld [vmem:[#allocation10 + $0x78] sm:$0xff]
        %v1771 = vld [vmem:[#allocation10 + $0x80] sm:$0xff]
        %v1772 = vld [vmem:[#allocation10 + $0x88] sm:$0xff]
        %v1773 = vld [vmem:[#allocation10 + $0x90] sm:$0xff]
        %v1774 = vld [vmem:[#allocation10 + $0x98] sm:$0xff]
        %v1775 = vld [vmem:[#allocation10 + $0xa0] sm:$0xff]
        %v1776 = vld [vmem:[#allocation10 + $0xa8] sm:$0xff]
        %v1777 = vld [vmem:[#allocation10 + $0xb0] sm:$0xff]
        %v1778 = vld [vmem:[#allocation10 + $0xb8] sm:$0xff]
        %v1779 = vld [vmem:[#allocation10 + $0xc0] sm:$0xff]
        %v1780 = vld [vmem:[#allocation10 + $0xc8] sm:$0xff]
        %v1781 = vld [vmem:[#allocation10 + $0xd0] sm:$0xff]
        %v1782 = vld [vmem:[#allocation10 + $0xd8] sm:$0xff]
        %v1783 = vld [vmem:[#allocation10 + $0xe0] sm:$0xff]
        %v1784 = vld [vmem:[#allocation10 + $0xe8] sm:$0xff]
        %v1785 = vld [vmem:[#allocation10 + $0xf0] sm:$0xff]
        %v1786 = vld [vmem:[#allocation10 + $0xf8] sm:$0xff]
        %v1787 = vld [vmem:[#allocation11] sm:$0xff]
        %v1788 = vld [vmem:[#allocation11 + $0x8] sm:$0xff]
        %v1789 = vld [vmem:[#allocation11 + $0x10] sm:$0xff]
        %v1790 = vld [vmem:[#allocation11 + $0x18] sm:$0xff]
        %v1791 = vld [vmem:[#allocation11 + $0x20] sm:$0xff]
        %v1792 = vld [vmem:[#allocation11 + $0x28] sm:$0xff]
        %v1793 = vld [vmem:[#allocation11 + $0x30] sm:$0xff]
        %v1794 = vld [vmem:[#allocation11 + $0x38] sm:$0xff]
        %v1795 = vld [vmem:[#allocation11 + $0x40] sm:$0xff]
        %v1796 = vld [vmem:[#allocation11 + $0x48] sm:$0xff]
        %v1797 = vld [vmem:[#allocation11 + $0x50] sm:$0xff]
        %v1798 = vld [vmem:[#allocation11 + $0x58] sm:$0xff]
        %v1799 = vld [vmem:[#allocation11 + $0x60] sm:$0xff]
        %v1800 = vld [vmem:[#allocation11 + $0x68] sm:$0xff]
        %v1801 = vld [vmem:[#allocation11 + $0x70] sm:$0xff]
        %v1802 = vld [vmem:[#allocation11 + $0x78] sm:$0xff]
        %v1803 = vld [vmem:[#allocation11 + $0x80] sm:$0xff]
        %v1804 = vld [vmem:[#allocation11 + $0x88] sm:$0xff]
        %v1805 = vld [vmem:[#allocation11 + $0x90] sm:$0xff]
        %v1806 = vld [vmem:[#allocation11 + $0x98] sm:$0xff]
        %v1807 = vld [vmem:[#allocation11 + $0xa0] sm:$0xff]
        %v1808 = vld [vmem:[#allocation11 + $0xa8] sm:$0xff]
        %v1809 = vld [vmem:[#allocation11 + $0xb0] sm:$0xff]
        %v1810 = vld [vmem:[#allocation11 + $0xb8] sm:$0xff]
        %v1811 = vld [vmem:[#allocation11 + $0xc0] sm:$0xff]
        %v1812 = vld [vmem:[#allocation11 + $0xc8] sm:$0xff]
        %v1813 = vld [vmem:[#allocation11 + $0xd0] sm:$0xff]
        %v1814 = vld [vmem:[#allocation11 + $0xd8] sm:$0xff]
        %v1815 = vld [vmem:[#allocation11 + $0xe0] sm:$0xff]
        %v1816 = vld [vmem:[#allocation11 + $0xe8] sm:$0xff]
        %v1817 = vld [vmem:[#allocation11 + $0xf0] sm:$0xff]
        %v1818 = vld [vmem:[#allocation11 + $0xf8] sm:$0xff]
        %1819 = vadd.xlane.f32.xlu0 %v1719
        %v1820 = vpop.xlane.xlu0 %1819
        %1821 = vadd.xlane.f32.xlu0 %v1720
        %v1822 = vpop.xlane.xlu0 %1821
        %1823 = vadd.xlane.f32.xlu0 %v1721
        %v1824 = vpop.xlane.xlu0 %1823
        %1825 = vadd.xlane.f32.xlu0 %v1722
        %v1826 = vpop.xlane.xlu0 %1825
        %1827 = vadd.xlane.f32.xlu0 %v1723
        %v1828 = vpop.xlane.xlu0 %1827
        %1829 = vadd.xlane.f32.xlu0 %v1724
        %v1830 = vpop.xlane.xlu0 %1829
        %1831 = vadd.xlane.f32.xlu0 %v1725
        %v1832 = vpop.xlane.xlu0 %1831
        %1833 = vadd.xlane.f32.xlu0 %v1726
        %v1834 = vpop.xlane.xlu0 %1833
        %1835 = vadd.xlane.f32.xlu0 %v1727
        %v1836 = vpop.xlane.xlu0 %1835
        %1837 = vadd.xlane.f32.xlu0 %v1728
        %v1838 = vpop.xlane.xlu0 %1837
        %1839 = vadd.xlane.f32.xlu0 %v1729
        %v1840 = vpop.xlane.xlu0 %1839
        %1841 = vadd.xlane.f32.xlu0 %v1730
        %v1842 = vpop.xlane.xlu0 %1841
        %1843 = vadd.xlane.f32.xlu0 %v1731
        %v1844 = vpop.xlane.xlu0 %1843
        %1845 = vadd.xlane.f32.xlu0 %v1732
        %v1846 = vpop.xlane.xlu0 %1845
        %1847 = vadd.xlane.f32.xlu0 %v1733
        %v1848 = vpop.xlane.xlu0 %1847
        %1849 = vadd.xlane.f32.xlu0 %v1734
        %v1850 = vpop.xlane.xlu0 %1849
        %1851 = vadd.xlane.f32.xlu0 %v1735
        %v1852 = vpop.xlane.xlu0 %1851
        %1853 = vadd.xlane.f32.xlu0 %v1736
        %v1854 = vpop.xlane.xlu0 %1853
        %1855 = vadd.xlane.f32.xlu0 %v1737
        %v1856 = vpop.xlane.xlu0 %1855
        %1857 = vadd.xlane.f32.xlu0 %v1738
        %v1858 = vpop.xlane.xlu0 %1857
        %1859 = vadd.xlane.f32.xlu0 %v1739
        %v1860 = vpop.xlane.xlu0 %1859
        %1861 = vadd.xlane.f32.xlu0 %v1740
        %v1862 = vpop.xlane.xlu0 %1861
        %1863 = vadd.xlane.f32.xlu0 %v1741
        %v1864 = vpop.xlane.xlu0 %1863
        %1865 = vadd.xlane.f32.xlu0 %v1742
        %v1866 = vpop.xlane.xlu0 %1865
        %1867 = vadd.xlane.f32.xlu0 %v1743
        %v1868 = vpop.xlane.xlu0 %1867
        %1869 = vadd.xlane.f32.xlu0 %v1744
        %v1870 = vpop.xlane.xlu0 %1869
        %1871 = vadd.xlane.f32.xlu0 %v1745
        %v1872 = vpop.xlane.xlu0 %1871
        %1873 = vadd.xlane.f32.xlu0 %v1746
        %v1874 = vpop.xlane.xlu0 %1873
        %1875 = vadd.xlane.f32.xlu0 %v1747
        %v1876 = vpop.xlane.xlu0 %1875
        %1877 = vadd.xlane.f32.xlu0 %v1748
        %v1878 = vpop.xlane.xlu0 %1877
        %1879 = vadd.xlane.f32.xlu0 %v1749
        %v1880 = vpop.xlane.xlu0 %1879
        %1881 = vadd.xlane.f32.xlu0 %v1750
        %v1882 = vpop.xlane.xlu0 %1881
        %v1883 = vmul.f32 %v1719, %v1719
        %v1884 = vmul.f32 %v1720, %v1720
        %v1885 = vmul.f32 %v1721, %v1721
        %v1886 = vmul.f32 %v1722, %v1722
        %v1887 = vmul.f32 %v1723, %v1723
        %v1888 = vmul.f32 %v1724, %v1724
        %v1889 = vmul.f32 %v1725, %v1725
        %v1890 = vmul.f32 %v1726, %v1726
        %v1891 = vmul.f32 %v1727, %v1727
        %v1892 = vmul.f32 %v1728, %v1728
        %v1893 = vmul.f32 %v1729, %v1729
        %v1894 = vmul.f32 %v1730, %v1730
        %v1895 = vmul.f32 %v1731, %v1731
        %v1896 = vmul.f32 %v1732, %v1732
        %v1897 = vmul.f32 %v1733, %v1733
        %v1898 = vmul.f32 %v1734, %v1734
        %v1899 = vmul.f32 %v1735, %v1735
        %v1900 = vmul.f32 %v1736, %v1736
        %v1901 = vmul.f32 %v1737, %v1737
        %v1902 = vmul.f32 %v1738, %v1738
        %v1903 = vmul.f32 %v1739, %v1739
        %v1904 = vmul.f32 %v1740, %v1740
        %v1905 = vmul.f32 %v1741, %v1741
        %v1906 = vmul.f32 %v1742, %v1742
        %v1907 = vmul.f32 %v1743, %v1743
        %v1908 = vmul.f32 %v1744, %v1744
        %v1909 = vmul.f32 %v1745, %v1745
        %v1910 = vmul.f32 %v1746, %v1746
        %v1911 = vmul.f32 %v1747, %v1747
        %v1912 = vmul.f32 %v1748, %v1748
        %v1913 = vmul.f32 %v1749, %v1749
        %v1914 = vmul.f32 %v1750, %v1750
        %1915 = vadd.xlane.f32.xlu0 %v1883
        %v1916 = vpop.xlane.xlu0 %1915
        %1917 = vadd.xlane.f32.xlu0 %v1884
        %v1918 = vpop.xlane.xlu0 %1917
        %1919 = vadd.xlane.f32.xlu0 %v1885
        %v1920 = vpop.xlane.xlu0 %1919
        %1921 = vadd.xlane.f32.xlu0 %v1886
        %v1922 = vpop.xlane.xlu0 %1921
        %1923 = vadd.xlane.f32.xlu0 %v1887
        %v1924 = vpop.xlane.xlu0 %1923
        %1925 = vadd.xlane.f32.xlu0 %v1888
        %v1926 = vpop.xlane.xlu0 %1925
        %1927 = vadd.xlane.f32.xlu0 %v1889
        %v1928 = vpop.xlane.xlu0 %1927
        %1929 = vadd.xlane.f32.xlu0 %v1890
        %v1930 = vpop.xlane.xlu0 %1929
        %1931 = vadd.xlane.f32.xlu0 %v1891
        %v1932 = vpop.xlane.xlu0 %1931
        %1933 = vadd.xlane.f32.xlu0 %v1892
        %v1934 = vpop.xlane.xlu0 %1933
        %1935 = vadd.xlane.f32.xlu0 %v1893
        %v1936 = vpop.xlane.xlu0 %1935
        %1937 = vadd.xlane.f32.xlu0 %v1894
        %v1938 = vpop.xlane.xlu0 %1937
        %1939 = vadd.xlane.f32.xlu0 %v1895
        %v1940 = vpop.xlane.xlu0 %1939
        %1941 = vadd.xlane.f32.xlu0 %v1896
        %v1942 = vpop.xlane.xlu0 %1941
        %1943 = vadd.xlane.f32.xlu0 %v1897
        %v1944 = vpop.xlane.xlu0 %1943
        %1945 = vadd.xlane.f32.xlu0 %v1898
        %v1946 = vpop.xlane.xlu0 %1945
        %1947 = vadd.xlane.f32.xlu0 %v1899
        %v1948 = vpop.xlane.xlu0 %1947
        %1949 = vadd.xlane.f32.xlu0 %v1900
        %v1950 = vpop.xlane.xlu0 %1949
        %1951 = vadd.xlane.f32.xlu0 %v1901
        %v1952 = vpop.xlane.xlu0 %1951
        %1953 = vadd.xlane.f32.xlu0 %v1902
        %v1954 = vpop.xlane.xlu0 %1953
        %1955 = vadd.xlane.f32.xlu0 %v1903
        %v1956 = vpop.xlane.xlu0 %1955
        %1957 = vadd.xlane.f32.xlu0 %v1904
        %v1958 = vpop.xlane.xlu0 %1957
        %1959 = vadd.xlane.f32.xlu0 %v1905
        %v1960 = vpop.xlane.xlu0 %1959
        %1961 = vadd.xlane.f32.xlu0 %v1906
        %v1962 = vpop.xlane.xlu0 %1961
        %1963 = vadd.xlane.f32.xlu0 %v1907
        %v1964 = vpop.xlane.xlu0 %1963
        %1965 = vadd.xlane.f32.xlu0 %v1908
        %v1966 = vpop.xlane.xlu0 %1965
        %1967 = vadd.xlane.f32.xlu0 %v1909
        %v1968 = vpop.xlane.xlu0 %1967
        %1969 = vadd.xlane.f32.xlu0 %v1910
        %v1970 = vpop.xlane.xlu0 %1969
        %1971 = vadd.xlane.f32.xlu0 %v1911
        %v1972 = vpop.xlane.xlu0 %1971
        %1973 = vadd.xlane.f32.xlu0 %v1912
        %v1974 = vpop.xlane.xlu0 %1973
        %1975 = vadd.xlane.f32.xlu0 %v1913
        %v1976 = vpop.xlane.xlu0 %1975
        %1977 = vadd.xlane.f32.xlu0 %v1914
        %v1978 = vpop.xlane.xlu0 %1977
        %v1979 = vmul.f32 %v1820, 0.0078125
        %v1980 = vmul.f32 %v1822, 0.0078125
        %v1981 = vmul.f32 %v1824, 0.0078125
        %v1982 = vmul.f32 %v1826, 0.0078125
        %v1983 = vmul.f32 %v1828, 0.0078125
        %v1984 = vmul.f32 %v1830, 0.0078125
        %v1985 = vmul.f32 %v1832, 0.0078125
        %v1986 = vmul.f32 %v1834, 0.0078125
        %v1987 = vmul.f32 %v1836, 0.0078125
        %v1988 = vmul.f32 %v1838, 0.0078125
        %v1989 = vmul.f32 %v1840, 0.0078125
        %v1990 = vmul.f32 %v1842, 0.0078125
        %v1991 = vmul.f32 %v1844, 0.0078125
        %v1992 = vmul.f32 %v1846, 0.0078125
        %v1993 = vmul.f32 %v1848, 0.0078125
        %v1994 = vmul.f32 %v1850, 0.0078125
        %v1995 = vmul.f32 %v1852, 0.0078125
        %v1996 = vmul.f32 %v1854, 0.0078125
        %v1997 = vmul.f32 %v1856, 0.0078125
        %v1998 = vmul.f32 %v1858, 0.0078125
        %v1999 = vmul.f32 %v1860, 0.0078125
        %v2000 = vmul.f32 %v1862, 0.0078125
        %v2001 = vmul.f32 %v1864, 0.0078125
        %v2002 = vmul.f32 %v1866, 0.0078125
        %v2003 = vmul.f32 %v1868, 0.0078125
        %v2004 = vmul.f32 %v1870, 0.0078125
        %v2005 = vmul.f32 %v1872, 0.0078125
        %v2006 = vmul.f32 %v1874, 0.0078125
        %v2007 = vmul.f32 %v1876, 0.0078125
        %v2008 = vmul.f32 %v1878, 0.0078125
        %v2009 = vmul.f32 %v1880, 0.0078125
        %v2010 = vmul.f32 %v1882, 0.0078125
        %v2011 = vmul.f32 %v1916, 0.0078125
        %v2012 = vmul.f32 %v1918, 0.0078125
        %v2013 = vmul.f32 %v1920, 0.0078125
        %v2014 = vmul.f32 %v1922, 0.0078125
        %v2015 = vmul.f32 %v1924, 0.0078125
        %v2016 = vmul.f32 %v1926, 0.0078125
        %v2017 = vmul.f32 %v1928, 0.0078125
        %v2018 = vmul.f32 %v1930, 0.0078125
        %v2019 = vmul.f32 %v1932, 0.0078125
        %v2020 = vmul.f32 %v1934, 0.0078125
        %v2021 = vmul.f32 %v1936, 0.0078125
        %v2022 = vmul.f32 %v1938, 0.0078125
        %v2023 = vmul.f32 %v1940, 0.0078125
        %v2024 = vmul.f32 %v1942, 0.0078125
        %v2025 = vmul.f32 %v1944, 0.0078125
        %v2026 = vmul.f32 %v1946, 0.0078125
        %v2027 = vmul.f32 %v1948, 0.0078125
        %v2028 = vmul.f32 %v1950, 0.0078125
        %v2029 = vmul.f32 %v1952, 0.0078125
        %v2030 = vmul.f32 %v1954, 0.0078125
        %v2031 = vmul.f32 %v1956, 0.0078125
        %v2032 = vmul.f32 %v1958, 0.0078125
        %v2033 = vmul.f32 %v1960, 0.0078125
        %v2034 = vmul.f32 %v1962, 0.0078125
        %v2035 = vmul.f32 %v1964, 0.0078125
        %v2036 = vmul.f32 %v1966, 0.0078125
        %v2037 = vmul.f32 %v1968, 0.0078125
        %v2038 = vmul.f32 %v1970, 0.0078125
        %v2039 = vmul.f32 %v1972, 0.0078125
        %v2040 = vmul.f32 %v1974, 0.0078125
        %v2041 = vmul.f32 %v1976, 0.0078125
        %v2042 = vmul.f32 %v1978, 0.0078125
        %v2043 = vmul.f32 %v1979, %v1979
        %v2044 = vmul.f32 %v1980, %v1980
        %v2045 = vmul.f32 %v1981, %v1981
        %v2046 = vmul.f32 %v1982, %v1982
        %v2047 = vmul.f32 %v1983, %v1983
        %v2048 = vmul.f32 %v1984, %v1984
        %v2049 = vmul.f32 %v1985, %v1985
        %v2050 = vmul.f32 %v1986, %v1986
        %v2051 = vmul.f32 %v1987, %v1987
        %v2052 = vmul.f32 %v1988, %v1988
        %v2053 = vmul.f32 %v1989, %v1989
        %v2054 = vmul.f32 %v1990, %v1990
        %v2055 = vmul.f32 %v1991, %v1991
        %v2056 = vmul.f32 %v1992, %v1992
        %v2057 = vmul.f32 %v1993, %v1993
        %v2058 = vmul.f32 %v1994, %v1994
        %v2059 = vmul.f32 %v1995, %v1995
        %v2060 = vmul.f32 %v1996, %v1996
        %v2061 = vmul.f32 %v1997, %v1997
        %v2062 = vmul.f32 %v1998, %v1998
        %v2063 = vmul.f32 %v1999, %v1999
        %v2064 = vmul.f32 %v2000, %v2000
        %v2065 = vmul.f32 %v2001, %v2001
        %v2066 = vmul.f32 %v2002, %v2002
        %v2067 = vmul.f32 %v2003, %v2003
        %v2068 = vmul.f32 %v2004, %v2004
        %v2069 = vmul.f32 %v2005, %v2005
        %v2070 = vmul.f32 %v2006, %v2006
        %v2071 = vmul.f32 %v2007, %v2007
        %v2072 = vmul.f32 %v2008, %v2008
        %v2073 = vmul.f32 %v2009, %v2009
        %v2074 = vmul.f32 %v2010, %v2010
        %v2075 = vsub.f32 %v2011, %v2043
        %v2076 = vsub.f32 %v2012, %v2044
        %v2077 = vsub.f32 %v2013, %v2045
        %v2078 = vsub.f32 %v2014, %v2046
        %v2079 = vsub.f32 %v2015, %v2047
        %v2080 = vsub.f32 %v2016, %v2048
        %v2081 = vsub.f32 %v2017, %v2049
        %v2082 = vsub.f32 %v2018, %v2050
        %v2083 = vsub.f32 %v2019, %v2051
        %v2084 = vsub.f32 %v2020, %v2052
        %v2085 = vsub.f32 %v2021, %v2053
        %v2086 = vsub.f32 %v2022, %v2054
        %v2087 = vsub.f32 %v2023, %v2055
        %v2088 = vsub.f32 %v2024, %v2056
        %v2089 = vsub.f32 %v2025, %v2057
        %v2090 = vsub.f32 %v2026, %v2058
        %v2091 = vsub.f32 %v2027, %v2059
        %v2092 = vsub.f32 %v2028, %v2060
        %v2093 = vsub.f32 %v2029, %v2061
        %v2094 = vsub.f32 %v2030, %v2062
        %v2095 = vsub.f32 %v2031, %v2063
        %v2096 = vsub.f32 %v2032, %v2064
        %v2097 = vsub.f32 %v2033, %v2065
        %v2098 = vsub.f32 %v2034, %v2066
        %v2099 = vsub.f32 %v2035, %v2067
        %v2100 = vsub.f32 %v2036, %v2068
        %v2101 = vsub.f32 %v2037, %v2069
        %v2102 = vsub.f32 %v2038, %v2070
        %v2103 = vsub.f32 %v2039, %v2071
        %v2104 = vsub.f32 %v2040, %v2072
        %v2105 = vsub.f32 %v2041, %v2073
        %v2106 = vsub.f32 %v2042, %v2074
        %v2107 = vmax.f32 %v2075, 0.0
        %v2108 = vmax.f32 %v2076, 0.0
        %v2109 = vmax.f32 %v2077, 0.0
        %v2110 = vmax.f32 %v2078, 0.0
        %v2111 = vmax.f32 %v2079, 0.0
        %v2112 = vmax.f32 %v2080, 0.0
        %v2113 = vmax.f32 %v2081, 0.0
        %v2114 = vmax.f32 %v2082, 0.0
        %v2115 = vmax.f32 %v2083, 0.0
        %v2116 = vmax.f32 %v2084, 0.0
        %v2117 = vmax.f32 %v2085, 0.0
        %v2118 = vmax.f32 %v2086, 0.0
        %v2119 = vmax.f32 %v2087, 0.0
        %v2120 = vmax.f32 %v2088, 0.0
        %v2121 = vmax.f32 %v2089, 0.0
        %v2122 = vmax.f32 %v2090, 0.0
        %v2123 = vmax.f32 %v2091, 0.0
        %v2124 = vmax.f32 %v2092, 0.0
        %v2125 = vmax.f32 %v2093, 0.0
        %v2126 = vmax.f32 %v2094, 0.0
        %v2127 = vmax.f32 %v2095, 0.0
        %v2128 = vmax.f32 %v2096, 0.0
        %v2129 = vmax.f32 %v2097, 0.0
        %v2130 = vmax.f32 %v2098, 0.0
        %v2131 = vmax.f32 %v2099, 0.0
        %v2132 = vmax.f32 %v2100, 0.0
        %v2133 = vmax.f32 %v2101, 0.0
        %v2134 = vmax.f32 %v2102, 0.0
        %v2135 = vmax.f32 %v2103, 0.0
        %v2136 = vmax.f32 %v2104, 0.0
        %v2137 = vmax.f32 %v2105, 0.0
        %v2138 = vmax.f32 %v2106, 0.0
        %v2139 = vsub.f32 %v1719, %v1979
        %v2140 = vsub.f32 %v1720, %v1980
        %v2141 = vsub.f32 %v1721, %v1981
        %v2142 = vsub.f32 %v1722, %v1982
        %v2143 = vsub.f32 %v1723, %v1983
        %v2144 = vsub.f32 %v1724, %v1984
        %v2145 = vsub.f32 %v1725, %v1985
        %v2146 = vsub.f32 %v1726, %v1986
        %v2147 = vsub.f32 %v1727, %v1987
        %v2148 = vsub.f32 %v1728, %v1988
        %v2149 = vsub.f32 %v1729, %v1989
        %v2150 = vsub.f32 %v1730, %v1990
        %v2151 = vsub.f32 %v1731, %v1991
        %v2152 = vsub.f32 %v1732, %v1992
        %v2153 = vsub.f32 %v1733, %v1993
        %v2154 = vsub.f32 %v1734, %v1994
        %v2155 = vsub.f32 %v1735, %v1995
        %v2156 = vsub.f32 %v1736, %v1996
        %v2157 = vsub.f32 %v1737, %v1997
        %v2158 = vsub.f32 %v1738, %v1998
        %v2159 = vsub.f32 %v1739, %v1999
        %v2160 = vsub.f32 %v1740, %v2000
        %v2161 = vsub.f32 %v1741, %v2001
        %v2162 = vsub.f32 %v1742, %v2002
        %v2163 = vsub.f32 %v1743, %v2003
        %v2164 = vsub.f32 %v1744, %v2004
        %v2165 = vsub.f32 %v1745, %v2005
        %v2166 = vsub.f32 %v1746, %v2006
        %v2167 = vsub.f32 %v1747, %v2007
        %v2168 = vsub.f32 %v1748, %v2008
        %v2169 = vsub.f32 %v1749, %v2009
        %v2170 = vsub.f32 %v1750, %v2010
        %v2171 = vadd.f32 %v2107, 1e-05
        %v2172 = vadd.f32 %v2108, 1e-05
        %v2173 = vadd.f32 %v2109, 1e-05
        %v2174 = vadd.f32 %v2110, 1e-05
        %v2175 = vadd.f32 %v2111, 1e-05
        %v2176 = vadd.f32 %v2112, 1e-05
        %v2177 = vadd.f32 %v2113, 1e-05
        %v2178 = vadd.f32 %v2114, 1e-05
        %v2179 = vadd.f32 %v2115, 1e-05
        %v2180 = vadd.f32 %v2116, 1e-05
        %v2181 = vadd.f32 %v2117, 1e-05
        %v2182 = vadd.f32 %v2118, 1e-05
        %v2183 = vadd.f32 %v2119, 1e-05
        %v2184 = vadd.f32 %v2120, 1e-05
        %v2185 = vadd.f32 %v2121, 1e-05
        %v2186 = vadd.f32 %v2122, 1e-05
        %v2187 = vadd.f32 %v2123, 1e-05
        %v2188 = vadd.f32 %v2124, 1e-05
        %v2189 = vadd.f32 %v2125, 1e-05
        %v2190 = vadd.f32 %v2126, 1e-05
        %v2191 = vadd.f32 %v2127, 1e-05
        %v2192 = vadd.f32 %v2128, 1e-05
        %v2193 = vadd.f32 %v2129, 1e-05
        %v2194 = vadd.f32 %v2130, 1e-05
        %v2195 = vadd.f32 %v2131, 1e-05
        %v2196 = vadd.f32 %v2132, 1e-05
        %v2197 = vadd.f32 %v2133, 1e-05
        %v2198 = vadd.f32 %v2134, 1e-05
        %v2199 = vadd.f32 %v2135, 1e-05
        %v2200 = vadd.f32 %v2136, 1e-05
        %v2201 = vadd.f32 %v2137, 1e-05
        %v2202 = vadd.f32 %v2138, 1e-05
        %v2203 = vrsqrt.pop %v2171
        %v2204 = vrsqrt.pop %v2172
        %v2205 = vrsqrt.pop %v2173
        %v2206 = vrsqrt.pop %v2174
        %v2207 = vrsqrt.pop %v2175
        %v2208 = vrsqrt.pop %v2176
        %v2209 = vrsqrt.pop %v2177
        %v2210 = vrsqrt.pop %v2178
        %v2211 = vrsqrt.pop %v2179
        %v2212 = vrsqrt.pop %v2180
        %v2213 = vrsqrt.pop %v2181
        %v2214 = vrsqrt.pop %v2182
        %v2215 = vrsqrt.pop %v2183
        %v2216 = vrsqrt.pop %v2184
        %v2217 = vrsqrt.pop %v2185
        %v2218 = vrsqrt.pop %v2186
        %v2219 = vrsqrt.pop %v2187
        %v2220 = vrsqrt.pop %v2188
        %v2221 = vrsqrt.pop %v2189
        %v2222 = vrsqrt.pop %v2190
        %v2223 = vrsqrt.pop %v2191
        %v2224 = vrsqrt.pop %v2192
        %v2225 = vrsqrt.pop %v2193
        %v2226 = vrsqrt.pop %v2194
        %v2227 = vrsqrt.pop %v2195
        %v2228 = vrsqrt.pop %v2196
        %v2229 = vrsqrt.pop %v2197
        %v2230 = vrsqrt.pop %v2198
        %v2231 = vrsqrt.pop %v2199
        %v2232 = vrsqrt.pop %v2200
        %v2233 = vrsqrt.pop %v2201
        %v2234 = vrsqrt.pop %v2202
        %v2235 = vmul.f32 %v2139, %v2203
        %v2236 = vmul.f32 %v2140, %v2204
        %v2237 = vmul.f32 %v2141, %v2205
        %v2238 = vmul.f32 %v2142, %v2206
        %v2239 = vmul.f32 %v2143, %v2207
        %v2240 = vmul.f32 %v2144, %v2208
        %v2241 = vmul.f32 %v2145, %v2209
        %v2242 = vmul.f32 %v2146, %v2210
        %v2243 = vmul.f32 %v2147, %v2211
        %v2244 = vmul.f32 %v2148, %v2212
        %v2245 = vmul.f32 %v2149, %v2213
        %v2246 = vmul.f32 %v2150, %v2214
        %v2247 = vmul.f32 %v2151, %v2215
        %v2248 = vmul.f32 %v2152, %v2216
        %v2249 = vmul.f32 %v2153, %v2217
        %v2250 = vmul.f32 %v2154, %v2218
        %v2251 = vmul.f32 %v2155, %v2219
        %v2252 = vmul.f32 %v2156, %v2220
        %v2253 = vmul.f32 %v2157, %v2221
        %v2254 = vmul.f32 %v2158, %v2222
        %v2255 = vmul.f32 %v2159, %v2223
        %v2256 = vmul.f32 %v2160, %v2224
        %v2257 = vmul.f32 %v2161, %v2225
        %v2258 = vmul.f32 %v2162, %v2226
        %v2259 = vmul.f32 %v2163, %v2227
        %v2260 = vmul.f32 %v2164, %v2228
        %v2261 = vmul.f32 %v2165, %v2229
        %v2262 = vmul.f32 %v2166, %v2230
        %v2263 = vmul.f32 %v2167, %v2231
        %v2264 = vmul.f32 %v2168, %v2232
        %v2265 = vmul.f32 %v2169, %v2233
        %v2266 = vmul.f32 %v2170, %v2234
        %v2268 = vlaneseq
        %v2269 = vshrl.u32 %v2268, 7
        %v2270 = vsub.s32 0, %v2269
        %v2271 = vrot.slane %v1751, %v2270
        %v2273 = vmul.f32 %v2235, %v2271
        %v2274 = vmul.f32 %v2236, %v2271
        %v2275 = vmul.f32 %v2237, %v2271
        %v2276 = vmul.f32 %v2238, %v2271
        %v2277 = vmul.f32 %v2239, %v2271
        %v2278 = vmul.f32 %v2240, %v2271
        %v2279 = vmul.f32 %v2241, %v2271
        %v2280 = vmul.f32 %v2242, %v2271
        %v2281 = vmul.f32 %v2243, %v2271
        %v2282 = vmul.f32 %v2244, %v2271
        %v2283 = vmul.f32 %v2245, %v2271
        %v2284 = vmul.f32 %v2246, %v2271
        %v2285 = vmul.f32 %v2247, %v2271
        %v2286 = vmul.f32 %v2248, %v2271
        %v2287 = vmul.f32 %v2249, %v2271
        %v2288 = vmul.f32 %v2250, %v2271
        %v2289 = vmul.f32 %v2251, %v2271
        %v2290 = vmul.f32 %v2252, %v2271
        %v2291 = vmul.f32 %v2253, %v2271
        %v2292 = vmul.f32 %v2254, %v2271
        %v2293 = vmul.f32 %v2255, %v2271
        %v2294 = vmul.f32 %v2256, %v2271
        %v2295 = vmul.f32 %v2257, %v2271
        %v2296 = vmul.f32 %v2258, %v2271
        %v2297 = vmul.f32 %v2259, %v2271
        %v2298 = vmul.f32 %v2260, %v2271
        %v2299 = vmul.f32 %v2261, %v2271
        %v2300 = vmul.f32 %v2262, %v2271
        %v2301 = vmul.f32 %v2263, %v2271
        %v2302 = vmul.f32 %v2264, %v2271
        %v2303 = vmul.f32 %v2265, %v2271
        %v2304 = vmul.f32 %v2266, %v2271
        %v2306 = vlaneseq
        %v2307 = vshrl.u32 %v2306, 7
        %v2308 = vsub.s32 0, %v2307
        %v2309 = vrot.slane %v1752, %v2308
        %v2311 = vadd.f32 %v2273, %v2309
        %v2312 = vadd.f32 %v2274, %v2309
        %v2313 = vadd.f32 %v2275, %v2309
        %v2314 = vadd.f32 %v2276, %v2309
        %v2315 = vadd.f32 %v2277, %v2309
        %v2316 = vadd.f32 %v2278, %v2309
        %v2317 = vadd.f32 %v2279, %v2309
        %v2318 = vadd.f32 %v2280, %v2309
        %v2319 = vadd.f32 %v2281, %v2309
        %v2320 = vadd.f32 %v2282, %v2309
        %v2321 = vadd.f32 %v2283, %v2309
        %v2322 = vadd.f32 %v2284, %v2309
        %v2323 = vadd.f32 %v2285, %v2309
        %v2324 = vadd.f32 %v2286, %v2309
        %v2325 = vadd.f32 %v2287, %v2309
        %v2326 = vadd.f32 %v2288, %v2309
        %v2327 = vadd.f32 %v2289, %v2309
        %v2328 = vadd.f32 %v2290, %v2309
        %v2329 = vadd.f32 %v2291, %v2309
        %v2330 = vadd.f32 %v2292, %v2309
        %v2331 = vadd.f32 %v2293, %v2309
        %v2332 = vadd.f32 %v2294, %v2309
        %v2333 = vadd.f32 %v2295, %v2309
        %v2334 = vadd.f32 %v2296, %v2309
        %v2335 = vadd.f32 %v2297, %v2309
        %v2336 = vadd.f32 %v2298, %v2309
        %v2337 = vadd.f32 %v2299, %v2309
        %v2338 = vadd.f32 %v2300, %v2309
        %v2339 = vadd.f32 %v2301, %v2309
        %v2340 = vadd.f32 %v2302, %v2309
        %v2341 = vadd.f32 %v2303, %v2309
        %v2342 = vadd.f32 %v2304, %v2309
        %v2344 = vlaneseq
        %v2345 = vshrl.u32 %v2344, 7
        %v2346 = vsub.s32 0, %v2345
        %v2347 = vrot.slane %v1753, %v2346
        %v2348 = vlaneseq
        %v2349 = vshrl.u32 %v2348, 7
        %v2350 = vsub.s32 1, %v2349
        %v2351 = vrot.slane %v1753, %v2350
        %2354 = vmatprep.subr.mxu0 %v1786
        %2355 = vmatpush1.msra.mxu0 %v1785
        %2356 = vmatprep.subr.mxu0 %v1784
        %2357 = vmatpush1.msra.mxu0 %v1783
        %2358 = vmatprep.subr.mxu0 %v1782
        %2359 = vmatpush1.msra.mxu0 %v1781
        %2360 = vmatprep.subr.mxu0 %v1780
        %2361 = vmatpush1.msra.mxu0 %v1779
        %2362 = vmatprep.subr.mxu0 %v1778
        %2363 = vmatpush1.msra.mxu0 %v1777
        %2364 = vmatprep.subr.mxu0 %v1776
        %2365 = vmatpush1.msra.mxu0 %v1775
        %2366 = vmatprep.subr.mxu0 %v1774
        %2367 = vmatpush1.msra.mxu0 %v1773
        %2368 = vmatprep.subr.mxu0 %v1772
        %2369 = vmatpush1.msra.mxu0 %v1771
        %2370 = vmatprep.subr.mxu0 %v1770
        %2371 = vmatpush1.msra.mxu0 %v1769
        %2372 = vmatprep.subr.mxu0 %v1768
        %2373 = vmatpush1.msra.mxu0 %v1767
        %2374 = vmatprep.subr.mxu0 %v1766
        %2375 = vmatpush1.msra.mxu0 %v1765
        %2376 = vmatprep.subr.mxu0 %v1764
        %2377 = vmatpush1.msra.mxu0 %v1763
        %2378 = vmatprep.subr.mxu0 %v1762
        %2379 = vmatpush1.msra.mxu0 %v1761
        %2380 = vmatprep.subr.mxu0 %v1760
        %2381 = vmatpush1.msra.mxu0 %v1759
        %2382 = vmatprep.subr.mxu0 %v1758
        %2383 = vmatpush1.msra.mxu0 %v1757
        %2384 = vmatprep.subr.mxu0 %v1756
        %2385 = vmatpush1.msra.mxu0 %v1755
        %2386 = vmatprep.subr.mxu0 0.0
        %2387 = vmatpush2.msra.mxu0 0.0
        %2388 = vmatprep.subr.mxu0 0.0
        %2389 = vmatpush2.msra.mxu0 0.0
        %2390 = vmatprep.subr.mxu0 0.0
        %2391 = vmatpush2.msra.mxu0 0.0
        %2392 = vmatprep.subr.mxu0 0.0
        %2393 = vmatpush2.msra.mxu0 0.0
        %2394 = vmatprep.subr.mxu0 0.0
        %2395 = vmatpush2.msra.mxu0 0.0
        %2396 = vmatprep.subr.mxu0 0.0
        %2397 = vmatpush2.msra.mxu0 0.0
        %2398 = vmatprep.subr.mxu0 0.0
        %2399 = vmatpush2.msra.mxu0 0.0
        %2400 = vmatprep.subr.mxu0 0.0
        %2401 = vmatpush2.msra.mxu0 0.0
        %2402 = vmatprep.subr.mxu0 0.0
        %2403 = vmatpush2.msra.mxu0 0.0
        %2404 = vmatprep.subr.mxu0 0.0
        %2405 = vmatpush2.msra.mxu0 0.0
        %2406 = vmatprep.subr.mxu0 0.0
        %2407 = vmatpush2.msra.mxu0 0.0
        %2408 = vmatprep.subr.mxu0 0.0
        %2409 = vmatpush2.msra.mxu0 0.0
        %2410 = vmatprep.subr.mxu0 0.0
        %2411 = vmatpush2.msra.mxu0 0.0
        %2412 = vmatprep.subr.mxu0 0.0
        %2413 = vmatpush2.msra.mxu0 0.0
        %2414 = vmatprep.subr.mxu0 0.0
        %2415 = vmatpush2.msra.mxu0 0.0
        %2416 = vmatprep.subr.mxu0 0.0
        %2417 = vmatpush2.msra.mxu0 0.0
        %2418 = vmatprep.mubr.f32.mxu0 0.0
        %2419 = vmatmul.mubr.f32.gmra.mxu0 %v2311
        %v2420 = vpop.f32.mrf.mxu0
        %v2421 = vadd.f32 %v2347, %v2420
        %v2422 = vpop.f32.mrf.mxu0
        %v2423 = vadd.f32 %v2351, %v2422
        %2424 = vmatprep.mubr.f32.mxu0 0.0
        %2425 = vmatmul.mubr.f32.gmra.mxu0 %v2312
        %v2426 = vpop.f32.mrf.mxu0
        %v2427 = vadd.f32 %v2347, %v2426
        %v2428 = vpop.f32.mrf.mxu0
        %v2429 = vadd.f32 %v2351, %v2428
        %2430 = vmatprep.mubr.f32.mxu0 0.0
        %2431 = vmatmul.mubr.f32.gmra.mxu0 %v2313
        %v2432 = vpop.f32.mrf.mxu0
        %v2433 = vadd.f32 %v2347, %v2432
        %v2434 = vpop.f32.mrf.mxu0
        %v2435 = vadd.f32 %v2351, %v2434
        %2436 = vmatprep.mubr.f32.mxu0 0.0
        %2437 = vmatmul.mubr.f32.gmra.mxu0 %v2314
        %v2438 = vpop.f32.mrf.mxu0
        %v2439 = vadd.f32 %v2347, %v2438
        %v2440 = vpop.f32.mrf.mxu0
        %v2441 = vadd.f32 %v2351, %v2440
        %2442 = vmatprep.mubr.f32.mxu0 0.0
        %2443 = vmatmul.mubr.f32.gmra.mxu0 %v2315
        %v2444 = vpop.f32.mrf.mxu0
        %v2445 = vadd.f32 %v2347, %v2444
        %v2446 = vpop.f32.mrf.mxu0
        %v2447 = vadd.f32 %v2351, %v2446
        %2448 = vmatprep.mubr.f32.mxu0 0.0
        %2449 = vmatmul.mubr.f32.gmra.mxu0 %v2316
        %v2450 = vpop.f32.mrf.mxu0
        %v2451 = vadd.f32 %v2347, %v2450
        %v2452 = vpop.f32.mrf.mxu0
        %v2453 = vadd.f32 %v2351, %v2452
        %2454 = vmatprep.mubr.f32.mxu0 0.0
        %2455 = vmatmul.mubr.f32.gmra.mxu0 %v2317
        %v2456 = vpop.f32.mrf.mxu0
        %v2457 = vadd.f32 %v2347, %v2456
        %v2458 = vpop.f32.mrf.mxu0
        %v2459 = vadd.f32 %v2351, %v2458
        %2460 = vmatprep.mubr.f32.mxu0 0.0
        %2461 = vmatmul.mubr.f32.gmra.mxu0 %v2318
        %v2462 = vpop.f32.mrf.mxu0
        %v2463 = vadd.f32 %v2347, %v2462
        %v2464 = vpop.f32.mrf.mxu0
        %v2465 = vadd.f32 %v2351, %v2464
        %2466 = vmatprep.mubr.f32.mxu0 0.0
        %2467 = vmatmul.mubr.f32.gmra.mxu0 %v2319
        %v2468 = vpop.f32.mrf.mxu0
        %v2469 = vadd.f32 %v2347, %v2468
        %v2470 = vpop.f32.mrf.mxu0
        %v2471 = vadd.f32 %v2351, %v2470
        %2472 = vmatprep.mubr.f32.mxu0 0.0
        %2473 = vmatmul.mubr.f32.gmra.mxu0 %v2320
        %v2474 = vpop.f32.mrf.mxu0
        %v2475 = vadd.f32 %v2347, %v2474
        %v2476 = vpop.f32.mrf.mxu0
        %v2477 = vadd.f32 %v2351, %v2476
        %2478 = vmatprep.mubr.f32.mxu0 0.0
        %2479 = vmatmul.mubr.f32.gmra.mxu0 %v2321
        %v2480 = vpop.f32.mrf.mxu0
        %v2481 = vadd.f32 %v2347, %v2480
        %v2482 = vpop.f32.mrf.mxu0
        %v2483 = vadd.f32 %v2351, %v2482
        %2484 = vmatprep.mubr.f32.mxu0 0.0
        %2485 = vmatmul.mubr.f32.gmra.mxu0 %v2322
        %v2486 = vpop.f32.mrf.mxu0
        %v2487 = vadd.f32 %v2347, %v2486
        %v2488 = vpop.f32.mrf.mxu0
        %v2489 = vadd.f32 %v2351, %v2488
        %2490 = vmatprep.mubr.f32.mxu0 0.0
        %2491 = vmatmul.mubr.f32.gmra.mxu0 %v2323
        %v2492 = vpop.f32.mrf.mxu0
        %v2493 = vadd.f32 %v2347, %v2492
        %v2494 = vpop.f32.mrf.mxu0
        %v2495 = vadd.f32 %v2351, %v2494
        %2496 = vmatprep.mubr.f32.mxu0 0.0
        %2497 = vmatmul.mubr.f32.gmra.mxu0 %v2324
        %v2498 = vpop.f32.mrf.mxu0
        %v2499 = vadd.f32 %v2347, %v2498
        %v2500 = vpop.f32.mrf.mxu0
        %v2501 = vadd.f32 %v2351, %v2500
        %2502 = vmatprep.mubr.f32.mxu0 0.0
        %2503 = vmatmul.mubr.f32.gmra.mxu0 %v2325
        %v2504 = vpop.f32.mrf.mxu0
        %v2505 = vadd.f32 %v2347, %v2504
        %v2506 = vpop.f32.mrf.mxu0
        %v2507 = vadd.f32 %v2351, %v2506
        %2508 = vmatprep.mubr.f32.mxu0 0.0
        %2509 = vmatmul.mubr.f32.gmra.mxu0 %v2326
        %v2510 = vpop.f32.mrf.mxu0
        %v2511 = vadd.f32 %v2347, %v2510
        %v2512 = vpop.f32.mrf.mxu0
        %v2513 = vadd.f32 %v2351, %v2512
        %2514 = vmatprep.mubr.f32.mxu0 0.0
        %2515 = vmatmul.mubr.f32.gmra.mxu0 %v2327
        %v2516 = vpop.f32.mrf.mxu0
        %v2517 = vadd.f32 %v2347, %v2516
        %v2518 = vpop.f32.mrf.mxu0
        %v2519 = vadd.f32 %v2351, %v2518
        %2520 = vmatprep.mubr.f32.mxu0 0.0
        %2521 = vmatmul.mubr.f32.gmra.mxu0 %v2328
        %v2522 = vpop.f32.mrf.mxu0
        %v2523 = vadd.f32 %v2347, %v2522
        %v2524 = vpop.f32.mrf.mxu0
        %v2525 = vadd.f32 %v2351, %v2524
        %2526 = vmatprep.mubr.f32.mxu0 0.0
        %2527 = vmatmul.mubr.f32.gmra.mxu0 %v2329
        %v2528 = vpop.f32.mrf.mxu0
        %v2529 = vadd.f32 %v2347, %v2528
        %v2530 = vpop.f32.mrf.mxu0
        %v2531 = vadd.f32 %v2351, %v2530
        %2532 = vmatprep.mubr.f32.mxu0 0.0
        %2533 = vmatmul.mubr.f32.gmra.mxu0 %v2330
        %v2534 = vpop.f32.mrf.mxu0
        %v2535 = vadd.f32 %v2347, %v2534
        %v2536 = vpop.f32.mrf.mxu0
        %v2537 = vadd.f32 %v2351, %v2536
        %2538 = vmatprep.mubr.f32.mxu0 0.0
        %2539 = vmatmul.mubr.f32.gmra.mxu0 %v2331
        %v2540 = vpop.f32.mrf.mxu0
        %v2541 = vadd.f32 %v2347, %v2540
        %v2542 = vpop.f32.mrf.mxu0
        %v2543 = vadd.f32 %v2351, %v2542
        %2544 = vmatprep.mubr.f32.mxu0 0.0
        %2545 = vmatmul.mubr.f32.gmra.mxu0 %v2332
        %v2546 = vpop.f32.mrf.mxu0
        %v2547 = vadd.f32 %v2347, %v2546
        %v2548 = vpop.f32.mrf.mxu0
        %v2549 = vadd.f32 %v2351, %v2548
        %2550 = vmatprep.mubr.f32.mxu0 0.0
        %2551 = vmatmul.mubr.f32.gmra.mxu0 %v2333
        %v2552 = vpop.f32.mrf.mxu0
        %v2553 = vadd.f32 %v2347, %v2552
        %v2554 = vpop.f32.mrf.mxu0
        %v2555 = vadd.f32 %v2351, %v2554
        %2556 = vmatprep.mubr.f32.mxu0 0.0
        %2557 = vmatmul.mubr.f32.gmra.mxu0 %v2334
        %v2558 = vpop.f32.mrf.mxu0
        %v2559 = vadd.f32 %v2347, %v2558
        %v2560 = vpop.f32.mrf.mxu0
        %v2561 = vadd.f32 %v2351, %v2560
        %2562 = vmatprep.mubr.f32.mxu0 0.0
        %2563 = vmatmul.mubr.f32.gmra.mxu0 %v2335
        %v2564 = vpop.f32.mrf.mxu0
        %v2565 = vadd.f32 %v2347, %v2564
        %v2566 = vpop.f32.mrf.mxu0
        %v2567 = vadd.f32 %v2351, %v2566
        %2568 = vmatprep.mubr.f32.mxu0 0.0
        %2569 = vmatmul.mubr.f32.gmra.mxu0 %v2336
        %v2570 = vpop.f32.mrf.mxu0
        %v2571 = vadd.f32 %v2347, %v2570
        %v2572 = vpop.f32.mrf.mxu0
        %v2573 = vadd.f32 %v2351, %v2572
        %2574 = vmatprep.mubr.f32.mxu0 0.0
        %2575 = vmatmul.mubr.f32.gmra.mxu0 %v2337
        %v2576 = vpop.f32.mrf.mxu0
        %v2577 = vadd.f32 %v2347, %v2576
        %v2578 = vpop.f32.mrf.mxu0
        %v2579 = vadd.f32 %v2351, %v2578
        %2580 = vmatprep.mubr.f32.mxu0 0.0
        %2581 = vmatmul.mubr.f32.gmra.mxu0 %v2338
        %v2582 = vpop.f32.mrf.mxu0
        %v2583 = vadd.f32 %v2347, %v2582
        %v2584 = vpop.f32.mrf.mxu0
        %v2585 = vadd.f32 %v2351, %v2584
        %2586 = vmatprep.mubr.f32.mxu0 0.0
        %2587 = vmatmul.mubr.f32.gmra.mxu0 %v2339
        %v2588 = vpop.f32.mrf.mxu0
        %v2589 = vadd.f32 %v2347, %v2588
        %v2590 = vpop.f32.mrf.mxu0
        %v2591 = vadd.f32 %v2351, %v2590
        %2592 = vmatprep.mubr.f32.mxu0 0.0
        %2593 = vmatmul.mubr.f32.gmra.mxu0 %v2340
        %v2594 = vpop.f32.mrf.mxu0
        %v2595 = vadd.f32 %v2347, %v2594
        %v2596 = vpop.f32.mrf.mxu0
        %v2597 = vadd.f32 %v2351, %v2596
        %2598 = vmatprep.mubr.f32.mxu0 0.0
        %2599 = vmatmul.mubr.f32.gmra.mxu0 %v2341
        %v2600 = vpop.f32.mrf.mxu0
        %v2601 = vadd.f32 %v2347, %v2600
        %v2602 = vpop.f32.mrf.mxu0
        %v2603 = vadd.f32 %v2351, %v2602
        %2604 = vmatprep.mubr.f32.mxu0 0.0
        %2605 = vmatmul.mubr.f32.gmra.mxu0 %v2342
        %v2606 = vpop.f32.mrf.mxu0
        %v2607 = vadd.f32 %v2347, %v2606
        %v2608 = vpop.f32.mrf.mxu0
        %v2609 = vadd.f32 %v2351, %v2608
        %2610 = vdwg.mxu0
        %v2611 = vmax.f32 %v2421, 0.0
        %v2612 = vmax.f32 %v2423, 0.0
        %v2613 = vmax.f32 %v2427, 0.0
        %v2614 = vmax.f32 %v2429, 0.0
        %v2615 = vmax.f32 %v2433, 0.0
        %v2616 = vmax.f32 %v2435, 0.0
        %v2617 = vmax.f32 %v2439, 0.0
        %v2618 = vmax.f32 %v2441, 0.0
        %v2619 = vmax.f32 %v2445, 0.0
        %v2620 = vmax.f32 %v2447, 0.0
        %v2621 = vmax.f32 %v2451, 0.0
        %v2622 = vmax.f32 %v2453, 0.0
        %v2623 = vmax.f32 %v2457, 0.0
        %v2624 = vmax.f32 %v2459, 0.0
        %v2625 = vmax.f32 %v2463, 0.0
        %v2626 = vmax.f32 %v2465, 0.0
        %v2627 = vmax.f32 %v2469, 0.0
        %v2628 = vmax.f32 %v2471, 0.0
        %v2629 = vmax.f32 %v2475, 0.0
        %v2630 = vmax.f32 %v2477, 0.0
        %v2631 = vmax.f32 %v2481, 0.0
        %v2632 = vmax.f32 %v2483, 0.0
        %v2633 = vmax.f32 %v2487, 0.0
        %v2634 = vmax.f32 %v2489, 0.0
        %v2635 = vmax.f32 %v2493, 0.0
        %v2636 = vmax.f32 %v2495, 0.0
        %v2637 = vmax.f32 %v2499, 0.0
        %v2638 = vmax.f32 %v2501, 0.0
        %v2639 = vmax.f32 %v2505, 0.0
        %v2640 = vmax.f32 %v2507, 0.0
        %v2641 = vmax.f32 %v2511, 0.0
        %v2642 = vmax.f32 %v2513, 0.0
        %v2643 = vmax.f32 %v2517, 0.0
        %v2644 = vmax.f32 %v2519, 0.0
        %v2645 = vmax.f32 %v2523, 0.0
        %v2646 = vmax.f32 %v2525, 0.0
        %v2647 = vmax.f32 %v2529, 0.0
        %v2648 = vmax.f32 %v2531, 0.0
        %v2649 = vmax.f32 %v2535, 0.0
        %v2650 = vmax.f32 %v2537, 0.0
        %v2651 = vmax.f32 %v2541, 0.0
        %v2652 = vmax.f32 %v2543, 0.0
        %v2653 = vmax.f32 %v2547, 0.0
        %v2654 = vmax.f32 %v2549, 0.0
        %v2655 = vmax.f32 %v2553, 0.0
        %v2656 = vmax.f32 %v2555, 0.0
        %v2657 = vmax.f32 %v2559, 0.0
        %v2658 = vmax.f32 %v2561, 0.0
        %v2659 = vmax.f32 %v2565, 0.0
        %v2660 = vmax.f32 %v2567, 0.0
        %v2661 = vmax.f32 %v2571, 0.0
        %v2662 = vmax.f32 %v2573, 0.0
        %v2663 = vmax.f32 %v2577, 0.0
        %v2664 = vmax.f32 %v2579, 0.0
        %v2665 = vmax.f32 %v2583, 0.0
        %v2666 = vmax.f32 %v2585, 0.0
        %v2667 = vmax.f32 %v2589, 0.0
        %v2668 = vmax.f32 %v2591, 0.0
        %v2669 = vmax.f32 %v2595, 0.0
        %v2670 = vmax.f32 %v2597, 0.0
        %v2671 = vmax.f32 %v2601, 0.0
        %v2672 = vmax.f32 %v2603, 0.0
        %v2673 = vmax.f32 %v2607, 0.0
        %v2674 = vmax.f32 %v2609, 0.0
        %v2676 = vlaneseq
        %v2677 = vshrl.u32 %v2676, 7
        %v2678 = vsub.s32 0, %v2677
        %v2679 = vrot.slane %v1754, %v2678
        %2681 = vmatprep.subr.mxu0 0.0
        %2682 = vmatpush1.msra.mxu0 %v1802
        %2683 = vmatprep.subr.mxu0 0.0
        %2684 = vmatpush1.msra.mxu0 %v1801
        %2685 = vmatprep.subr.mxu0 0.0
        %2686 = vmatpush1.msra.mxu0 %v1800
        %2687 = vmatprep.subr.mxu0 0.0
        %2688 = vmatpush1.msra.mxu0 %v1799
        %2689 = vmatprep.subr.mxu0 0.0
        %2690 = vmatpush1.msra.mxu0 %v1798
        %2691 = vmatprep.subr.mxu0 0.0
        %2692 = vmatpush1.msra.mxu0 %v1797
        %2693 = vmatprep.subr.mxu0 0.0
        %2694 = vmatpush1.msra.mxu0 %v1796
        %2695 = vmatprep.subr.mxu0 0.0
        %2696 = vmatpush1.msra.mxu0 %v1795
        %2697 = vmatprep.subr.mxu0 0.0
        %2698 = vmatpush1.msra.mxu0 %v1794
        %2699 = vmatprep.subr.mxu0 0.0
        %2700 = vmatpush1.msra.mxu0 %v1793
        %2701 = vmatprep.subr.mxu0 0.0
        %2702 = vmatpush1.msra.mxu0 %v1792
        %2703 = vmatprep.subr.mxu0 0.0
        %2704 = vmatpush1.msra.mxu0 %v1791
        %2705 = vmatprep.subr.mxu0 0.0
        %2706 = vmatpush1.msra.mxu0 %v1790
        %2707 = vmatprep.subr.mxu0 0.0
        %2708 = vmatpush1.msra.mxu0 %v1789
        %2709 = vmatprep.subr.mxu0 0.0
        %2710 = vmatpush1.msra.mxu0 %v1788
        %2711 = vmatprep.subr.mxu0 0.0
        %2712 = vmatpush1.msra.mxu0 %v1787
        %2713 = vmatprep.subr.mxu0 0.0
        %2714 = vmatpush2.msra.mxu0 %v1818
        %2715 = vmatprep.subr.mxu0 0.0
        %2716 = vmatpush2.msra.mxu0 %v1817
        %2717 = vmatprep.subr.mxu0 0.0
        %2718 = vmatpush2.msra.mxu0 %v1816
        %2719 = vmatprep.subr.mxu0 0.0
        %2720 = vmatpush2.msra.mxu0 %v1815
        %2721 = vmatprep.subr.mxu0 0.0
        %2722 = vmatpush2.msra.mxu0 %v1814
        %2723 = vmatprep.subr.mxu0 0.0
        %2724 = vmatpush2.msra.mxu0 %v1813
        %2725 = vmatprep.subr.mxu0 0.0
        %2726 = vmatpush2.msra.mxu0 %v1812
        %2727 = vmatprep.subr.mxu0 0.0
        %2728 = vmatpush2.msra.mxu0 %v1811
        %2729 = vmatprep.subr.mxu0 0.0
        %2730 = vmatpush2.msra.mxu0 %v1810
        %2731 = vmatprep.subr.mxu0 0.0
        %2732 = vmatpush2.msra.mxu0 %v1809
        %2733 = vmatprep.subr.mxu0 0.0
        %2734 = vmatpush2.msra.mxu0 %v1808
        %2735 = vmatprep.subr.mxu0 0.0
        %2736 = vmatpush2.msra.mxu0 %v1807
        %2737 = vmatprep.subr.mxu0 0.0
        %2738 = vmatpush2.msra.mxu0 %v1806
        %2739 = vmatprep.subr.mxu0 0.0
        %2740 = vmatpush2.msra.mxu0 %v1805
        %2741 = vmatprep.subr.mxu0 0.0
        %2742 = vmatpush2.msra.mxu0 %v1804
        %2743 = vmatprep.subr.mxu0 0.0
        %2744 = vmatpush2.msra.mxu0 %v1803
        %2745 = vmatprep.mubr.f32.mxu0 %v2612
        %2746 = vmatmul.mubr.f32.gmra.mxu0 %v2611
        %v2747 = vpop.f32.mrf.mxu0
        %v2748 = vadd.f32 %v2679, %v2747
        %v2749 = vpop.f32.mrf.mxu0
        %2750 = vmatprep.mubr.f32.mxu0 %v2614
        %2751 = vmatmul.mubr.f32.gmra.mxu0 %v2613
        %v2752 = vpop.f32.mrf.mxu0
        %v2753 = vadd.f32 %v2679, %v2752
        %v2754 = vpop.f32.mrf.mxu0
        %2755 = vmatprep.mubr.f32.mxu0 %v2616
        %2756 = vmatmul.mubr.f32.gmra.mxu0 %v2615
        %v2757 = vpop.f32.mrf.mxu0
        %v2758 = vadd.f32 %v2679, %v2757
        %v2759 = vpop.f32.mrf.mxu0
        %2760 = vmatprep.mubr.f32.mxu0 %v2618
        %2761 = vmatmul.mubr.f32.gmra.mxu0 %v2617
        %v2762 = vpop.f32.mrf.mxu0
        %v2763 = vadd.f32 %v2679, %v2762
        %v2764 = vpop.f32.mrf.mxu0
        %2765 = vmatprep.mubr.f32.mxu0 %v2620
        %2766 = vmatmul.mubr.f32.gmra.mxu0 %v2619
        %v2767 = vpop.f32.mrf.mxu0
        %v2768 = vadd.f32 %v2679, %v2767
        %v2769 = vpop.f32.mrf.mxu0
        %2770 = vmatprep.mubr.f32.mxu0 %v2622
        %2771 = vmatmul.mubr.f32.gmra.mxu0 %v2621
        %v2772 = vpop.f32.mrf.mxu0
        %v2773 = vadd.f32 %v2679, %v2772
        %v2774 = vpop.f32.mrf.mxu0
        %2775 = vmatprep.mubr.f32.mxu0 %v2624
        %2776 = vmatmul.mubr.f32.gmra.mxu0 %v2623
        %v2777 = vpop.f32.mrf.mxu0
        %v2778 = vadd.f32 %v2679, %v2777
        %v2779 = vpop.f32.mrf.mxu0
        %2780 = vmatprep.mubr.f32.mxu0 %v2626
        %2781 = vmatmul.mubr.f32.gmra.mxu0 %v2625
        %v2782 = vpop.f32.mrf.mxu0
        %v2783 = vadd.f32 %v2679, %v2782
        %v2784 = vpop.f32.mrf.mxu0
        %2785 = vmatprep.mubr.f32.mxu0 %v2628
        %2786 = vmatmul.mubr.f32.gmra.mxu0 %v2627
        %v2787 = vpop.f32.mrf.mxu0
        %v2788 = vadd.f32 %v2679, %v2787
        %v2789 = vpop.f32.mrf.mxu0
        %2790 = vmatprep.mubr.f32.mxu0 %v2630
        %2791 = vmatmul.mubr.f32.gmra.mxu0 %v2629
        %v2792 = vpop.f32.mrf.mxu0
        %v2793 = vadd.f32 %v2679, %v2792
        %v2794 = vpop.f32.mrf.mxu0
        %2795 = vmatprep.mubr.f32.mxu0 %v2632
        %2796 = vmatmul.mubr.f32.gmra.mxu0 %v2631
        %v2797 = vpop.f32.mrf.mxu0
        %v2798 = vadd.f32 %v2679, %v2797
        %v2799 = vpop.f32.mrf.mxu0
        %2800 = vmatprep.mubr.f32.mxu0 %v2634
        %2801 = vmatmul.mubr.f32.gmra.mxu0 %v2633
        %v2802 = vpop.f32.mrf.mxu0
        %v2803 = vadd.f32 %v2679, %v2802
        %v2804 = vpop.f32.mrf.mxu0
        %2805 = vmatprep.mubr.f32.mxu0 %v2636
        %2806 = vmatmul.mubr.f32.gmra.mxu0 %v2635
        %v2807 = vpop.f32.mrf.mxu0
        %v2808 = vadd.f32 %v2679, %v2807
        %v2809 = vpop.f32.mrf.mxu0
        %2810 = vmatprep.mubr.f32.mxu0 %v2638
        %2811 = vmatmul.mubr.f32.gmra.mxu0 %v2637
        %v2812 = vpop.f32.mrf.mxu0
        %v2813 = vadd.f32 %v2679, %v2812
        %v2814 = vpop.f32.mrf.mxu0
        %2815 = vmatprep.mubr.f32.mxu0 %v2640
        %2816 = vmatmul.mubr.f32.gmra.mxu0 %v2639
        %v2817 = vpop.f32.mrf.mxu0
        %v2818 = vadd.f32 %v2679, %v2817
        %v2819 = vpop.f32.mrf.mxu0
        %2820 = vmatprep.mubr.f32.mxu0 %v2642
        %2821 = vmatmul.mubr.f32.gmra.mxu0 %v2641
        %v2822 = vpop.f32.mrf.mxu0
        %v2823 = vadd.f32 %v2679, %v2822
        %v2824 = vpop.f32.mrf.mxu0
        %2825 = vmatprep.mubr.f32.mxu0 %v2644
        %2826 = vmatmul.mubr.f32.gmra.mxu0 %v2643
        %v2827 = vpop.f32.mrf.mxu0
        %v2828 = vadd.f32 %v2679, %v2827
        %v2829 = vpop.f32.mrf.mxu0
        %2830 = vmatprep.mubr.f32.mxu0 %v2646
        %2831 = vmatmul.mubr.f32.gmra.mxu0 %v2645
        %v2832 = vpop.f32.mrf.mxu0
        %v2833 = vadd.f32 %v2679, %v2832
        %v2834 = vpop.f32.mrf.mxu0
        %2835 = vmatprep.mubr.f32.mxu0 %v2648
        %2836 = vmatmul.mubr.f32.gmra.mxu0 %v2647
        %v2837 = vpop.f32.mrf.mxu0
        %v2838 = vadd.f32 %v2679, %v2837
        %v2839 = vpop.f32.mrf.mxu0
        %2840 = vmatprep.mubr.f32.mxu0 %v2650
        %2841 = vmatmul.mubr.f32.gmra.mxu0 %v2649
        %v2842 = vpop.f32.mrf.mxu0
        %v2843 = vadd.f32 %v2679, %v2842
        %v2844 = vpop.f32.mrf.mxu0
        %2845 = vmatprep.mubr.f32.mxu0 %v2652
        %2846 = vmatmul.mubr.f32.gmra.mxu0 %v2651
        %v2847 = vpop.f32.mrf.mxu0
        %v2848 = vadd.f32 %v2679, %v2847
        %v2849 = vpop.f32.mrf.mxu0
        %2850 = vmatprep.mubr.f32.mxu0 %v2654
        %2851 = vmatmul.mubr.f32.gmra.mxu0 %v2653
        %v2852 = vpop.f32.mrf.mxu0
        %v2853 = vadd.f32 %v2679, %v2852
        %v2854 = vpop.f32.mrf.mxu0
        %2855 = vmatprep.mubr.f32.mxu0 %v2656
        %2856 = vmatmul.mubr.f32.gmra.mxu0 %v2655
        %v2857 = vpop.f32.mrf.mxu0
        %v2858 = vadd.f32 %v2679, %v2857
        %v2859 = vpop.f32.mrf.mxu0
        %2860 = vmatprep.mubr.f32.mxu0 %v2658
        %2861 = vmatmul.mubr.f32.gmra.mxu0 %v2657
        %v2862 = vpop.f32.mrf.mxu0
        %v2863 = vadd.f32 %v2679, %v2862
        %v2864 = vpop.f32.mrf.mxu0
        %2865 = vmatprep.mubr.f32.mxu0 %v2660
        %2866 = vmatmul.mubr.f32.gmra.mxu0 %v2659
        %v2867 = vpop.f32.mrf.mxu0
        %v2868 = vadd.f32 %v2679, %v2867
        %v2869 = vpop.f32.mrf.mxu0
        %2870 = vmatprep.mubr.f32.mxu0 %v2662
        %2871 = vmatmul.mubr.f32.gmra.mxu0 %v2661
        %v2872 = vpop.f32.mrf.mxu0
        %v2873 = vadd.f32 %v2679, %v2872
        %v2874 = vpop.f32.mrf.mxu0
        %2875 = vmatprep.mubr.f32.mxu0 %v2664
        %2876 = vmatmul.mubr.f32.gmra.mxu0 %v2663
        %v2877 = vpop.f32.mrf.mxu0
        %v2878 = vadd.f32 %v2679, %v2877
        %v2879 = vpop.f32.mrf.mxu0
        %2880 = vmatprep.mubr.f32.mxu0 %v2666
        %2881 = vmatmul.mubr.f32.gmra.mxu0 %v2665
        %v2882 = vpop.f32.mrf.mxu0
        %v2883 = vadd.f32 %v2679, %v2882
        %v2884 = vpop.f32.mrf.mxu0
        %2885 = vmatprep.mubr.f32.mxu0 %v2668
        %2886 = vmatmul.mubr.f32.gmra.mxu0 %v2667
        %v2887 = vpop.f32.mrf.mxu0
        %v2888 = vadd.f32 %v2679, %v2887
        %v2889 = vpop.f32.mrf.mxu0
        %2890 = vmatprep.mubr.f32.mxu0 %v2670
        %2891 = vmatmul.mubr.f32.gmra.mxu0 %v2669
        %v2892 = vpop.f32.mrf.mxu0
        %v2893 = vadd.f32 %v2679, %v2892
        %v2894 = vpop.f32.mrf.mxu0
        %2895 = vmatprep.mubr.f32.mxu0 %v2672
        %2896 = vmatmul.mubr.f32.gmra.mxu0 %v2671
        %v2897 = vpop.f32.mrf.mxu0
        %v2898 = vadd.f32 %v2679, %v2897
        %v2899 = vpop.f32.mrf.mxu0
        %2900 = vmatprep.mubr.f32.mxu0 %v2674
        %2901 = vmatmul.mubr.f32.gmra.mxu0 %v2673
        %v2902 = vpop.f32.mrf.mxu0
        %v2903 = vadd.f32 %v2679, %v2902
        %v2904 = vpop.f32.mrf.mxu0
        %2905 = vdwg.mxu0
        %v2906 = vadd.f32 %v1719, %v2748
        %v2907 = vadd.f32 %v1720, %v2753
        %v2908 = vadd.f32 %v1721, %v2758
        %v2909 = vadd.f32 %v1722, %v2763
        %v2910 = vadd.f32 %v1723, %v2768
        %v2911 = vadd.f32 %v1724, %v2773
        %v2912 = vadd.f32 %v1725, %v2778
        %v2913 = vadd.f32 %v1726, %v2783
        %v2914 = vadd.f32 %v1727, %v2788
        %v2915 = vadd.f32 %v1728, %v2793
        %v2916 = vadd.f32 %v1729, %v2798
        %v2917 = vadd.f32 %v1730, %v2803
        %v2918 = vadd.f32 %v1731, %v2808
        %v2919 = vadd.f32 %v1732, %v2813
        %v2920 = vadd.f32 %v1733, %v2818
        %v2921 = vadd.f32 %v1734, %v2823
        %v2922 = vadd.f32 %v1735, %v2828
        %v2923 = vadd.f32 %v1736, %v2833
        %v2924 = vadd.f32 %v1737, %v2838
        %v2925 = vadd.f32 %v1738, %v2843
        %v2926 = vadd.f32 %v1739, %v2848
        %v2927 = vadd.f32 %v1740, %v2853
        %v2928 = vadd.f32 %v1741, %v2858
        %v2929 = vadd.f32 %v1742, %v2863
        %v2930 = vadd.f32 %v1743, %v2868
        %v2931 = vadd.f32 %v1744, %v2873
        %v2932 = vadd.f32 %v1745, %v2878
        %v2933 = vadd.f32 %v1746, %v2883
        %v2934 = vadd.f32 %v1747, %v2888
        %v2935 = vadd.f32 %v1748, %v2893
        %v2936 = vadd.f32 %v1749, %v2898
        %v2937 = vadd.f32 %v1750, %v2903
        %2938 = vst [vmem:[%s529] sm:$0xff] %v2906
        %2939 = vst [vmem:[%s529 + $0x8] sm:$0xff] %v2907
        %2940 = vst [vmem:[%s529 + $0x10] sm:$0xff] %v2908
        %2941 = vst [vmem:[%s529 + $0x18] sm:$0xff] %v2909
        %2942 = vst [vmem:[%s529 + $0x20] sm:$0xff] %v2910
        %2943 = vst [vmem:[%s529 + $0x28] sm:$0xff] %v2911
        %2944 = vst [vmem:[%s529 + $0x30] sm:$0xff] %v2912
        %2945 = vst [vmem:[%s529 + $0x38] sm:$0xff] %v2913
        %2946 = vst [vmem:[%s529 + $0x40] sm:$0xff] %v2914
        %2947 = vst [vmem:[%s529 + $0x48] sm:$0xff] %v2915
        %2948 = vst [vmem:[%s529 + $0x50] sm:$0xff] %v2916
        %2949 = vst [vmem:[%s529 + $0x58] sm:$0xff] %v2917
        %2950 = vst [vmem:[%s529 + $0x60] sm:$0xff] %v2918
        %2951 = vst [vmem:[%s529 + $0x68] sm:$0xff] %v2919
        %2952 = vst [vmem:[%s529 + $0x70] sm:$0xff] %v2920
        %2953 = vst [vmem:[%s529 + $0x78] sm:$0xff] %v2921
        %2954 = vst [vmem:[%s529 + $0x80] sm:$0xff] %v2922
        %2955 = vst [vmem:[%s529 + $0x88] sm:$0xff] %v2923
        %2956 = vst [vmem:[%s529 + $0x90] sm:$0xff] %v2924
        %2957 = vst [vmem:[%s529 + $0x98] sm:$0xff] %v2925
        %2958 = vst [vmem:[%s529 + $0xa0] sm:$0xff] %v2926
        %2959 = vst [vmem:[%s529 + $0xa8] sm:$0xff] %v2927
        %2960 = vst [vmem:[%s529 + $0xb0] sm:$0xff] %v2928
        %2961 = vst [vmem:[%s529 + $0xb8] sm:$0xff] %v2929
        %2962 = vst [vmem:[%s529 + $0xc0] sm:$0xff] %v2930
        %2963 = vst [vmem:[%s529 + $0xc8] sm:$0xff] %v2931
        %2964 = vst [vmem:[%s529 + $0xd0] sm:$0xff] %v2932
        %2965 = vst [vmem:[%s529 + $0xd8] sm:$0xff] %v2933
        %2966 = vst [vmem:[%s529 + $0xe0] sm:$0xff] %v2934
        %2967 = vst [vmem:[%s529 + $0xe8] sm:$0xff] %v2935
        %2968 = vst [vmem:[%s529 + $0xf0] sm:$0xff] %v2936
        %2969 = vst [vmem:[%s529 + $0xf8] sm:$0xff] %v2937
        %s2970 = sand.u32 %s319, 1
        %s2971 = scalar_lea.sflag [#allocation4], %s2970
        %s2972 = sand.u32 %s319, 1
        %s2973 = smul.addr %s2972, 256
        %s2974 = scalar_lea.vmem [#allocation13], %s2973
        // Predicated region
        $region97: #{tpu_custom_call.1} parent=71 // pred_check
          %p2975 = pneg %p329
        $region98: #{tpu_custom_call.1} parent=71 // pred_check_branch
          %2977 = sbr.rel (%p2975) target = $region100
        $region99: #{tpu_custom_call.1} parent=71 // pred_region
          %s2978 = smul.u32 32, %s33
          %s2980 = ssub.s32 4096, 4096
          %2981 = vsyncadd %s2971, %s2980
          %s2982 = smul.addr %s2978, 128
          %s2983 = scalar_lea.hbm %s13, %s2982
          %s2984 = sshll.u32 %s2974, 4
          %s2985 = int_to_ptr.vmem [resolvable:$true] %s2984
          %2990 = dma.vmem_to_hbm [thread:$0]  %s2985, 4096, %s2983, %s2971, 128, 128, 8
        $region100: #{tpu_custom_call.1} parent=71 // pred_fallthru
          _
      $region72: #{tpu_custom_call.1} parent=5 // pred_fallthru
        _
      %p2991 = scmp.le.s32.totalorder 2, %s28
      // Predicated region
      $region101: #{tpu_custom_call.1} parent=5 // pred_check
        %p2992 = pneg %p2991
      $region102: #{tpu_custom_call.1} parent=5 // pred_check_branch
        %2994 = sbr.rel (%p2992) target = $region104
      $region103: #{tpu_custom_call.1} parent=5 // pred_region
        %s2995 = ssub.s32 %s28, 2
        // Predicated region
        $region105: #{tpu_custom_call.1} parent=103 // pred_check
          %p2996 = pneg %p335
        $region106: #{tpu_custom_call.1} parent=103 // pred_check_branch
          %2998 = sbr.rel (%p2996) target = $region108
        $region107: #{tpu_custom_call.1} parent=103 // pred_region
          %s2999 = sand.u32 %s320, 1
          %s3000 = scalar_lea.sflag [#allocation4], %s2999
          %s3001 = sand.u32 %s320, 1
          %s3002 = smul.addr %s3001, 256
          %s3003 = scalar_lea.vmem [#allocation13], %s3002
          %3004 = dma.done %s3000, 4096
        $region108: #{tpu_custom_call.1} parent=103 // pred_fallthru
          _
      $region104: #{tpu_custom_call.1} parent=5 // pred_fallthru
        _
    $region6: #{tpu_custom_call.1} parent=1 // loop_footer
      %s32 = sadd.s32 1, %s28
    $region7: #{tpu_custom_call.1} parent=1 // loop_footer_branch
      %27 = sbr.rel target = $region3
    $region8: #{tpu_custom_call.1} parent=1 // loop_exit
      _
    %3005 = vsyncpa [#allocation3], 1
    %s3006 = scalar_lea.sflag [#allocation3], 1
    %3007 = vsyncpa %s3006, 1
    %3008 = vsyncpa [#allocation6], 1
    %3009 = vsyncpa [#allocation9], 1
    %3010 = vsyncpa [#allocation12], 1
    %3011 = vsyncpa [#allocation4], 1
    %s3012 = scalar_lea.sflag [#allocation4], 1
    %3013 = vsyncpa %s3012, 1

// kernel: tpu_custom_call.1
$region0: #{tpu_custom_call.1}
  #allocation0 [shape = 'u32[]', space=smem, size = 0x4, offset = 0x4, fixed_abs, tag = 'smem constant byte address 0x4 - core index']
  #allocation1 [shape = 'u32[144,128]{1,0:T(1,128)}', space=vmem, size = 0x12000, scoped, tag = 'internal scratch']
  %s0 = inlined_call_operand.hbm [shape: f32[1024,128], index: 0, kind: input, shape index: {}]
  %s1 = inlined_call_operand.vmem [shape: f32[1,128], index: 1, kind: input, shape index: {}]
  %s2 = inlined_call_operand.hbm [shape: f32[1,128], index: 2, kind: input, shape index: {}]
  %s3 = inlined_call_operand.hbm [shape: f32[128,256], index: 3, kind: input, shape index: {}]
  %s4 = inlined_call_operand.vmem [shape: f32[1,256], index: 4, kind: input, shape index: {}]
  %s5 = inlined_call_operand.hbm [shape: f32[256,128], index: 5, kind: input, shape index: {}]
  %s6 = inlined_call_operand.vmem [shape: f32[1,128], index: 6, kind: input, shape index: {}]
  %s7 = inlined_call_operand.vmem [shape: f32[1,128], index: 7, kind: input, shape index: {}]
  %s8 = inlined_call_operand.vmem [shape: f32[1,128], index: 8, kind: input, shape index: {}]
  %s9 = inlined_call_operand.hbm [shape: f32[128,256], index: 9, kind: input, shape index: {}]
  %s10 = inlined_call_operand.vmem [shape: f32[1,256], index: 10, kind: input, shape index: {}]
  %s11 = inlined_call_operand.hbm [shape: f32[256,128], index: 11, kind: input, shape index: {}]
  %s12 = inlined_call_operand.vmem [shape: f32[1,128], index: 12, kind: input, shape index: {}]
  %s13 = inlined_call_operand.hbm [shape: f32[1024,128], index: 13, kind: output, shape index: {}]
  %s14 = sld [smem:[#allocation0]]
  $region109: #{tpu_custom_call.1} parent=0
    _
  %s16 = ssub.s32 1, %s14
  %s17 = scalar_select 0, %s16, %s14
  $region1: #{tpu_custom_call.1} parent=0
    #allocation2 [shape = 'u8[262144]{0}', space=vmem, size = 0x40000, scoped, tag = 'input window, operand 0']
    #allocation3 [shape = 's32[2]{0}', space=sflag, size = 0x8, scoped, tag = 'scoped memory for tpu_custom_call.1']
    #allocation4 [shape = 's32[2]{0}', space=sflag, size = 0x8, scoped, tag = 'scoped memory for tpu_custom_call.1']
    #allocation5 [shape = 'u8[512]{0}', space=vmem, size = 0x400, scoped, tag = 'input window, operand 2, single buffered']
    #allocation6 [shape = 's32[1]{0}', space=sflag, size = 0x4, scoped, tag = 'scoped memory for tpu_custom_call.1']
    #allocation7 [shape = 'u8[131072]{0}', space=vmem, size = 0x20000, scoped, tag = 'input window, operand 3, single buffered']
    #allocation8 [shape = 'u8[131072]{0}', space=vmem, size = 0x20000, scoped, tag = 'input window, operand 5, single buffered']
    #allocation9 [shape = 's32[1]{0}', space=sflag, size = 0x4, scoped, tag = 'scoped memory for tpu_custom_call.1']
    #allocation10 [shape = 'u8[131072]{0}', space=vmem, size = 0x20000, scoped, tag = 'input window, operand 9, single buffered']
    #allocation11 [shape = 'u8[131072]{0}', space=vmem, size = 0x20000, scoped, tag = 'input window, operand 11, single buffered']
    #allocation12 [shape = 's32[1]{0}', space=sflag, size = 0x4, scoped, tag = 'scoped memory for tpu_custom_call.1']
    #allocation13 [shape = 'u8[262144]{0}', space=vmem, size = 0x40000, scoped, tag = 'output window, operand 0']
    %18 = vsyncpa [#allocation3], 0
    %s19 = scalar_lea.sflag [#allocation3], 1
    %20 = vsyncpa %s19, 0
    %21 = vsyncpa [#allocation6], 0
    %22 = vsyncpa [#allocation9], 0
    %23 = vsyncpa [#allocation12], 0
    %24 = vsyncpa [#allocation4], 0
    %s25 = scalar_lea.sflag [#allocation4], 1
    %26 = vsyncpa %s25, 0
    loop: start=0, step=1, limit=6
    $region2: #{tpu_custom_call.1} parent=1 // loop_pre_header
      _
    $region3: #{tpu_custom_call.1} parent=1 // loop_header
      %s28 = sphi 0, %s32
      %p29 = scmp.ge.s32.totalorder %s28, 6
      %s38 = sphi 0, %s40
      %s41 = sphi 0, %s38
      %s42 = sphi 0, %s41
      %s58 = sphi 0, %s42
      %s62 = sphi 0, %s62
      %s64 = sphi 0, %s62
      %s65 = sphi 0, %s64
      %s79 = sphi 0, %s65
      %s83 = sphi 0, %s83
      %s85 = sphi 0, %s83
      %s86 = sphi 0, %s85
      %s100 = sphi 0, %s86
      %s104 = sphi 0, %s104
      %s106 = sphi 0, %s104
      %s107 = sphi 0, %s106
      %s121 = sphi 0, %s107
      %s125 = sphi 0, %s125
      %s127 = sphi 0, %s125
      %s128 = sphi 0, %s127
      %s142 = sphi 0, %s128
      %s146 = sphi 0, %s146
      %s148 = sphi 0, %s146
      %s149 = sphi 0, %s148
      %s163 = sphi 0, %s149
      %s167 = sphi 0, %s167
      %s169 = sphi 0, %s167
      %s170 = sphi 0, %s169
      %s184 = sphi 0, %s170
      %s188 = sphi 0, %s188
      %s190 = sphi 0, %s188
      %s191 = sphi 0, %s190
      %s205 = sphi 0, %s191
      %s209 = sphi 0, %s209
      %s211 = sphi 0, %s209
      %s212 = sphi 0, %s211
      %s226 = sphi 0, %s212
      %s230 = sphi 0, %s230
      %s232 = sphi 0, %s230
      %s233 = sphi 0, %s232
      %s247 = sphi 0, %s233
      %s251 = sphi 0, %s251
      %s253 = sphi 0, %s251
      %s254 = sphi 0, %s253
      %s268 = sphi 0, %s254
      %s272 = sphi 0, %s272
      %s274 = sphi 0, %s272
      %s275 = sphi 0, %s274
      %s289 = sphi 0, %s275
      %s293 = sphi 0, %s293
      %s295 = sphi 0, %s293
      %s296 = sphi 0, %s295
      %s310 = sphi 0, %s296
      %s316 = sphi 0, %s318
      %s319 = sphi 0, %s316
      %s320 = sphi 0, %s319
      %s336 = sphi 0, %s320
    $region4: #{tpu_custom_call.1} parent=1 // loop_header_branch
      %31 = sbr.rel (%p29) target = $region8
    $region5: #{tpu_custom_call.1} parent=1 // loop_body
      %s33 = ssub.s32 %s28, 1
      %s34 = ssub.s32 %s28, 2
      %s35 = sadd.s32 %s28, 1
      %s36 = ssub.s32 %s28, %s35
      %p37 = scmp.eq.s32.totalorder %s36, 0
      %s39 = sadd.s32 %s38, 1
      %s40 = scalar_select %p37, %s38, %s39
      %p43 = pneg %p37
      %p44 = scmp.eq.s32.totalorder %s28, 3
      %p45 = por %p43, %p44
      %p46 = scmp.ne.s32.totalorder %s38, %s41
      %p47 = scmp.eq.s32.totalorder %s28, 0
      %p48 = por %p46, %p47
      %p49 = scmp.ne.s32.totalorder %s38, %s41
      %p50 = scmp.eq.s32.totalorder %s33, 3
      %p51 = por %p49, %p50
      %p52 = scmp.ne.s32.totalorder %s41, %s42
      %p53 = scmp.eq.s32.totalorder %s33, 0
      %p54 = por %p52, %p53
      %p55 = scmp.ne.s32.totalorder %s41, %s42
      %p56 = scmp.eq.s32.totalorder %s34, 3
      %p57 = por %p55, %p56
      %p59 = scmp.ne.s32.totalorder %s42, %s58
      %p60 = scmp.eq.s32.totalorder %s34, 0
      %p61 = por %p59, %p60
      %s63 = sadd.s32 %s62, 1
      %p66 = scmp.eq.s32.totalorder %s28, 3
      %p67 = scmp.ne.s32.totalorder %s62, %s64
      %p68 = scmp.eq.s32.totalorder %s28, 0
      %p69 = por %p67, %p68
      %p70 = scmp.ne.s32.totalorder %s62, %s64
      %p71 = scmp.eq.s32.totalorder %s33, 3
      %p72 = por %p70, %p71
      %p73 = scmp.ne.s32.totalorder %s64, %s65
      %p74 = scmp.eq.s32.totalorder %s33, 0
      %p75 = por %p73, %p74
      %p76 = scmp.ne.s32.totalorder %s64, %s65
      %p77 = scmp.eq.s32.totalorder %s34, 3
      %p78 = por %p76, %p77
      %p80 = scmp.ne.s32.totalorder %s65, %s79
      %p81 = scmp.eq.s32.totalorder %s34, 0
      %p82 = por %p80, %p81
      %s84 = sadd.s32 %s83, 1
      %p87 = scmp.eq.s32.totalorder %s28, 3
      %p88 = scmp.ne.s32.totalorder %s83, %s85
      %p89 = scmp.eq.s32.totalorder %s28, 0
      %p90 = por %p88, %p89
      %p91 = scmp.ne.s32.totalorder %s83, %s85
      %p92 = scmp.eq.s32.totalorder %s33, 3
      %p93 = por %p91, %p92
      %p94 = scmp.ne.s32.totalorder %s85, %s86
      %p95 = scmp.eq.s32.totalorder %s33, 0
      %p96 = por %p94, %p95
      %p97 = scmp.ne.s32.totalorder %s85, %s86
      %p98 = scmp.eq.s32.totalorder %s34, 3
      %p99 = por %p97, %p98
      %p101 = scmp.ne.s32.totalorder %s86, %s100
      %p102 = scmp.eq.s32.totalorder %s34, 0
      %p103 = por %p101, %p102
      %s105 = sadd.s32 %s104, 1
      %p108 = scmp.eq.s32.totalorder %s28, 3
      %p109 = scmp.ne.s32.totalorder %s104, %s106
      %p110 = scmp.eq.s32.totalorder %s28, 0
      %p111 = por %p109, %p110
      %p112 = scmp.ne.s32.totalorder %s104, %s106
      %p113 = scmp.eq.s32.totalorder %s33, 3
      %p114 = por %p112, %p113
      %p115 = scmp.ne.s32.totalorder %s106, %s107
      %p116 = scmp.eq.s32.totalorder %s33, 0
      %p117 = por %p115, %p116
      %p118 = scmp.ne.s32.totalorder %s106, %s107
      %p119 = scmp.eq.s32.totalorder %s34, 3
      %p120 = por %p118, %p119
      %p122 = scmp.ne.s32.totalorder %s107, %s121
      %p123 = scmp.eq.s32.totalorder %s34, 0
      %p124 = por %p122, %p123
      %s126 = sadd.s32 %s125, 1
      %p129 = scmp.eq.s32.totalorder %s28, 3
      %p130 = scmp.ne.s32.totalorder %s125, %s127
      %p131 = scmp.eq.s32.totalorder %s28, 0
      %p132 = por %p130, %p131
      %p133 = scmp.ne.s32.totalorder %s125, %s127
      %p134 = scmp.eq.s32.totalorder %s33, 3
      %p135 = por %p133, %p134
      %p136 = scmp.ne.s32.totalorder %s127, %s128
      %p137 = scmp.eq.s32.totalorder %s33, 0
      %p138 = por %p136, %p137
      %p139 = scmp.ne.s32.totalorder %s127, %s128
      %p140 = scmp.eq.s32.totalorder %s34, 3
      %p141 = por %p139, %p140
      %p143 = scmp.ne.s32.totalorder %s128, %s142
      %p144 = scmp.eq.s32.totalorder %s34, 0
      %p145 = por %p143, %p144
      %s147 = sadd.s32 %s146, 1
      %p150 = scmp.eq.s32.totalorder %s28, 3
      %p151 = scmp.ne.s32.totalorder %s146, %s148
      %p152 = scmp.eq.s32.totalorder %s28, 0
      %p153 = por %p151, %p152
      %p154 = scmp.ne.s32.totalorder %s146, %s148
      %p155 = scmp.eq.s32.totalorder %s33, 3
      %p156 = por %p154, %p155
      %p157 = scmp.ne.s32.totalorder %s148, %s149
      %p158 = scmp.eq.s32.totalorder %s33, 0
      %p159 = por %p157, %p158
      %p160 = scmp.ne.s32.totalorder %s148, %s149
      %p161 = scmp.eq.s32.totalorder %s34, 3
      %p162 = por %p160, %p161
      %p164 = scmp.ne.s32.totalorder %s149, %s163
      %p165 = scmp.eq.s32.totalorder %s34, 0
      %p166 = por %p164, %p165
      %s168 = sadd.s32 %s167, 1
      %p171 = scmp.eq.s32.totalorder %s28, 3
      %p172 = scmp.ne.s32.totalorder %s167, %s169
      %p173 = scmp.eq.s32.totalorder %s28, 0
      %p174 = por %p172, %p173
      %p175 = scmp.ne.s32.totalorder %s167, %s169
      %p176 = scmp.eq.s32.totalorder %s33, 3
      %p177 = por %p175, %p176
      %p178 = scmp.ne.s32.totalorder %s169, %s170
      %p179 = scmp.eq.s32.totalorder %s33, 0
      %p180 = por %p178, %p179
      %p181 = scmp.ne.s32.totalorder %s169, %s170
      %p182 = scmp.eq.s32.totalorder %s34, 3
      %p183 = por %p181, %p182
      %p185 = scmp.ne.s32.totalorder %s170, %s184
      %p186 = scmp.eq.s32.totalorder %s34, 0
      %p187 = por %p185, %p186
      %s189 = sadd.s32 %s188, 1
      %p192 = scmp.eq.s32.totalorder %s28, 3
      %p193 = scmp.ne.s32.totalorder %s188, %s190
      %p194 = scmp.eq.s32.totalorder %s28, 0
      %p195 = por %p193, %p194
      %p196 = scmp.ne.s32.totalorder %s188, %s190
      %p197 = scmp.eq.s32.totalorder %s33, 3
      %p198 = por %p196, %p197
      %p199 = scmp.ne.s32.totalorder %s190, %s191
      %p200 = scmp.eq.s32.totalorder %s33, 0
      %p201 = por %p199, %p200
      %p202 = scmp.ne.s32.totalorder %s190, %s191
      %p203 = scmp.eq.s32.totalorder %s34, 3
      %p204 = por %p202, %p203
      %p206 = scmp.ne.s32.totalorder %s191, %s205
      %p207 = scmp.eq.s32.totalorder %s34, 0
      %p208 = por %p206, %p207
      %s210 = sadd.s32 %s209, 1
      %p213 = scmp.eq.s32.totalorder %s28, 3
      %p214 = scmp.ne.s32.totalorder %s209, %s211
      %p215 = scmp.eq.s32.totalorder %s28, 0
      %p216 = por %p214, %p215
      %p217 = scmp.ne.s32.totalorder %s209, %s211
      %p218 = scmp.eq.s32.totalorder %s33, 3
      %p219 = por %p217, %p218
      %p220 = scmp.ne.s32.totalorder %s211, %s212
      %p221 = scmp.eq.s32.totalorder %s33, 0
      %p222 = por %p220, %p221
      %p223 = scmp.ne.s32.totalorder %s211, %s212
      %p224 = scmp.eq.s32.totalorder %s34, 3
      %p225 = por %p223, %p224
      %p227 = scmp.ne.s32.totalorder %s212, %s226
      %p228 = scmp.eq.s32.totalorder %s34, 0
      %p229 = por %p227, %p228
      %s231 = sadd.s32 %s230, 1
      %p234 = scmp.eq.s32.totalorder %s28, 3
      %p235 = scmp.ne.s32.totalorder %s230, %s232
      %p236 = scmp.eq.s32.totalorder %s28, 0
      %p237 = por %p235, %p236
      %p238 = scmp.ne.s32.totalorder %s230, %s232
      %p239 = scmp.eq.s32.totalorder %s33, 3
      %p240 = por %p238, %p239
      %p241 = scmp.ne.s32.totalorder %s232, %s233
      %p242 = scmp.eq.s32.totalorder %s33, 0
      %p243 = por %p241, %p242
      %p244 = scmp.ne.s32.totalorder %s232, %s233
      %p245 = scmp.eq.s32.totalorder %s34, 3
      %p246 = por %p244, %p245
      %p248 = scmp.ne.s32.totalorder %s233, %s247
      %p249 = scmp.eq.s32.totalorder %s34, 0
      %p250 = por %p248, %p249
      %s252 = sadd.s32 %s251, 1
      %p255 = scmp.eq.s32.totalorder %s28, 3
      %p256 = scmp.ne.s32.totalorder %s251, %s253
      %p257 = scmp.eq.s32.totalorder %s28, 0
      %p258 = por %p256, %p257
      %p259 = scmp.ne.s32.totalorder %s251, %s253
      %p260 = scmp.eq.s32.totalorder %s33, 3
      %p261 = por %p259, %p260
      %p262 = scmp.ne.s32.totalorder %s253, %s254
      %p263 = scmp.eq.s32.totalorder %s33, 0
      %p264 = por %p262, %p263
      %p265 = scmp.ne.s32.totalorder %s253, %s254
      %p266 = scmp.eq.s32.totalorder %s34, 3
      %p267 = por %p265, %p266
      %p269 = scmp.ne.s32.totalorder %s254, %s268
      %p270 = scmp.eq.s32.totalorder %s34, 0
      %p271 = por %p269, %p270
      %s273 = sadd.s32 %s272, 1
      %p276 = scmp.eq.s32.totalorder %s28, 3
      %p277 = scmp.ne.s32.totalorder %s272, %s274
      %p278 = scmp.eq.s32.totalorder %s28, 0
      %p279 = por %p277, %p278
      %p280 = scmp.ne.s32.totalorder %s272, %s274
      %p281 = scmp.eq.s32.totalorder %s33, 3
      %p282 = por %p280, %p281
      %p283 = scmp.ne.s32.totalorder %s274, %s275
      %p284 = scmp.eq.s32.totalorder %s33, 0
      %p285 = por %p283, %p284
      %p286 = scmp.ne.s32.totalorder %s274, %s275
      %p287 = scmp.eq.s32.totalorder %s34, 3
      %p288 = por %p286, %p287
      %p290 = scmp.ne.s32.totalorder %s275, %s289
      %p291 = scmp.eq.s32.totalorder %s34, 0
      %p292 = por %p290, %p291
      %s294 = sadd.s32 %s293, 1
      %p297 = scmp.eq.s32.totalorder %s28, 3
      %p298 = scmp.ne.s32.totalorder %s293, %s295
      %p299 = scmp.eq.s32.totalorder %s28, 0
      %p300 = por %p298, %p299
      %p301 = scmp.ne.s32.totalorder %s293, %s295
      %p302 = scmp.eq.s32.totalorder %s33, 3
      %p303 = por %p301, %p302
      %p304 = scmp.ne.s32.totalorder %s295, %s296
      %p305 = scmp.eq.s32.totalorder %s33, 0
      %p306 = por %p304, %p305
      %p307 = scmp.ne.s32.totalorder %s295, %s296
      %p308 = scmp.eq.s32.totalorder %s34, 3
      %p309 = por %p307, %p308
      %p311 = scmp.ne.s32.totalorder %s296, %s310
      %p312 = scmp.eq.s32.totalorder %s34, 0
      %p313 = por %p311, %p312
      %s314 = ssub.s32 %s28, %s35
      %p315 = scmp.eq.s32.totalorder %s314, 0
      %s317 = sadd.s32 %s316, 1
      %s318 = scalar_select %p315, %s316, %s317
      %p321 = pneg %p315
      %p322 = scmp.eq.s32.totalorder %s28, 3
      %p323 = por %p321, %p322
      %p324 = scmp.ne.s32.totalorder %s316, %s319
      %p325 = scmp.eq.s32.totalorder %s28, 0
      %p326 = por %p324, %p325
      %p327 = scmp.ne.s32.totalorder %s316, %s319
      %p328 = scmp.eq.s32.totalorder %s33, 3
      %p329 = por %p327, %p328
      %p330 = scmp.ne.s32.totalorder %s319, %s320
      %p331 = scmp.eq.s32.totalorder %s33, 0
      %p332 = por %p330, %p331
      %p333 = scmp.ne.s32.totalorder %s319, %s320
      %p334 = scmp.eq.s32.totalorder %s34, 3
      %p335 = por %p333, %p334
      %p337 = scmp.ne.s32.totalorder %s320, %s336
      %p338 = scmp.eq.s32.totalorder %s34, 0
      %p339 = por %p337, %p338
      %p340 = scmp.le.s32.totalorder 1, %s28
      %p341 = scmp.lt.s32.totalorder %s28, 5
      %p342 = pnand %p340, %p341
      %p343 = pneg %p342
      // Predicated region
      $region9: #{tpu_custom_call.1} parent=5 // pred_check
        _
      $region10: #{tpu_custom_call.1} parent=5 // pred_check_branch
        %345 = sbr.rel (%p342) target = $region12
      $region11: #{tpu_custom_call.1} parent=5 // pred_region
        %s346 = ssub.s32 %s28, 1
        // Predicated region
        $region13: #{tpu_custom_call.1} parent=11 // pred_check
          %p347 = pneg %p75
        $region14: #{tpu_custom_call.1} parent=11 // pred_check_branch
          %349 = sbr.rel (%p347) target = $region16
        $region15: #{tpu_custom_call.1} parent=11 // pred_region
          _
        $region16: #{tpu_custom_call.1} parent=11 // pred_fallthru
          _
        // Predicated region
        $region17: #{tpu_custom_call.1} parent=11 // pred_check
          %p350 = pneg %p96
        $region18: #{tpu_custom_call.1} parent=11 // pred_check_branch
          %352 = sbr.rel (%p350) target = $region20
        $region19: #{tpu_custom_call.1} parent=11 // pred_region
          %s354 = ssub.s32 16, 16
          %355 = vsyncadd [#allocation6], %s354
          %s357 = sshll.u32 [#allocation5], 4
          %s358 = int_to_ptr.vmem [resolvable:$true] %s357
          %360 = dma.hbm_to_vmem [thread:$0]  %s2, 16, %s358, [#allocation6]
        $region20: #{tpu_custom_call.1} parent=11 // pred_fallthru
          _
        // Predicated region
        $region21: #{tpu_custom_call.1} parent=11 // pred_check
          %p361 = pneg %p117
        $region22: #{tpu_custom_call.1} parent=11 // pred_check_branch
          %363 = sbr.rel (%p361) target = $region24
        $region23: #{tpu_custom_call.1} parent=11 // pred_region
          %s365 = ssub.s32 4096, 4096
          %366 = vsyncadd [#allocation6], %s365
          %s367 = sshll.u32 [#allocation7], 4
          %s368 = int_to_ptr.vmem [resolvable:$true] %s367
          %373 = dma.hbm_to_vmem [thread:$0]  %s3, 4096, %s368, [#allocation6], 256, 256, 16
        $region24: #{tpu_custom_call.1} parent=11 // pred_fallthru
          _
        // Predicated region
        $region25: #{tpu_custom_call.1} parent=11 // pred_check
          %p374 = pneg %p138
        $region26: #{tpu_custom_call.1} parent=11 // pred_check_branch
          %376 = sbr.rel (%p374) target = $region28
        $region27: #{tpu_custom_call.1} parent=11 // pred_region
          _
        $region28: #{tpu_custom_call.1} parent=11 // pred_fallthru
          _
        // Predicated region
        $region29: #{tpu_custom_call.1} parent=11 // pred_check
          %p377 = pneg %p159
        $region30: #{tpu_custom_call.1} parent=11 // pred_check_branch
          %379 = sbr.rel (%p377) target = $region32
        $region31: #{tpu_custom_call.1} parent=11 // pred_region
          %s381 = ssub.s32 4096, 4096
          %382 = vsyncadd [#allocation9], %s381
          %s383 = sshll.u32 [#allocation8], 4
          %s384 = int_to_ptr.vmem [resolvable:$true] %s383
          %389 = dma.hbm_to_vmem [thread:$0]  %s5, 4096, %s384, [#allocation9], 128, 128, 8
        $region32: #{tpu_custom_call.1} parent=11 // pred_fallthru
          _
        // Predicated region
        $region33: #{tpu_custom_call.1} parent=11 // pred_check
          %p390 = pneg %p180
        $region34: #{tpu_custom_call.1} parent=11 // pred_check_branch
          %392 = sbr.rel (%p390) target = $region36
        $region35: #{tpu_custom_call.1} parent=11 // pred_region
          _
        $region36: #{tpu_custom_call.1} parent=11 // pred_fallthru
          _
        // Predicated region
        $region37: #{tpu_custom_call.1} parent=11 // pred_check
          %p393 = pneg %p201
        $region38: #{tpu_custom_call.1} parent=11 // pred_check_branch
          %395 = sbr.rel (%p393) target = $region40
        $region39: #{tpu_custom_call.1} parent=11 // pred_region
          _
        $region40: #{tpu_custom_call.1} parent=11 // pred_fallthru
          _
        // Predicated region
        $region41: #{tpu_custom_call.1} parent=11 // pred_check
          %p396 = pneg %p222
        $region42: #{tpu_custom_call.1} parent=11 // pred_check_branch
          %398 = sbr.rel (%p396) target = $region44
        $region43: #{tpu_custom_call.1} parent=11 // pred_region
          _
        $region44: #{tpu_custom_call.1} parent=11 // pred_fallthru
          _
        // Predicated region
        $region45: #{tpu_custom_call.1} parent=11 // pred_check
          %p399 = pneg %p243
        $region46: #{tpu_custom_call.1} parent=11 // pred_check_branch
          %401 = sbr.rel (%p399) target = $region48
        $region47: #{tpu_custom_call.1} parent=11 // pred_region
          %s403 = ssub.s32 4096, 4096
          %404 = vsyncadd [#allocation9], %s403
          %s405 = sshll.u32 [#allocation10], 4
          %s406 = int_to_ptr.vmem [resolvable:$true] %s405
          %411 = dma.hbm_to_vmem [thread:$0]  %s9, 4096, %s406, [#allocation9], 256, 256, 16
        $region48: #{tpu_custom_call.1} parent=11 // pred_fallthru
          _
        // Predicated region
        $region49: #{tpu_custom_call.1} parent=11 // pred_check
          %p412 = pneg %p264
        $region50: #{tpu_custom_call.1} parent=11 // pred_check_branch
          %414 = sbr.rel (%p412) target = $region52
        $region51: #{tpu_custom_call.1} parent=11 // pred_region
          _
        $region52: #{tpu_custom_call.1} parent=11 // pred_fallthru
          _
        // Predicated region
        $region53: #{tpu_custom_call.1} parent=11 // pred_check
          %p415 = pneg %p285
        $region54: #{tpu_custom_call.1} parent=11 // pred_check_branch
          %417 = sbr.rel (%p415) target = $region56
        $region55: #{tpu_custom_call.1} parent=11 // pred_region
          %s419 = ssub.s32 4096, 4096
          %420 = vsyncadd [#allocation12], %s419
          %s421 = sshll.u32 [#allocation11], 4
          %s422 = int_to_ptr.vmem [resolvable:$true] %s421
          %427 = dma.hbm_to_vmem [thread:$0]  %s11, 4096, %s422, [#allocation12], 128, 128, 8
        $region56: #{tpu_custom_call.1} parent=11 // pred_fallthru
          _
        // Predicated region
        $region57: #{tpu_custom_call.1} parent=11 // pred_check
          %p428 = pneg %p306
        $region58: #{tpu_custom_call.1} parent=11 // pred_check_branch
          %430 = sbr.rel (%p428) target = $region60
        $region59: #{tpu_custom_call.1} parent=11 // pred_region
          _
        $region60: #{tpu_custom_call.1} parent=11 // pred_fallthru
          _
      $region12: #{tpu_custom_call.1} parent=5 // pred_fallthru
        _
      %p431 = scmp.lt.s32.totalorder %s28, 4
      // Predicated region
      $region61: #{tpu_custom_call.1} parent=5 // pred_check
        %p432 = pneg %p431
      $region62: #{tpu_custom_call.1} parent=5 // pred_check_branch
        %434 = sbr.rel (%p432) target = $region64
      $region63: #{tpu_custom_call.1} parent=5 // pred_region
        // Predicated region
        $region65: #{tpu_custom_call.1} parent=63 // pred_check
          %p435 = pneg %p48
        $region66: #{tpu_custom_call.1} parent=63 // pred_check_branch
          %437 = sbr.rel (%p435) target = $region68
        $region67: #{tpu_custom_call.1} parent=63 // pred_region
          %s438 = sand.u32 %s38, 1
          %s439 = scalar_lea.sflag [#allocation3], %s438
          %s440 = sand.u32 %s38, 1
          %s441 = smul.addr %s440, 256
          %s442 = scalar_lea.vmem [#allocation2], %s441
          %s443 = smul.u32 32, %s28
          %s445 = ssub.s32 4096, 4096
          %446 = vsyncadd %s439, %s445
          %s447 = smul.addr %s443, 128
          %s448 = scalar_lea.hbm %s0, %s447
          %s449 = sshll.u32 %s442, 4
          %s450 = int_to_ptr.vmem [resolvable:$true] %s449
          %455 = dma.hbm_to_vmem [thread:$0]  %s448, 4096, %s450, %s439, 128, 128, 8
        $region68: #{tpu_custom_call.1} parent=63 // pred_fallthru
          _
      $region64: #{tpu_custom_call.1} parent=5 // pred_fallthru
        _
      %p456 = scmp.le.s32.totalorder 1, %s28
      %p457 = scmp.lt.s32.totalorder %s28, 5
      %p458 = pnand %p456, %p457
      %p459 = pneg %p458
      // Predicated region
      $region69: #{tpu_custom_call.1} parent=5 // pred_check
        _
      $region70: #{tpu_custom_call.1} parent=5 // pred_check_branch
        %461 = sbr.rel (%p458) target = $region72
      $region71: #{tpu_custom_call.1} parent=5 // pred_region
        %s462 = ssub.s32 %s28, 1
        %s463 = sand.u32 %s41, 1
        %s464 = scalar_lea.sflag [#allocation3], %s463
        %s465 = sand.u32 %s41, 1
        %s466 = smul.addr %s465, 256
        %s467 = scalar_lea.vmem [#allocation2], %s466
        // Predicated region
        $region73: #{tpu_custom_call.1} parent=71 // pred_check
          %p468 = pneg %p54
        $region74: #{tpu_custom_call.1} parent=71 // pred_check_branch
          %470 = sbr.rel (%p468) target = $region76
        $region75: #{tpu_custom_call.1} parent=71 // pred_region
          %471 = dma.done %s464, 4096
        $region76: #{tpu_custom_call.1} parent=71 // pred_fallthru
          _
        // Predicated region
        $region77: #{tpu_custom_call.1} parent=71 // pred_check
          %p472 = pneg %p96
        $region78: #{tpu_custom_call.1} parent=71 // pred_check_branch
          %474 = sbr.rel (%p472) target = $region80
        $region79: #{tpu_custom_call.1} parent=71 // pred_region
          %475 = dma.done [#allocation6], 16
        $region80: #{tpu_custom_call.1} parent=71 // pred_fallthru
          _
        // Predicated region
        $region81: #{tpu_custom_call.1} parent=71 // pred_check
          %p476 = pneg %p117
        $region82: #{tpu_custom_call.1} parent=71 // pred_check_branch
          %478 = sbr.rel (%p476) target = $region84
        $region83: #{tpu_custom_call.1} parent=71 // pred_region
          %479 = dma.done [#allocation6], 4096
        $region84: #{tpu_custom_call.1} parent=71 // pred_fallthru
          _
        // Predicated region
        $region85: #{tpu_custom_call.1} parent=71 // pred_check
          %p480 = pneg %p159
        $region86: #{tpu_custom_call.1} parent=71 // pred_check_branch
          %482 = sbr.rel (%p480) target = $region88
        $region87: #{tpu_custom_call.1} parent=71 // pred_region
          %483 = dma.done [#allocation9], 4096
        $region88: #{tpu_custom_call.1} parent=71 // pred_fallthru
          _
        // Predicated region
        $region89: #{tpu_custom_call.1} parent=71 // pred_check
          %p484 = pneg %p243
        $region90: #{tpu_custom_call.1} parent=71 // pred_check_branch
          %486 = sbr.rel (%p484) target = $region92
        $region91: #{tpu_custom_call.1} parent=71 // pred_region
          %487 = dma.done [#allocation9], 4096
        $region92: #{tpu_custom_call.1} parent=71 // pred_fallthru
          _
        // Predicated region
        $region93: #{tpu_custom_call.1} parent=71 // pred_check
          %p488 = pneg %p285
        $region94: #{tpu_custom_call.1} parent=71 // pred_check_branch
          %490 = sbr.rel (%p488) target = $region96
        $region95: #{tpu_custom_call.1} parent=71 // pred_region
          %491 = dma.done [#allocation12], 4096
        $region96: #{tpu_custom_call.1} parent=71 // pred_fallthru
          _
        %s492 = sand.u32 %s41, 1
        %s493 = scalar_lea.sflag [#allocation3], %s492
        %s494 = sand.u32 %s41, 1
        %s495 = smul.addr %s494, 256
        %s496 = scalar_lea.vmem [#allocation2], %s495
        %p497 = pneg %p54
        %p498 = pneg %p51
        %p499 = pneg %p75
        %p500 = pneg %p72
        %p501 = pneg %p96
        %p502 = pneg %p93
        %p503 = pneg %p117
        %p504 = pneg %p114
        %p505 = pneg %p138
        %p506 = pneg %p135
        %p507 = pneg %p159
        %p508 = pneg %p156
        %p509 = pneg %p180
        %p510 = pneg %p177
        %p511 = pneg %p201
        %p512 = pneg %p198
        %p513 = pneg %p222
        %p514 = pneg %p219
        %p515 = pneg %p243
        %p516 = pneg %p240
        %p517 = pneg %p264
        %p518 = pneg %p261
        %p519 = pneg %p285
        %p520 = pneg %p282
        %p521 = pneg %p306
        %p522 = pneg %p303
        %p523 = pneg %p332
        %p524 = pneg %p329
        %s525 = sand.u32 %s319, 1
        %s526 = scalar_lea.sflag [#allocation4], %s525
        %s527 = sand.u32 %s319, 1
        %s528 = smul.addr %s527, 256
        %s529 = scalar_lea.vmem [#allocation13], %s528
        %s530 = smul.u32 32, %s33
        %s531 = smul.u32 32, %s33
        %v532 = vld [vmem:[%s467] sm:$0xff]
        %v533 = vld [vmem:[%s467 + $0x8] sm:$0xff]
        %v534 = vld [vmem:[%s467 + $0x10] sm:$0xff]
        %v535 = vld [vmem:[%s467 + $0x18] sm:$0xff]
        %v536 = vld [vmem:[%s467 + $0x20] sm:$0xff]
        %v537 = vld [vmem:[%s467 + $0x28] sm:$0xff]
        %v538 = vld [vmem:[%s467 + $0x30] sm:$0xff]
        %v539 = vld [vmem:[%s467 + $0x38] sm:$0xff]
        %v540 = vld [vmem:[%s467 + $0x40] sm:$0xff]
        %v541 = vld [vmem:[%s467 + $0x48] sm:$0xff]
        %v542 = vld [vmem:[%s467 + $0x50] sm:$0xff]
        %v543 = vld [vmem:[%s467 + $0x58] sm:$0xff]
        %v544 = vld [vmem:[%s467 + $0x60] sm:$0xff]
        %v545 = vld [vmem:[%s467 + $0x68] sm:$0xff]
        %v546 = vld [vmem:[%s467 + $0x70] sm:$0xff]
        %v547 = vld [vmem:[%s467 + $0x78] sm:$0xff]
        %v548 = vld [vmem:[%s467 + $0x80] sm:$0xff]
        %v549 = vld [vmem:[%s467 + $0x88] sm:$0xff]
        %v550 = vld [vmem:[%s467 + $0x90] sm:$0xff]
        %v551 = vld [vmem:[%s467 + $0x98] sm:$0xff]
        %v552 = vld [vmem:[%s467 + $0xa0] sm:$0xff]
        %v553 = vld [vmem:[%s467 + $0xa8] sm:$0xff]
        %v554 = vld [vmem:[%s467 + $0xb0] sm:$0xff]
        %v555 = vld [vmem:[%s467 + $0xb8] sm:$0xff]
        %v556 = vld [vmem:[%s467 + $0xc0] sm:$0xff]
        %v557 = vld [vmem:[%s467 + $0xc8] sm:$0xff]
        %v558 = vld [vmem:[%s467 + $0xd0] sm:$0xff]
        %v559 = vld [vmem:[%s467 + $0xd8] sm:$0xff]
        %v560 = vld [vmem:[%s467 + $0xe0] sm:$0xff]
        %v561 = vld [vmem:[%s467 + $0xe8] sm:$0xff]
        %v562 = vld [vmem:[%s467 + $0xf0] sm:$0xff]
        %v563 = vld [vmem:[%s467 + $0xf8] sm:$0xff]
        %v564 = vld [vmem:[%s1] sm:$0x1]
        %v565 = vld [vmem:[#allocation5] sm:$0x1]
        %v566 = vld [vmem:[%s4] sm:$0x3]
        %v567 = vld [vmem:[%s6] sm:$0x1]
        %v568 = vld [vmem:[#allocation7] sm:$0xff]
        %v569 = vld [vmem:[#allocation7 + $0x8] sm:$0xff]
        %v570 = vld [vmem:[#allocation7 + $0x10] sm:$0xff]
        %v571 = vld [vmem:[#allocation7 + $0x18] sm:$0xff]
        %v572 = vld [vmem:[#allocation7 + $0x20] sm:$0xff]
        %v573 = vld [vmem:[#allocation7 + $0x28] sm:$0xff]
        %v574 = vld [vmem:[#allocation7 + $0x30] sm:$0xff]
        %v575 = vld [vmem:[#allocation7 + $0x38] sm:$0xff]
        %v576 = vld [vmem:[#allocation7 + $0x40] sm:$0xff]
        %v577 = vld [vmem:[#allocation7 + $0x48] sm:$0xff]
        %v578 = vld [vmem:[#allocation7 + $0x50] sm:$0xff]
        %v579 = vld [vmem:[#allocation7 + $0x58] sm:$0xff]
        %v580 = vld [vmem:[#allocation7 + $0x60] sm:$0xff]
        %v581 = vld [vmem:[#allocation7 + $0x68] sm:$0xff]
        %v582 = vld [vmem:[#allocation7 + $0x70] sm:$0xff]
        %v583 = vld [vmem:[#allocation7 + $0x78] sm:$0xff]
        %v584 = vld [vmem:[#allocation7 + $0x80] sm:$0xff]
        %v585 = vld [vmem:[#allocation7 + $0x88] sm:$0xff]
        %v586 = vld [vmem:[#allocation7 + $0x90] sm:$0xff]
        %v587 = vld [vmem:[#allocation7 + $0x98] sm:$0xff]
        %v588 = vld [vmem:[#allocation7 + $0xa0] sm:$0xff]
        %v589 = vld [vmem:[#allocation7 + $0xa8] sm:$0xff]
        %v590 = vld [vmem:[#allocation7 + $0xb0] sm:$0xff]
        %v591 = vld [vmem:[#allocation7 + $0xb8] sm:$0xff]
        %v592 = vld [vmem:[#allocation7 + $0xc0] sm:$0xff]
        %v593 = vld [vmem:[#allocation7 + $0xc8] sm:$0xff]
        %v594 = vld [vmem:[#allocation7 + $0xd0] sm:$0xff]
        %v595 = vld [vmem:[#allocation7 + $0xd8] sm:$0xff]
        %v596 = vld [vmem:[#allocation7 + $0xe0] sm:$0xff]
        %v597 = vld [vmem:[#allocation7 + $0xe8] sm:$0xff]
        %v598 = vld [vmem:[#allocation7 + $0xf0] sm:$0xff]
        %v599 = vld [vmem:[#allocation7 + $0xf8] sm:$0xff]
        %v600 = vld [vmem:[#allocation8] sm:$0xff]
        %v601 = vld [vmem:[#allocation8 + $0x8] sm:$0xff]
        %v602 = vld [vmem:[#allocation8 + $0x10] sm:$0xff]
        %v603 = vld [vmem:[#allocation8 + $0x18] sm:$0xff]
        %v604 = vld [vmem:[#allocation8 + $0x20] sm:$0xff]
        %v605 = vld [vmem:[#allocation8 + $0x28] sm:$0xff]
        %v606 = vld [vmem:[#allocation8 + $0x30] sm:$0xff]
        %v607 = vld [vmem:[#allocation8 + $0x38] sm:$0xff]
        %v608 = vld [vmem:[#allocation8 + $0x40] sm:$0xff]
        %v609 = vld [vmem:[#allocation8 + $0x48] sm:$0xff]
        %v610 = vld [vmem:[#allocation8 + $0x50] sm:$0xff]
        %v611 = vld [vmem:[#allocation8 + $0x58] sm:$0xff]
        %v612 = vld [vmem:[#allocation8 + $0x60] sm:$0xff]
        %v613 = vld [vmem:[#allocation8 + $0x68] sm:$0xff]
        %v614 = vld [vmem:[#allocation8 + $0x70] sm:$0xff]
        %v615 = vld [vmem:[#allocation8 + $0x78] sm:$0xff]
        %v616 = vld [vmem:[#allocation8 + $0x80] sm:$0xff]
        %v617 = vld [vmem:[#allocation8 + $0x88] sm:$0xff]
        %v618 = vld [vmem:[#allocation8 + $0x90] sm:$0xff]
        %v619 = vld [vmem:[#allocation8 + $0x98] sm:$0xff]
        %v620 = vld [vmem:[#allocation8 + $0xa0] sm:$0xff]
        %v621 = vld [vmem:[#allocation8 + $0xa8] sm:$0xff]
        %v622 = vld [vmem:[#allocation8 + $0xb0] sm:$0xff]
        %v623 = vld [vmem:[#allocation8 + $0xb8] sm:$0xff]
        %v624 = vld [vmem:[#allocation8 + $0xc0] sm:$0xff]
        %v625 = vld [vmem:[#allocation8 + $0xc8] sm:$0xff]
        %v626 = vld [vmem:[#allocation8 + $0xd0] sm:$0xff]
        %v627 = vld [vmem:[#allocation8 + $0xd8] sm:$0xff]
        %v628 = vld [vmem:[#allocation8 + $0xe0] sm:$0xff]
        %v629 = vld [vmem:[#allocation8 + $0xe8] sm:$0xff]
        %v630 = vld [vmem:[#allocation8 + $0xf0] sm:$0xff]
        %v631 = vld [vmem:[#allocation8 + $0xf8] sm:$0xff]
        %632 = vadd.xlane.f32.xlu0 %v532
        %v633 = vpop.xlane.xlu0 %632
        %634 = vadd.xlane.f32.xlu0 %v533
        %v635 = vpop.xlane.xlu0 %634
        %636 = vadd.xlane.f32.xlu0 %v534
        %v637 = vpop.xlane.xlu0 %636
        %638 = vadd.xlane.f32.xlu0 %v535
        %v639 = vpop.xlane.xlu0 %638
        %640 = vadd.xlane.f32.xlu0 %v536
        %v641 = vpop.xlane.xlu0 %640
        %642 = vadd.xlane.f32.xlu0 %v537
        %v643 = vpop.xlane.xlu0 %642
        %644 = vadd.xlane.f32.xlu0 %v538
        %v645 = vpop.xlane.xlu0 %644
        %646 = vadd.xlane.f32.xlu0 %v539
        %v647 = vpop.xlane.xlu0 %646
        %648 = vadd.xlane.f32.xlu0 %v540
        %v649 = vpop.xlane.xlu0 %648
        %650 = vadd.xlane.f32.xlu0 %v541
        %v651 = vpop.xlane.xlu0 %650
        %652 = vadd.xlane.f32.xlu0 %v542
        %v653 = vpop.xlane.xlu0 %652
        %654 = vadd.xlane.f32.xlu0 %v543
        %v655 = vpop.xlane.xlu0 %654
        %656 = vadd.xlane.f32.xlu0 %v544
        %v657 = vpop.xlane.xlu0 %656
        %658 = vadd.xlane.f32.xlu0 %v545
        %v659 = vpop.xlane.xlu0 %658
        %660 = vadd.xlane.f32.xlu0 %v546
        %v661 = vpop.xlane.xlu0 %660
        %662 = vadd.xlane.f32.xlu0 %v547
        %v663 = vpop.xlane.xlu0 %662
        %664 = vadd.xlane.f32.xlu0 %v548
        %v665 = vpop.xlane.xlu0 %664
        %666 = vadd.xlane.f32.xlu0 %v549
        %v667 = vpop.xlane.xlu0 %666
        %668 = vadd.xlane.f32.xlu0 %v550
        %v669 = vpop.xlane.xlu0 %668
        %670 = vadd.xlane.f32.xlu0 %v551
        %v671 = vpop.xlane.xlu0 %670
        %672 = vadd.xlane.f32.xlu0 %v552
        %v673 = vpop.xlane.xlu0 %672
        %674 = vadd.xlane.f32.xlu0 %v553
        %v675 = vpop.xlane.xlu0 %674
        %676 = vadd.xlane.f32.xlu0 %v554
        %v677 = vpop.xlane.xlu0 %676
        %678 = vadd.xlane.f32.xlu0 %v555
        %v679 = vpop.xlane.xlu0 %678
        %680 = vadd.xlane.f32.xlu0 %v556
        %v681 = vpop.xlane.xlu0 %680
        %682 = vadd.xlane.f32.xlu0 %v557
        %v683 = vpop.xlane.xlu0 %682
        %684 = vadd.xlane.f32.xlu0 %v558
        %v685 = vpop.xlane.xlu0 %684
        %686 = vadd.xlane.f32.xlu0 %v559
        %v687 = vpop.xlane.xlu0 %686
        %688 = vadd.xlane.f32.xlu0 %v560
        %v689 = vpop.xlane.xlu0 %688
        %690 = vadd.xlane.f32.xlu0 %v561
        %v691 = vpop.xlane.xlu0 %690
        %692 = vadd.xlane.f32.xlu0 %v562
        %v693 = vpop.xlane.xlu0 %692
        %694 = vadd.xlane.f32.xlu0 %v563
        %v695 = vpop.xlane.xlu0 %694
        %v696 = vmul.f32 %v532, %v532
        %v697 = vmul.f32 %v533, %v533
        %v698 = vmul.f32 %v534, %v534
        %v699 = vmul.f32 %v535, %v535
        %v700 = vmul.f32 %v536, %v536
        %v701 = vmul.f32 %v537, %v537
        %v702 = vmul.f32 %v538, %v538
        %v703 = vmul.f32 %v539, %v539
        %v704 = vmul.f32 %v540, %v540
        %v705 = vmul.f32 %v541, %v541
        %v706 = vmul.f32 %v542, %v542
        %v707 = vmul.f32 %v543, %v543
        %v708 = vmul.f32 %v544, %v544
        %v709 = vmul.f32 %v545, %v545
        %v710 = vmul.f32 %v546, %v546
        %v711 = vmul.f32 %v547, %v547
        %v712 = vmul.f32 %v548, %v548
        %v713 = vmul.f32 %v549, %v549
        %v714 = vmul.f32 %v550, %v550
        %v715 = vmul.f32 %v551, %v551
        %v716 = vmul.f32 %v552, %v552
        %v717 = vmul.f32 %v553, %v553
        %v718 = vmul.f32 %v554, %v554
        %v719 = vmul.f32 %v555, %v555
        %v720 = vmul.f32 %v556, %v556
        %v721 = vmul.f32 %v557, %v557
        %v722 = vmul.f32 %v558, %v558
        %v723 = vmul.f32 %v559, %v559
        %v724 = vmul.f32 %v560, %v560
        %v725 = vmul.f32 %v561, %v561
        %v726 = vmul.f32 %v562, %v562
        %v727 = vmul.f32 %v563, %v563
        %728 = vadd.xlane.f32.xlu0 %v696
        %v729 = vpop.xlane.xlu0 %728
        %730 = vadd.xlane.f32.xlu0 %v697
        %v731 = vpop.xlane.xlu0 %730
        %732 = vadd.xlane.f32.xlu0 %v698
        %v733 = vpop.xlane.xlu0 %732
        %734 = vadd.xlane.f32.xlu0 %v699
        %v735 = vpop.xlane.xlu0 %734
        %736 = vadd.xlane.f32.xlu0 %v700
        %v737 = vpop.xlane.xlu0 %736
        %738 = vadd.xlane.f32.xlu0 %v701
        %v739 = vpop.xlane.xlu0 %738
        %740 = vadd.xlane.f32.xlu0 %v702
        %v741 = vpop.xlane.xlu0 %740
        %742 = vadd.xlane.f32.xlu0 %v703
        %v743 = vpop.xlane.xlu0 %742
        %744 = vadd.xlane.f32.xlu0 %v704
        %v745 = vpop.xlane.xlu0 %744
        %746 = vadd.xlane.f32.xlu0 %v705
        %v747 = vpop.xlane.xlu0 %746
        %748 = vadd.xlane.f32.xlu0 %v706
        %v749 = vpop.xlane.xlu0 %748
        %750 = vadd.xlane.f32.xlu0 %v707
        %v751 = vpop.xlane.xlu0 %750
        %752 = vadd.xlane.f32.xlu0 %v708
        %v753 = vpop.xlane.xlu0 %752
        %754 = vadd.xlane.f32.xlu0 %v709
        %v755 = vpop.xlane.xlu0 %754
        %756 = vadd.xlane.f32.xlu0 %v710
        %v757 = vpop.xlane.xlu0 %756
        %758 = vadd.xlane.f32.xlu0 %v711
        %v759 = vpop.xlane.xlu0 %758
        %760 = vadd.xlane.f32.xlu0 %v712
        %v761 = vpop.xlane.xlu0 %760
        %762 = vadd.xlane.f32.xlu0 %v713
        %v763 = vpop.xlane.xlu0 %762
        %764 = vadd.xlane.f32.xlu0 %v714
        %v765 = vpop.xlane.xlu0 %764
        %766 = vadd.xlane.f32.xlu0 %v715
        %v767 = vpop.xlane.xlu0 %766
        %768 = vadd.xlane.f32.xlu0 %v716
        %v769 = vpop.xlane.xlu0 %768
        %770 = vadd.xlane.f32.xlu0 %v717
        %v771 = vpop.xlane.xlu0 %770
        %772 = vadd.xlane.f32.xlu0 %v718
        %v773 = vpop.xlane.xlu0 %772
        %774 = vadd.xlane.f32.xlu0 %v719
        %v775 = vpop.xlane.xlu0 %774
        %776 = vadd.xlane.f32.xlu0 %v720
        %v777 = vpop.xlane.xlu0 %776
        %778 = vadd.xlane.f32.xlu0 %v721
        %v779 = vpop.xlane.xlu0 %778
        %780 = vadd.xlane.f32.xlu0 %v722
        %v781 = vpop.xlane.xlu0 %780
        %782 = vadd.xlane.f32.xlu0 %v723
        %v783 = vpop.xlane.xlu0 %782
        %784 = vadd.xlane.f32.xlu0 %v724
        %v785 = vpop.xlane.xlu0 %784
        %786 = vadd.xlane.f32.xlu0 %v725
        %v787 = vpop.xlane.xlu0 %786
        %788 = vadd.xlane.f32.xlu0 %v726
        %v789 = vpop.xlane.xlu0 %788
        %790 = vadd.xlane.f32.xlu0 %v727
        %v791 = vpop.xlane.xlu0 %790
        %v792 = vmul.f32 %v633, 0.0078125
        %v793 = vmul.f32 %v635, 0.0078125
        %v794 = vmul.f32 %v637, 0.0078125
        %v795 = vmul.f32 %v639, 0.0078125
        %v796 = vmul.f32 %v641, 0.0078125
        %v797 = vmul.f32 %v643, 0.0078125
        %v798 = vmul.f32 %v645, 0.0078125
        %v799 = vmul.f32 %v647, 0.0078125
        %v800 = vmul.f32 %v649, 0.0078125
        %v801 = vmul.f32 %v651, 0.0078125
        %v802 = vmul.f32 %v653, 0.0078125
        %v803 = vmul.f32 %v655, 0.0078125
        %v804 = vmul.f32 %v657, 0.0078125
        %v805 = vmul.f32 %v659, 0.0078125
        %v806 = vmul.f32 %v661, 0.0078125
        %v807 = vmul.f32 %v663, 0.0078125
        %v808 = vmul.f32 %v665, 0.0078125
        %v809 = vmul.f32 %v667, 0.0078125
        %v810 = vmul.f32 %v669, 0.0078125
        %v811 = vmul.f32 %v671, 0.0078125
        %v812 = vmul.f32 %v673, 0.0078125
        %v813 = vmul.f32 %v675, 0.0078125
        %v814 = vmul.f32 %v677, 0.0078125
        %v815 = vmul.f32 %v679, 0.0078125
        %v816 = vmul.f32 %v681, 0.0078125
        %v817 = vmul.f32 %v683, 0.0078125
        %v818 = vmul.f32 %v685, 0.0078125
        %v819 = vmul.f32 %v687, 0.0078125
        %v820 = vmul.f32 %v689, 0.0078125
        %v821 = vmul.f32 %v691, 0.0078125
        %v822 = vmul.f32 %v693, 0.0078125
        %v823 = vmul.f32 %v695, 0.0078125
        %v824 = vmul.f32 %v729, 0.0078125
        %v825 = vmul.f32 %v731, 0.0078125
        %v826 = vmul.f32 %v733, 0.0078125
        %v827 = vmul.f32 %v735, 0.0078125
        %v828 = vmul.f32 %v737, 0.0078125
        %v829 = vmul.f32 %v739, 0.0078125
        %v830 = vmul.f32 %v741, 0.0078125
        %v831 = vmul.f32 %v743, 0.0078125
        %v832 = vmul.f32 %v745, 0.0078125
        %v833 = vmul.f32 %v747, 0.0078125
        %v834 = vmul.f32 %v749, 0.0078125
        %v835 = vmul.f32 %v751, 0.0078125
        %v836 = vmul.f32 %v753, 0.0078125
        %v837 = vmul.f32 %v755, 0.0078125
        %v838 = vmul.f32 %v757, 0.0078125
        %v839 = vmul.f32 %v759, 0.0078125
        %v840 = vmul.f32 %v761, 0.0078125
        %v841 = vmul.f32 %v763, 0.0078125
        %v842 = vmul.f32 %v765, 0.0078125
        %v843 = vmul.f32 %v767, 0.0078125
        %v844 = vmul.f32 %v769, 0.0078125
        %v845 = vmul.f32 %v771, 0.0078125
        %v846 = vmul.f32 %v773, 0.0078125
        %v847 = vmul.f32 %v775, 0.0078125
        %v848 = vmul.f32 %v777, 0.0078125
        %v849 = vmul.f32 %v779, 0.0078125
        %v850 = vmul.f32 %v781, 0.0078125
        %v851 = vmul.f32 %v783, 0.0078125
        %v852 = vmul.f32 %v785, 0.0078125
        %v853 = vmul.f32 %v787, 0.0078125
        %v854 = vmul.f32 %v789, 0.0078125
        %v855 = vmul.f32 %v791, 0.0078125
        %v856 = vmul.f32 %v792, %v792
        %v857 = vmul.f32 %v793, %v793
        %v858 = vmul.f32 %v794, %v794
        %v859 = vmul.f32 %v795, %v795
        %v860 = vmul.f32 %v796, %v796
        %v861 = vmul.f32 %v797, %v797
        %v862 = vmul.f32 %v798, %v798
        %v863 = vmul.f32 %v799, %v799
        %v864 = vmul.f32 %v800, %v800
        %v865 = vmul.f32 %v801, %v801
        %v866 = vmul.f32 %v802, %v802
        %v867 = vmul.f32 %v803, %v803
        %v868 = vmul.f32 %v804, %v804
        %v869 = vmul.f32 %v805, %v805
        %v870 = vmul.f32 %v806, %v806
        %v871 = vmul.f32 %v807, %v807
        %v872 = vmul.f32 %v808, %v808
        %v873 = vmul.f32 %v809, %v809
        %v874 = vmul.f32 %v810, %v810
        %v875 = vmul.f32 %v811, %v811
        %v876 = vmul.f32 %v812, %v812
        %v877 = vmul.f32 %v813, %v813
        %v878 = vmul.f32 %v814, %v814
        %v879 = vmul.f32 %v815, %v815
        %v880 = vmul.f32 %v816, %v816
        %v881 = vmul.f32 %v817, %v817
        %v882 = vmul.f32 %v818, %v818
        %v883 = vmul.f32 %v819, %v819
        %v884 = vmul.f32 %v820, %v820
        %v885 = vmul.f32 %v821, %v821
        %v886 = vmul.f32 %v822, %v822
        %v887 = vmul.f32 %v823, %v823
        %v888 = vsub.f32 %v824, %v856
        %v889 = vsub.f32 %v825, %v857
        %v890 = vsub.f32 %v826, %v858
        %v891 = vsub.f32 %v827, %v859
        %v892 = vsub.f32 %v828, %v860
        %v893 = vsub.f32 %v829, %v861
        %v894 = vsub.f32 %v830, %v862
        %v895 = vsub.f32 %v831, %v863
        %v896 = vsub.f32 %v832, %v864
        %v897 = vsub.f32 %v833, %v865
        %v898 = vsub.f32 %v834, %v866
        %v899 = vsub.f32 %v835, %v867
        %v900 = vsub.f32 %v836, %v868
        %v901 = vsub.f32 %v837, %v869
        %v902 = vsub.f32 %v838, %v870
        %v903 = vsub.f32 %v839, %v871
        %v904 = vsub.f32 %v840, %v872
        %v905 = vsub.f32 %v841, %v873
        %v906 = vsub.f32 %v842, %v874
        %v907 = vsub.f32 %v843, %v875
        %v908 = vsub.f32 %v844, %v876
        %v909 = vsub.f32 %v845, %v877
        %v910 = vsub.f32 %v846, %v878
        %v911 = vsub.f32 %v847, %v879
        %v912 = vsub.f32 %v848, %v880
        %v913 = vsub.f32 %v849, %v881
        %v914 = vsub.f32 %v850, %v882
        %v915 = vsub.f32 %v851, %v883
        %v916 = vsub.f32 %v852, %v884
        %v917 = vsub.f32 %v853, %v885
        %v918 = vsub.f32 %v854, %v886
        %v919 = vsub.f32 %v855, %v887
        %v920 = vmax.f32 %v888, 0.0
        %v921 = vmax.f32 %v889, 0.0
        %v922 = vmax.f32 %v890, 0.0
        %v923 = vmax.f32 %v891, 0.0
        %v924 = vmax.f32 %v892, 0.0
        %v925 = vmax.f32 %v893, 0.0
        %v926 = vmax.f32 %v894, 0.0
        %v927 = vmax.f32 %v895, 0.0
        %v928 = vmax.f32 %v896, 0.0
        %v929 = vmax.f32 %v897, 0.0
        %v930 = vmax.f32 %v898, 0.0
        %v931 = vmax.f32 %v899, 0.0
        %v932 = vmax.f32 %v900, 0.0
        %v933 = vmax.f32 %v901, 0.0
        %v934 = vmax.f32 %v902, 0.0
        %v935 = vmax.f32 %v903, 0.0
        %v936 = vmax.f32 %v904, 0.0
        %v937 = vmax.f32 %v905, 0.0
        %v938 = vmax.f32 %v906, 0.0
        %v939 = vmax.f32 %v907, 0.0
        %v940 = vmax.f32 %v908, 0.0
        %v941 = vmax.f32 %v909, 0.0
        %v942 = vmax.f32 %v910, 0.0
        %v943 = vmax.f32 %v911, 0.0
        %v944 = vmax.f32 %v912, 0.0
        %v945 = vmax.f32 %v913, 0.0
        %v946 = vmax.f32 %v914, 0.0
        %v947 = vmax.f32 %v915, 0.0
        %v948 = vmax.f32 %v916, 0.0
        %v949 = vmax.f32 %v917, 0.0
        %v950 = vmax.f32 %v918, 0.0
        %v951 = vmax.f32 %v919, 0.0
        %v952 = vsub.f32 %v532, %v792
        %v953 = vsub.f32 %v533, %v793
        %v954 = vsub.f32 %v534, %v794
        %v955 = vsub.f32 %v535, %v795
        %v956 = vsub.f32 %v536, %v796
        %v957 = vsub.f32 %v537, %v797
        %v958 = vsub.f32 %v538, %v798
        %v959 = vsub.f32 %v539, %v799
        %v960 = vsub.f32 %v540, %v800
        %v961 = vsub.f32 %v541, %v801
        %v962 = vsub.f32 %v542, %v802
        %v963 = vsub.f32 %v543, %v803
        %v964 = vsub.f32 %v544, %v804
        %v965 = vsub.f32 %v545, %v805
        %v966 = vsub.f32 %v546, %v806
        %v967 = vsub.f32 %v547, %v807
        %v968 = vsub.f32 %v548, %v808
        %v969 = vsub.f32 %v549, %v809
        %v970 = vsub.f32 %v550, %v810
        %v971 = vsub.f32 %v551, %v811
        %v972 = vsub.f32 %v552, %v812
        %v973 = vsub.f32 %v553, %v813
        %v974 = vsub.f32 %v554, %v814
        %v975 = vsub.f32 %v555, %v815
        %v976 = vsub.f32 %v556, %v816
        %v977 = vsub.f32 %v557, %v817
        %v978 = vsub.f32 %v558, %v818
        %v979 = vsub.f32 %v559, %v819
        %v980 = vsub.f32 %v560, %v820
        %v981 = vsub.f32 %v561, %v821
        %v982 = vsub.f32 %v562, %v822
        %v983 = vsub.f32 %v563, %v823
        %v984 = vadd.f32 %v920, 1e-05
        %v985 = vadd.f32 %v921, 1e-05
        %v986 = vadd.f32 %v922, 1e-05
        %v987 = vadd.f32 %v923, 1e-05
        %v988 = vadd.f32 %v924, 1e-05
        %v989 = vadd.f32 %v925, 1e-05
        %v990 = vadd.f32 %v926, 1e-05
        %v991 = vadd.f32 %v927, 1e-05
        %v992 = vadd.f32 %v928, 1e-05
        %v993 = vadd.f32 %v929, 1e-05
        %v994 = vadd.f32 %v930, 1e-05
        %v995 = vadd.f32 %v931, 1e-05
        %v996 = vadd.f32 %v932, 1e-05
        %v997 = vadd.f32 %v933, 1e-05
        %v998 = vadd.f32 %v934, 1e-05
        %v999 = vadd.f32 %v935, 1e-05
        %v1000 = vadd.f32 %v936, 1e-05
        %v1001 = vadd.f32 %v937, 1e-05
        %v1002 = vadd.f32 %v938, 1e-05
        %v1003 = vadd.f32 %v939, 1e-05
        %v1004 = vadd.f32 %v940, 1e-05
        %v1005 = vadd.f32 %v941, 1e-05
        %v1006 = vadd.f32 %v942, 1e-05
        %v1007 = vadd.f32 %v943, 1e-05
        %v1008 = vadd.f32 %v944, 1e-05
        %v1009 = vadd.f32 %v945, 1e-05
        %v1010 = vadd.f32 %v946, 1e-05
        %v1011 = vadd.f32 %v947, 1e-05
        %v1012 = vadd.f32 %v948, 1e-05
        %v1013 = vadd.f32 %v949, 1e-05
        %v1014 = vadd.f32 %v950, 1e-05
        %v1015 = vadd.f32 %v951, 1e-05
        %v1016 = vrsqrt.pop %v984
        %v1017 = vrsqrt.pop %v985
        %v1018 = vrsqrt.pop %v986
        %v1019 = vrsqrt.pop %v987
        %v1020 = vrsqrt.pop %v988
        %v1021 = vrsqrt.pop %v989
        %v1022 = vrsqrt.pop %v990
        %v1023 = vrsqrt.pop %v991
        %v1024 = vrsqrt.pop %v992
        %v1025 = vrsqrt.pop %v993
        %v1026 = vrsqrt.pop %v994
        %v1027 = vrsqrt.pop %v995
        %v1028 = vrsqrt.pop %v996
        %v1029 = vrsqrt.pop %v997
        %v1030 = vrsqrt.pop %v998
        %v1031 = vrsqrt.pop %v999
        %v1032 = vrsqrt.pop %v1000
        %v1033 = vrsqrt.pop %v1001
        %v1034 = vrsqrt.pop %v1002
        %v1035 = vrsqrt.pop %v1003
        %v1036 = vrsqrt.pop %v1004
        %v1037 = vrsqrt.pop %v1005
        %v1038 = vrsqrt.pop %v1006
        %v1039 = vrsqrt.pop %v1007
        %v1040 = vrsqrt.pop %v1008
        %v1041 = vrsqrt.pop %v1009
        %v1042 = vrsqrt.pop %v1010
        %v1043 = vrsqrt.pop %v1011
        %v1044 = vrsqrt.pop %v1012
        %v1045 = vrsqrt.pop %v1013
        %v1046 = vrsqrt.pop %v1014
        %v1047 = vrsqrt.pop %v1015
        %v1048 = vmul.f32 %v952, %v1016
        %v1049 = vmul.f32 %v953, %v1017
        %v1050 = vmul.f32 %v954, %v1018
        %v1051 = vmul.f32 %v955, %v1019
        %v1052 = vmul.f32 %v956, %v1020
        %v1053 = vmul.f32 %v957, %v1021
        %v1054 = vmul.f32 %v958, %v1022
        %v1055 = vmul.f32 %v959, %v1023
        %v1056 = vmul.f32 %v960, %v1024
        %v1057 = vmul.f32 %v961, %v1025
        %v1058 = vmul.f32 %v962, %v1026
        %v1059 = vmul.f32 %v963, %v1027
        %v1060 = vmul.f32 %v964, %v1028
        %v1061 = vmul.f32 %v965, %v1029
        %v1062 = vmul.f32 %v966, %v1030
        %v1063 = vmul.f32 %v967, %v1031
        %v1064 = vmul.f32 %v968, %v1032
        %v1065 = vmul.f32 %v969, %v1033
        %v1066 = vmul.f32 %v970, %v1034
        %v1067 = vmul.f32 %v971, %v1035
        %v1068 = vmul.f32 %v972, %v1036
        %v1069 = vmul.f32 %v973, %v1037
        %v1070 = vmul.f32 %v974, %v1038
        %v1071 = vmul.f32 %v975, %v1039
        %v1072 = vmul.f32 %v976, %v1040
        %v1073 = vmul.f32 %v977, %v1041
        %v1074 = vmul.f32 %v978, %v1042
        %v1075 = vmul.f32 %v979, %v1043
        %v1076 = vmul.f32 %v980, %v1044
        %v1077 = vmul.f32 %v981, %v1045
        %v1078 = vmul.f32 %v982, %v1046
        %v1079 = vmul.f32 %v983, %v1047
        %v1081 = vlaneseq
        %v1082 = vshrl.u32 %v1081, 7
        %v1083 = vsub.s32 0, %v1082
        %v1084 = vrot.slane %v564, %v1083
        %v1086 = vmul.f32 %v1048, %v1084
        %v1087 = vmul.f32 %v1049, %v1084
        %v1088 = vmul.f32 %v1050, %v1084
        %v1089 = vmul.f32 %v1051, %v1084
        %v1090 = vmul.f32 %v1052, %v1084
        %v1091 = vmul.f32 %v1053, %v1084
        %v1092 = vmul.f32 %v1054, %v1084
        %v1093 = vmul.f32 %v1055, %v1084
        %v1094 = vmul.f32 %v1056, %v1084
        %v1095 = vmul.f32 %v1057, %v1084
        %v1096 = vmul.f32 %v1058, %v1084
        %v1097 = vmul.f32 %v1059, %v1084
        %v1098 = vmul.f32 %v1060, %v1084
        %v1099 = vmul.f32 %v1061, %v1084
        %v1100 = vmul.f32 %v1062, %v1084
        %v1101 = vmul.f32 %v1063, %v1084
        %v1102 = vmul.f32 %v1064, %v1084
        %v1103 = vmul.f32 %v1065, %v1084
        %v1104 = vmul.f32 %v1066, %v1084
        %v1105 = vmul.f32 %v1067, %v1084
        %v1106 = vmul.f32 %v1068, %v1084
        %v1107 = vmul.f32 %v1069, %v1084
        %v1108 = vmul.f32 %v1070, %v1084
        %v1109 = vmul.f32 %v1071, %v1084
        %v1110 = vmul.f32 %v1072, %v1084
        %v1111 = vmul.f32 %v1073, %v1084
        %v1112 = vmul.f32 %v1074, %v1084
        %v1113 = vmul.f32 %v1075, %v1084
        %v1114 = vmul.f32 %v1076, %v1084
        %v1115 = vmul.f32 %v1077, %v1084
        %v1116 = vmul.f32 %v1078, %v1084
        %v1117 = vmul.f32 %v1079, %v1084
        %v1119 = vlaneseq
        %v1120 = vshrl.u32 %v1119, 7
        %v1121 = vsub.s32 0, %v1120
        %v1122 = vrot.slane %v565, %v1121
        %v1124 = vadd.f32 %v1086, %v1122
        %v1125 = vadd.f32 %v1087, %v1122
        %v1126 = vadd.f32 %v1088, %v1122
        %v1127 = vadd.f32 %v1089, %v1122
        %v1128 = vadd.f32 %v1090, %v1122
        %v1129 = vadd.f32 %v1091, %v1122
        %v1130 = vadd.f32 %v1092, %v1122
        %v1131 = vadd.f32 %v1093, %v1122
        %v1132 = vadd.f32 %v1094, %v1122
        %v1133 = vadd.f32 %v1095, %v1122
        %v1134 = vadd.f32 %v1096, %v1122
        %v1135 = vadd.f32 %v1097, %v1122
        %v1136 = vadd.f32 %v1098, %v1122
        %v1137 = vadd.f32 %v1099, %v1122
        %v1138 = vadd.f32 %v1100, %v1122
        %v1139 = vadd.f32 %v1101, %v1122
        %v1140 = vadd.f32 %v1102, %v1122
        %v1141 = vadd.f32 %v1103, %v1122
        %v1142 = vadd.f32 %v1104, %v1122
        %v1143 = vadd.f32 %v1105, %v1122
        %v1144 = vadd.f32 %v1106, %v1122
        %v1145 = vadd.f32 %v1107, %v1122
        %v1146 = vadd.f32 %v1108, %v1122
        %v1147 = vadd.f32 %v1109, %v1122
        %v1148 = vadd.f32 %v1110, %v1122
        %v1149 = vadd.f32 %v1111, %v1122
        %v1150 = vadd.f32 %v1112, %v1122
        %v1151 = vadd.f32 %v1113, %v1122
        %v1152 = vadd.f32 %v1114, %v1122
        %v1153 = vadd.f32 %v1115, %v1122
        %v1154 = vadd.f32 %v1116, %v1122
        %v1155 = vadd.f32 %v1117, %v1122
        %v1157 = vlaneseq
        %v1158 = vshrl.u32 %v1157, 7
        %v1159 = vsub.s32 0, %v1158
        %v1160 = vrot.slane %v566, %v1159
        %v1161 = vlaneseq
        %v1162 = vshrl.u32 %v1161, 7
        %v1163 = vsub.s32 1, %v1162
        %v1164 = vrot.slane %v566, %v1163
        %1167 = vmatprep.subr.mxu0 %v599
        %1168 = vmatpush1.msra.mxu0 %v598
        %1169 = vmatprep.subr.mxu0 %v597
        %1170 = vmatpush1.msra.mxu0 %v596
        %1171 = vmatprep.subr.mxu0 %v595
        %1172 = vmatpush1.msra.mxu0 %v594
        %1173 = vmatprep.subr.mxu0 %v593
        %1174 = vmatpush1.msra.mxu0 %v592
        %1175 = vmatprep.subr.mxu0 %v591
        %1176 = vmatpush1.msra.mxu0 %v590
        %1177 = vmatprep.subr.mxu0 %v589
        %1178 = vmatpush1.msra.mxu0 %v588
        %1179 = vmatprep.subr.mxu0 %v587
        %1180 = vmatpush1.msra.mxu0 %v586
        %1181 = vmatprep.subr.mxu0 %v585
        %1182 = vmatpush1.msra.mxu0 %v584
        %1183 = vmatprep.subr.mxu0 %v583
        %1184 = vmatpush1.msra.mxu0 %v582
        %1185 = vmatprep.subr.mxu0 %v581
        %1186 = vmatpush1.msra.mxu0 %v580
        %1187 = vmatprep.subr.mxu0 %v579
        %1188 = vmatpush1.msra.mxu0 %v578
        %1189 = vmatprep.subr.mxu0 %v577
        %1190 = vmatpush1.msra.mxu0 %v576
        %1191 = vmatprep.subr.mxu0 %v575
        %1192 = vmatpush1.msra.mxu0 %v574
        %1193 = vmatprep.subr.mxu0 %v573
        %1194 = vmatpush1.msra.mxu0 %v572
        %1195 = vmatprep.subr.mxu0 %v571
        %1196 = vmatpush1.msra.mxu0 %v570
        %1197 = vmatprep.subr.mxu0 %v569
        %1198 = vmatpush1.msra.mxu0 %v568
        %1199 = vmatprep.subr.mxu0 0.0
        %1200 = vmatpush2.msra.mxu0 0.0
        %1201 = vmatprep.subr.mxu0 0.0
        %1202 = vmatpush2.msra.mxu0 0.0
        %1203 = vmatprep.subr.mxu0 0.0
        %1204 = vmatpush2.msra.mxu0 0.0
        %1205 = vmatprep.subr.mxu0 0.0
        %1206 = vmatpush2.msra.mxu0 0.0
        %1207 = vmatprep.subr.mxu0 0.0
        %1208 = vmatpush2.msra.mxu0 0.0
        %1209 = vmatprep.subr.mxu0 0.0
        %1210 = vmatpush2.msra.mxu0 0.0
        %1211 = vmatprep.subr.mxu0 0.0
        %1212 = vmatpush2.msra.mxu0 0.0
        %1213 = vmatprep.subr.mxu0 0.0
        %1214 = vmatpush2.msra.mxu0 0.0
        %1215 = vmatprep.subr.mxu0 0.0
        %1216 = vmatpush2.msra.mxu0 0.0
        %1217 = vmatprep.subr.mxu0 0.0
        %1218 = vmatpush2.msra.mxu0 0.0
        %1219 = vmatprep.subr.mxu0 0.0
        %1220 = vmatpush2.msra.mxu0 0.0
        %1221 = vmatprep.subr.mxu0 0.0
        %1222 = vmatpush2.msra.mxu0 0.0
        %1223 = vmatprep.subr.mxu0 0.0
        %1224 = vmatpush2.msra.mxu0 0.0
        %1225 = vmatprep.subr.mxu0 0.0
        %1226 = vmatpush2.msra.mxu0 0.0
        %1227 = vmatprep.subr.mxu0 0.0
        %1228 = vmatpush2.msra.mxu0 0.0
        %1229 = vmatprep.subr.mxu0 0.0
        %1230 = vmatpush2.msra.mxu0 0.0
        %1231 = vmatprep.mubr.f32.mxu0 0.0
        %1232 = vmatmul.mubr.f32.gmra.mxu0 %v1124
        %v1233 = vpop.f32.mrf.mxu0
        %v1234 = vadd.f32 %v1160, %v1233
        %v1235 = vpop.f32.mrf.mxu0
        %v1236 = vadd.f32 %v1164, %v1235
        %1237 = vmatprep.mubr.f32.mxu0 0.0
        %1238 = vmatmul.mubr.f32.gmra.mxu0 %v1125
        %v1239 = vpop.f32.mrf.mxu0
        %v1240 = vadd.f32 %v1160, %v1239
        %v1241 = vpop.f32.mrf.mxu0
        %v1242 = vadd.f32 %v1164, %v1241
        %1243 = vmatprep.mubr.f32.mxu0 0.0
        %1244 = vmatmul.mubr.f32.gmra.mxu0 %v1126
        %v1245 = vpop.f32.mrf.mxu0
        %v1246 = vadd.f32 %v1160, %v1245
        %v1247 = vpop.f32.mrf.mxu0
        %v1248 = vadd.f32 %v1164, %v1247
        %1249 = vmatprep.mubr.f32.mxu0 0.0
        %1250 = vmatmul.mubr.f32.gmra.mxu0 %v1127
        %v1251 = vpop.f32.mrf.mxu0
        %v1252 = vadd.f32 %v1160, %v1251
        %v1253 = vpop.f32.mrf.mxu0
        %v1254 = vadd.f32 %v1164, %v1253
        %1255 = vmatprep.mubr.f32.mxu0 0.0
        %1256 = vmatmul.mubr.f32.gmra.mxu0 %v1128
        %v1257 = vpop.f32.mrf.mxu0
        %v1258 = vadd.f32 %v1160, %v1257
        %v1259 = vpop.f32.mrf.mxu0
        %v1260 = vadd.f32 %v1164, %v1259
        %1261 = vmatprep.mubr.f32.mxu0 0.0
        %1262 = vmatmul.mubr.f32.gmra.mxu0 %v1129
        %v1263 = vpop.f32.mrf.mxu0
        %v1264 = vadd.f32 %v1160, %v1263
        %v1265 = vpop.f32.mrf.mxu0
        %v1266 = vadd.f32 %v1164, %v1265
        %1267 = vmatprep.mubr.f32.mxu0 0.0
        %1268 = vmatmul.mubr.f32.gmra.mxu0 %v1130
        %v1269 = vpop.f32.mrf.mxu0
        %v1270 = vadd.f32 %v1160, %v1269
        %v1271 = vpop.f32.mrf.mxu0
        %v1272 = vadd.f32 %v1164, %v1271
        %1273 = vmatprep.mubr.f32.mxu0 0.0
        %1274 = vmatmul.mubr.f32.gmra.mxu0 %v1131
        %v1275 = vpop.f32.mrf.mxu0
        %v1276 = vadd.f32 %v1160, %v1275
        %v1277 = vpop.f32.mrf.mxu0
        %v1278 = vadd.f32 %v1164, %v1277
        %1279 = vmatprep.mubr.f32.mxu0 0.0
        %1280 = vmatmul.mubr.f32.gmra.mxu0 %v1132
        %v1281 = vpop.f32.mrf.mxu0
        %v1282 = vadd.f32 %v1160, %v1281
        %v1283 = vpop.f32.mrf.mxu0
        %v1284 = vadd.f32 %v1164, %v1283
        %1285 = vmatprep.mubr.f32.mxu0 0.0
        %1286 = vmatmul.mubr.f32.gmra.mxu0 %v1133
        %v1287 = vpop.f32.mrf.mxu0
        %v1288 = vadd.f32 %v1160, %v1287
        %v1289 = vpop.f32.mrf.mxu0
        %v1290 = vadd.f32 %v1164, %v1289
        %1291 = vmatprep.mubr.f32.mxu0 0.0
        %1292 = vmatmul.mubr.f32.gmra.mxu0 %v1134
        %v1293 = vpop.f32.mrf.mxu0
        %v1294 = vadd.f32 %v1160, %v1293
        %v1295 = vpop.f32.mrf.mxu0
        %v1296 = vadd.f32 %v1164, %v1295
        %1297 = vmatprep.mubr.f32.mxu0 0.0
        %1298 = vmatmul.mubr.f32.gmra.mxu0 %v1135
        %v1299 = vpop.f32.mrf.mxu0
        %v1300 = vadd.f32 %v1160, %v1299
        %v1301 = vpop.f32.mrf.mxu0
        %v1302 = vadd.f32 %v1164, %v1301
        %1303 = vmatprep.mubr.f32.mxu0 0.0
        %1304 = vmatmul.mubr.f32.gmra.mxu0 %v1136
        %v1305 = vpop.f32.mrf.mxu0
        %v1306 = vadd.f32 %v1160, %v1305
        %v1307 = vpop.f32.mrf.mxu0
        %v1308 = vadd.f32 %v1164, %v1307
        %1309 = vmatprep.mubr.f32.mxu0 0.0
        %1310 = vmatmul.mubr.f32.gmra.mxu0 %v1137
        %v1311 = vpop.f32.mrf.mxu0
        %v1312 = vadd.f32 %v1160, %v1311
        %v1313 = vpop.f32.mrf.mxu0
        %v1314 = vadd.f32 %v1164, %v1313
        %1315 = vmatprep.mubr.f32.mxu0 0.0
        %1316 = vmatmul.mubr.f32.gmra.mxu0 %v1138
        %v1317 = vpop.f32.mrf.mxu0
        %v1318 = vadd.f32 %v1160, %v1317
        %v1319 = vpop.f32.mrf.mxu0
        %v1320 = vadd.f32 %v1164, %v1319
        %1321 = vmatprep.mubr.f32.mxu0 0.0
        %1322 = vmatmul.mubr.f32.gmra.mxu0 %v1139
        %v1323 = vpop.f32.mrf.mxu0
        %v1324 = vadd.f32 %v1160, %v1323
        %v1325 = vpop.f32.mrf.mxu0
        %v1326 = vadd.f32 %v1164, %v1325
        %1327 = vmatprep.mubr.f32.mxu0 0.0
        %1328 = vmatmul.mubr.f32.gmra.mxu0 %v1140
        %v1329 = vpop.f32.mrf.mxu0
        %v1330 = vadd.f32 %v1160, %v1329
        %v1331 = vpop.f32.mrf.mxu0
        %v1332 = vadd.f32 %v1164, %v1331
        %1333 = vmatprep.mubr.f32.mxu0 0.0
        %1334 = vmatmul.mubr.f32.gmra.mxu0 %v1141
        %v1335 = vpop.f32.mrf.mxu0
        %v1336 = vadd.f32 %v1160, %v1335
        %v1337 = vpop.f32.mrf.mxu0
        %v1338 = vadd.f32 %v1164, %v1337
        %1339 = vmatprep.mubr.f32.mxu0 0.0
        %1340 = vmatmul.mubr.f32.gmra.mxu0 %v1142
        %v1341 = vpop.f32.mrf.mxu0
        %v1342 = vadd.f32 %v1160, %v1341
        %v1343 = vpop.f32.mrf.mxu0
        %v1344 = vadd.f32 %v1164, %v1343
        %1345 = vmatprep.mubr.f32.mxu0 0.0
        %1346 = vmatmul.mubr.f32.gmra.mxu0 %v1143
        %v1347 = vpop.f32.mrf.mxu0
        %v1348 = vadd.f32 %v1160, %v1347
        %v1349 = vpop.f32.mrf.mxu0
        %v1350 = vadd.f32 %v1164, %v1349
        %1351 = vmatprep.mubr.f32.mxu0 0.0
        %1352 = vmatmul.mubr.f32.gmra.mxu0 %v1144
        %v1353 = vpop.f32.mrf.mxu0
        %v1354 = vadd.f32 %v1160, %v1353
        %v1355 = vpop.f32.mrf.mxu0
        %v1356 = vadd.f32 %v1164, %v1355
        %1357 = vmatprep.mubr.f32.mxu0 0.0
        %1358 = vmatmul.mubr.f32.gmra.mxu0 %v1145
        %v1359 = vpop.f32.mrf.mxu0
        %v1360 = vadd.f32 %v1160, %v1359
        %v1361 = vpop.f32.mrf.mxu0
        %v1362 = vadd.f32 %v1164, %v1361
        %1363 = vmatprep.mubr.f32.mxu0 0.0
        %1364 = vmatmul.mubr.f32.gmra.mxu0 %v1146
        %v1365 = vpop.f32.mrf.mxu0
        %v1366 = vadd.f32 %v1160, %v1365
        %v1367 = vpop.f32.mrf.mxu0
        %v1368 = vadd.f32 %v1164, %v1367
        %1369 = vmatprep.mubr.f32.mxu0 0.0
        %1370 = vmatmul.mubr.f32.gmra.mxu0 %v1147
        %v1371 = vpop.f32.mrf.mxu0
        %v1372 = vadd.f32 %v1160, %v1371
        %v1373 = vpop.f32.mrf.mxu0
        %v1374 = vadd.f32 %v1164, %v1373
        %1375 = vmatprep.mubr.f32.mxu0 0.0
        %1376 = vmatmul.mubr.f32.gmra.mxu0 %v1148
        %v1377 = vpop.f32.mrf.mxu0
        %v1378 = vadd.f32 %v1160, %v1377
        %v1379 = vpop.f32.mrf.mxu0
        %v1380 = vadd.f32 %v1164, %v1379
        %1381 = vmatprep.mubr.f32.mxu0 0.0
        %1382 = vmatmul.mubr.f32.gmra.mxu0 %v1149
        %v1383 = vpop.f32.mrf.mxu0
        %v1384 = vadd.f32 %v1160, %v1383
        %v1385 = vpop.f32.mrf.mxu0
        %v1386 = vadd.f32 %v1164, %v1385
        %1387 = vmatprep.mubr.f32.mxu0 0.0
        %1388 = vmatmul.mubr.f32.gmra.mxu0 %v1150
        %v1389 = vpop.f32.mrf.mxu0
        %v1390 = vadd.f32 %v1160, %v1389
        %v1391 = vpop.f32.mrf.mxu0
        %v1392 = vadd.f32 %v1164, %v1391
        %1393 = vmatprep.mubr.f32.mxu0 0.0
        %1394 = vmatmul.mubr.f32.gmra.mxu0 %v1151
        %v1395 = vpop.f32.mrf.mxu0
        %v1396 = vadd.f32 %v1160, %v1395
        %v1397 = vpop.f32.mrf.mxu0
        %v1398 = vadd.f32 %v1164, %v1397
        %1399 = vmatprep.mubr.f32.mxu0 0.0
        %1400 = vmatmul.mubr.f32.gmra.mxu0 %v1152
        %v1401 = vpop.f32.mrf.mxu0
        %v1402 = vadd.f32 %v1160, %v1401
        %v1403 = vpop.f32.mrf.mxu0
        %v1404 = vadd.f32 %v1164, %v1403
        %1405 = vmatprep.mubr.f32.mxu0 0.0
        %1406 = vmatmul.mubr.f32.gmra.mxu0 %v1153
        %v1407 = vpop.f32.mrf.mxu0
        %v1408 = vadd.f32 %v1160, %v1407
        %v1409 = vpop.f32.mrf.mxu0
        %v1410 = vadd.f32 %v1164, %v1409
        %1411 = vmatprep.mubr.f32.mxu0 0.0
        %1412 = vmatmul.mubr.f32.gmra.mxu0 %v1154
        %v1413 = vpop.f32.mrf.mxu0
        %v1414 = vadd.f32 %v1160, %v1413
        %v1415 = vpop.f32.mrf.mxu0
        %v1416 = vadd.f32 %v1164, %v1415
        %1417 = vmatprep.mubr.f32.mxu0 0.0
        %1418 = vmatmul.mubr.f32.gmra.mxu0 %v1155
        %v1419 = vpop.f32.mrf.mxu0
        %v1420 = vadd.f32 %v1160, %v1419
        %v1421 = vpop.f32.mrf.mxu0
        %v1422 = vadd.f32 %v1164, %v1421
        %1423 = vdwg.mxu0
        %v1424 = vmax.f32 %v1234, 0.0
        %v1425 = vmax.f32 %v1236, 0.0
        %v1426 = vmax.f32 %v1240, 0.0
        %v1427 = vmax.f32 %v1242, 0.0
        %v1428 = vmax.f32 %v1246, 0.0
        %v1429 = vmax.f32 %v1248, 0.0
        %v1430 = vmax.f32 %v1252, 0.0
        %v1431 = vmax.f32 %v1254, 0.0
        %v1432 = vmax.f32 %v1258, 0.0
        %v1433 = vmax.f32 %v1260, 0.0
        %v1434 = vmax.f32 %v1264, 0.0
        %v1435 = vmax.f32 %v1266, 0.0
        %v1436 = vmax.f32 %v1270, 0.0
        %v1437 = vmax.f32 %v1272, 0.0
        %v1438 = vmax.f32 %v1276, 0.0
        %v1439 = vmax.f32 %v1278, 0.0
        %v1440 = vmax.f32 %v1282, 0.0
        %v1441 = vmax.f32 %v1284, 0.0
        %v1442 = vmax.f32 %v1288, 0.0
        %v1443 = vmax.f32 %v1290, 0.0
        %v1444 = vmax.f32 %v1294, 0.0
        %v1445 = vmax.f32 %v1296, 0.0
        %v1446 = vmax.f32 %v1300, 0.0
        %v1447 = vmax.f32 %v1302, 0.0
        %v1448 = vmax.f32 %v1306, 0.0
        %v1449 = vmax.f32 %v1308, 0.0
        %v1450 = vmax.f32 %v1312, 0.0
        %v1451 = vmax.f32 %v1314, 0.0
        %v1452 = vmax.f32 %v1318, 0.0
        %v1453 = vmax.f32 %v1320, 0.0
        %v1454 = vmax.f32 %v1324, 0.0
        %v1455 = vmax.f32 %v1326, 0.0
        %v1456 = vmax.f32 %v1330, 0.0
        %v1457 = vmax.f32 %v1332, 0.0
        %v1458 = vmax.f32 %v1336, 0.0
        %v1459 = vmax.f32 %v1338, 0.0
        %v1460 = vmax.f32 %v1342, 0.0
        %v1461 = vmax.f32 %v1344, 0.0
        %v1462 = vmax.f32 %v1348, 0.0
        %v1463 = vmax.f32 %v1350, 0.0
        %v1464 = vmax.f32 %v1354, 0.0
        %v1465 = vmax.f32 %v1356, 0.0
        %v1466 = vmax.f32 %v1360, 0.0
        %v1467 = vmax.f32 %v1362, 0.0
        %v1468 = vmax.f32 %v1366, 0.0
        %v1469 = vmax.f32 %v1368, 0.0
        %v1470 = vmax.f32 %v1372, 0.0
        %v1471 = vmax.f32 %v1374, 0.0
        %v1472 = vmax.f32 %v1378, 0.0
        %v1473 = vmax.f32 %v1380, 0.0
        %v1474 = vmax.f32 %v1384, 0.0
        %v1475 = vmax.f32 %v1386, 0.0
        %v1476 = vmax.f32 %v1390, 0.0
        %v1477 = vmax.f32 %v1392, 0.0
        %v1478 = vmax.f32 %v1396, 0.0
        %v1479 = vmax.f32 %v1398, 0.0
        %v1480 = vmax.f32 %v1402, 0.0
        %v1481 = vmax.f32 %v1404, 0.0
        %v1482 = vmax.f32 %v1408, 0.0
        %v1483 = vmax.f32 %v1410, 0.0
        %v1484 = vmax.f32 %v1414, 0.0
        %v1485 = vmax.f32 %v1416, 0.0
        %v1486 = vmax.f32 %v1420, 0.0
        %v1487 = vmax.f32 %v1422, 0.0
        %v1489 = vlaneseq
        %v1490 = vshrl.u32 %v1489, 7
        %v1491 = vsub.s32 0, %v1490
        %v1492 = vrot.slane %v567, %v1491
        %1494 = vmatprep.subr.mxu0 0.0
        %1495 = vmatpush1.msra.mxu0 %v615
        %1496 = vmatprep.subr.mxu0 0.0
        %1497 = vmatpush1.msra.mxu0 %v614
        %1498 = vmatprep.subr.mxu0 0.0
        %1499 = vmatpush1.msra.mxu0 %v613
        %1500 = vmatprep.subr.mxu0 0.0
        %1501 = vmatpush1.msra.mxu0 %v612
        %1502 = vmatprep.subr.mxu0 0.0
        %1503 = vmatpush1.msra.mxu0 %v611
        %1504 = vmatprep.subr.mxu0 0.0
        %1505 = vmatpush1.msra.mxu0 %v610
        %1506 = vmatprep.subr.mxu0 0.0
        %1507 = vmatpush1.msra.mxu0 %v609
        %1508 = vmatprep.subr.mxu0 0.0
        %1509 = vmatpush1.msra.mxu0 %v608
        %1510 = vmatprep.subr.mxu0 0.0
        %1511 = vmatpush1.msra.mxu0 %v607
        %1512 = vmatprep.subr.mxu0 0.0
        %1513 = vmatpush1.msra.mxu0 %v606
        %1514 = vmatprep.subr.mxu0 0.0
        %1515 = vmatpush1.msra.mxu0 %v605
        %1516 = vmatprep.subr.mxu0 0.0
        %1517 = vmatpush1.msra.mxu0 %v604
        %1518 = vmatprep.subr.mxu0 0.0
        %1519 = vmatpush1.msra.mxu0 %v603
        %1520 = vmatprep.subr.mxu0 0.0
        %1521 = vmatpush1.msra.mxu0 %v602
        %1522 = vmatprep.subr.mxu0 0.0
        %1523 = vmatpush1.msra.mxu0 %v601
        %1524 = vmatprep.subr.mxu0 0.0
        %1525 = vmatpush1.msra.mxu0 %v600
        %1526 = vmatprep.subr.mxu0 0.0
        %1527 = vmatpush2.msra.mxu0 %v631
        %1528 = vmatprep.subr.mxu0 0.0
        %1529 = vmatpush2.msra.mxu0 %v630
        %1530 = vmatprep.subr.mxu0 0.0
        %1531 = vmatpush2.msra.mxu0 %v629
        %1532 = vmatprep.subr.mxu0 0.0
        %1533 = vmatpush2.msra.mxu0 %v628
        %1534 = vmatprep.subr.mxu0 0.0
        %1535 = vmatpush2.msra.mxu0 %v627
        %1536 = vmatprep.subr.mxu0 0.0
        %1537 = vmatpush2.msra.mxu0 %v626
        %1538 = vmatprep.subr.mxu0 0.0
        %1539 = vmatpush2.msra.mxu0 %v625
        %1540 = vmatprep.subr.mxu0 0.0
        %1541 = vmatpush2.msra.mxu0 %v624
        %1542 = vmatprep.subr.mxu0 0.0
        %1543 = vmatpush2.msra.mxu0 %v623
        %1544 = vmatprep.subr.mxu0 0.0
        %1545 = vmatpush2.msra.mxu0 %v622
        %1546 = vmatprep.subr.mxu0 0.0
        %1547 = vmatpush2.msra.mxu0 %v621
        %1548 = vmatprep.subr.mxu0 0.0
        %1549 = vmatpush2.msra.mxu0 %v620
        %1550 = vmatprep.subr.mxu0 0.0
        %1551 = vmatpush2.msra.mxu0 %v619
        %1552 = vmatprep.subr.mxu0 0.0
        %1553 = vmatpush2.msra.mxu0 %v618
        %1554 = vmatprep.subr.mxu0 0.0
        %1555 = vmatpush2.msra.mxu0 %v617
        %1556 = vmatprep.subr.mxu0 0.0
        %1557 = vmatpush2.msra.mxu0 %v616
        %1558 = vmatprep.mubr.f32.mxu0 %v1425
        %1559 = vmatmul.mubr.f32.gmra.mxu0 %v1424
        %v1560 = vpop.f32.mrf.mxu0
        %v1561 = vadd.f32 %v1492, %v1560
        %v1562 = vpop.f32.mrf.mxu0
        %1563 = vmatprep.mubr.f32.mxu0 %v1427
        %1564 = vmatmul.mubr.f32.gmra.mxu0 %v1426
        %v1565 = vpop.f32.mrf.mxu0
        %v1566 = vadd.f32 %v1492, %v1565
        %v1567 = vpop.f32.mrf.mxu0
        %1568 = vmatprep.mubr.f32.mxu0 %v1429
        %1569 = vmatmul.mubr.f32.gmra.mxu0 %v1428
        %v1570 = vpop.f32.mrf.mxu0
        %v1571 = vadd.f32 %v1492, %v1570
        %v1572 = vpop.f32.mrf.mxu0
        %1573 = vmatprep.mubr.f32.mxu0 %v1431
        %1574 = vmatmul.mubr.f32.gmra.mxu0 %v1430
        %v1575 = vpop.f32.mrf.mxu0
        %v1576 = vadd.f32 %v1492, %v1575
        %v1577 = vpop.f32.mrf.mxu0
        %1578 = vmatprep.mubr.f32.mxu0 %v1433
        %1579 = vmatmul.mubr.f32.gmra.mxu0 %v1432
        %v1580 = vpop.f32.mrf.mxu0
        %v1581 = vadd.f32 %v1492, %v1580
        %v1582 = vpop.f32.mrf.mxu0
        %1583 = vmatprep.mubr.f32.mxu0 %v1435
        %1584 = vmatmul.mubr.f32.gmra.mxu0 %v1434
        %v1585 = vpop.f32.mrf.mxu0
        %v1586 = vadd.f32 %v1492, %v1585
        %v1587 = vpop.f32.mrf.mxu0
        %1588 = vmatprep.mubr.f32.mxu0 %v1437
        %1589 = vmatmul.mubr.f32.gmra.mxu0 %v1436
        %v1590 = vpop.f32.mrf.mxu0
        %v1591 = vadd.f32 %v1492, %v1590
        %v1592 = vpop.f32.mrf.mxu0
        %1593 = vmatprep.mubr.f32.mxu0 %v1439
        %1594 = vmatmul.mubr.f32.gmra.mxu0 %v1438
        %v1595 = vpop.f32.mrf.mxu0
        %v1596 = vadd.f32 %v1492, %v1595
        %v1597 = vpop.f32.mrf.mxu0
        %1598 = vmatprep.mubr.f32.mxu0 %v1441
        %1599 = vmatmul.mubr.f32.gmra.mxu0 %v1440
        %v1600 = vpop.f32.mrf.mxu0
        %v1601 = vadd.f32 %v1492, %v1600
        %v1602 = vpop.f32.mrf.mxu0
        %1603 = vmatprep.mubr.f32.mxu0 %v1443
        %1604 = vmatmul.mubr.f32.gmra.mxu0 %v1442
        %v1605 = vpop.f32.mrf.mxu0
        %v1606 = vadd.f32 %v1492, %v1605
        %v1607 = vpop.f32.mrf.mxu0
        %1608 = vmatprep.mubr.f32.mxu0 %v1445
        %1609 = vmatmul.mubr.f32.gmra.mxu0 %v1444
        %v1610 = vpop.f32.mrf.mxu0
        %v1611 = vadd.f32 %v1492, %v1610
        %v1612 = vpop.f32.mrf.mxu0
        %1613 = vmatprep.mubr.f32.mxu0 %v1447
        %1614 = vmatmul.mubr.f32.gmra.mxu0 %v1446
        %v1615 = vpop.f32.mrf.mxu0
        %v1616 = vadd.f32 %v1492, %v1615
        %v1617 = vpop.f32.mrf.mxu0
        %1618 = vmatprep.mubr.f32.mxu0 %v1449
        %1619 = vmatmul.mubr.f32.gmra.mxu0 %v1448
        %v1620 = vpop.f32.mrf.mxu0
        %v1621 = vadd.f32 %v1492, %v1620
        %v1622 = vpop.f32.mrf.mxu0
        %1623 = vmatprep.mubr.f32.mxu0 %v1451
        %1624 = vmatmul.mubr.f32.gmra.mxu0 %v1450
        %v1625 = vpop.f32.mrf.mxu0
        %v1626 = vadd.f32 %v1492, %v1625
        %v1627 = vpop.f32.mrf.mxu0
        %1628 = vmatprep.mubr.f32.mxu0 %v1453
        %1629 = vmatmul.mubr.f32.gmra.mxu0 %v1452
        %v1630 = vpop.f32.mrf.mxu0
        %v1631 = vadd.f32 %v1492, %v1630
        %v1632 = vpop.f32.mrf.mxu0
        %1633 = vmatprep.mubr.f32.mxu0 %v1455
        %1634 = vmatmul.mubr.f32.gmra.mxu0 %v1454
        %v1635 = vpop.f32.mrf.mxu0
        %v1636 = vadd.f32 %v1492, %v1635
        %v1637 = vpop.f32.mrf.mxu0
        %1638 = vmatprep.mubr.f32.mxu0 %v1457
        %1639 = vmatmul.mubr.f32.gmra.mxu0 %v1456
        %v1640 = vpop.f32.mrf.mxu0
        %v1641 = vadd.f32 %v1492, %v1640
        %v1642 = vpop.f32.mrf.mxu0
        %1643 = vmatprep.mubr.f32.mxu0 %v1459
        %1644 = vmatmul.mubr.f32.gmra.mxu0 %v1458
        %v1645 = vpop.f32.mrf.mxu0
        %v1646 = vadd.f32 %v1492, %v1645
        %v1647 = vpop.f32.mrf.mxu0
        %1648 = vmatprep.mubr.f32.mxu0 %v1461
        %1649 = vmatmul.mubr.f32.gmra.mxu0 %v1460
        %v1650 = vpop.f32.mrf.mxu0
        %v1651 = vadd.f32 %v1492, %v1650
        %v1652 = vpop.f32.mrf.mxu0
        %1653 = vmatprep.mubr.f32.mxu0 %v1463
        %1654 = vmatmul.mubr.f32.gmra.mxu0 %v1462
        %v1655 = vpop.f32.mrf.mxu0
        %v1656 = vadd.f32 %v1492, %v1655
        %v1657 = vpop.f32.mrf.mxu0
        %1658 = vmatprep.mubr.f32.mxu0 %v1465
        %1659 = vmatmul.mubr.f32.gmra.mxu0 %v1464
        %v1660 = vpop.f32.mrf.mxu0
        %v1661 = vadd.f32 %v1492, %v1660
        %v1662 = vpop.f32.mrf.mxu0
        %1663 = vmatprep.mubr.f32.mxu0 %v1467
        %1664 = vmatmul.mubr.f32.gmra.mxu0 %v1466
        %v1665 = vpop.f32.mrf.mxu0
        %v1666 = vadd.f32 %v1492, %v1665
        %v1667 = vpop.f32.mrf.mxu0
        %1668 = vmatprep.mubr.f32.mxu0 %v1469
        %1669 = vmatmul.mubr.f32.gmra.mxu0 %v1468
        %v1670 = vpop.f32.mrf.mxu0
        %v1671 = vadd.f32 %v1492, %v1670
        %v1672 = vpop.f32.mrf.mxu0
        %1673 = vmatprep.mubr.f32.mxu0 %v1471
        %1674 = vmatmul.mubr.f32.gmra.mxu0 %v1470
        %v1675 = vpop.f32.mrf.mxu0
        %v1676 = vadd.f32 %v1492, %v1675
        %v1677 = vpop.f32.mrf.mxu0
        %1678 = vmatprep.mubr.f32.mxu0 %v1473
        %1679 = vmatmul.mubr.f32.gmra.mxu0 %v1472
        %v1680 = vpop.f32.mrf.mxu0
        %v1681 = vadd.f32 %v1492, %v1680
        %v1682 = vpop.f32.mrf.mxu0
        %1683 = vmatprep.mubr.f32.mxu0 %v1475
        %1684 = vmatmul.mubr.f32.gmra.mxu0 %v1474
        %v1685 = vpop.f32.mrf.mxu0
        %v1686 = vadd.f32 %v1492, %v1685
        %v1687 = vpop.f32.mrf.mxu0
        %1688 = vmatprep.mubr.f32.mxu0 %v1477
        %1689 = vmatmul.mubr.f32.gmra.mxu0 %v1476
        %v1690 = vpop.f32.mrf.mxu0
        %v1691 = vadd.f32 %v1492, %v1690
        %v1692 = vpop.f32.mrf.mxu0
        %1693 = vmatprep.mubr.f32.mxu0 %v1479
        %1694 = vmatmul.mubr.f32.gmra.mxu0 %v1478
        %v1695 = vpop.f32.mrf.mxu0
        %v1696 = vadd.f32 %v1492, %v1695
        %v1697 = vpop.f32.mrf.mxu0
        %1698 = vmatprep.mubr.f32.mxu0 %v1481
        %1699 = vmatmul.mubr.f32.gmra.mxu0 %v1480
        %v1700 = vpop.f32.mrf.mxu0
        %v1701 = vadd.f32 %v1492, %v1700
        %v1702 = vpop.f32.mrf.mxu0
        %1703 = vmatprep.mubr.f32.mxu0 %v1483
        %1704 = vmatmul.mubr.f32.gmra.mxu0 %v1482
        %v1705 = vpop.f32.mrf.mxu0
        %v1706 = vadd.f32 %v1492, %v1705
        %v1707 = vpop.f32.mrf.mxu0
        %1708 = vmatprep.mubr.f32.mxu0 %v1485
        %1709 = vmatmul.mubr.f32.gmra.mxu0 %v1484
        %v1710 = vpop.f32.mrf.mxu0
        %v1711 = vadd.f32 %v1492, %v1710
        %v1712 = vpop.f32.mrf.mxu0
        %1713 = vmatprep.mubr.f32.mxu0 %v1487
        %1714 = vmatmul.mubr.f32.gmra.mxu0 %v1486
        %v1715 = vpop.f32.mrf.mxu0
        %v1716 = vadd.f32 %v1492, %v1715
        %v1717 = vpop.f32.mrf.mxu0
        %1718 = vdwg.mxu0
        %v1719 = vadd.f32 %v532, %v1561
        %v1720 = vadd.f32 %v533, %v1566
        %v1721 = vadd.f32 %v534, %v1571
        %v1722 = vadd.f32 %v535, %v1576
        %v1723 = vadd.f32 %v536, %v1581
        %v1724 = vadd.f32 %v537, %v1586
        %v1725 = vadd.f32 %v538, %v1591
        %v1726 = vadd.f32 %v539, %v1596
        %v1727 = vadd.f32 %v540, %v1601
        %v1728 = vadd.f32 %v541, %v1606
        %v1729 = vadd.f32 %v542, %v1611
        %v1730 = vadd.f32 %v543, %v1616
        %v1731 = vadd.f32 %v544, %v1621
        %v1732 = vadd.f32 %v545, %v1626
        %v1733 = vadd.f32 %v546, %v1631
        %v1734 = vadd.f32 %v547, %v1636
        %v1735 = vadd.f32 %v548, %v1641
        %v1736 = vadd.f32 %v549, %v1646
        %v1737 = vadd.f32 %v550, %v1651
        %v1738 = vadd.f32 %v551, %v1656
        %v1739 = vadd.f32 %v552, %v1661
        %v1740 = vadd.f32 %v553, %v1666
        %v1741 = vadd.f32 %v554, %v1671
        %v1742 = vadd.f32 %v555, %v1676
        %v1743 = vadd.f32 %v556, %v1681
        %v1744 = vadd.f32 %v557, %v1686
        %v1745 = vadd.f32 %v558, %v1691
        %v1746 = vadd.f32 %v559, %v1696
        %v1747 = vadd.f32 %v560, %v1701
        %v1748 = vadd.f32 %v561, %v1706
        %v1749 = vadd.f32 %v562, %v1711
        %v1750 = vadd.f32 %v563, %v1716
        %v1751 = vld [vmem:[%s7] sm:$0x1]
        %v1752 = vld [vmem:[%s8] sm:$0x1]
        %v1753 = vld [vmem:[%s10] sm:$0x3]
        %v1754 = vld [vmem:[%s12] sm:$0x1]
        %v1755 = vld [vmem:[#allocation10] sm:$0xff]
        %v1756 = vld [vmem:[#allocation10 + $0x8] sm:$0xff]
        %v1757 = vld [vmem:[#allocation10 + $0x10] sm:$0xff]
        %v1758 = vld [vmem:[#allocation10 + $0x18] sm:$0xff]
        %v1759 = vld [vmem:[#allocation10 + $0x20] sm:$0xff]
        %v1760 = vld [vmem:[#allocation10 + $0x28] sm:$0xff]
        %v1761 = vld [vmem:[#allocation10 + $0x30] sm:$0xff]
        %v1762 = vld [vmem:[#allocation10 + $0x38] sm:$0xff]
        %v1763 = vld [vmem:[#allocation10 + $0x40] sm:$0xff]
        %v1764 = vld [vmem:[#allocation10 + $0x48] sm:$0xff]
        %v1765 = vld [vmem:[#allocation10 + $0x50] sm:$0xff]
        %v1766 = vld [vmem:[#allocation10 + $0x58] sm:$0xff]
        %v1767 = vld [vmem:[#allocation10 + $0x60] sm:$0xff]
        %v1768 = vld [vmem:[#allocation10 + $0x68] sm:$0xff]
        %v1769 = vld [vmem:[#allocation10 + $0x70] sm:$0xff]
        %v1770 = vld [vmem:[#allocation10 + $0x78] sm:$0xff]
        %v1771 = vld [vmem:[#allocation10 + $0x80] sm:$0xff]
        %v1772 = vld [vmem:[#allocation10 + $0x88] sm:$0xff]
        %v1773 = vld [vmem:[#allocation10 + $0x90] sm:$0xff]
        %v1774 = vld [vmem:[#allocation10 + $0x98] sm:$0xff]
        %v1775 = vld [vmem:[#allocation10 + $0xa0] sm:$0xff]
        %v1776 = vld [vmem:[#allocation10 + $0xa8] sm:$0xff]
        %v1777 = vld [vmem:[#allocation10 + $0xb0] sm:$0xff]
        %v1778 = vld [vmem:[#allocation10 + $0xb8] sm:$0xff]
        %v1779 = vld [vmem:[#allocation10 + $0xc0] sm:$0xff]
        %v1780 = vld [vmem:[#allocation10 + $0xc8] sm:$0xff]
        %v1781 = vld [vmem:[#allocation10 + $0xd0] sm:$0xff]
        %v1782 = vld [vmem:[#allocation10 + $0xd8] sm:$0xff]
        %v1783 = vld [vmem:[#allocation10 + $0xe0] sm:$0xff]
        %v1784 = vld [vmem:[#allocation10 + $0xe8] sm:$0xff]
        %v1785 = vld [vmem:[#allocation10 + $0xf0] sm:$0xff]
        %v1786 = vld [vmem:[#allocation10 + $0xf8] sm:$0xff]
        %v1787 = vld [vmem:[#allocation11] sm:$0xff]
        %v1788 = vld [vmem:[#allocation11 + $0x8] sm:$0xff]
        %v1789 = vld [vmem:[#allocation11 + $0x10] sm:$0xff]
        %v1790 = vld [vmem:[#allocation11 + $0x18] sm:$0xff]
        %v1791 = vld [vmem:[#allocation11 + $0x20] sm:$0xff]
        %v1792 = vld [vmem:[#allocation11 + $0x28] sm:$0xff]
        %v1793 = vld [vmem:[#allocation11 + $0x30] sm:$0xff]
        %v1794 = vld [vmem:[#allocation11 + $0x38] sm:$0xff]
        %v1795 = vld [vmem:[#allocation11 + $0x40] sm:$0xff]
        %v1796 = vld [vmem:[#allocation11 + $0x48] sm:$0xff]
        %v1797 = vld [vmem:[#allocation11 + $0x50] sm:$0xff]
        %v1798 = vld [vmem:[#allocation11 + $0x58] sm:$0xff]
        %v1799 = vld [vmem:[#allocation11 + $0x60] sm:$0xff]
        %v1800 = vld [vmem:[#allocation11 + $0x68] sm:$0xff]
        %v1801 = vld [vmem:[#allocation11 + $0x70] sm:$0xff]
        %v1802 = vld [vmem:[#allocation11 + $0x78] sm:$0xff]
        %v1803 = vld [vmem:[#allocation11 + $0x80] sm:$0xff]
        %v1804 = vld [vmem:[#allocation11 + $0x88] sm:$0xff]
        %v1805 = vld [vmem:[#allocation11 + $0x90] sm:$0xff]
        %v1806 = vld [vmem:[#allocation11 + $0x98] sm:$0xff]
        %v1807 = vld [vmem:[#allocation11 + $0xa0] sm:$0xff]
        %v1808 = vld [vmem:[#allocation11 + $0xa8] sm:$0xff]
        %v1809 = vld [vmem:[#allocation11 + $0xb0] sm:$0xff]
        %v1810 = vld [vmem:[#allocation11 + $0xb8] sm:$0xff]
        %v1811 = vld [vmem:[#allocation11 + $0xc0] sm:$0xff]
        %v1812 = vld [vmem:[#allocation11 + $0xc8] sm:$0xff]
        %v1813 = vld [vmem:[#allocation11 + $0xd0] sm:$0xff]
        %v1814 = vld [vmem:[#allocation11 + $0xd8] sm:$0xff]
        %v1815 = vld [vmem:[#allocation11 + $0xe0] sm:$0xff]
        %v1816 = vld [vmem:[#allocation11 + $0xe8] sm:$0xff]
        %v1817 = vld [vmem:[#allocation11 + $0xf0] sm:$0xff]
        %v1818 = vld [vmem:[#allocation11 + $0xf8] sm:$0xff]
        %1819 = vadd.xlane.f32.xlu0 %v1719
        %v1820 = vpop.xlane.xlu0 %1819
        %1821 = vadd.xlane.f32.xlu0 %v1720
        %v1822 = vpop.xlane.xlu0 %1821
        %1823 = vadd.xlane.f32.xlu0 %v1721
        %v1824 = vpop.xlane.xlu0 %1823
        %1825 = vadd.xlane.f32.xlu0 %v1722
        %v1826 = vpop.xlane.xlu0 %1825
        %1827 = vadd.xlane.f32.xlu0 %v1723
        %v1828 = vpop.xlane.xlu0 %1827
        %1829 = vadd.xlane.f32.xlu0 %v1724
        %v1830 = vpop.xlane.xlu0 %1829
        %1831 = vadd.xlane.f32.xlu0 %v1725
        %v1832 = vpop.xlane.xlu0 %1831
        %1833 = vadd.xlane.f32.xlu0 %v1726
        %v1834 = vpop.xlane.xlu0 %1833
        %1835 = vadd.xlane.f32.xlu0 %v1727
        %v1836 = vpop.xlane.xlu0 %1835
        %1837 = vadd.xlane.f32.xlu0 %v1728
        %v1838 = vpop.xlane.xlu0 %1837
        %1839 = vadd.xlane.f32.xlu0 %v1729
        %v1840 = vpop.xlane.xlu0 %1839
        %1841 = vadd.xlane.f32.xlu0 %v1730
        %v1842 = vpop.xlane.xlu0 %1841
        %1843 = vadd.xlane.f32.xlu0 %v1731
        %v1844 = vpop.xlane.xlu0 %1843
        %1845 = vadd.xlane.f32.xlu0 %v1732
        %v1846 = vpop.xlane.xlu0 %1845
        %1847 = vadd.xlane.f32.xlu0 %v1733
        %v1848 = vpop.xlane.xlu0 %1847
        %1849 = vadd.xlane.f32.xlu0 %v1734
        %v1850 = vpop.xlane.xlu0 %1849
        %1851 = vadd.xlane.f32.xlu0 %v1735
        %v1852 = vpop.xlane.xlu0 %1851
        %1853 = vadd.xlane.f32.xlu0 %v1736
        %v1854 = vpop.xlane.xlu0 %1853
        %1855 = vadd.xlane.f32.xlu0 %v1737
        %v1856 = vpop.xlane.xlu0 %1855
        %1857 = vadd.xlane.f32.xlu0 %v1738
        %v1858 = vpop.xlane.xlu0 %1857
        %1859 = vadd.xlane.f32.xlu0 %v1739
        %v1860 = vpop.xlane.xlu0 %1859
        %1861 = vadd.xlane.f32.xlu0 %v1740
        %v1862 = vpop.xlane.xlu0 %1861
        %1863 = vadd.xlane.f32.xlu0 %v1741
        %v1864 = vpop.xlane.xlu0 %1863
        %1865 = vadd.xlane.f32.xlu0 %v1742
        %v1866 = vpop.xlane.xlu0 %1865
        %1867 = vadd.xlane.f32.xlu0 %v1743
        %v1868 = vpop.xlane.xlu0 %1867
        %1869 = vadd.xlane.f32.xlu0 %v1744
        %v1870 = vpop.xlane.xlu0 %1869
        %1871 = vadd.xlane.f32.xlu0 %v1745
        %v1872 = vpop.xlane.xlu0 %1871
        %1873 = vadd.xlane.f32.xlu0 %v1746
        %v1874 = vpop.xlane.xlu0 %1873
        %1875 = vadd.xlane.f32.xlu0 %v1747
        %v1876 = vpop.xlane.xlu0 %1875
        %1877 = vadd.xlane.f32.xlu0 %v1748
        %v1878 = vpop.xlane.xlu0 %1877
        %1879 = vadd.xlane.f32.xlu0 %v1749
        %v1880 = vpop.xlane.xlu0 %1879
        %1881 = vadd.xlane.f32.xlu0 %v1750
        %v1882 = vpop.xlane.xlu0 %1881
        %v1883 = vmul.f32 %v1719, %v1719
        %v1884 = vmul.f32 %v1720, %v1720
        %v1885 = vmul.f32 %v1721, %v1721
        %v1886 = vmul.f32 %v1722, %v1722
        %v1887 = vmul.f32 %v1723, %v1723
        %v1888 = vmul.f32 %v1724, %v1724
        %v1889 = vmul.f32 %v1725, %v1725
        %v1890 = vmul.f32 %v1726, %v1726
        %v1891 = vmul.f32 %v1727, %v1727
        %v1892 = vmul.f32 %v1728, %v1728
        %v1893 = vmul.f32 %v1729, %v1729
        %v1894 = vmul.f32 %v1730, %v1730
        %v1895 = vmul.f32 %v1731, %v1731
        %v1896 = vmul.f32 %v1732, %v1732
        %v1897 = vmul.f32 %v1733, %v1733
        %v1898 = vmul.f32 %v1734, %v1734
        %v1899 = vmul.f32 %v1735, %v1735
        %v1900 = vmul.f32 %v1736, %v1736
        %v1901 = vmul.f32 %v1737, %v1737
        %v1902 = vmul.f32 %v1738, %v1738
        %v1903 = vmul.f32 %v1739, %v1739
        %v1904 = vmul.f32 %v1740, %v1740
        %v1905 = vmul.f32 %v1741, %v1741
        %v1906 = vmul.f32 %v1742, %v1742
        %v1907 = vmul.f32 %v1743, %v1743
        %v1908 = vmul.f32 %v1744, %v1744
        %v1909 = vmul.f32 %v1745, %v1745
        %v1910 = vmul.f32 %v1746, %v1746
        %v1911 = vmul.f32 %v1747, %v1747
        %v1912 = vmul.f32 %v1748, %v1748
        %v1913 = vmul.f32 %v1749, %v1749
        %v1914 = vmul.f32 %v1750, %v1750
        %1915 = vadd.xlane.f32.xlu0 %v1883
        %v1916 = vpop.xlane.xlu0 %1915
        %1917 = vadd.xlane.f32.xlu0 %v1884
        %v1918 = vpop.xlane.xlu0 %1917
        %1919 = vadd.xlane.f32.xlu0 %v1885
        %v1920 = vpop.xlane.xlu0 %1919
        %1921 = vadd.xlane.f32.xlu0 %v1886
        %v1922 = vpop.xlane.xlu0 %1921
        %1923 = vadd.xlane.f32.xlu0 %v1887
        %v1924 = vpop.xlane.xlu0 %1923
        %1925 = vadd.xlane.f32.xlu0 %v1888
        %v1926 = vpop.xlane.xlu0 %1925
        %1927 = vadd.xlane.f32.xlu0 %v1889
        %v1928 = vpop.xlane.xlu0 %1927
        %1929 = vadd.xlane.f32.xlu0 %v1890
        %v1930 = vpop.xlane.xlu0 %1929
        %1931 = vadd.xlane.f32.xlu0 %v1891
        %v1932 = vpop.xlane.xlu0 %1931
        %1933 = vadd.xlane.f32.xlu0 %v1892
        %v1934 = vpop.xlane.xlu0 %1933
        %1935 = vadd.xlane.f32.xlu0 %v1893
        %v1936 = vpop.xlane.xlu0 %1935
        %1937 = vadd.xlane.f32.xlu0 %v1894
        %v1938 = vpop.xlane.xlu0 %1937
        %1939 = vadd.xlane.f32.xlu0 %v1895
        %v1940 = vpop.xlane.xlu0 %1939
        %1941 = vadd.xlane.f32.xlu0 %v1896
        %v1942 = vpop.xlane.xlu0 %1941
        %1943 = vadd.xlane.f32.xlu0 %v1897
        %v1944 = vpop.xlane.xlu0 %1943
        %1945 = vadd.xlane.f32.xlu0 %v1898
        %v1946 = vpop.xlane.xlu0 %1945
        %1947 = vadd.xlane.f32.xlu0 %v1899
        %v1948 = vpop.xlane.xlu0 %1947
        %1949 = vadd.xlane.f32.xlu0 %v1900
        %v1950 = vpop.xlane.xlu0 %1949
        %1951 = vadd.xlane.f32.xlu0 %v1901
        %v1952 = vpop.xlane.xlu0 %1951
        %1953 = vadd.xlane.f32.xlu0 %v1902
        %v1954 = vpop.xlane.xlu0 %1953
        %1955 = vadd.xlane.f32.xlu0 %v1903
        %v1956 = vpop.xlane.xlu0 %1955
        %1957 = vadd.xlane.f32.xlu0 %v1904
        %v1958 = vpop.xlane.xlu0 %1957
        %1959 = vadd.xlane.f32.xlu0 %v1905
        %v1960 = vpop.xlane.xlu0 %1959
        %1961 = vadd.xlane.f32.xlu0 %v1906
        %v1962 = vpop.xlane.xlu0 %1961
        %1963 = vadd.xlane.f32.xlu0 %v1907
        %v1964 = vpop.xlane.xlu0 %1963
        %1965 = vadd.xlane.f32.xlu0 %v1908
        %v1966 = vpop.xlane.xlu0 %1965
        %1967 = vadd.xlane.f32.xlu0 %v1909
        %v1968 = vpop.xlane.xlu0 %1967
        %1969 = vadd.xlane.f32.xlu0 %v1910
        %v1970 = vpop.xlane.xlu0 %1969
        %1971 = vadd.xlane.f32.xlu0 %v1911
        %v1972 = vpop.xlane.xlu0 %1971
        %1973 = vadd.xlane.f32.xlu0 %v1912
        %v1974 = vpop.xlane.xlu0 %1973
        %1975 = vadd.xlane.f32.xlu0 %v1913
        %v1976 = vpop.xlane.xlu0 %1975
        %1977 = vadd.xlane.f32.xlu0 %v1914
        %v1978 = vpop.xlane.xlu0 %1977
        %v1979 = vmul.f32 %v1820, 0.0078125
        %v1980 = vmul.f32 %v1822, 0.0078125
        %v1981 = vmul.f32 %v1824, 0.0078125
        %v1982 = vmul.f32 %v1826, 0.0078125
        %v1983 = vmul.f32 %v1828, 0.0078125
        %v1984 = vmul.f32 %v1830, 0.0078125
        %v1985 = vmul.f32 %v1832, 0.0078125
        %v1986 = vmul.f32 %v1834, 0.0078125
        %v1987 = vmul.f32 %v1836, 0.0078125
        %v1988 = vmul.f32 %v1838, 0.0078125
        %v1989 = vmul.f32 %v1840, 0.0078125
        %v1990 = vmul.f32 %v1842, 0.0078125
        %v1991 = vmul.f32 %v1844, 0.0078125
        %v1992 = vmul.f32 %v1846, 0.0078125
        %v1993 = vmul.f32 %v1848, 0.0078125
        %v1994 = vmul.f32 %v1850, 0.0078125
        %v1995 = vmul.f32 %v1852, 0.0078125
        %v1996 = vmul.f32 %v1854, 0.0078125
        %v1997 = vmul.f32 %v1856, 0.0078125
        %v1998 = vmul.f32 %v1858, 0.0078125
        %v1999 = vmul.f32 %v1860, 0.0078125
        %v2000 = vmul.f32 %v1862, 0.0078125
        %v2001 = vmul.f32 %v1864, 0.0078125
        %v2002 = vmul.f32 %v1866, 0.0078125
        %v2003 = vmul.f32 %v1868, 0.0078125
        %v2004 = vmul.f32 %v1870, 0.0078125
        %v2005 = vmul.f32 %v1872, 0.0078125
        %v2006 = vmul.f32 %v1874, 0.0078125
        %v2007 = vmul.f32 %v1876, 0.0078125
        %v2008 = vmul.f32 %v1878, 0.0078125
        %v2009 = vmul.f32 %v1880, 0.0078125
        %v2010 = vmul.f32 %v1882, 0.0078125
        %v2011 = vmul.f32 %v1916, 0.0078125
        %v2012 = vmul.f32 %v1918, 0.0078125
        %v2013 = vmul.f32 %v1920, 0.0078125
        %v2014 = vmul.f32 %v1922, 0.0078125
        %v2015 = vmul.f32 %v1924, 0.0078125
        %v2016 = vmul.f32 %v1926, 0.0078125
        %v2017 = vmul.f32 %v1928, 0.0078125
        %v2018 = vmul.f32 %v1930, 0.0078125
        %v2019 = vmul.f32 %v1932, 0.0078125
        %v2020 = vmul.f32 %v1934, 0.0078125
        %v2021 = vmul.f32 %v1936, 0.0078125
        %v2022 = vmul.f32 %v1938, 0.0078125
        %v2023 = vmul.f32 %v1940, 0.0078125
        %v2024 = vmul.f32 %v1942, 0.0078125
        %v2025 = vmul.f32 %v1944, 0.0078125
        %v2026 = vmul.f32 %v1946, 0.0078125
        %v2027 = vmul.f32 %v1948, 0.0078125
        %v2028 = vmul.f32 %v1950, 0.0078125
        %v2029 = vmul.f32 %v1952, 0.0078125
        %v2030 = vmul.f32 %v1954, 0.0078125
        %v2031 = vmul.f32 %v1956, 0.0078125
        %v2032 = vmul.f32 %v1958, 0.0078125
        %v2033 = vmul.f32 %v1960, 0.0078125
        %v2034 = vmul.f32 %v1962, 0.0078125
        %v2035 = vmul.f32 %v1964, 0.0078125
        %v2036 = vmul.f32 %v1966, 0.0078125
        %v2037 = vmul.f32 %v1968, 0.0078125
        %v2038 = vmul.f32 %v1970, 0.0078125
        %v2039 = vmul.f32 %v1972, 0.0078125
        %v2040 = vmul.f32 %v1974, 0.0078125
        %v2041 = vmul.f32 %v1976, 0.0078125
        %v2042 = vmul.f32 %v1978, 0.0078125
        %v2043 = vmul.f32 %v1979, %v1979
        %v2044 = vmul.f32 %v1980, %v1980
        %v2045 = vmul.f32 %v1981, %v1981
        %v2046 = vmul.f32 %v1982, %v1982
        %v2047 = vmul.f32 %v1983, %v1983
        %v2048 = vmul.f32 %v1984, %v1984
        %v2049 = vmul.f32 %v1985, %v1985
        %v2050 = vmul.f32 %v1986, %v1986
        %v2051 = vmul.f32 %v1987, %v1987
        %v2052 = vmul.f32 %v1988, %v1988
        %v2053 = vmul.f32 %v1989, %v1989
        %v2054 = vmul.f32 %v1990, %v1990
        %v2055 = vmul.f32 %v1991, %v1991
        %v2056 = vmul.f32 %v1992, %v1992
        %v2057 = vmul.f32 %v1993, %v1993
        %v2058 = vmul.f32 %v1994, %v1994
        %v2059 = vmul.f32 %v1995, %v1995
        %v2060 = vmul.f32 %v1996, %v1996
        %v2061 = vmul.f32 %v1997, %v1997
        %v2062 = vmul.f32 %v1998, %v1998
        %v2063 = vmul.f32 %v1999, %v1999
        %v2064 = vmul.f32 %v2000, %v2000
        %v2065 = vmul.f32 %v2001, %v2001
        %v2066 = vmul.f32 %v2002, %v2002
        %v2067 = vmul.f32 %v2003, %v2003
        %v2068 = vmul.f32 %v2004, %v2004
        %v2069 = vmul.f32 %v2005, %v2005
        %v2070 = vmul.f32 %v2006, %v2006
        %v2071 = vmul.f32 %v2007, %v2007
        %v2072 = vmul.f32 %v2008, %v2008
        %v2073 = vmul.f32 %v2009, %v2009
        %v2074 = vmul.f32 %v2010, %v2010
        %v2075 = vsub.f32 %v2011, %v2043
        %v2076 = vsub.f32 %v2012, %v2044
        %v2077 = vsub.f32 %v2013, %v2045
        %v2078 = vsub.f32 %v2014, %v2046
        %v2079 = vsub.f32 %v2015, %v2047
        %v2080 = vsub.f32 %v2016, %v2048
        %v2081 = vsub.f32 %v2017, %v2049
        %v2082 = vsub.f32 %v2018, %v2050
        %v2083 = vsub.f32 %v2019, %v2051
        %v2084 = vsub.f32 %v2020, %v2052
        %v2085 = vsub.f32 %v2021, %v2053
        %v2086 = vsub.f32 %v2022, %v2054
        %v2087 = vsub.f32 %v2023, %v2055
        %v2088 = vsub.f32 %v2024, %v2056
        %v2089 = vsub.f32 %v2025, %v2057
        %v2090 = vsub.f32 %v2026, %v2058
        %v2091 = vsub.f32 %v2027, %v2059
        %v2092 = vsub.f32 %v2028, %v2060
        %v2093 = vsub.f32 %v2029, %v2061
        %v2094 = vsub.f32 %v2030, %v2062
        %v2095 = vsub.f32 %v2031, %v2063
        %v2096 = vsub.f32 %v2032, %v2064
        %v2097 = vsub.f32 %v2033, %v2065
        %v2098 = vsub.f32 %v2034, %v2066
        %v2099 = vsub.f32 %v2035, %v2067
        %v2100 = vsub.f32 %v2036, %v2068
        %v2101 = vsub.f32 %v2037, %v2069
        %v2102 = vsub.f32 %v2038, %v2070
        %v2103 = vsub.f32 %v2039, %v2071
        %v2104 = vsub.f32 %v2040, %v2072
        %v2105 = vsub.f32 %v2041, %v2073
        %v2106 = vsub.f32 %v2042, %v2074
        %v2107 = vmax.f32 %v2075, 0.0
        %v2108 = vmax.f32 %v2076, 0.0
        %v2109 = vmax.f32 %v2077, 0.0
        %v2110 = vmax.f32 %v2078, 0.0
        %v2111 = vmax.f32 %v2079, 0.0
        %v2112 = vmax.f32 %v2080, 0.0
        %v2113 = vmax.f32 %v2081, 0.0
        %v2114 = vmax.f32 %v2082, 0.0
        %v2115 = vmax.f32 %v2083, 0.0
        %v2116 = vmax.f32 %v2084, 0.0
        %v2117 = vmax.f32 %v2085, 0.0
        %v2118 = vmax.f32 %v2086, 0.0
        %v2119 = vmax.f32 %v2087, 0.0
        %v2120 = vmax.f32 %v2088, 0.0
        %v2121 = vmax.f32 %v2089, 0.0
        %v2122 = vmax.f32 %v2090, 0.0
        %v2123 = vmax.f32 %v2091, 0.0
        %v2124 = vmax.f32 %v2092, 0.0
        %v2125 = vmax.f32 %v2093, 0.0
        %v2126 = vmax.f32 %v2094, 0.0
        %v2127 = vmax.f32 %v2095, 0.0
        %v2128 = vmax.f32 %v2096, 0.0
        %v2129 = vmax.f32 %v2097, 0.0
        %v2130 = vmax.f32 %v2098, 0.0
        %v2131 = vmax.f32 %v2099, 0.0
        %v2132 = vmax.f32 %v2100, 0.0
        %v2133 = vmax.f32 %v2101, 0.0
        %v2134 = vmax.f32 %v2102, 0.0
        %v2135 = vmax.f32 %v2103, 0.0
        %v2136 = vmax.f32 %v2104, 0.0
        %v2137 = vmax.f32 %v2105, 0.0
        %v2138 = vmax.f32 %v2106, 0.0
        %v2139 = vsub.f32 %v1719, %v1979
        %v2140 = vsub.f32 %v1720, %v1980
        %v2141 = vsub.f32 %v1721, %v1981
        %v2142 = vsub.f32 %v1722, %v1982
        %v2143 = vsub.f32 %v1723, %v1983
        %v2144 = vsub.f32 %v1724, %v1984
        %v2145 = vsub.f32 %v1725, %v1985
        %v2146 = vsub.f32 %v1726, %v1986
        %v2147 = vsub.f32 %v1727, %v1987
        %v2148 = vsub.f32 %v1728, %v1988
        %v2149 = vsub.f32 %v1729, %v1989
        %v2150 = vsub.f32 %v1730, %v1990
        %v2151 = vsub.f32 %v1731, %v1991
        %v2152 = vsub.f32 %v1732, %v1992
        %v2153 = vsub.f32 %v1733, %v1993
        %v2154 = vsub.f32 %v1734, %v1994
        %v2155 = vsub.f32 %v1735, %v1995
        %v2156 = vsub.f32 %v1736, %v1996
        %v2157 = vsub.f32 %v1737, %v1997
        %v2158 = vsub.f32 %v1738, %v1998
        %v2159 = vsub.f32 %v1739, %v1999
        %v2160 = vsub.f32 %v1740, %v2000
        %v2161 = vsub.f32 %v1741, %v2001
        %v2162 = vsub.f32 %v1742, %v2002
        %v2163 = vsub.f32 %v1743, %v2003
        %v2164 = vsub.f32 %v1744, %v2004
        %v2165 = vsub.f32 %v1745, %v2005
        %v2166 = vsub.f32 %v1746, %v2006
        %v2167 = vsub.f32 %v1747, %v2007
        %v2168 = vsub.f32 %v1748, %v2008
        %v2169 = vsub.f32 %v1749, %v2009
        %v2170 = vsub.f32 %v1750, %v2010
        %v2171 = vadd.f32 %v2107, 1e-05
        %v2172 = vadd.f32 %v2108, 1e-05
        %v2173 = vadd.f32 %v2109, 1e-05
        %v2174 = vadd.f32 %v2110, 1e-05
        %v2175 = vadd.f32 %v2111, 1e-05
        %v2176 = vadd.f32 %v2112, 1e-05
        %v2177 = vadd.f32 %v2113, 1e-05
        %v2178 = vadd.f32 %v2114, 1e-05
        %v2179 = vadd.f32 %v2115, 1e-05
        %v2180 = vadd.f32 %v2116, 1e-05
        %v2181 = vadd.f32 %v2117, 1e-05
        %v2182 = vadd.f32 %v2118, 1e-05
        %v2183 = vadd.f32 %v2119, 1e-05
        %v2184 = vadd.f32 %v2120, 1e-05
        %v2185 = vadd.f32 %v2121, 1e-05
        %v2186 = vadd.f32 %v2122, 1e-05
        %v2187 = vadd.f32 %v2123, 1e-05
        %v2188 = vadd.f32 %v2124, 1e-05
        %v2189 = vadd.f32 %v2125, 1e-05
        %v2190 = vadd.f32 %v2126, 1e-05
        %v2191 = vadd.f32 %v2127, 1e-05
        %v2192 = vadd.f32 %v2128, 1e-05
        %v2193 = vadd.f32 %v2129, 1e-05
        %v2194 = vadd.f32 %v2130, 1e-05
        %v2195 = vadd.f32 %v2131, 1e-05
        %v2196 = vadd.f32 %v2132, 1e-05
        %v2197 = vadd.f32 %v2133, 1e-05
        %v2198 = vadd.f32 %v2134, 1e-05
        %v2199 = vadd.f32 %v2135, 1e-05
        %v2200 = vadd.f32 %v2136, 1e-05
        %v2201 = vadd.f32 %v2137, 1e-05
        %v2202 = vadd.f32 %v2138, 1e-05
        %v2203 = vrsqrt.pop %v2171
        %v2204 = vrsqrt.pop %v2172
        %v2205 = vrsqrt.pop %v2173
        %v2206 = vrsqrt.pop %v2174
        %v2207 = vrsqrt.pop %v2175
        %v2208 = vrsqrt.pop %v2176
        %v2209 = vrsqrt.pop %v2177
        %v2210 = vrsqrt.pop %v2178
        %v2211 = vrsqrt.pop %v2179
        %v2212 = vrsqrt.pop %v2180
        %v2213 = vrsqrt.pop %v2181
        %v2214 = vrsqrt.pop %v2182
        %v2215 = vrsqrt.pop %v2183
        %v2216 = vrsqrt.pop %v2184
        %v2217 = vrsqrt.pop %v2185
        %v2218 = vrsqrt.pop %v2186
        %v2219 = vrsqrt.pop %v2187
        %v2220 = vrsqrt.pop %v2188
        %v2221 = vrsqrt.pop %v2189
        %v2222 = vrsqrt.pop %v2190
        %v2223 = vrsqrt.pop %v2191
        %v2224 = vrsqrt.pop %v2192
        %v2225 = vrsqrt.pop %v2193
        %v2226 = vrsqrt.pop %v2194
        %v2227 = vrsqrt.pop %v2195
        %v2228 = vrsqrt.pop %v2196
        %v2229 = vrsqrt.pop %v2197
        %v2230 = vrsqrt.pop %v2198
        %v2231 = vrsqrt.pop %v2199
        %v2232 = vrsqrt.pop %v2200
        %v2233 = vrsqrt.pop %v2201
        %v2234 = vrsqrt.pop %v2202
        %v2235 = vmul.f32 %v2139, %v2203
        %v2236 = vmul.f32 %v2140, %v2204
        %v2237 = vmul.f32 %v2141, %v2205
        %v2238 = vmul.f32 %v2142, %v2206
        %v2239 = vmul.f32 %v2143, %v2207
        %v2240 = vmul.f32 %v2144, %v2208
        %v2241 = vmul.f32 %v2145, %v2209
        %v2242 = vmul.f32 %v2146, %v2210
        %v2243 = vmul.f32 %v2147, %v2211
        %v2244 = vmul.f32 %v2148, %v2212
        %v2245 = vmul.f32 %v2149, %v2213
        %v2246 = vmul.f32 %v2150, %v2214
        %v2247 = vmul.f32 %v2151, %v2215
        %v2248 = vmul.f32 %v2152, %v2216
        %v2249 = vmul.f32 %v2153, %v2217
        %v2250 = vmul.f32 %v2154, %v2218
        %v2251 = vmul.f32 %v2155, %v2219
        %v2252 = vmul.f32 %v2156, %v2220
        %v2253 = vmul.f32 %v2157, %v2221
        %v2254 = vmul.f32 %v2158, %v2222
        %v2255 = vmul.f32 %v2159, %v2223
        %v2256 = vmul.f32 %v2160, %v2224
        %v2257 = vmul.f32 %v2161, %v2225
        %v2258 = vmul.f32 %v2162, %v2226
        %v2259 = vmul.f32 %v2163, %v2227
        %v2260 = vmul.f32 %v2164, %v2228
        %v2261 = vmul.f32 %v2165, %v2229
        %v2262 = vmul.f32 %v2166, %v2230
        %v2263 = vmul.f32 %v2167, %v2231
        %v2264 = vmul.f32 %v2168, %v2232
        %v2265 = vmul.f32 %v2169, %v2233
        %v2266 = vmul.f32 %v2170, %v2234
        %v2268 = vlaneseq
        %v2269 = vshrl.u32 %v2268, 7
        %v2270 = vsub.s32 0, %v2269
        %v2271 = vrot.slane %v1751, %v2270
        %v2273 = vmul.f32 %v2235, %v2271
        %v2274 = vmul.f32 %v2236, %v2271
        %v2275 = vmul.f32 %v2237, %v2271
        %v2276 = vmul.f32 %v2238, %v2271
        %v2277 = vmul.f32 %v2239, %v2271
        %v2278 = vmul.f32 %v2240, %v2271
        %v2279 = vmul.f32 %v2241, %v2271
        %v2280 = vmul.f32 %v2242, %v2271
        %v2281 = vmul.f32 %v2243, %v2271
        %v2282 = vmul.f32 %v2244, %v2271
        %v2283 = vmul.f32 %v2245, %v2271
        %v2284 = vmul.f32 %v2246, %v2271
        %v2285 = vmul.f32 %v2247, %v2271
        %v2286 = vmul.f32 %v2248, %v2271
        %v2287 = vmul.f32 %v2249, %v2271
        %v2288 = vmul.f32 %v2250, %v2271
        %v2289 = vmul.f32 %v2251, %v2271
        %v2290 = vmul.f32 %v2252, %v2271
        %v2291 = vmul.f32 %v2253, %v2271
        %v2292 = vmul.f32 %v2254, %v2271
        %v2293 = vmul.f32 %v2255, %v2271
        %v2294 = vmul.f32 %v2256, %v2271
        %v2295 = vmul.f32 %v2257, %v2271
        %v2296 = vmul.f32 %v2258, %v2271
        %v2297 = vmul.f32 %v2259, %v2271
        %v2298 = vmul.f32 %v2260, %v2271
        %v2299 = vmul.f32 %v2261, %v2271
        %v2300 = vmul.f32 %v2262, %v2271
        %v2301 = vmul.f32 %v2263, %v2271
        %v2302 = vmul.f32 %v2264, %v2271
        %v2303 = vmul.f32 %v2265, %v2271
        %v2304 = vmul.f32 %v2266, %v2271
        %v2306 = vlaneseq
        %v2307 = vshrl.u32 %v2306, 7
        %v2308 = vsub.s32 0, %v2307
        %v2309 = vrot.slane %v1752, %v2308
        %v2311 = vadd.f32 %v2273, %v2309
        %v2312 = vadd.f32 %v2274, %v2309
        %v2313 = vadd.f32 %v2275, %v2309
        %v2314 = vadd.f32 %v2276, %v2309
        %v2315 = vadd.f32 %v2277, %v2309
        %v2316 = vadd.f32 %v2278, %v2309
        %v2317 = vadd.f32 %v2279, %v2309
        %v2318 = vadd.f32 %v2280, %v2309
        %v2319 = vadd.f32 %v2281, %v2309
        %v2320 = vadd.f32 %v2282, %v2309
        %v2321 = vadd.f32 %v2283, %v2309
        %v2322 = vadd.f32 %v2284, %v2309
        %v2323 = vadd.f32 %v2285, %v2309
        %v2324 = vadd.f32 %v2286, %v2309
        %v2325 = vadd.f32 %v2287, %v2309
        %v2326 = vadd.f32 %v2288, %v2309
        %v2327 = vadd.f32 %v2289, %v2309
        %v2328 = vadd.f32 %v2290, %v2309
        %v2329 = vadd.f32 %v2291, %v2309
        %v2330 = vadd.f32 %v2292, %v2309
        %v2331 = vadd.f32 %v2293, %v2309
        %v2332 = vadd.f32 %v2294, %v2309
        %v2333 = vadd.f32 %v2295, %v2309
        %v2334 = vadd.f32 %v2296, %v2309
        %v2335 = vadd.f32 %v2297, %v2309
        %v2336 = vadd.f32 %v2298, %v2309
        %v2337 = vadd.f32 %v2299, %v2309
        %v2338 = vadd.f32 %v2300, %v2309
        %v2339 = vadd.f32 %v2301, %v2309
        %v2340 = vadd.f32 %v2302, %v2309
        %v2341 = vadd.f32 %v2303, %v2309
        %v2342 = vadd.f32 %v2304, %v2309
        %v2344 = vlaneseq
        %v2345 = vshrl.u32 %v2344, 7
        %v2346 = vsub.s32 0, %v2345
        %v2347 = vrot.slane %v1753, %v2346
        %v2348 = vlaneseq
        %v2349 = vshrl.u32 %v2348, 7
        %v2350 = vsub.s32 1, %v2349
        %v2351 = vrot.slane %v1753, %v2350
        %2354 = vmatprep.subr.mxu0 %v1786
        %2355 = vmatpush1.msra.mxu0 %v1785
        %2356 = vmatprep.subr.mxu0 %v1784
        %2357 = vmatpush1.msra.mxu0 %v1783
        %2358 = vmatprep.subr.mxu0 %v1782
        %2359 = vmatpush1.msra.mxu0 %v1781
        %2360 = vmatprep.subr.mxu0 %v1780
        %2361 = vmatpush1.msra.mxu0 %v1779
        %2362 = vmatprep.subr.mxu0 %v1778
        %2363 = vmatpush1.msra.mxu0 %v1777
        %2364 = vmatprep.subr.mxu0 %v1776
        %2365 = vmatpush1.msra.mxu0 %v1775
        %2366 = vmatprep.subr.mxu0 %v1774
        %2367 = vmatpush1.msra.mxu0 %v1773
        %2368 = vmatprep.subr.mxu0 %v1772
        %2369 = vmatpush1.msra.mxu0 %v1771
        %2370 = vmatprep.subr.mxu0 %v1770
        %2371 = vmatpush1.msra.mxu0 %v1769
        %2372 = vmatprep.subr.mxu0 %v1768
        %2373 = vmatpush1.msra.mxu0 %v1767
        %2374 = vmatprep.subr.mxu0 %v1766
        %2375 = vmatpush1.msra.mxu0 %v1765
        %2376 = vmatprep.subr.mxu0 %v1764
        %2377 = vmatpush1.msra.mxu0 %v1763
        %2378 = vmatprep.subr.mxu0 %v1762
        %2379 = vmatpush1.msra.mxu0 %v1761
        %2380 = vmatprep.subr.mxu0 %v1760
        %2381 = vmatpush1.msra.mxu0 %v1759
        %2382 = vmatprep.subr.mxu0 %v1758
        %2383 = vmatpush1.msra.mxu0 %v1757
        %2384 = vmatprep.subr.mxu0 %v1756
        %2385 = vmatpush1.msra.mxu0 %v1755
        %2386 = vmatprep.subr.mxu0 0.0
        %2387 = vmatpush2.msra.mxu0 0.0
        %2388 = vmatprep.subr.mxu0 0.0
        %2389 = vmatpush2.msra.mxu0 0.0
        %2390 = vmatprep.subr.mxu0 0.0
        %2391 = vmatpush2.msra.mxu0 0.0
        %2392 = vmatprep.subr.mxu0 0.0
        %2393 = vmatpush2.msra.mxu0 0.0
        %2394 = vmatprep.subr.mxu0 0.0
        %2395 = vmatpush2.msra.mxu0 0.0
        %2396 = vmatprep.subr.mxu0 0.0
        %2397 = vmatpush2.msra.mxu0 0.0
        %2398 = vmatprep.subr.mxu0 0.0
        %2399 = vmatpush2.msra.mxu0 0.0
        %2400 = vmatprep.subr.mxu0 0.0
        %2401 = vmatpush2.msra.mxu0 0.0
        %2402 = vmatprep.subr.mxu0 0.0
        %2403 = vmatpush2.msra.mxu0 0.0
        %2404 = vmatprep.subr.mxu0 0.0
        %2405 = vmatpush2.msra.mxu0 0.0
        %2406 = vmatprep.subr.mxu0 0.0
        %2407 = vmatpush2.msra.mxu0 0.0
        %2408 = vmatprep.subr.mxu0 0.0
        %2409 = vmatpush2.msra.mxu0 0.0
        %2410 = vmatprep.subr.mxu0 0.0
        %2411 = vmatpush2.msra.mxu0 0.0
        %2412 = vmatprep.subr.mxu0 0.0
        %2413 = vmatpush2.msra.mxu0 0.0
        %2414 = vmatprep.subr.mxu0 0.0
        %2415 = vmatpush2.msra.mxu0 0.0
        %2416 = vmatprep.subr.mxu0 0.0
        %2417 = vmatpush2.msra.mxu0 0.0
        %2418 = vmatprep.mubr.f32.mxu0 0.0
        %2419 = vmatmul.mubr.f32.gmra.mxu0 %v2311
        %v2420 = vpop.f32.mrf.mxu0
        %v2421 = vadd.f32 %v2347, %v2420
        %v2422 = vpop.f32.mrf.mxu0
        %v2423 = vadd.f32 %v2351, %v2422
        %2424 = vmatprep.mubr.f32.mxu0 0.0
        %2425 = vmatmul.mubr.f32.gmra.mxu0 %v2312
        %v2426 = vpop.f32.mrf.mxu0
        %v2427 = vadd.f32 %v2347, %v2426
        %v2428 = vpop.f32.mrf.mxu0
        %v2429 = vadd.f32 %v2351, %v2428
        %2430 = vmatprep.mubr.f32.mxu0 0.0
        %2431 = vmatmul.mubr.f32.gmra.mxu0 %v2313
        %v2432 = vpop.f32.mrf.mxu0
        %v2433 = vadd.f32 %v2347, %v2432
        %v2434 = vpop.f32.mrf.mxu0
        %v2435 = vadd.f32 %v2351, %v2434
        %2436 = vmatprep.mubr.f32.mxu0 0.0
        %2437 = vmatmul.mubr.f32.gmra.mxu0 %v2314
        %v2438 = vpop.f32.mrf.mxu0
        %v2439 = vadd.f32 %v2347, %v2438
        %v2440 = vpop.f32.mrf.mxu0
        %v2441 = vadd.f32 %v2351, %v2440
        %2442 = vmatprep.mubr.f32.mxu0 0.0
        %2443 = vmatmul.mubr.f32.gmra.mxu0 %v2315
        %v2444 = vpop.f32.mrf.mxu0
        %v2445 = vadd.f32 %v2347, %v2444
        %v2446 = vpop.f32.mrf.mxu0
        %v2447 = vadd.f32 %v2351, %v2446
        %2448 = vmatprep.mubr.f32.mxu0 0.0
        %2449 = vmatmul.mubr.f32.gmra.mxu0 %v2316
        %v2450 = vpop.f32.mrf.mxu0
        %v2451 = vadd.f32 %v2347, %v2450
        %v2452 = vpop.f32.mrf.mxu0
        %v2453 = vadd.f32 %v2351, %v2452
        %2454 = vmatprep.mubr.f32.mxu0 0.0
        %2455 = vmatmul.mubr.f32.gmra.mxu0 %v2317
        %v2456 = vpop.f32.mrf.mxu0
        %v2457 = vadd.f32 %v2347, %v2456
        %v2458 = vpop.f32.mrf.mxu0
        %v2459 = vadd.f32 %v2351, %v2458
        %2460 = vmatprep.mubr.f32.mxu0 0.0
        %2461 = vmatmul.mubr.f32.gmra.mxu0 %v2318
        %v2462 = vpop.f32.mrf.mxu0
        %v2463 = vadd.f32 %v2347, %v2462
        %v2464 = vpop.f32.mrf.mxu0
        %v2465 = vadd.f32 %v2351, %v2464
        %2466 = vmatprep.mubr.f32.mxu0 0.0
        %2467 = vmatmul.mubr.f32.gmra.mxu0 %v2319
        %v2468 = vpop.f32.mrf.mxu0
        %v2469 = vadd.f32 %v2347, %v2468
        %v2470 = vpop.f32.mrf.mxu0
        %v2471 = vadd.f32 %v2351, %v2470
        %2472 = vmatprep.mubr.f32.mxu0 0.0
        %2473 = vmatmul.mubr.f32.gmra.mxu0 %v2320
        %v2474 = vpop.f32.mrf.mxu0
        %v2475 = vadd.f32 %v2347, %v2474
        %v2476 = vpop.f32.mrf.mxu0
        %v2477 = vadd.f32 %v2351, %v2476
        %2478 = vmatprep.mubr.f32.mxu0 0.0
        %2479 = vmatmul.mubr.f32.gmra.mxu0 %v2321
        %v2480 = vpop.f32.mrf.mxu0
        %v2481 = vadd.f32 %v2347, %v2480
        %v2482 = vpop.f32.mrf.mxu0
        %v2483 = vadd.f32 %v2351, %v2482
        %2484 = vmatprep.mubr.f32.mxu0 0.0
        %2485 = vmatmul.mubr.f32.gmra.mxu0 %v2322
        %v2486 = vpop.f32.mrf.mxu0
        %v2487 = vadd.f32 %v2347, %v2486
        %v2488 = vpop.f32.mrf.mxu0
        %v2489 = vadd.f32 %v2351, %v2488
        %2490 = vmatprep.mubr.f32.mxu0 0.0
        %2491 = vmatmul.mubr.f32.gmra.mxu0 %v2323
        %v2492 = vpop.f32.mrf.mxu0
        %v2493 = vadd.f32 %v2347, %v2492
        %v2494 = vpop.f32.mrf.mxu0
        %v2495 = vadd.f32 %v2351, %v2494
        %2496 = vmatprep.mubr.f32.mxu0 0.0
        %2497 = vmatmul.mubr.f32.gmra.mxu0 %v2324
        %v2498 = vpop.f32.mrf.mxu0
        %v2499 = vadd.f32 %v2347, %v2498
        %v2500 = vpop.f32.mrf.mxu0
        %v2501 = vadd.f32 %v2351, %v2500
        %2502 = vmatprep.mubr.f32.mxu0 0.0
        %2503 = vmatmul.mubr.f32.gmra.mxu0 %v2325
        %v2504 = vpop.f32.mrf.mxu0
        %v2505 = vadd.f32 %v2347, %v2504
        %v2506 = vpop.f32.mrf.mxu0
        %v2507 = vadd.f32 %v2351, %v2506
        %2508 = vmatprep.mubr.f32.mxu0 0.0
        %2509 = vmatmul.mubr.f32.gmra.mxu0 %v2326
        %v2510 = vpop.f32.mrf.mxu0
        %v2511 = vadd.f32 %v2347, %v2510
        %v2512 = vpop.f32.mrf.mxu0
        %v2513 = vadd.f32 %v2351, %v2512
        %2514 = vmatprep.mubr.f32.mxu0 0.0
        %2515 = vmatmul.mubr.f32.gmra.mxu0 %v2327
        %v2516 = vpop.f32.mrf.mxu0
        %v2517 = vadd.f32 %v2347, %v2516
        %v2518 = vpop.f32.mrf.mxu0
        %v2519 = vadd.f32 %v2351, %v2518
        %2520 = vmatprep.mubr.f32.mxu0 0.0
        %2521 = vmatmul.mubr.f32.gmra.mxu0 %v2328
        %v2522 = vpop.f32.mrf.mxu0
        %v2523 = vadd.f32 %v2347, %v2522
        %v2524 = vpop.f32.mrf.mxu0
        %v2525 = vadd.f32 %v2351, %v2524
        %2526 = vmatprep.mubr.f32.mxu0 0.0
        %2527 = vmatmul.mubr.f32.gmra.mxu0 %v2329
        %v2528 = vpop.f32.mrf.mxu0
        %v2529 = vadd.f32 %v2347, %v2528
        %v2530 = vpop.f32.mrf.mxu0
        %v2531 = vadd.f32 %v2351, %v2530
        %2532 = vmatprep.mubr.f32.mxu0 0.0
        %2533 = vmatmul.mubr.f32.gmra.mxu0 %v2330
        %v2534 = vpop.f32.mrf.mxu0
        %v2535 = vadd.f32 %v2347, %v2534
        %v2536 = vpop.f32.mrf.mxu0
        %v2537 = vadd.f32 %v2351, %v2536
        %2538 = vmatprep.mubr.f32.mxu0 0.0
        %2539 = vmatmul.mubr.f32.gmra.mxu0 %v2331
        %v2540 = vpop.f32.mrf.mxu0
        %v2541 = vadd.f32 %v2347, %v2540
        %v2542 = vpop.f32.mrf.mxu0
        %v2543 = vadd.f32 %v2351, %v2542
        %2544 = vmatprep.mubr.f32.mxu0 0.0
        %2545 = vmatmul.mubr.f32.gmra.mxu0 %v2332
        %v2546 = vpop.f32.mrf.mxu0
        %v2547 = vadd.f32 %v2347, %v2546
        %v2548 = vpop.f32.mrf.mxu0
        %v2549 = vadd.f32 %v2351, %v2548
        %2550 = vmatprep.mubr.f32.mxu0 0.0
        %2551 = vmatmul.mubr.f32.gmra.mxu0 %v2333
        %v2552 = vpop.f32.mrf.mxu0
        %v2553 = vadd.f32 %v2347, %v2552
        %v2554 = vpop.f32.mrf.mxu0
        %v2555 = vadd.f32 %v2351, %v2554
        %2556 = vmatprep.mubr.f32.mxu0 0.0
        %2557 = vmatmul.mubr.f32.gmra.mxu0 %v2334
        %v2558 = vpop.f32.mrf.mxu0
        %v2559 = vadd.f32 %v2347, %v2558
        %v2560 = vpop.f32.mrf.mxu0
        %v2561 = vadd.f32 %v2351, %v2560
        %2562 = vmatprep.mubr.f32.mxu0 0.0
        %2563 = vmatmul.mubr.f32.gmra.mxu0 %v2335
        %v2564 = vpop.f32.mrf.mxu0
        %v2565 = vadd.f32 %v2347, %v2564
        %v2566 = vpop.f32.mrf.mxu0
        %v2567 = vadd.f32 %v2351, %v2566
        %2568 = vmatprep.mubr.f32.mxu0 0.0
        %2569 = vmatmul.mubr.f32.gmra.mxu0 %v2336
        %v2570 = vpop.f32.mrf.mxu0
        %v2571 = vadd.f32 %v2347, %v2570
        %v2572 = vpop.f32.mrf.mxu0
        %v2573 = vadd.f32 %v2351, %v2572
        %2574 = vmatprep.mubr.f32.mxu0 0.0
        %2575 = vmatmul.mubr.f32.gmra.mxu0 %v2337
        %v2576 = vpop.f32.mrf.mxu0
        %v2577 = vadd.f32 %v2347, %v2576
        %v2578 = vpop.f32.mrf.mxu0
        %v2579 = vadd.f32 %v2351, %v2578
        %2580 = vmatprep.mubr.f32.mxu0 0.0
        %2581 = vmatmul.mubr.f32.gmra.mxu0 %v2338
        %v2582 = vpop.f32.mrf.mxu0
        %v2583 = vadd.f32 %v2347, %v2582
        %v2584 = vpop.f32.mrf.mxu0
        %v2585 = vadd.f32 %v2351, %v2584
        %2586 = vmatprep.mubr.f32.mxu0 0.0
        %2587 = vmatmul.mubr.f32.gmra.mxu0 %v2339
        %v2588 = vpop.f32.mrf.mxu0
        %v2589 = vadd.f32 %v2347, %v2588
        %v2590 = vpop.f32.mrf.mxu0
        %v2591 = vadd.f32 %v2351, %v2590
        %2592 = vmatprep.mubr.f32.mxu0 0.0
        %2593 = vmatmul.mubr.f32.gmra.mxu0 %v2340
        %v2594 = vpop.f32.mrf.mxu0
        %v2595 = vadd.f32 %v2347, %v2594
        %v2596 = vpop.f32.mrf.mxu0
        %v2597 = vadd.f32 %v2351, %v2596
        %2598 = vmatprep.mubr.f32.mxu0 0.0
        %2599 = vmatmul.mubr.f32.gmra.mxu0 %v2341
        %v2600 = vpop.f32.mrf.mxu0
        %v2601 = vadd.f32 %v2347, %v2600
        %v2602 = vpop.f32.mrf.mxu0
        %v2603 = vadd.f32 %v2351, %v2602
        %2604 = vmatprep.mubr.f32.mxu0 0.0
        %2605 = vmatmul.mubr.f32.gmra.mxu0 %v2342
        %v2606 = vpop.f32.mrf.mxu0
        %v2607 = vadd.f32 %v2347, %v2606
        %v2608 = vpop.f32.mrf.mxu0
        %v2609 = vadd.f32 %v2351, %v2608
        %2610 = vdwg.mxu0
        %v2611 = vmax.f32 %v2421, 0.0
        %v2612 = vmax.f32 %v2423, 0.0
        %v2613 = vmax.f32 %v2427, 0.0
        %v2614 = vmax.f32 %v2429, 0.0
        %v2615 = vmax.f32 %v2433, 0.0
        %v2616 = vmax.f32 %v2435, 0.0
        %v2617 = vmax.f32 %v2439, 0.0
        %v2618 = vmax.f32 %v2441, 0.0
        %v2619 = vmax.f32 %v2445, 0.0
        %v2620 = vmax.f32 %v2447, 0.0
        %v2621 = vmax.f32 %v2451, 0.0
        %v2622 = vmax.f32 %v2453, 0.0
        %v2623 = vmax.f32 %v2457, 0.0
        %v2624 = vmax.f32 %v2459, 0.0
        %v2625 = vmax.f32 %v2463, 0.0
        %v2626 = vmax.f32 %v2465, 0.0
        %v2627 = vmax.f32 %v2469, 0.0
        %v2628 = vmax.f32 %v2471, 0.0
        %v2629 = vmax.f32 %v2475, 0.0
        %v2630 = vmax.f32 %v2477, 0.0
        %v2631 = vmax.f32 %v2481, 0.0
        %v2632 = vmax.f32 %v2483, 0.0
        %v2633 = vmax.f32 %v2487, 0.0
        %v2634 = vmax.f32 %v2489, 0.0
        %v2635 = vmax.f32 %v2493, 0.0
        %v2636 = vmax.f32 %v2495, 0.0
        %v2637 = vmax.f32 %v2499, 0.0
        %v2638 = vmax.f32 %v2501, 0.0
        %v2639 = vmax.f32 %v2505, 0.0
        %v2640 = vmax.f32 %v2507, 0.0
        %v2641 = vmax.f32 %v2511, 0.0
        %v2642 = vmax.f32 %v2513, 0.0
        %v2643 = vmax.f32 %v2517, 0.0
        %v2644 = vmax.f32 %v2519, 0.0
        %v2645 = vmax.f32 %v2523, 0.0
        %v2646 = vmax.f32 %v2525, 0.0
        %v2647 = vmax.f32 %v2529, 0.0
        %v2648 = vmax.f32 %v2531, 0.0
        %v2649 = vmax.f32 %v2535, 0.0
        %v2650 = vmax.f32 %v2537, 0.0
        %v2651 = vmax.f32 %v2541, 0.0
        %v2652 = vmax.f32 %v2543, 0.0
        %v2653 = vmax.f32 %v2547, 0.0
        %v2654 = vmax.f32 %v2549, 0.0
        %v2655 = vmax.f32 %v2553, 0.0
        %v2656 = vmax.f32 %v2555, 0.0
        %v2657 = vmax.f32 %v2559, 0.0
        %v2658 = vmax.f32 %v2561, 0.0
        %v2659 = vmax.f32 %v2565, 0.0
        %v2660 = vmax.f32 %v2567, 0.0
        %v2661 = vmax.f32 %v2571, 0.0
        %v2662 = vmax.f32 %v2573, 0.0
        %v2663 = vmax.f32 %v2577, 0.0
        %v2664 = vmax.f32 %v2579, 0.0
        %v2665 = vmax.f32 %v2583, 0.0
        %v2666 = vmax.f32 %v2585, 0.0
        %v2667 = vmax.f32 %v2589, 0.0
        %v2668 = vmax.f32 %v2591, 0.0
        %v2669 = vmax.f32 %v2595, 0.0
        %v2670 = vmax.f32 %v2597, 0.0
        %v2671 = vmax.f32 %v2601, 0.0
        %v2672 = vmax.f32 %v2603, 0.0
        %v2673 = vmax.f32 %v2607, 0.0
        %v2674 = vmax.f32 %v2609, 0.0
        %v2676 = vlaneseq
        %v2677 = vshrl.u32 %v2676, 7
        %v2678 = vsub.s32 0, %v2677
        %v2679 = vrot.slane %v1754, %v2678
        %2681 = vmatprep.subr.mxu0 0.0
        %2682 = vmatpush1.msra.mxu0 %v1802
        %2683 = vmatprep.subr.mxu0 0.0
        %2684 = vmatpush1.msra.mxu0 %v1801
        %2685 = vmatprep.subr.mxu0 0.0
        %2686 = vmatpush1.msra.mxu0 %v1800
        %2687 = vmatprep.subr.mxu0 0.0
        %2688 = vmatpush1.msra.mxu0 %v1799
        %2689 = vmatprep.subr.mxu0 0.0
        %2690 = vmatpush1.msra.mxu0 %v1798
        %2691 = vmatprep.subr.mxu0 0.0
        %2692 = vmatpush1.msra.mxu0 %v1797
        %2693 = vmatprep.subr.mxu0 0.0
        %2694 = vmatpush1.msra.mxu0 %v1796
        %2695 = vmatprep.subr.mxu0 0.0
        %2696 = vmatpush1.msra.mxu0 %v1795
        %2697 = vmatprep.subr.mxu0 0.0
        %2698 = vmatpush1.msra.mxu0 %v1794
        %2699 = vmatprep.subr.mxu0 0.0
        %2700 = vmatpush1.msra.mxu0 %v1793
        %2701 = vmatprep.subr.mxu0 0.0
        %2702 = vmatpush1.msra.mxu0 %v1792
        %2703 = vmatprep.subr.mxu0 0.0
        %2704 = vmatpush1.msra.mxu0 %v1791
        %2705 = vmatprep.subr.mxu0 0.0
        %2706 = vmatpush1.msra.mxu0 %v1790
        %2707 = vmatprep.subr.mxu0 0.0
        %2708 = vmatpush1.msra.mxu0 %v1789
        %2709 = vmatprep.subr.mxu0 0.0
        %2710 = vmatpush1.msra.mxu0 %v1788
        %2711 = vmatprep.subr.mxu0 0.0
        %2712 = vmatpush1.msra.mxu0 %v1787
        %2713 = vmatprep.subr.mxu0 0.0
        %2714 = vmatpush2.msra.mxu0 %v1818
        %2715 = vmatprep.subr.mxu0 0.0
        %2716 = vmatpush2.msra.mxu0 %v1817
        %2717 = vmatprep.subr.mxu0 0.0
        %2718 = vmatpush2.msra.mxu0 %v1816
        %2719 = vmatprep.subr.mxu0 0.0
        %2720 = vmatpush2.msra.mxu0 %v1815
        %2721 = vmatprep.subr.mxu0 0.0
        %2722 = vmatpush2.msra.mxu0 %v1814
        %2723 = vmatprep.subr.mxu0 0.0
        %2724 = vmatpush2.msra.mxu0 %v1813
        %2725 = vmatprep.subr.mxu0 0.0
        %2726 = vmatpush2.msra.mxu0 %v1812
        %2727 = vmatprep.subr.mxu0 0.0
        %2728 = vmatpush2.msra.mxu0 %v1811
        %2729 = vmatprep.subr.mxu0 0.0
        %2730 = vmatpush2.msra.mxu0 %v1810
        %2731 = vmatprep.subr.mxu0 0.0
        %2732 = vmatpush2.msra.mxu0 %v1809
        %2733 = vmatprep.subr.mxu0 0.0
        %2734 = vmatpush2.msra.mxu0 %v1808
        %2735 = vmatprep.subr.mxu0 0.0
        %2736 = vmatpush2.msra.mxu0 %v1807
        %2737 = vmatprep.subr.mxu0 0.0
        %2738 = vmatpush2.msra.mxu0 %v1806
        %2739 = vmatprep.subr.mxu0 0.0
        %2740 = vmatpush2.msra.mxu0 %v1805
        %2741 = vmatprep.subr.mxu0 0.0
        %2742 = vmatpush2.msra.mxu0 %v1804
        %2743 = vmatprep.subr.mxu0 0.0
        %2744 = vmatpush2.msra.mxu0 %v1803
        %2745 = vmatprep.mubr.f32.mxu0 %v2612
        %2746 = vmatmul.mubr.f32.gmra.mxu0 %v2611
        %v2747 = vpop.f32.mrf.mxu0
        %v2748 = vadd.f32 %v2679, %v2747
        %v2749 = vpop.f32.mrf.mxu0
        %2750 = vmatprep.mubr.f32.mxu0 %v2614
        %2751 = vmatmul.mubr.f32.gmra.mxu0 %v2613
        %v2752 = vpop.f32.mrf.mxu0
        %v2753 = vadd.f32 %v2679, %v2752
        %v2754 = vpop.f32.mrf.mxu0
        %2755 = vmatprep.mubr.f32.mxu0 %v2616
        %2756 = vmatmul.mubr.f32.gmra.mxu0 %v2615
        %v2757 = vpop.f32.mrf.mxu0
        %v2758 = vadd.f32 %v2679, %v2757
        %v2759 = vpop.f32.mrf.mxu0
        %2760 = vmatprep.mubr.f32.mxu0 %v2618
        %2761 = vmatmul.mubr.f32.gmra.mxu0 %v2617
        %v2762 = vpop.f32.mrf.mxu0
        %v2763 = vadd.f32 %v2679, %v2762
        %v2764 = vpop.f32.mrf.mxu0
        %2765 = vmatprep.mubr.f32.mxu0 %v2620
        %2766 = vmatmul.mubr.f32.gmra.mxu0 %v2619
        %v2767 = vpop.f32.mrf.mxu0
        %v2768 = vadd.f32 %v2679, %v2767
        %v2769 = vpop.f32.mrf.mxu0
        %2770 = vmatprep.mubr.f32.mxu0 %v2622
        %2771 = vmatmul.mubr.f32.gmra.mxu0 %v2621
        %v2772 = vpop.f32.mrf.mxu0
        %v2773 = vadd.f32 %v2679, %v2772
        %v2774 = vpop.f32.mrf.mxu0
        %2775 = vmatprep.mubr.f32.mxu0 %v2624
        %2776 = vmatmul.mubr.f32.gmra.mxu0 %v2623
        %v2777 = vpop.f32.mrf.mxu0
        %v2778 = vadd.f32 %v2679, %v2777
        %v2779 = vpop.f32.mrf.mxu0
        %2780 = vmatprep.mubr.f32.mxu0 %v2626
        %2781 = vmatmul.mubr.f32.gmra.mxu0 %v2625
        %v2782 = vpop.f32.mrf.mxu0
        %v2783 = vadd.f32 %v2679, %v2782
        %v2784 = vpop.f32.mrf.mxu0
        %2785 = vmatprep.mubr.f32.mxu0 %v2628
        %2786 = vmatmul.mubr.f32.gmra.mxu0 %v2627
        %v2787 = vpop.f32.mrf.mxu0
        %v2788 = vadd.f32 %v2679, %v2787
        %v2789 = vpop.f32.mrf.mxu0
        %2790 = vmatprep.mubr.f32.mxu0 %v2630
        %2791 = vmatmul.mubr.f32.gmra.mxu0 %v2629
        %v2792 = vpop.f32.mrf.mxu0
        %v2793 = vadd.f32 %v2679, %v2792
        %v2794 = vpop.f32.mrf.mxu0
        %2795 = vmatprep.mubr.f32.mxu0 %v2632
        %2796 = vmatmul.mubr.f32.gmra.mxu0 %v2631
        %v2797 = vpop.f32.mrf.mxu0
        %v2798 = vadd.f32 %v2679, %v2797
        %v2799 = vpop.f32.mrf.mxu0
        %2800 = vmatprep.mubr.f32.mxu0 %v2634
        %2801 = vmatmul.mubr.f32.gmra.mxu0 %v2633
        %v2802 = vpop.f32.mrf.mxu0
        %v2803 = vadd.f32 %v2679, %v2802
        %v2804 = vpop.f32.mrf.mxu0
        %2805 = vmatprep.mubr.f32.mxu0 %v2636
        %2806 = vmatmul.mubr.f32.gmra.mxu0 %v2635
        %v2807 = vpop.f32.mrf.mxu0
        %v2808 = vadd.f32 %v2679, %v2807
        %v2809 = vpop.f32.mrf.mxu0
        %2810 = vmatprep.mubr.f32.mxu0 %v2638
        %2811 = vmatmul.mubr.f32.gmra.mxu0 %v2637
        %v2812 = vpop.f32.mrf.mxu0
        %v2813 = vadd.f32 %v2679, %v2812
        %v2814 = vpop.f32.mrf.mxu0
        %2815 = vmatprep.mubr.f32.mxu0 %v2640
        %2816 = vmatmul.mubr.f32.gmra.mxu0 %v2639
        %v2817 = vpop.f32.mrf.mxu0
        %v2818 = vadd.f32 %v2679, %v2817
        %v2819 = vpop.f32.mrf.mxu0
        %2820 = vmatprep.mubr.f32.mxu0 %v2642
        %2821 = vmatmul.mubr.f32.gmra.mxu0 %v2641
        %v2822 = vpop.f32.mrf.mxu0
        %v2823 = vadd.f32 %v2679, %v2822
        %v2824 = vpop.f32.mrf.mxu0
        %2825 = vmatprep.mubr.f32.mxu0 %v2644
        %2826 = vmatmul.mubr.f32.gmra.mxu0 %v2643
        %v2827 = vpop.f32.mrf.mxu0
        %v2828 = vadd.f32 %v2679, %v2827
        %v2829 = vpop.f32.mrf.mxu0
        %2830 = vmatprep.mubr.f32.mxu0 %v2646
        %2831 = vmatmul.mubr.f32.gmra.mxu0 %v2645
        %v2832 = vpop.f32.mrf.mxu0
        %v2833 = vadd.f32 %v2679, %v2832
        %v2834 = vpop.f32.mrf.mxu0
        %2835 = vmatprep.mubr.f32.mxu0 %v2648
        %2836 = vmatmul.mubr.f32.gmra.mxu0 %v2647
        %v2837 = vpop.f32.mrf.mxu0
        %v2838 = vadd.f32 %v2679, %v2837
        %v2839 = vpop.f32.mrf.mxu0
        %2840 = vmatprep.mubr.f32.mxu0 %v2650
        %2841 = vmatmul.mubr.f32.gmra.mxu0 %v2649
        %v2842 = vpop.f32.mrf.mxu0
        %v2843 = vadd.f32 %v2679, %v2842
        %v2844 = vpop.f32.mrf.mxu0
        %2845 = vmatprep.mubr.f32.mxu0 %v2652
        %2846 = vmatmul.mubr.f32.gmra.mxu0 %v2651
        %v2847 = vpop.f32.mrf.mxu0
        %v2848 = vadd.f32 %v2679, %v2847
        %v2849 = vpop.f32.mrf.mxu0
        %2850 = vmatprep.mubr.f32.mxu0 %v2654
        %2851 = vmatmul.mubr.f32.gmra.mxu0 %v2653
        %v2852 = vpop.f32.mrf.mxu0
        %v2853 = vadd.f32 %v2679, %v2852
        %v2854 = vpop.f32.mrf.mxu0
        %2855 = vmatprep.mubr.f32.mxu0 %v2656
        %2856 = vmatmul.mubr.f32.gmra.mxu0 %v2655
        %v2857 = vpop.f32.mrf.mxu0
        %v2858 = vadd.f32 %v2679, %v2857
        %v2859 = vpop.f32.mrf.mxu0
        %2860 = vmatprep.mubr.f32.mxu0 %v2658
        %2861 = vmatmul.mubr.f32.gmra.mxu0 %v2657
        %v2862 = vpop.f32.mrf.mxu0
        %v2863 = vadd.f32 %v2679, %v2862
        %v2864 = vpop.f32.mrf.mxu0
        %2865 = vmatprep.mubr.f32.mxu0 %v2660
        %2866 = vmatmul.mubr.f32.gmra.mxu0 %v2659
        %v2867 = vpop.f32.mrf.mxu0
        %v2868 = vadd.f32 %v2679, %v2867
        %v2869 = vpop.f32.mrf.mxu0
        %2870 = vmatprep.mubr.f32.mxu0 %v2662
        %2871 = vmatmul.mubr.f32.gmra.mxu0 %v2661
        %v2872 = vpop.f32.mrf.mxu0
        %v2873 = vadd.f32 %v2679, %v2872
        %v2874 = vpop.f32.mrf.mxu0
        %2875 = vmatprep.mubr.f32.mxu0 %v2664
        %2876 = vmatmul.mubr.f32.gmra.mxu0 %v2663
        %v2877 = vpop.f32.mrf.mxu0
        %v2878 = vadd.f32 %v2679, %v2877
        %v2879 = vpop.f32.mrf.mxu0
        %2880 = vmatprep.mubr.f32.mxu0 %v2666
        %2881 = vmatmul.mubr.f32.gmra.mxu0 %v2665
        %v2882 = vpop.f32.mrf.mxu0
        %v2883 = vadd.f32 %v2679, %v2882
        %v2884 = vpop.f32.mrf.mxu0
        %2885 = vmatprep.mubr.f32.mxu0 %v2668
        %2886 = vmatmul.mubr.f32.gmra.mxu0 %v2667
        %v2887 = vpop.f32.mrf.mxu0
        %v2888 = vadd.f32 %v2679, %v2887
        %v2889 = vpop.f32.mrf.mxu0
        %2890 = vmatprep.mubr.f32.mxu0 %v2670
        %2891 = vmatmul.mubr.f32.gmra.mxu0 %v2669
        %v2892 = vpop.f32.mrf.mxu0
        %v2893 = vadd.f32 %v2679, %v2892
        %v2894 = vpop.f32.mrf.mxu0
        %2895 = vmatprep.mubr.f32.mxu0 %v2672
        %2896 = vmatmul.mubr.f32.gmra.mxu0 %v2671
        %v2897 = vpop.f32.mrf.mxu0
        %v2898 = vadd.f32 %v2679, %v2897
        %v2899 = vpop.f32.mrf.mxu0
        %2900 = vmatprep.mubr.f32.mxu0 %v2674
        %2901 = vmatmul.mubr.f32.gmra.mxu0 %v2673
        %v2902 = vpop.f32.mrf.mxu0
        %v2903 = vadd.f32 %v2679, %v2902
        %v2904 = vpop.f32.mrf.mxu0
        %2905 = vdwg.mxu0
        %v2906 = vadd.f32 %v1719, %v2748
        %v2907 = vadd.f32 %v1720, %v2753
        %v2908 = vadd.f32 %v1721, %v2758
        %v2909 = vadd.f32 %v1722, %v2763
        %v2910 = vadd.f32 %v1723, %v2768
        %v2911 = vadd.f32 %v1724, %v2773
        %v2912 = vadd.f32 %v1725, %v2778
        %v2913 = vadd.f32 %v1726, %v2783
        %v2914 = vadd.f32 %v1727, %v2788
        %v2915 = vadd.f32 %v1728, %v2793
        %v2916 = vadd.f32 %v1729, %v2798
        %v2917 = vadd.f32 %v1730, %v2803
        %v2918 = vadd.f32 %v1731, %v2808
        %v2919 = vadd.f32 %v1732, %v2813
        %v2920 = vadd.f32 %v1733, %v2818
        %v2921 = vadd.f32 %v1734, %v2823
        %v2922 = vadd.f32 %v1735, %v2828
        %v2923 = vadd.f32 %v1736, %v2833
        %v2924 = vadd.f32 %v1737, %v2838
        %v2925 = vadd.f32 %v1738, %v2843
        %v2926 = vadd.f32 %v1739, %v2848
        %v2927 = vadd.f32 %v1740, %v2853
        %v2928 = vadd.f32 %v1741, %v2858
        %v2929 = vadd.f32 %v1742, %v2863
        %v2930 = vadd.f32 %v1743, %v2868
        %v2931 = vadd.f32 %v1744, %v2873
        %v2932 = vadd.f32 %v1745, %v2878
        %v2933 = vadd.f32 %v1746, %v2883
        %v2934 = vadd.f32 %v1747, %v2888
        %v2935 = vadd.f32 %v1748, %v2893
        %v2936 = vadd.f32 %v1749, %v2898
        %v2937 = vadd.f32 %v1750, %v2903
        %2938 = vst [vmem:[%s529] sm:$0xff] %v2906
        %2939 = vst [vmem:[%s529 + $0x8] sm:$0xff] %v2907
        %2940 = vst [vmem:[%s529 + $0x10] sm:$0xff] %v2908
        %2941 = vst [vmem:[%s529 + $0x18] sm:$0xff] %v2909
        %2942 = vst [vmem:[%s529 + $0x20] sm:$0xff] %v2910
        %2943 = vst [vmem:[%s529 + $0x28] sm:$0xff] %v2911
        %2944 = vst [vmem:[%s529 + $0x30] sm:$0xff] %v2912
        %2945 = vst [vmem:[%s529 + $0x38] sm:$0xff] %v2913
        %2946 = vst [vmem:[%s529 + $0x40] sm:$0xff] %v2914
        %2947 = vst [vmem:[%s529 + $0x48] sm:$0xff] %v2915
        %2948 = vst [vmem:[%s529 + $0x50] sm:$0xff] %v2916
        %2949 = vst [vmem:[%s529 + $0x58] sm:$0xff] %v2917
        %2950 = vst [vmem:[%s529 + $0x60] sm:$0xff] %v2918
        %2951 = vst [vmem:[%s529 + $0x68] sm:$0xff] %v2919
        %2952 = vst [vmem:[%s529 + $0x70] sm:$0xff] %v2920
        %2953 = vst [vmem:[%s529 + $0x78] sm:$0xff] %v2921
        %2954 = vst [vmem:[%s529 + $0x80] sm:$0xff] %v2922
        %2955 = vst [vmem:[%s529 + $0x88] sm:$0xff] %v2923
        %2956 = vst [vmem:[%s529 + $0x90] sm:$0xff] %v2924
        %2957 = vst [vmem:[%s529 + $0x98] sm:$0xff] %v2925
        %2958 = vst [vmem:[%s529 + $0xa0] sm:$0xff] %v2926
        %2959 = vst [vmem:[%s529 + $0xa8] sm:$0xff] %v2927
        %2960 = vst [vmem:[%s529 + $0xb0] sm:$0xff] %v2928
        %2961 = vst [vmem:[%s529 + $0xb8] sm:$0xff] %v2929
        %2962 = vst [vmem:[%s529 + $0xc0] sm:$0xff] %v2930
        %2963 = vst [vmem:[%s529 + $0xc8] sm:$0xff] %v2931
        %2964 = vst [vmem:[%s529 + $0xd0] sm:$0xff] %v2932
        %2965 = vst [vmem:[%s529 + $0xd8] sm:$0xff] %v2933
        %2966 = vst [vmem:[%s529 + $0xe0] sm:$0xff] %v2934
        %2967 = vst [vmem:[%s529 + $0xe8] sm:$0xff] %v2935
        %2968 = vst [vmem:[%s529 + $0xf0] sm:$0xff] %v2936
        %2969 = vst [vmem:[%s529 + $0xf8] sm:$0xff] %v2937
        %s2970 = sand.u32 %s319, 1
        %s2971 = scalar_lea.sflag [#allocation4], %s2970
        %s2972 = sand.u32 %s319, 1
        %s2973 = smul.addr %s2972, 256
        %s2974 = scalar_lea.vmem [#allocation13], %s2973
        // Predicated region
        $region97: #{tpu_custom_call.1} parent=71 // pred_check
          %p2975 = pneg %p329
        $region98: #{tpu_custom_call.1} parent=71 // pred_check_branch
          %2977 = sbr.rel (%p2975) target = $region100
        $region99: #{tpu_custom_call.1} parent=71 // pred_region
          %s2978 = smul.u32 32, %s33
          %s2980 = ssub.s32 4096, 4096
          %2981 = vsyncadd %s2971, %s2980
          %s2982 = smul.addr %s2978, 128
          %s2983 = scalar_lea.hbm %s13, %s2982
          %s2984 = sshll.u32 %s2974, 4
          %s2985 = int_to_ptr.vmem [resolvable:$true] %s2984
          %2990 = dma.vmem_to_hbm [thread:$0]  %s2985, 4096, %s2983, %s2971, 128, 128, 8
        $region100: #{tpu_custom_call.1} parent=71 // pred_fallthru
          _
      $region72: #{tpu_custom_call.1} parent=5 // pred_fallthru
        _
      %p2991 = scmp.le.s32.totalorder 2, %s28
      // Predicated region
      $region101: #{tpu_custom_call.1} parent=5 // pred_check
        %p2992 = pneg %p2991
      $region102: #{tpu_custom_call.1} parent=5 // pred_check_branch
        %2994 = sbr.rel (%p2992) target = $region104
      $region103: #{tpu_custom_call.1} parent=5 // pred_region
        %s2995 = ssub.s32 %s28, 2
        // Predicated region
        $region105: #{tpu_custom_call.1} parent=103 // pred_check
          %p2996 = pneg %p335
        $region106: #{tpu_custom_call.1} parent=103 // pred_check_branch
          %2998 = sbr.rel (%p2996) target = $region108
        $region107: #{tpu_custom_call.1} parent=103 // pred_region
          %s2999 = sand.u32 %s320, 1
          %s3000 = scalar_lea.sflag [#allocation4], %s2999
          %s3001 = sand.u32 %s320, 1
          %s3002 = smul.addr %s3001, 256
          %s3003 = scalar_lea.vmem [#allocation13], %s3002
          %3004 = dma.done %s3000, 4096
        $region108: #{tpu_custom_call.1} parent=103 // pred_fallthru
          _
      $region104: #{tpu_custom_call.1} parent=5 // pred_fallthru
        _
    $region6: #{tpu_custom_call.1} parent=1 // loop_footer
      %s32 = sadd.s32 1, %s28
    $region7: #{tpu_custom_call.1} parent=1 // loop_footer_branch
      %27 = sbr.rel target = $region3
    $region8: #{tpu_custom_call.1} parent=1 // loop_exit
      _
    %3005 = vsyncpa [#allocation3], 1
    %s3006 = scalar_lea.sflag [#allocation3], 1
    %3007 = vsyncpa %s3006, 1
    %3008 = vsyncpa [#allocation6], 1
    %3009 = vsyncpa [#allocation9], 1
    %3010 = vsyncpa [#allocation12], 1
    %3011 = vsyncpa [#allocation4], 1
    %s3012 = scalar_lea.sflag [#allocation4], 1
    %3013 = vsyncpa %s3012, 1

</llo_original>
